<compile_context>
chip_gen: v7x
topology: tpu7x:2x2x1
jax: 0.10.0
libtpu: 0.0.40
codegen_flags: <defaults>
</compile_context>

<pallas_src>
import functools

import numpy as np

import jax
import jax.numpy as jnp
from jax.experimental import pallas as pl
from jax.experimental.pallas import tpu as pltpu

IPV = 1e-6       # initial_posterior_variance
EPSILON = 1e-8   # kept for parity with the torch module (unused in forward)
NEG_BIG = -1e30  # bias for padded class columns -> exp() underflows to exact 0


# ------------------------------ Pallas kernel -------------------------------

def _conv_vcl_fused_kernel(xcol1_ref, tpad2_ref, tpad3_ref,
                           w1_ref, b1_ref, w2_ref, b2_ref, w3_ref, b3_ref,
                           wf1_ref, bf1_ref, wf2_ref, bf2_ref,
                           o_ref, *, N, H, W):
    """Full ConvVCL forward for one MC weight sample (grid axis = sample).

    xcol1_ref : (N*H*W, 9*Cin)  bf16   layer-1 im2col (built in the wrapper)
    tpad{2,3} : 0/1 selector matmuls realising zero padding for layers 2/3
    w*_ref    : (1, K, Cout)    bf16   per-sample stacked weights
    b*_ref    : (1, 1, Cout)    f32    per-sample stacked biases
    o_ref     : (1, N, ncls_pad) f32   per-sample softmax (class dim lane-padded)
    """
    f32 = jnp.float32
    bf16 = jnp.bfloat16

    def conv_bias_relu_pool(xcol, w_ref, b_ref, n, h, w):
        """One big-K MXU matmul + bias + ReLU + 2x2 max-pool."""
        cout = w_ref.shape[2]
        acc = jnp.dot(xcol, w_ref[0], preferred_element_type=f32)
        acc = jnp.maximum(acc + b_ref[0], 0.0)
        ho, wo = h // 2, w // 2
        acc = jnp.max(acc.reshape(n * ho, 2, w, cout), axis=1)       # pool H
        acc = jnp.max(acc.reshape(n * ho * wo, 2, cout), axis=1)     # pool W
        return acc                                  # (n*ho*wo, cout) f32

    def im2col(act, tpad_ref, n, h, w, c):
        """Zero-pad via a 0/1 selector matmul, then gather the 9 shifted views
        and concatenate along lanes (c is a multiple of 128 -> aligned)."""
        xp = jnp.dot(tpad_ref[...], act.astype(bf16),
                     preferred_element_type=f32).astype(bf16)
        xp = xp.reshape(n, h + 2, w + 2, c)
        pieces = [xp[:, ky:ky + h, kx:kx + w, :].reshape(n * h * w, c)
                  for ky in range(3) for kx in range(3)]
        return jnp.concatenate(pieces, axis=1)      # (n*h*w, 9*c) bf16

    c1 = w1_ref.shape[2]          # conv1 cout (lane-padded to 128)
    c2 = w2_ref.shape[2]          # conv2 cout
    c3 = w3_ref.shape[2]          # conv3 cout

    # conv1 + ReLU + pool (im2col already precomputed in the wrapper)
    a1 = conv_bias_relu_pool(xcol1_ref[...], w1_ref, b1_ref, N, H, W)
    h2, w2s = H // 2, W // 2
    # conv2 + ReLU + pool
    a2 = conv_bias_relu_pool(im2col(a1, tpad2_ref, N, h2, w2s, c1),
                             w2_ref, b2_ref, N, h2, w2s)
    h3, w3s = h2 // 2, w2s // 2
    # conv3 + ReLU + pool
    a3 = conv_bias_relu_pool(im2col(a2, tpad3_ref, N, h3, w3s, c2),
                             w3_ref, b3_ref, N, h3, w3s)
    h4, w4s = h3 // 2, w3s // 2
    p_cnt = h4 * w4s

    # ----- task head (n_hidden_layers == 1): fc1 -> fc2 -> softmax -----
    # fc1 is ONE big-K matmul: feature rows for all spatial positions are
    # concatenated along lanes (256-wide aligned pieces); wf1's rows were
    # pre-permuted in the wrapper so this exactly matches the torch NCHW
    # flatten followed by the original linear layer.  (No ReLU between head
    # linears — the torch Sequential has none.)
    a3r = a3.reshape(N, p_cnt, c3).astype(bf16)
    feat = jnp.concatenate([a3r[:, p, :] for p in range(p_cnt)],
                           axis=1)                              # (N, p_cnt*c3)
    hid = jnp.dot(feat, wf1_ref[0], preferred_element_type=f32) + bf1_ref[0]

    # fc2 over the lane-padded class dim (pad weights 0, pad biases -1e30 so
    # the padded probabilities are exactly 0 and the real softmax is unchanged).
    logits = jnp.dot(hid.astype(bf16), wf2_ref[0],
                     preferred_element_type=f32) + bf2_ref[0]

    m = jnp.max(logits, axis=-1, keepdims=True)
    e = jnp.exp(logits - m)
    o_ref[0] = e / jnp.sum(e, axis=-1, keepdims=True)


# --------------------------- Wrapper-side helpers ----------------------------

def _pad_selector(n, h, w):
    """0/1 matrix mapping (n*h*w, c) activation rows to zero-padded
    (n*(h+2)*(w+2), c) rows; rows with no source stay all-zero."""
    hp, wp = h + 2, w + 2
    t = np.zeros((n * hp * wp, n * h * w), np.float32)
    for nn in range(n):
        for yy in range(h):
            for xx in range(w):
                t[nn * hp * wp + (yy + 1) * wp + (xx + 1),
                  nn * h * w + yy * w + xx] = 1.0
    return jnp.asarray(t, jnp.bfloat16)


# ------------------------- Parameters (mean-field) ---------------------------

def _init_mean_field(key, shape, std=0.1):
    return {
        "mean": std * jax.random.normal(key, shape, jnp.float32),
        "log_var": jnp.full(shape, jnp.log(IPV), jnp.float32),
    }


def init_conv_vcl_params(key, input_dims, hidden_dim, num_tasks,
                         num_classes_per_task, n_hidden_layers=1):
    cin, h, w = input_dims
    conv_channels = [cin, 64, 128, 256]
    kit = iter(jax.random.split(key, 64))
    convs = []
    for i in range(3):
        convs.append({
            "w": _init_mean_field(next(kit),
                                  (3, 3, conv_channels[i], conv_channels[i + 1])),
            "b": _init_mean_field(next(kit), (conv_channels[i + 1],)),
        })
    # flattening convention: NCHW order, feature index = c * (H/8 * W/8) + p
    conv_out_size = conv_channels[-1] * (h // 8) * (w // 8)
    heads = []
    for _ in range(num_tasks):
        dims = [conv_out_size] + [hidden_dim] * n_hidden_layers + [num_classes_per_task]
        layers = []
        for i in range(len(dims) - 1):
            layers.append({
                "w": _init_mean_field(next(kit), (dims[i], dims[i + 1])),
                "b": _init_mean_field(next(kit), (dims[i + 1],)),
            })
        heads.append(layers)
    return {"convs": convs, "heads": heads}


# ---------------------------------- Forward ----------------------------------

def conv_vcl_forward(params, x_nchw, key, *, task_idx=0,
                     mc_sampling_n=10, sample_parameters=True):
    """Matches ConvVCL.forward: MC average of softmax(head(conv_features))."""
    S = mc_sampling_n if sample_parameters else 1
    N, Cin, H, W = x_nchw.shape
    assert H % 8 == 0 and W % 8 == 0, "spatial dims must be divisible by 8"

    head = params["heads"][task_idx]
    assert len(head) == 2, "fused kernel is specialised to n_hidden_layers == 1"

    # ----- sample all S weight draws up front, stacked on a leading S axis ---
    kit = iter(jax.random.split(key, 32))

    def draw(p):
        if not sample_parameters:
            return p["mean"][None]
        eps = jax.random.normal(next(kit), (S,) + p["mean"].shape, jnp.float32)
        return p["mean"][None] + eps * jnp.exp(0.5 * p["log_var"])[None]

    convs = params["convs"]
    c1 = convs[0]["w"]["mean"].shape[-1]           # 64
    c1p = ((c1 + 127) // 128) * 128                # 128: lane-pad conv1 output
    c2 = convs[1]["w"]["mean"].shape[-1]           # 128
    c3 = convs[2]["w"]["mean"].shape[-1]           # 256

    # conv weights as (S, 9*Cin, Cout) matching the im2col column order
    w1 = draw(convs[0]["w"]).reshape(S, 9 * Cin, c1)
    w1 = jnp.pad(w1, ((0, 0), (0, 0), (0, c1p - c1))).astype(jnp.bfloat16)
    b1 = jnp.pad(draw(convs[0]["b"]), ((0, 0), (0, c1p - c1))).reshape(S, 1, c1p)
    w2 = draw(convs[1]["w"]).reshape(S, 9, c1, c2)
    w2 = jnp.pad(w2, ((0, 0), (0, 0), (0, c1p - c1), (0, 0)))   # zero rows for pad channels
    w2 = w2.reshape(S, 9 * c1p, c2).astype(jnp.bfloat16)
    b2 = draw(convs[1]["b"]).reshape(S, 1, c2)
    w3 = draw(convs[2]["w"]).reshape(S, 9 * c2, c3).astype(jnp.bfloat16)
    b3 = draw(convs[2]["b"]).reshape(S, 1, c3)

    P = (H // 8) * (W // 8)
    hidden = head[0]["w"]["mean"].shape[-1]
    ncls = head[1]["w"]["mean"].shape[-1]
    ncls_p = ((ncls + 127) // 128) * 128           # lane-dense output stores

    # fold the NCHW flatten into a row permutation of the first head weight:
    # NCHW row index c*P + p  ->  NHWC row index p*c3 + c
    wf1 = draw(head[0]["w"])                                     # (S, c3*P, hidden)
    wf1 = jnp.transpose(wf1.reshape(S, c3, P, hidden), (0, 2, 1, 3))
    wf1 = wf1.reshape(S, P * c3, hidden).astype(jnp.bfloat16)
    bf1 = draw(head[0]["b"]).reshape(S, 1, hidden)
    # class dim lane-padded to 128: zero weight columns, -1e30 bias columns
    wf2 = jnp.pad(draw(head[1]["w"]),
                  ((0, 0), (0, 0), (0, ncls_p - ncls))).astype(jnp.bfloat16)
    bf2 = jnp.pad(draw(head[1]["b"]), ((0, 0), (0, ncls_p - ncls)),
                  constant_values=NEG_BIG).reshape(S, 1, ncls_p)

    # ----- sample-independent tensors (built once, shared across the grid) ---
    x_nhwc = jnp.transpose(x_nchw, (0, 2, 3, 1))                 # NCHW -> NHWC
    xpad = jnp.pad(x_nhwc, ((0, 0), (1, 1), (1, 1), (0, 0)))
    xcol1 = jnp.concatenate(
        [xpad[:, ky:ky + H, kx:kx + W, :] for ky in range(3) for kx in range(3)],
        axis=-1).reshape(N * H * W, 9 * Cin).astype(jnp.bfloat16)
    tpad2 = _pad_selector(N, H // 2, W // 2)
    tpad3 = _pad_selector(N, H // 4, W // 4)

    kernel = functools.partial(_conv_vcl_fused_kernel, N=N, H=H, W=W)
    probs = pl.pallas_call(
        kernel,
        out_shape=jax.ShapeDtypeStruct((S, N, ncls_p), jnp.float32),
        grid=(S,),
        in_specs=[
            pl.BlockSpec((N * H * W, 9 * Cin), lambda s: (0, 0)),
            pl.BlockSpec(tpad2.shape, lambda s: (0, 0)),
            pl.BlockSpec(tpad3.shape, lambda s: (0, 0)),
            pl.BlockSpec((1, 9 * Cin, c1p), lambda s: (s, 0, 0)),
            pl.BlockSpec((1, 1, c1p), lambda s: (s, 0, 0)),
            pl.BlockSpec((1, 9 * c1p, c2), lambda s: (s, 0, 0)),
            pl.BlockSpec((1, 1, c2), lambda s: (s, 0, 0)),
            pl.BlockSpec((1, 9 * c2, c3), lambda s: (s, 0, 0)),
            pl.BlockSpec((1, 1, c3), lambda s: (s, 0, 0)),
            pl.BlockSpec((1, P * c3, hidden), lambda s: (s, 0, 0)),
            pl.BlockSpec((1, 1, hidden), lambda s: (s, 0, 0)),
            pl.BlockSpec((1, hidden, ncls_p), lambda s: (s, 0, 0)),
            pl.BlockSpec((1, 1, ncls_p), lambda s: (s, 0, 0)),
        ],
        out_specs=pl.BlockSpec((1, N, ncls_p), lambda s: (s, 0, 0)),
        compiler_params=pltpu.CompilerParams(
            dimension_semantics=("parallel",),          # samples are independent
            vmem_limit_bytes=32 * 1024 * 1024,          # explicit v7x-safe budget
        ),
    )(xcol1, tpad2, tpad3, w1, b1, w2, b2, w3, b3, wf1, bf1, wf2, bf2)

    # MC average of per-sample softmax outputs (matches torch add_/div_);
    # slice off the lane-padding (padded probs are exactly 0 anyway).
    return jnp.sum(probs[:, :, :ncls], axis=0) / S


# ------------------------------------ Main ------------------------------------

if __name__ == "__main__":
    key = jax.random.PRNGKey(0)
    pkey, xkey, skey = jax.random.split(key, 3)

    input_dims = (4, 16, 16)        # (C, H, W) — pools 16 -> 8 -> 4 -> 2
    batch = 2
    hidden_dim = 32
    num_tasks = 2
    num_classes_per_task = 10
    mc_sampling_n = 3

    params = init_conv_vcl_params(pkey, input_dims, hidden_dim,
                                  num_tasks, num_classes_per_task,
                                  n_hidden_layers=1)
    x = jax.random.normal(xkey, (batch,) + input_dims, jnp.float32)

    fwd = jax.jit(functools.partial(conv_vcl_forward,
                                    task_idx=0,
                                    mc_sampling_n=mc_sampling_n,
                                    sample_parameters=True))
    y = fwd(params, x, skey)
    jax.block_until_ready(y)

    assert y.shape == (batch, num_classes_per_task)
    assert bool(jnp.all(jnp.isfinite(y)))
    # y is an average of softmax outputs -> rows sum to 1
    assert bool(jnp.allclose(jnp.sum(y, axis=1), 1.0, atol=1e-4))
    print("KERNEL_OK")
</pallas_src>

<mosaic_0001>
module attributes {stable_mosaic.version = 11 : i64} {
  func.func @_conv_vcl_fused_kernel(%arg0: i32, %arg1: memref<512x36xbf16, #tpu.memory_space<vmem>>, %arg2: memref<200x128xbf16, #tpu.memory_space<vmem>>, %arg3: memref<72x32xbf16, #tpu.memory_space<vmem>>, %arg4: memref<1x36x128xbf16, #tpu.memory_space<vmem>>, %arg5: memref<1x1x128xf32, #tpu.memory_space<vmem>>, %arg6: memref<1x1152x128xbf16, #tpu.memory_space<vmem>>, %arg7: memref<1x1x128xf32, #tpu.memory_space<vmem>>, %arg8: memref<1x1152x256xbf16, #tpu.memory_space<vmem>>, %arg9: memref<1x1x256xf32, #tpu.memory_space<vmem>>, %arg10: memref<1x1024x32xbf16, #tpu.memory_space<vmem>>, %arg11: memref<1x1x32xf32, #tpu.memory_space<vmem>>, %arg12: memref<1x32x128xbf16, #tpu.memory_space<vmem>>, %arg13: memref<1x1x128xf32, #tpu.memory_space<vmem>>, %arg14: memref<1x2x128xf32, #tpu.memory_space<vmem>>) attributes {dimension_semantics = [#tpu.dimension_semantics<parallel>], iteration_bounds = array<i64: 3>, scalar_prefetch = 0 : i64, scratch_operands = 0 : i64, tpu.core_type = #tpu.core_type<tc>, window_params = [{pipeline_mode = #tpu.pipeline_mode<synchronous>, transform_indices = @transform_0, window_bounds = array<i64: 512, 36>}, {pipeline_mode = #tpu.pipeline_mode<synchronous>, transform_indices = @transform_1, window_bounds = array<i64: 200, 128>}, {pipeline_mode = #tpu.pipeline_mode<synchronous>, transform_indices = @transform_2, window_bounds = array<i64: 72, 32>}, {transform_indices = @transform_3, window_bounds = array<i64: 1, 36, 128>}, {transform_indices = @transform_4, window_bounds = array<i64: 1, 1, 128>}, {transform_indices = @transform_5, window_bounds = array<i64: 1, 1152, 128>}, {transform_indices = @transform_6, window_bounds = array<i64: 1, 1, 128>}, {transform_indices = @transform_7, window_bounds = array<i64: 1, 1152, 256>}, {transform_indices = @transform_8, window_bounds = array<i64: 1, 1, 256>}, {transform_indices = @transform_9, window_bounds = array<i64: 1, 1024, 32>}, {transform_indices = @transform_10, window_bounds = array<i64: 1, 1, 32>}, {transform_indices = @transform_11, window_bounds = array<i64: 1, 32, 128>}, {transform_indices = @transform_12, window_bounds = array<i64: 1, 1, 128>}, {transform_indices = @transform_13, window_bounds = array<i64: 1, 2, 128>}]} {
    %c0 = arith.constant 0 : index
    %c0_0 = arith.constant 0 : index
    %0 = vector.load %arg1[%c0, %c0_0] : memref<512x36xbf16, #tpu.memory_space<vmem>>, vector<512x36xbf16>
    %c0_1 = arith.constant 0 : index
    %c0_2 = arith.constant 0 : index
    %c0_3 = arith.constant 0 : index
    %1 = vector.load %arg4[%c0_1, %c0_2, %c0_3] : memref<1x36x128xbf16, #tpu.memory_space<vmem>>, vector<1x36x128xbf16>
    %2 = vector.shape_cast %1 : vector<1x36x128xbf16> to vector<36x128xbf16>
    %cst = arith.constant dense<0.000000e+00> : vector<512x128xf32>
    %3 = tpu.matmul %0, %2, %cst {dimension_numbers = #tpu.dot_dimension_numbers<[1], [0], [0], [1], [0, 0, 1, 1], [], []>} : vector<512x36xbf16>, vector<36x128xbf16>, vector<512x128xf32> -> vector<512x128xf32>
    %c0_4 = arith.constant 0 : index
    %c0_5 = arith.constant 0 : index
    %c0_6 = arith.constant 0 : index
    %4 = vector.load %arg5[%c0_4, %c0_5, %c0_6] : memref<1x1x128xf32, #tpu.memory_space<vmem>>, vector<1x1x128xf32>
    %5 = vector.shape_cast %4 : vector<1x1x128xf32> to vector<1x128xf32>
    %6 = vector.broadcast %5 : vector<1x128xf32> to vector<512x128xf32>
    %7 = arith.addf %3, %6 : vector<512x128xf32>
    %cst_7 = arith.constant 0.000000e+00 : f32
    %8 = vector.broadcast %cst_7 : f32 to vector<512x128xf32>
    %9 = arith.maximumf %7, %8 : vector<512x128xf32>
    %10 = vector.shape_cast %9 : vector<512x128xf32> to vector<16x2x16x128xf32>
    %cst_8 = arith.constant dense<0xFF800000> : vector<16x16x128xf32>
    %11 = vector.multi_reduction <maximumf>, %10, %cst_8 [1] : vector<16x2x16x128xf32> to vector<16x16x128xf32>
    %12 = vector.shape_cast %11 : vector<16x16x128xf32> to vector<128x2x128xf32>
    %cst_9 = arith.constant dense<0xFF800000> : vector<128x128xf32>
    %13 = vector.multi_reduction <maximumf>, %12, %cst_9 [1] : vector<128x2x128xf32> to vector<128x128xf32>
    %c0_10 = arith.constant 0 : index
    %c0_11 = arith.constant 0 : index
    %14 = vector.load %arg2[%c0_10, %c0_11] : memref<200x128xbf16, #tpu.memory_space<vmem>>, vector<200x128xbf16>
    %15 = arith.truncf %13 : vector<128x128xf32> to vector<128x128xbf16>
    %cst_12 = arith.constant dense<0.000000e+00> : vector<200x128xf32>
    %16 = tpu.matmul %14, %15, %cst_12 {dimension_numbers = #tpu.dot_dimension_numbers<[1], [0], [0], [1], [0, 0, 1, 1], [], []>} : vector<200x128xbf16>, vector<128x128xbf16>, vector<200x128xf32> -> vector<200x128xf32>
    %17 = arith.truncf %16 : vector<200x128xf32> to vector<200x128xbf16>
    %18 = vector.shape_cast %17 : vector<200x128xbf16> to vector<2x10x10x128xbf16>
    %19 = vector.extract_strided_slice %18 {offsets = [0, 0, 0, 0], sizes = [2, 8, 8, 128], strides = [1, 1, 1, 1]} : vector<2x10x10x128xbf16> to vector<2x8x8x128xbf16>
    %20 = vector.shape_cast %19 : vector<2x8x8x128xbf16> to vector<128x128xbf16>
    %21 = vector.extract_strided_slice %18 {offsets = [0, 0, 1, 0], sizes = [2, 8, 8, 128], strides = [1, 1, 1, 1]} : vector<2x10x10x128xbf16> to vector<2x8x8x128xbf16>
    %22 = vector.shape_cast %21 : vector<2x8x8x128xbf16> to vector<128x128xbf16>
    %23 = vector.extract_strided_slice %18 {offsets = [0, 0, 2, 0], sizes = [2, 8, 8, 128], strides = [1, 1, 1, 1]} : vector<2x10x10x128xbf16> to vector<2x8x8x128xbf16>
    %24 = vector.shape_cast %23 : vector<2x8x8x128xbf16> to vector<128x128xbf16>
    %25 = vector.extract_strided_slice %18 {offsets = [0, 1, 0, 0], sizes = [2, 8, 8, 128], strides = [1, 1, 1, 1]} : vector<2x10x10x128xbf16> to vector<2x8x8x128xbf16>
    %26 = vector.shape_cast %25 : vector<2x8x8x128xbf16> to vector<128x128xbf16>
    %27 = vector.extract_strided_slice %18 {offsets = [0, 1, 1, 0], sizes = [2, 8, 8, 128], strides = [1, 1, 1, 1]} : vector<2x10x10x128xbf16> to vector<2x8x8x128xbf16>
    %28 = vector.shape_cast %27 : vector<2x8x8x128xbf16> to vector<128x128xbf16>
    %29 = vector.extract_strided_slice %18 {offsets = [0, 1, 2, 0], sizes = [2, 8, 8, 128], strides = [1, 1, 1, 1]} : vector<2x10x10x128xbf16> to vector<2x8x8x128xbf16>
    %30 = vector.shape_cast %29 : vector<2x8x8x128xbf16> to vector<128x128xbf16>
    %31 = vector.extract_strided_slice %18 {offsets = [0, 2, 0, 0], sizes = [2, 8, 8, 128], strides = [1, 1, 1, 1]} : vector<2x10x10x128xbf16> to vector<2x8x8x128xbf16>
    %32 = vector.shape_cast %31 : vector<2x8x8x128xbf16> to vector<128x128xbf16>
    %33 = vector.extract_strided_slice %18 {offsets = [0, 2, 1, 0], sizes = [2, 8, 8, 128], strides = [1, 1, 1, 1]} : vector<2x10x10x128xbf16> to vector<2x8x8x128xbf16>
    %34 = vector.shape_cast %33 : vector<2x8x8x128xbf16> to vector<128x128xbf16>
    %35 = vector.extract_strided_slice %18 {offsets = [0, 2, 2, 0], sizes = [2, 8, 8, 128], strides = [1, 1, 1, 1]} : vector<2x10x10x128xbf16> to vector<2x8x8x128xbf16>
    %36 = vector.shape_cast %35 : vector<2x8x8x128xbf16> to vector<128x128xbf16>
    %37 = tpu.concatenate %20, %22, %24, %26, %28, %30, %32, %34, %36 in 1 : vector<128x128xbf16>, vector<128x128xbf16>, vector<128x128xbf16>, vector<128x128xbf16>, vector<128x128xbf16>, vector<128x128xbf16>, vector<128x128xbf16>, vector<128x128xbf16>, vector<128x128xbf16> -> vector<128x1152xbf16>
    %c0_13 = arith.constant 0 : index
    %c0_14 = arith.constant 0 : index
    %c0_15 = arith.constant 0 : index
    %38 = vector.load %arg6[%c0_13, %c0_14, %c0_15] : memref<1x1152x128xbf16, #tpu.memory_space<vmem>>, vector<1x1152x128xbf16>
    %39 = vector.shape_cast %38 : vector<1x1152x128xbf16> to vector<1152x128xbf16>
    %cst_16 = arith.constant dense<0.000000e+00> : vector<128x128xf32>
    %40 = tpu.matmul %37, %39, %cst_16 {dimension_numbers = #tpu.dot_dimension_numbers<[1], [0], [0], [1], [0, 0, 1, 1], [], []>} : vector<128x1152xbf16>, vector<1152x128xbf16>, vector<128x128xf32> -> vector<128x128xf32>
    %c0_17 = arith.constant 0 : index
    %c0_18 = arith.constant 0 : index
    %c0_19 = arith.constant 0 : index
    %41 = vector.load %arg7[%c0_17, %c0_18, %c0_19] : memref<1x1x128xf32, #tpu.memory_space<vmem>>, vector<1x1x128xf32>
    %42 = vector.shape_cast %41 : vector<1x1x128xf32> to vector<1x128xf32>
    %43 = vector.broadcast %42 : vector<1x128xf32> to vector<128x128xf32>
    %44 = arith.addf %40, %43 : vector<128x128xf32>
    %cst_20 = arith.constant 0.000000e+00 : f32
    %45 = vector.broadcast %cst_20 : f32 to vector<128x128xf32>
    %46 = arith.maximumf %44, %45 : vector<128x128xf32>
    %47 = vector.shape_cast %46 : vector<128x128xf32> to vector<8x2x8x128xf32>
    %cst_21 = arith.constant dense<0xFF800000> : vector<8x8x128xf32>
    %48 = vector.multi_reduction <maximumf>, %47, %cst_21 [1] : vector<8x2x8x128xf32> to vector<8x8x128xf32>
    %49 = vector.shape_cast %48 : vector<8x8x128xf32> to vector<32x2x128xf32>
    %cst_22 = arith.constant dense<0xFF800000> : vector<32x128xf32>
    %50 = vector.multi_reduction <maximumf>, %49, %cst_22 [1] : vector<32x2x128xf32> to vector<32x128xf32>
    %c0_23 = arith.constant 0 : index
    %c0_24 = arith.constant 0 : index
    %51 = vector.load %arg3[%c0_23, %c0_24] : memref<72x32xbf16, #tpu.memory_space<vmem>>, vector<72x32xbf16>
    %52 = arith.truncf %50 : vector<32x128xf32> to vector<32x128xbf16>
    %cst_25 = arith.constant dense<0.000000e+00> : vector<72x128xf32>
    %53 = tpu.matmul %51, %52, %cst_25 {dimension_numbers = #tpu.dot_dimension_numbers<[1], [0], [0], [1], [0, 0, 1, 1], [], []>} : vector<72x32xbf16>, vector<32x128xbf16>, vector<72x128xf32> -> vector<72x128xf32>
    %54 = arith.truncf %53 : vector<72x128xf32> to vector<72x128xbf16>
    %55 = vector.shape_cast %54 : vector<72x128xbf16> to vector<2x6x6x128xbf16>
    %56 = vector.extract_strided_slice %55 {offsets = [0, 0, 0, 0], sizes = [2, 4, 4, 128], strides = [1, 1, 1, 1]} : vector<2x6x6x128xbf16> to vector<2x4x4x128xbf16>
    %57 = vector.shape_cast %56 : vector<2x4x4x128xbf16> to vector<32x128xbf16>
    %58 = vector.extract_strided_slice %55 {offsets = [0, 0, 1, 0], sizes = [2, 4, 4, 128], strides = [1, 1, 1, 1]} : vector<2x6x6x128xbf16> to vector<2x4x4x128xbf16>
    %59 = vector.shape_cast %58 : vector<2x4x4x128xbf16> to vector<32x128xbf16>
    %60 = vector.extract_strided_slice %55 {offsets = [0, 0, 2, 0], sizes = [2, 4, 4, 128], strides = [1, 1, 1, 1]} : vector<2x6x6x128xbf16> to vector<2x4x4x128xbf16>
    %61 = vector.shape_cast %60 : vector<2x4x4x128xbf16> to vector<32x128xbf16>
    %62 = vector.extract_strided_slice %55 {offsets = [0, 1, 0, 0], sizes = [2, 4, 4, 128], strides = [1, 1, 1, 1]} : vector<2x6x6x128xbf16> to vector<2x4x4x128xbf16>
    %63 = vector.shape_cast %62 : vector<2x4x4x128xbf16> to vector<32x128xbf16>
    %64 = vector.extract_strided_slice %55 {offsets = [0, 1, 1, 0], sizes = [2, 4, 4, 128], strides = [1, 1, 1, 1]} : vector<2x6x6x128xbf16> to vector<2x4x4x128xbf16>
    %65 = vector.shape_cast %64 : vector<2x4x4x128xbf16> to vector<32x128xbf16>
    %66 = vector.extract_strided_slice %55 {offsets = [0, 1, 2, 0], sizes = [2, 4, 4, 128], strides = [1, 1, 1, 1]} : vector<2x6x6x128xbf16> to vector<2x4x4x128xbf16>
    %67 = vector.shape_cast %66 : vector<2x4x4x128xbf16> to vector<32x128xbf16>
    %68 = vector.extract_strided_slice %55 {offsets = [0, 2, 0, 0], sizes = [2, 4, 4, 128], strides = [1, 1, 1, 1]} : vector<2x6x6x128xbf16> to vector<2x4x4x128xbf16>
    %69 = vector.shape_cast %68 : vector<2x4x4x128xbf16> to vector<32x128xbf16>
    %70 = vector.extract_strided_slice %55 {offsets = [0, 2, 1, 0], sizes = [2, 4, 4, 128], strides = [1, 1, 1, 1]} : vector<2x6x6x128xbf16> to vector<2x4x4x128xbf16>
    %71 = vector.shape_cast %70 : vector<2x4x4x128xbf16> to vector<32x128xbf16>
    %72 = vector.extract_strided_slice %55 {offsets = [0, 2, 2, 0], sizes = [2, 4, 4, 128], strides = [1, 1, 1, 1]} : vector<2x6x6x128xbf16> to vector<2x4x4x128xbf16>
    %73 = vector.shape_cast %72 : vector<2x4x4x128xbf16> to vector<32x128xbf16>
    %74 = tpu.concatenate %57, %59, %61, %63, %65, %67, %69, %71, %73 in 1 : vector<32x128xbf16>, vector<32x128xbf16>, vector<32x128xbf16>, vector<32x128xbf16>, vector<32x128xbf16>, vector<32x128xbf16>, vector<32x128xbf16>, vector<32x128xbf16>, vector<32x128xbf16> -> vector<32x1152xbf16>
    %c0_26 = arith.constant 0 : index
    %c0_27 = arith.constant 0 : index
    %c0_28 = arith.constant 0 : index
    %75 = vector.load %arg8[%c0_26, %c0_27, %c0_28] : memref<1x1152x256xbf16, #tpu.memory_space<vmem>>, vector<1x1152x256xbf16>
    %76 = vector.shape_cast %75 : vector<1x1152x256xbf16> to vector<1152x256xbf16>
    %cst_29 = arith.constant dense<0.000000e+00> : vector<32x256xf32>
    %77 = tpu.matmul %74, %76, %cst_29 {dimension_numbers = #tpu.dot_dimension_numbers<[1], [0], [0], [1], [0, 0, 1, 1], [], []>} : vector<32x1152xbf16>, vector<1152x256xbf16>, vector<32x256xf32> -> vector<32x256xf32>
    %c0_30 = arith.constant 0 : index
    %c0_31 = arith.constant 0 : index
    %c0_32 = arith.constant 0 : index
    %78 = vector.load %arg9[%c0_30, %c0_31, %c0_32] : memref<1x1x256xf32, #tpu.memory_space<vmem>>, vector<1x1x256xf32>
    %79 = vector.shape_cast %78 : vector<1x1x256xf32> to vector<1x256xf32>
    %80 = vector.broadcast %79 : vector<1x256xf32> to vector<32x256xf32>
    %81 = arith.addf %77, %80 : vector<32x256xf32>
    %cst_33 = arith.constant 0.000000e+00 : f32
    %82 = vector.broadcast %cst_33 : f32 to vector<32x256xf32>
    %83 = arith.maximumf %81, %82 : vector<32x256xf32>
    %84 = vector.shape_cast %83 : vector<32x256xf32> to vector<4x2x4x256xf32>
    %cst_34 = arith.constant dense<0xFF800000> : vector<4x4x256xf32>
    %85 = vector.multi_reduction <maximumf>, %84, %cst_34 [1] : vector<4x2x4x256xf32> to vector<4x4x256xf32>
    %86 = vector.shape_cast %85 : vector<4x4x256xf32> to vector<8x2x256xf32>
    %cst_35 = arith.constant dense<0xFF800000> : vector<8x256xf32>
    %87 = vector.multi_reduction <maximumf>, %86, %cst_35 [1] : vector<8x2x256xf32> to vector<8x256xf32>
    %88 = vector.shape_cast %87 : vector<8x256xf32> to vector<2x4x256xf32>
    %89 = arith.truncf %88 : vector<2x4x256xf32> to vector<2x4x256xbf16>
    %90 = vector.extract_strided_slice %89 {offsets = [0, 0, 0], sizes = [2, 1, 256], strides = [1, 1, 1]} : vector<2x4x256xbf16> to vector<2x1x256xbf16>
    %91 = vector.shape_cast %90 : vector<2x1x256xbf16> to vector<2x256xbf16>
    %92 = vector.extract_strided_slice %89 {offsets = [0, 1, 0], sizes = [2, 1, 256], strides = [1, 1, 1]} : vector<2x4x256xbf16> to vector<2x1x256xbf16>
    %93 = vector.shape_cast %92 : vector<2x1x256xbf16> to vector<2x256xbf16>
    %94 = vector.extract_strided_slice %89 {offsets = [0, 2, 0], sizes = [2, 1, 256], strides = [1, 1, 1]} : vector<2x4x256xbf16> to vector<2x1x256xbf16>
    %95 = vector.shape_cast %94 : vector<2x1x256xbf16> to vector<2x256xbf16>
    %96 = vector.extract_strided_slice %89 {offsets = [0, 3, 0], sizes = [2, 1, 256], strides = [1, 1, 1]} : vector<2x4x256xbf16> to vector<2x1x256xbf16>
    %97 = vector.shape_cast %96 : vector<2x1x256xbf16> to vector<2x256xbf16>
    %98 = tpu.concatenate %91, %93, %95, %97 in 1 : vector<2x256xbf16>, vector<2x256xbf16>, vector<2x256xbf16>, vector<2x256xbf16> -> vector<2x1024xbf16>
    %c0_36 = arith.constant 0 : index
    %c0_37 = arith.constant 0 : index
    %c0_38 = arith.constant 0 : index
    %99 = vector.load %arg10[%c0_36, %c0_37, %c0_38] : memref<1x1024x32xbf16, #tpu.memory_space<vmem>>, vector<1x1024x32xbf16>
    %100 = vector.shape_cast %99 : vector<1x1024x32xbf16> to vector<1024x32xbf16>
    %cst_39 = arith.constant dense<0.000000e+00> : vector<2x32xf32>
    %101 = tpu.matmul %98, %100, %cst_39 {dimension_numbers = #tpu.dot_dimension_numbers<[1], [0], [0], [1], [0, 0, 1, 1], [], []>} : vector<2x1024xbf16>, vector<1024x32xbf16>, vector<2x32xf32> -> vector<2x32xf32>
    %c0_40 = arith.constant 0 : index
    %c0_41 = arith.constant 0 : index
    %c0_42 = arith.constant 0 : index
    %102 = vector.load %arg11[%c0_40, %c0_41, %c0_42] : memref<1x1x32xf32, #tpu.memory_space<vmem>>, vector<1x1x32xf32>
    %103 = vector.shape_cast %102 : vector<1x1x32xf32> to vector<1x32xf32>
    %104 = vector.broadcast %103 : vector<1x32xf32> to vector<2x32xf32>
    %105 = arith.addf %101, %104 : vector<2x32xf32>
    %106 = arith.truncf %105 : vector<2x32xf32> to vector<2x32xbf16>
    %c0_43 = arith.constant 0 : index
    %c0_44 = arith.constant 0 : index
    %c0_45 = arith.constant 0 : index
    %107 = vector.load %arg12[%c0_43, %c0_44, %c0_45] : memref<1x32x128xbf16, #tpu.memory_space<vmem>>, vector<1x32x128xbf16>
    %108 = vector.shape_cast %107 : vector<1x32x128xbf16> to vector<32x128xbf16>
    %cst_46 = arith.constant dense<0.000000e+00> : vector<2x128xf32>
    %109 = tpu.matmul %106, %108, %cst_46 {dimension_numbers = #tpu.dot_dimension_numbers<[1], [0], [0], [1], [0, 0, 1, 1], [], []>} : vector<2x32xbf16>, vector<32x128xbf16>, vector<2x128xf32> -> vector<2x128xf32>
    %c0_47 = arith.constant 0 : index
    %c0_48 = arith.constant 0 : index
    %c0_49 = arith.constant 0 : index
    %110 = vector.load %arg13[%c0_47, %c0_48, %c0_49] : memref<1x1x128xf32, #tpu.memory_space<vmem>>, vector<1x1x128xf32>
    %111 = vector.shape_cast %110 : vector<1x1x128xf32> to vector<1x128xf32>
    %112 = vector.broadcast %111 : vector<1x128xf32> to vector<2x128xf32>
    %113 = arith.addf %109, %112 : vector<2x128xf32>
    %cst_50 = arith.constant dense<0xFF800000> : vector<2xf32>
    %114 = vector.multi_reduction <maximumf>, %113, %cst_50 [1] : vector<2x128xf32> to vector<2xf32>
    %115 = vector.shape_cast %114 : vector<2xf32> to vector<2x1xf32>
    %116 = vector.broadcast %115 : vector<2x1xf32> to vector<2x128xf32>
    %117 = arith.subf %113, %116 : vector<2x128xf32>
    %118 = math.exp %117 : vector<2x128xf32>
    %cst_51 = arith.constant dense<0.000000e+00> : vector<2xf32>
    %119 = vector.multi_reduction <add>, %118, %cst_51 [1] : vector<2x128xf32> to vector<2xf32>
    %120 = vector.shape_cast %119 : vector<2xf32> to vector<2x1xf32>
    %121 = vector.broadcast %120 : vector<2x1xf32> to vector<2x128xf32>
    %122 = arith.divf %118, %121 : vector<2x128xf32>
    %c0_52 = arith.constant 0 : index
    %c0_53 = arith.constant 0 : index
    %c0_54 = arith.constant 0 : index
    %123 = vector.load %arg14[%c0_52, %c0_53, %c0_54] : memref<1x2x128xf32, #tpu.memory_space<vmem>>, vector<1x2x128xf32>
    %124 = vector.shape_cast %123 : vector<1x2x128xf32> to vector<2x128xf32>
    %125 = vector.shape_cast %122 : vector<2x128xf32> to vector<1x2x128xf32>
    tpu.vector_store %arg14[%c0_52, %c0_53, %c0_54], %125 {strides = array<i32>} : memref<1x2x128xf32, #tpu.memory_space<vmem>>, vector<1x2x128xf32>,
    return
  }
  func.func @transform_0(%arg0: i32) -> (i32, i32) {
    %c0_i32 = arith.constant 0 : i32
    %c0_i32_0 = arith.constant 0 : i32
    %c0_i32_1 = arith.constant 0 : i32
    return %c0_i32, %c0_i32_0 : i32, i32
  }
  func.func @transform_1(%arg0: i32) -> (i32, i32) {
    %c0_i32 = arith.constant 0 : i32
    %c0_i32_0 = arith.constant 0 : i32
    %c0_i32_1 = arith.constant 0 : i32
    return %c0_i32, %c0_i32_0 : i32, i32
  }
  func.func @transform_2(%arg0: i32) -> (i32, i32) {
    %c0_i32 = arith.constant 0 : i32
    %c0_i32_0 = arith.constant 0 : i32
    %c0_i32_1 = arith.constant 0 : i32
    return %c0_i32, %c0_i32_0 : i32, i32
  }
  func.func @transform_3(%arg0: i32) -> (i32, i32, i32) {
    %c0_i32 = arith.constant 0 : i32
    %c0_i32_0 = arith.constant 0 : i32
    %c0_i32_1 = arith.constant 0 : i32
    return %arg0, %c0_i32, %c0_i32_0 : i32, i32, i32
  }
  func.func @transform_4(%arg0: i32) -> (i32, i32, i32) {
    %c0_i32 = arith.constant 0 : i32
    %c0_i32_0 = arith.constant 0 : i32
    %c0_i32_1 = arith.constant 0 : i32
    return %arg0, %c0_i32, %c0_i32_0 : i32, i32, i32
  }
  func.func @transform_5(%arg0: i32) -> (i32, i32, i32) {
    %c0_i32 = arith.constant 0 : i32
    %c0_i32_0 = arith.constant 0 : i32
    %c0_i32_1 = arith.constant 0 : i32
    return %arg0, %c0_i32, %c0_i32_0 : i32, i32, i32
  }
  func.func @transform_6(%arg0: i32) -> (i32, i32, i32) {
    %c0_i32 = arith.constant 0 : i32
    %c0_i32_0 = arith.constant 0 : i32
    %c0_i32_1 = arith.constant 0 : i32
    return %arg0, %c0_i32, %c0_i32_0 : i32, i32, i32
  }
  func.func @transform_7(%arg0: i32) -> (i32, i32, i32) {
    %c0_i32 = arith.constant 0 : i32
    %c0_i32_0 = arith.constant 0 : i32
    %c0_i32_1 = arith.constant 0 : i32
    return %arg0, %c0_i32, %c0_i32_0 : i32, i32, i32
  }
  func.func @transform_8(%arg0: i32) -> (i32, i32, i32) {
    %c0_i32 = arith.constant 0 : i32
    %c0_i32_0 = arith.constant 0 : i32
    %c0_i32_1 = arith.constant 0 : i32
    return %arg0, %c0_i32, %c0_i32_0 : i32, i32, i32
  }
  func.func @transform_9(%arg0: i32) -> (i32, i32, i32) {
    %c0_i32 = arith.constant 0 : i32
    %c0_i32_0 = arith.constant 0 : i32
    %c0_i32_1 = arith.constant 0 : i32
    return %arg0, %c0_i32, %c0_i32_0 : i32, i32, i32
  }
  func.func @transform_10(%arg0: i32) -> (i32, i32, i32) {
    %c0_i32 = arith.constant 0 : i32
    %c0_i32_0 = arith.constant 0 : i32
    %c0_i32_1 = arith.constant 0 : i32
    return %arg0, %c0_i32, %c0_i32_0 : i32, i32, i32
  }
  func.func @transform_11(%arg0: i32) -> (i32, i32, i32) {
    %c0_i32 = arith.constant 0 : i32
    %c0_i32_0 = arith.constant 0 : i32
    %c0_i32_1 = arith.constant 0 : i32
    return %arg0, %c0_i32, %c0_i32_0 : i32, i32, i32
  }
  func.func @transform_12(%arg0: i32) -> (i32, i32, i32) {
    %c0_i32 = arith.constant 0 : i32
    %c0_i32_0 = arith.constant 0 : i32
    %c0_i32_1 = arith.constant 0 : i32
    return %arg0, %c0_i32, %c0_i32_0 : i32, i32, i32
  }
  func.func @transform_13(%arg0: i32) -> (i32, i32, i32) {
    %c0_i32 = arith.constant 0 : i32
    %c0_i32_0 = arith.constant 0 : i32
    %c0_i32_1 = arith.constant 0 : i32
    return %arg0, %c0_i32, %c0_i32_0 : i32, i32, i32
  }
}

</mosaic_0001>

<llo_original>
// kernel: conv_vcl_forward.3
$region0: #{conv_vcl_forward.3}
  #allocation0 [shape = 'u32[]', space=smem, size = 0x4, offset = 0x4, fixed_abs, tag = 'smem constant byte address 0x4 - core index']
  #allocation1 [shape = 'u32[144,128]{1,0:T(1,128)}', space=vmem, size = 0x12000, scoped, tag = 'internal scratch']
  %s0 = inlined_call_operand.vmem [shape: bf16[512,36], index: 0, kind: input, shape index: {}]
  %s1 = inlined_call_operand.vmem [shape: bf16[200,128], index: 1, kind: input, shape index: {}]
  %s2 = inlined_call_operand.vmem [shape: bf16[72,32], index: 2, kind: input, shape index: {}]
  %s3 = inlined_call_operand.vmem [shape: bf16[3,36,128], index: 3, kind: input, shape index: {}]
  %s4 = inlined_call_operand.vmem [shape: f32[3,1,128], index: 4, kind: input, shape index: {}]
  %s5 = inlined_call_operand.vmem [shape: bf16[3,1152,128], index: 5, kind: input, shape index: {}]
  %s6 = inlined_call_operand.vmem [shape: f32[3,1,128], index: 6, kind: input, shape index: {}]
  %s7 = inlined_call_operand.vmem [shape: bf16[3,1152,256], index: 7, kind: input, shape index: {}]
  %s8 = inlined_call_operand.vmem [shape: f32[3,1,256], index: 8, kind: input, shape index: {}]
  %s9 = inlined_call_operand.vmem [shape: bf16[3,1024,32], index: 9, kind: input, shape index: {}]
  %s10 = inlined_call_operand.vmem [shape: f32[3,1,32], index: 10, kind: input, shape index: {}]
  %s11 = inlined_call_operand.vmem [shape: bf16[3,32,128], index: 11, kind: input, shape index: {}]
  %s12 = inlined_call_operand.vmem [shape: f32[3,1,128], index: 12, kind: input, shape index: {}]
  %s13 = inlined_call_operand.vmem [shape: f32[3,2,128], index: 13, kind: output, shape index: {}]
  %s14 = sld [smem:[#allocation0]]
  $region85: #{conv_vcl_forward.3} parent=0
    _
  %s16 = ssub.s32 1, %s14
  %s17 = scalar_select 0, %s16, %s14
  loop: start=0, step=1, limit=5
  $region2: #{conv_vcl_forward.3} parent=0 // loop_pre_header
    _
  $region3: #{conv_vcl_forward.3} parent=0 // loop_header
    %s19 = sphi 0, %s23
    %p20 = scmp.ge.s32.totalorder %s19, 5
    %s27 = sphi 0, %s27
    %s29 = sphi 0, %s27
    %s30 = sphi 0, %s29
    %s44 = sphi 0, %s30
    %s48 = sphi 0, %s48
    %s50 = sphi 0, %s48
    %s51 = sphi 0, %s50
    %s65 = sphi 0, %s51
    %s69 = sphi 0, %s69
    %s71 = sphi 0, %s69
    %s72 = sphi 0, %s71
    %s86 = sphi 0, %s72
    %s92 = sphi 0, %s94
    %s95 = sphi 0, %s92
    %s96 = sphi 0, %s95
    %s112 = sphi 0, %s96
    %s118 = sphi 0, %s120
    %s121 = sphi 0, %s118
    %s122 = sphi 0, %s121
    %s138 = sphi 0, %s122
    %s144 = sphi 0, %s146
    %s147 = sphi 0, %s144
    %s148 = sphi 0, %s147
    %s164 = sphi 0, %s148
    %s170 = sphi 0, %s172
    %s173 = sphi 0, %s170
    %s174 = sphi 0, %s173
    %s190 = sphi 0, %s174
    %s196 = sphi 0, %s198
    %s199 = sphi 0, %s196
    %s200 = sphi 0, %s199
    %s216 = sphi 0, %s200
    %s222 = sphi 0, %s224
    %s225 = sphi 0, %s222
    %s226 = sphi 0, %s225
    %s242 = sphi 0, %s226
    %s248 = sphi 0, %s250
    %s251 = sphi 0, %s248
    %s252 = sphi 0, %s251
    %s268 = sphi 0, %s252
    %s274 = sphi 0, %s276
    %s277 = sphi 0, %s274
    %s278 = sphi 0, %s277
    %s294 = sphi 0, %s278
    %s300 = sphi 0, %s302
    %s303 = sphi 0, %s300
    %s304 = sphi 0, %s303
    %s320 = sphi 0, %s304
    %s326 = sphi 0, %s328
    %s329 = sphi 0, %s326
    %s330 = sphi 0, %s329
    %s346 = sphi 0, %s330
    %s352 = sphi 0, %s354
    %s355 = sphi 0, %s352
    %s356 = sphi 0, %s355
    %s372 = sphi 0, %s356
  $region4: #{conv_vcl_forward.3} parent=0 // loop_header_branch
    %22 = sbr.rel (%p20) target = $region8
  $region5: #{conv_vcl_forward.3} parent=0 // loop_body
    %s24 = ssub.s32 %s19, 1
    %s25 = ssub.s32 %s19, 2
    %s26 = sadd.s32 %s19, 1
    %s28 = sadd.s32 %s27, 1
    %p31 = scmp.eq.s32.totalorder %s19, 2
    %p32 = scmp.ne.s32.totalorder %s27, %s29
    %p33 = scmp.eq.s32.totalorder %s19, 0
    %p34 = por %p32, %p33
    %p35 = scmp.ne.s32.totalorder %s27, %s29
    %p36 = scmp.eq.s32.totalorder %s24, 2
    %p37 = por %p35, %p36
    %p38 = scmp.ne.s32.totalorder %s29, %s30
    %p39 = scmp.eq.s32.totalorder %s24, 0
    %p40 = por %p38, %p39
    %p41 = scmp.ne.s32.totalorder %s29, %s30
    %p42 = scmp.eq.s32.totalorder %s25, 2
    %p43 = por %p41, %p42
    %p45 = scmp.ne.s32.totalorder %s30, %s44
    %p46 = scmp.eq.s32.totalorder %s25, 0
    %p47 = por %p45, %p46
    %s49 = sadd.s32 %s48, 1
    %p52 = scmp.eq.s32.totalorder %s19, 2
    %p53 = scmp.ne.s32.totalorder %s48, %s50
    %p54 = scmp.eq.s32.totalorder %s19, 0
    %p55 = por %p53, %p54
    %p56 = scmp.ne.s32.totalorder %s48, %s50
    %p57 = scmp.eq.s32.totalorder %s24, 2
    %p58 = por %p56, %p57
    %p59 = scmp.ne.s32.totalorder %s50, %s51
    %p60 = scmp.eq.s32.totalorder %s24, 0
    %p61 = por %p59, %p60
    %p62 = scmp.ne.s32.totalorder %s50, %s51
    %p63 = scmp.eq.s32.totalorder %s25, 2
    %p64 = por %p62, %p63
    %p66 = scmp.ne.s32.totalorder %s51, %s65
    %p67 = scmp.eq.s32.totalorder %s25, 0
    %p68 = por %p66, %p67
    %s70 = sadd.s32 %s69, 1
    %p73 = scmp.eq.s32.totalorder %s19, 2
    %p74 = scmp.ne.s32.totalorder %s69, %s71
    %p75 = scmp.eq.s32.totalorder %s19, 0
    %p76 = por %p74, %p75
    %p77 = scmp.ne.s32.totalorder %s69, %s71
    %p78 = scmp.eq.s32.totalorder %s24, 2
    %p79 = por %p77, %p78
    %p80 = scmp.ne.s32.totalorder %s71, %s72
    %p81 = scmp.eq.s32.totalorder %s24, 0
    %p82 = por %p80, %p81
    %p83 = scmp.ne.s32.totalorder %s71, %s72
    %p84 = scmp.eq.s32.totalorder %s25, 2
    %p85 = por %p83, %p84
    %p87 = scmp.ne.s32.totalorder %s72, %s86
    %p88 = scmp.eq.s32.totalorder %s25, 0
    %p89 = por %p87, %p88
    %s90 = ssub.s32 %s19, %s26
    %p91 = scmp.eq.s32.totalorder %s90, 0
    %s93 = sadd.s32 %s92, 1
    %s94 = scalar_select %p91, %s92, %s93
    %p97 = pneg %p91
    %p98 = scmp.eq.s32.totalorder %s19, 2
    %p99 = por %p97, %p98
    %p100 = scmp.ne.s32.totalorder %s92, %s95
    %p101 = scmp.eq.s32.totalorder %s19, 0
    %p102 = por %p100, %p101
    %p103 = scmp.ne.s32.totalorder %s92, %s95
    %p104 = scmp.eq.s32.totalorder %s24, 2
    %p105 = por %p103, %p104
    %p106 = scmp.ne.s32.totalorder %s95, %s96
    %p107 = scmp.eq.s32.totalorder %s24, 0
    %p108 = por %p106, %p107
    %p109 = scmp.ne.s32.totalorder %s95, %s96
    %p110 = scmp.eq.s32.totalorder %s25, 2
    %p111 = por %p109, %p110
    %p113 = scmp.ne.s32.totalorder %s96, %s112
    %p114 = scmp.eq.s32.totalorder %s25, 0
    %p115 = por %p113, %p114
    %s116 = ssub.s32 %s19, %s26
    %p117 = scmp.eq.s32.totalorder %s116, 0
    %s119 = sadd.s32 %s118, 1
    %s120 = scalar_select %p117, %s118, %s119
    %p123 = pneg %p117
    %p124 = scmp.eq.s32.totalorder %s19, 2
    %p125 = por %p123, %p124
    %p126 = scmp.ne.s32.totalorder %s118, %s121
    %p127 = scmp.eq.s32.totalorder %s19, 0
    %p128 = por %p126, %p127
    %p129 = scmp.ne.s32.totalorder %s118, %s121
    %p130 = scmp.eq.s32.totalorder %s24, 2
    %p131 = por %p129, %p130
    %p132 = scmp.ne.s32.totalorder %s121, %s122
    %p133 = scmp.eq.s32.totalorder %s24, 0
    %p134 = por %p132, %p133
    %p135 = scmp.ne.s32.totalorder %s121, %s122
    %p136 = scmp.eq.s32.totalorder %s25, 2
    %p137 = por %p135, %p136
    %p139 = scmp.ne.s32.totalorder %s122, %s138
    %p140 = scmp.eq.s32.totalorder %s25, 0
    %p141 = por %p139, %p140
    %s142 = ssub.s32 %s19, %s26
    %p143 = scmp.eq.s32.totalorder %s142, 0
    %s145 = sadd.s32 %s144, 1
    %s146 = scalar_select %p143, %s144, %s145
    %p149 = pneg %p143
    %p150 = scmp.eq.s32.totalorder %s19, 2
    %p151 = por %p149, %p150
    %p152 = scmp.ne.s32.totalorder %s144, %s147
    %p153 = scmp.eq.s32.totalorder %s19, 0
    %p154 = por %p152, %p153
    %p155 = scmp.ne.s32.totalorder %s144, %s147
    %p156 = scmp.eq.s32.totalorder %s24, 2
    %p157 = por %p155, %p156
    %p158 = scmp.ne.s32.totalorder %s147, %s148
    %p159 = scmp.eq.s32.totalorder %s24, 0
    %p160 = por %p158, %p159
    %p161 = scmp.ne.s32.totalorder %s147, %s148
    %p162 = scmp.eq.s32.totalorder %s25, 2
    %p163 = por %p161, %p162
    %p165 = scmp.ne.s32.totalorder %s148, %s164
    %p166 = scmp.eq.s32.totalorder %s25, 0
    %p167 = por %p165, %p166
    %s168 = ssub.s32 %s19, %s26
    %p169 = scmp.eq.s32.totalorder %s168, 0
    %s171 = sadd.s32 %s170, 1
    %s172 = scalar_select %p169, %s170, %s171
    %p175 = pneg %p169
    %p176 = scmp.eq.s32.totalorder %s19, 2
    %p177 = por %p175, %p176
    %p178 = scmp.ne.s32.totalorder %s170, %s173
    %p179 = scmp.eq.s32.totalorder %s19, 0
    %p180 = por %p178, %p179
    %p181 = scmp.ne.s32.totalorder %s170, %s173
    %p182 = scmp.eq.s32.totalorder %s24, 2
    %p183 = por %p181, %p182
    %p184 = scmp.ne.s32.totalorder %s173, %s174
    %p185 = scmp.eq.s32.totalorder %s24, 0
    %p186 = por %p184, %p185
    %p187 = scmp.ne.s32.totalorder %s173, %s174
    %p188 = scmp.eq.s32.totalorder %s25, 2
    %p189 = por %p187, %p188
    %p191 = scmp.ne.s32.totalorder %s174, %s190
    %p192 = scmp.eq.s32.totalorder %s25, 0
    %p193 = por %p191, %p192
    %s194 = ssub.s32 %s19, %s26
    %p195 = scmp.eq.s32.totalorder %s194, 0
    %s197 = sadd.s32 %s196, 1
    %s198 = scalar_select %p195, %s196, %s197
    %p201 = pneg %p195
    %p202 = scmp.eq.s32.totalorder %s19, 2
    %p203 = por %p201, %p202
    %p204 = scmp.ne.s32.totalorder %s196, %s199
    %p205 = scmp.eq.s32.totalorder %s19, 0
    %p206 = por %p204, %p205
    %p207 = scmp.ne.s32.totalorder %s196, %s199
    %p208 = scmp.eq.s32.totalorder %s24, 2
    %p209 = por %p207, %p208
    %p210 = scmp.ne.s32.totalorder %s199, %s200
    %p211 = scmp.eq.s32.totalorder %s24, 0
    %p212 = por %p210, %p211
    %p213 = scmp.ne.s32.totalorder %s199, %s200
    %p214 = scmp.eq.s32.totalorder %s25, 2
    %p215 = por %p213, %p214
    %p217 = scmp.ne.s32.totalorder %s200, %s216
    %p218 = scmp.eq.s32.totalorder %s25, 0
    %p219 = por %p217, %p218
    %s220 = ssub.s32 %s19, %s26
    %p221 = scmp.eq.s32.totalorder %s220, 0
    %s223 = sadd.s32 %s222, 1
    %s224 = scalar_select %p221, %s222, %s223
    %p227 = pneg %p221
    %p228 = scmp.eq.s32.totalorder %s19, 2
    %p229 = por %p227, %p228
    %p230 = scmp.ne.s32.totalorder %s222, %s225
    %p231 = scmp.eq.s32.totalorder %s19, 0
    %p232 = por %p230, %p231
    %p233 = scmp.ne.s32.totalorder %s222, %s225
    %p234 = scmp.eq.s32.totalorder %s24, 2
    %p235 = por %p233, %p234
    %p236 = scmp.ne.s32.totalorder %s225, %s226
    %p237 = scmp.eq.s32.totalorder %s24, 0
    %p238 = por %p236, %p237
    %p239 = scmp.ne.s32.totalorder %s225, %s226
    %p240 = scmp.eq.s32.totalorder %s25, 2
    %p241 = por %p239, %p240
    %p243 = scmp.ne.s32.totalorder %s226, %s242
    %p244 = scmp.eq.s32.totalorder %s25, 0
    %p245 = por %p243, %p244
    %s246 = ssub.s32 %s19, %s26
    %p247 = scmp.eq.s32.totalorder %s246, 0
    %s249 = sadd.s32 %s248, 1
    %s250 = scalar_select %p247, %s248, %s249
    %p253 = pneg %p247
    %p254 = scmp.eq.s32.totalorder %s19, 2
    %p255 = por %p253, %p254
    %p256 = scmp.ne.s32.totalorder %s248, %s251
    %p257 = scmp.eq.s32.totalorder %s19, 0
    %p258 = por %p256, %p257
    %p259 = scmp.ne.s32.totalorder %s248, %s251
    %p260 = scmp.eq.s32.totalorder %s24, 2
    %p261 = por %p259, %p260
    %p262 = scmp.ne.s32.totalorder %s251, %s252
    %p263 = scmp.eq.s32.totalorder %s24, 0
    %p264 = por %p262, %p263
    %p265 = scmp.ne.s32.totalorder %s251, %s252
    %p266 = scmp.eq.s32.totalorder %s25, 2
    %p267 = por %p265, %p266
    %p269 = scmp.ne.s32.totalorder %s252, %s268
    %p270 = scmp.eq.s32.totalorder %s25, 0
    %p271 = por %p269, %p270
    %s272 = ssub.s32 %s19, %s26
    %p273 = scmp.eq.s32.totalorder %s272, 0
    %s275 = sadd.s32 %s274, 1
    %s276 = scalar_select %p273, %s274, %s275
    %p279 = pneg %p273
    %p280 = scmp.eq.s32.totalorder %s19, 2
    %p281 = por %p279, %p280
    %p282 = scmp.ne.s32.totalorder %s274, %s277
    %p283 = scmp.eq.s32.totalorder %s19, 0
    %p284 = por %p282, %p283
    %p285 = scmp.ne.s32.totalorder %s274, %s277
    %p286 = scmp.eq.s32.totalorder %s24, 2
    %p287 = por %p285, %p286
    %p288 = scmp.ne.s32.totalorder %s277, %s278
    %p289 = scmp.eq.s32.totalorder %s24, 0
    %p290 = por %p288, %p289
    %p291 = scmp.ne.s32.totalorder %s277, %s278
    %p292 = scmp.eq.s32.totalorder %s25, 2
    %p293 = por %p291, %p292
    %p295 = scmp.ne.s32.totalorder %s278, %s294
    %p296 = scmp.eq.s32.totalorder %s25, 0
    %p297 = por %p295, %p296
    %s298 = ssub.s32 %s19, %s26
    %p299 = scmp.eq.s32.totalorder %s298, 0
    %s301 = sadd.s32 %s300, 1
    %s302 = scalar_select %p299, %s300, %s301
    %p305 = pneg %p299
    %p306 = scmp.eq.s32.totalorder %s19, 2
    %p307 = por %p305, %p306
    %p308 = scmp.ne.s32.totalorder %s300, %s303
    %p309 = scmp.eq.s32.totalorder %s19, 0
    %p310 = por %p308, %p309
    %p311 = scmp.ne.s32.totalorder %s300, %s303
    %p312 = scmp.eq.s32.totalorder %s24, 2
    %p313 = por %p311, %p312
    %p314 = scmp.ne.s32.totalorder %s303, %s304
    %p315 = scmp.eq.s32.totalorder %s24, 0
    %p316 = por %p314, %p315
    %p317 = scmp.ne.s32.totalorder %s303, %s304
    %p318 = scmp.eq.s32.totalorder %s25, 2
    %p319 = por %p317, %p318
    %p321 = scmp.ne.s32.totalorder %s304, %s320
    %p322 = scmp.eq.s32.totalorder %s25, 0
    %p323 = por %p321, %p322
    %s324 = ssub.s32 %s19, %s26
    %p325 = scmp.eq.s32.totalorder %s324, 0
    %s327 = sadd.s32 %s326, 1
    %s328 = scalar_select %p325, %s326, %s327
    %p331 = pneg %p325
    %p332 = scmp.eq.s32.totalorder %s19, 2
    %p333 = por %p331, %p332
    %p334 = scmp.ne.s32.totalorder %s326, %s329
    %p335 = scmp.eq.s32.totalorder %s19, 0
    %p336 = por %p334, %p335
    %p337 = scmp.ne.s32.totalorder %s326, %s329
    %p338 = scmp.eq.s32.totalorder %s24, 2
    %p339 = por %p337, %p338
    %p340 = scmp.ne.s32.totalorder %s329, %s330
    %p341 = scmp.eq.s32.totalorder %s24, 0
    %p342 = por %p340, %p341
    %p343 = scmp.ne.s32.totalorder %s329, %s330
    %p344 = scmp.eq.s32.totalorder %s25, 2
    %p345 = por %p343, %p344
    %p347 = scmp.ne.s32.totalorder %s330, %s346
    %p348 = scmp.eq.s32.totalorder %s25, 0
    %p349 = por %p347, %p348
    %s350 = ssub.s32 %s19, %s26
    %p351 = scmp.eq.s32.totalorder %s350, 0
    %s353 = sadd.s32 %s352, 1
    %s354 = scalar_select %p351, %s352, %s353
    %p357 = pneg %p351
    %p358 = scmp.eq.s32.totalorder %s19, 2
    %p359 = por %p357, %p358
    %p360 = scmp.ne.s32.totalorder %s352, %s355
    %p361 = scmp.eq.s32.totalorder %s19, 0
    %p362 = por %p360, %p361
    %p363 = scmp.ne.s32.totalorder %s352, %s355
    %p364 = scmp.eq.s32.totalorder %s24, 2
    %p365 = por %p363, %p364
    %p366 = scmp.ne.s32.totalorder %s355, %s356
    %p367 = scmp.eq.s32.totalorder %s24, 0
    %p368 = por %p366, %p367
    %p369 = scmp.ne.s32.totalorder %s355, %s356
    %p370 = scmp.eq.s32.totalorder %s25, 2
    %p371 = por %p369, %p370
    %p373 = scmp.ne.s32.totalorder %s356, %s372
    %p374 = scmp.eq.s32.totalorder %s25, 0
    %p375 = por %p373, %p374
    %p376 = scmp.le.s32.totalorder 1, %s19
    %p377 = scmp.lt.s32.totalorder %s19, 4
    %p378 = pnand %p376, %p377
    %p379 = pneg %p378
    // Predicated region
    $region9: #{conv_vcl_forward.3} parent=5 // pred_check
      _
    $region10: #{conv_vcl_forward.3} parent=5 // pred_check_branch
      %381 = sbr.rel (%p378) target = $region12
    $region11: #{conv_vcl_forward.3} parent=5 // pred_region
      %s382 = ssub.s32 %s19, 1
      // Predicated region
      $region13: #{conv_vcl_forward.3} parent=11 // pred_check
        %p383 = pneg %p40
      $region14: #{conv_vcl_forward.3} parent=11 // pred_check_branch
        %385 = sbr.rel (%p383) target = $region16
      $region15: #{conv_vcl_forward.3} parent=11 // pred_region
        _
      $region16: #{conv_vcl_forward.3} parent=11 // pred_fallthru
        _
      // Predicated region
      $region17: #{conv_vcl_forward.3} parent=11 // pred_check
        %p386 = pneg %p61
      $region18: #{conv_vcl_forward.3} parent=11 // pred_check_branch
        %388 = sbr.rel (%p386) target = $region20
      $region19: #{conv_vcl_forward.3} parent=11 // pred_region
        _
      $region20: #{conv_vcl_forward.3} parent=11 // pred_fallthru
        _
      // Predicated region
      $region21: #{conv_vcl_forward.3} parent=11 // pred_check
        %p389 = pneg %p82
      $region22: #{conv_vcl_forward.3} parent=11 // pred_check_branch
        %391 = sbr.rel (%p389) target = $region24
      $region23: #{conv_vcl_forward.3} parent=11 // pred_region
        _
      $region24: #{conv_vcl_forward.3} parent=11 // pred_fallthru
        _
    $region12: #{conv_vcl_forward.3} parent=5 // pred_fallthru
      _
    %p392 = scmp.lt.s32.totalorder %s19, 3
    // Predicated region
    $region25: #{conv_vcl_forward.3} parent=5 // pred_check
      %p393 = pneg %p392
    $region26: #{conv_vcl_forward.3} parent=5 // pred_check_branch
      %395 = sbr.rel (%p393) target = $region28
    $region27: #{conv_vcl_forward.3} parent=5 // pred_region
      // Predicated region
      $region29: #{conv_vcl_forward.3} parent=27 // pred_check
        %p396 = pneg %p102
      $region30: #{conv_vcl_forward.3} parent=27 // pred_check_branch
        %398 = sbr.rel (%p396) target = $region32
      $region31: #{conv_vcl_forward.3} parent=27 // pred_region
        %p399 = scmp.lt.s32.totalorder %s19, 2
        %s400 = scalar_select %p399, %s19, 2
        %s401 = smul.addr %s400, 5
        %s402 = smul.addr %s401, 4
        %s403 = scalar_lea.vmem %s3, %s402
      $region32: #{conv_vcl_forward.3} parent=27 // pred_fallthru
        _
      // Predicated region
      $region33: #{conv_vcl_forward.3} parent=27 // pred_check
        %p404 = pneg %p128
      $region34: #{conv_vcl_forward.3} parent=27 // pred_check_branch
        %406 = sbr.rel (%p404) target = $region36
      $region35: #{conv_vcl_forward.3} parent=27 // pred_region
        %p407 = scmp.lt.s32.totalorder %s19, 2
        %s408 = scalar_select %p407, %s19, 2
        %s409 = scalar_lea.vmem %s4, %s408
      $region36: #{conv_vcl_forward.3} parent=27 // pred_fallthru
        _
      // Predicated region
      $region37: #{conv_vcl_forward.3} parent=27 // pred_check
        %p410 = pneg %p154
      $region38: #{conv_vcl_forward.3} parent=27 // pred_check_branch
        %412 = sbr.rel (%p410) target = $region40
      $region39: #{conv_vcl_forward.3} parent=27 // pred_region
        %p413 = scmp.lt.s32.totalorder %s19, 2
        %s414 = scalar_select %p413, %s19, 2
        %s415 = smul.addr %s414, 144
        %s416 = smul.addr %s415, 4
        %s417 = scalar_lea.vmem %s5, %s416
      $region40: #{conv_vcl_forward.3} parent=27 // pred_fallthru
        _
      // Predicated region
      $region41: #{conv_vcl_forward.3} parent=27 // pred_check
        %p418 = pneg %p180
      $region42: #{conv_vcl_forward.3} parent=27 // pred_check_branch
        %420 = sbr.rel (%p418) target = $region44
      $region43: #{conv_vcl_forward.3} parent=27 // pred_region
        %p421 = scmp.lt.s32.totalorder %s19, 2
        %s422 = scalar_select %p421, %s19, 2
        %s423 = scalar_lea.vmem %s6, %s422
      $region44: #{conv_vcl_forward.3} parent=27 // pred_fallthru
        _
      // Predicated region
      $region45: #{conv_vcl_forward.3} parent=27 // pred_check
        %p424 = pneg %p206
      $region46: #{conv_vcl_forward.3} parent=27 // pred_check_branch
        %426 = sbr.rel (%p424) target = $region48
      $region47: #{conv_vcl_forward.3} parent=27 // pred_region
        %p427 = scmp.lt.s32.totalorder %s19, 2
        %s428 = scalar_select %p427, %s19, 2
        %s429 = smul.addr %s428, 288
        %s430 = smul.addr %s429, 4
        %s431 = scalar_lea.vmem %s7, %s430
      $region48: #{conv_vcl_forward.3} parent=27 // pred_fallthru
        _
      // Predicated region
      $region49: #{conv_vcl_forward.3} parent=27 // pred_check
        %p432 = pneg %p232
      $region50: #{conv_vcl_forward.3} parent=27 // pred_check_branch
        %434 = sbr.rel (%p432) target = $region52
      $region51: #{conv_vcl_forward.3} parent=27 // pred_region
        %p435 = scmp.lt.s32.totalorder %s19, 2
        %s436 = scalar_select %p435, %s19, 2
        %s437 = smul.addr %s436, 2
        %s438 = scalar_lea.vmem %s8, %s437
      $region52: #{conv_vcl_forward.3} parent=27 // pred_fallthru
        _
      // Predicated region
      $region53: #{conv_vcl_forward.3} parent=27 // pred_check
        %p439 = pneg %p258
      $region54: #{conv_vcl_forward.3} parent=27 // pred_check_branch
        %441 = sbr.rel (%p439) target = $region56
      $region55: #{conv_vcl_forward.3} parent=27 // pred_region
        %p442 = scmp.lt.s32.totalorder %s19, 2
        %s443 = scalar_select %p442, %s19, 2
        %s444 = smul.addr %s443, 128
        %s445 = smul.addr %s444, 4
        %s446 = scalar_lea.vmem %s9, %s445
      $region56: #{conv_vcl_forward.3} parent=27 // pred_fallthru
        _
      // Predicated region
      $region57: #{conv_vcl_forward.3} parent=27 // pred_check
        %p447 = pneg %p284
      $region58: #{conv_vcl_forward.3} parent=27 // pred_check_branch
        %449 = sbr.rel (%p447) target = $region60
      $region59: #{conv_vcl_forward.3} parent=27 // pred_region
        %p450 = scmp.lt.s32.totalorder %s19, 2
        %s451 = scalar_select %p450, %s19, 2
        %s452 = scalar_lea.vmem %s10, %s451
      $region60: #{conv_vcl_forward.3} parent=27 // pred_fallthru
        _
      // Predicated region
      $region61: #{conv_vcl_forward.3} parent=27 // pred_check
        %p453 = pneg %p310
      $region62: #{conv_vcl_forward.3} parent=27 // pred_check_branch
        %455 = sbr.rel (%p453) target = $region64
      $region63: #{conv_vcl_forward.3} parent=27 // pred_region
        %p456 = scmp.lt.s32.totalorder %s19, 2
        %s457 = scalar_select %p456, %s19, 2
        %s458 = smul.addr %s457, 4
        %s459 = smul.addr %s458, 4
        %s460 = scalar_lea.vmem %s11, %s459
      $region64: #{conv_vcl_forward.3} parent=27 // pred_fallthru
        _
      // Predicated region
      $region65: #{conv_vcl_forward.3} parent=27 // pred_check
        %p461 = pneg %p336
      $region66: #{conv_vcl_forward.3} parent=27 // pred_check_branch
        %463 = sbr.rel (%p461) target = $region68
      $region67: #{conv_vcl_forward.3} parent=27 // pred_region
        %p464 = scmp.lt.s32.totalorder %s19, 2
        %s465 = scalar_select %p464, %s19, 2
        %s466 = scalar_lea.vmem %s12, %s465
      $region68: #{conv_vcl_forward.3} parent=27 // pred_fallthru
        _
    $region28: #{conv_vcl_forward.3} parent=5 // pred_fallthru
      _
    %p467 = scmp.le.s32.totalorder 1, %s19
    %p468 = scmp.lt.s32.totalorder %s19, 4
    %p469 = pnand %p467, %p468
    %p470 = pneg %p469
    // Predicated region
    $region69: #{conv_vcl_forward.3} parent=5 // pred_check
      _
    $region70: #{conv_vcl_forward.3} parent=5 // pred_check_branch
      %472 = sbr.rel (%p469) target = $region72
    $region71: #{conv_vcl_forward.3} parent=5 // pred_region
      %s473 = ssub.s32 %s19, 1
      %p474 = pneg %p40
      %p475 = pneg %p37
      %p476 = pneg %p61
      %p477 = pneg %p58
      %p478 = pneg %p82
      %p479 = pneg %p79
      %p480 = scmp.lt.s32.totalorder %s24, 2
      %s481 = scalar_select %p480, %s24, 2
      %s482 = smul.addr %s481, 5
      %s483 = smul.addr %s482, 4
      %s484 = scalar_lea.vmem %s3, %s483
      %p485 = pneg %p108
      %p486 = pneg %p105
      %p487 = scmp.lt.s32.totalorder %s24, 2
      %s488 = scalar_select %p487, %s24, 2
      %s489 = scalar_lea.vmem %s4, %s488
      %p490 = pneg %p134
      %p491 = pneg %p131
      %p492 = scmp.lt.s32.totalorder %s24, 2
      %s493 = scalar_select %p492, %s24, 2
      %s494 = smul.addr %s493, 144
      %s495 = smul.addr %s494, 4
      %s496 = scalar_lea.vmem %s5, %s495
      %p497 = pneg %p160
      %p498 = pneg %p157
      %p499 = scmp.lt.s32.totalorder %s24, 2
      %s500 = scalar_select %p499, %s24, 2
      %s501 = scalar_lea.vmem %s6, %s500
      %p502 = pneg %p186
      %p503 = pneg %p183
      %p504 = scmp.lt.s32.totalorder %s24, 2
      %s505 = scalar_select %p504, %s24, 2
      %s506 = smul.addr %s505, 288
      %s507 = smul.addr %s506, 4
      %s508 = scalar_lea.vmem %s7, %s507
      %p509 = pneg %p212
      %p510 = pneg %p209
      %p511 = scmp.lt.s32.totalorder %s24, 2
      %s512 = scalar_select %p511, %s24, 2
      %s513 = smul.addr %s512, 2
      %s514 = scalar_lea.vmem %s8, %s513
      %p515 = pneg %p238
      %p516 = pneg %p235
      %p517 = scmp.lt.s32.totalorder %s24, 2
      %s518 = scalar_select %p517, %s24, 2
      %s519 = smul.addr %s518, 128
      %s520 = smul.addr %s519, 4
      %s521 = scalar_lea.vmem %s9, %s520
      %p522 = pneg %p264
      %p523 = pneg %p261
      %p524 = scmp.lt.s32.totalorder %s24, 2
      %s525 = scalar_select %p524, %s24, 2
      %s526 = scalar_lea.vmem %s10, %s525
      %p527 = pneg %p290
      %p528 = pneg %p287
      %p529 = scmp.lt.s32.totalorder %s24, 2
      %s530 = scalar_select %p529, %s24, 2
      %s531 = smul.addr %s530, 4
      %s532 = smul.addr %s531, 4
      %s533 = scalar_lea.vmem %s11, %s532
      %p534 = pneg %p316
      %p535 = pneg %p313
      %p536 = scmp.lt.s32.totalorder %s24, 2
      %s537 = scalar_select %p536, %s24, 2
      %s538 = scalar_lea.vmem %s12, %s537
      %p539 = pneg %p342
      %p540 = pneg %p339
      %p541 = pneg %p368
      %p542 = pneg %p365
      %p543 = scmp.lt.s32.totalorder %s24, 2
      %s544 = scalar_select %p543, %s24, 2
      %s545 = smul.addr %s544, 2
      %s546 = scalar_lea.vmem %s13, %s545
      %p547 = scmp.lt.s32.totalorder %s24, 2
      %s548 = scalar_select %p547, %s24, 2
      %s549 = smul.addr %s548, 5
      %s550 = smul.addr %s549, 4
      %s551 = scalar_lea.vmem %s3, %s550
      %p552 = scmp.lt.s32.totalorder %s24, 2
      %s553 = scalar_select %p552, %s24, 2
      %s554 = scalar_lea.vmem %s4, %s553
      %p555 = scmp.lt.s32.totalorder %s24, 2
      %s556 = scalar_select %p555, %s24, 2
      %s557 = smul.addr %s556, 144
      %s558 = smul.addr %s557, 4
      %s559 = scalar_lea.vmem %s5, %s558
      %p560 = scmp.lt.s32.totalorder %s24, 2
      %s561 = scalar_select %p560, %s24, 2
      %s562 = scalar_lea.vmem %s6, %s561
      %p563 = scmp.lt.s32.totalorder %s24, 2
      %s564 = scalar_select %p563, %s24, 2
      %s565 = smul.addr %s564, 288
      %s566 = smul.addr %s565, 4
      %s567 = scalar_lea.vmem %s7, %s566
      %p568 = scmp.lt.s32.totalorder %s24, 2
      %s569 = scalar_select %p568, %s24, 2
      %s570 = smul.addr %s569, 2
      %s571 = scalar_lea.vmem %s8, %s570
      %p572 = scmp.lt.s32.totalorder %s24, 2
      %s573 = scalar_select %p572, %s24, 2
      %s574 = smul.addr %s573, 128
      %s575 = smul.addr %s574, 4
      %s576 = scalar_lea.vmem %s9, %s575
      %p577 = scmp.lt.s32.totalorder %s24, 2
      %s578 = scalar_select %p577, %s24, 2
      %s579 = scalar_lea.vmem %s10, %s578
      %p580 = scmp.lt.s32.totalorder %s24, 2
      %s581 = scalar_select %p580, %s24, 2
      %s582 = smul.addr %s581, 4
      %s583 = smul.addr %s582, 4
      %s584 = scalar_lea.vmem %s11, %s583
      %p585 = scmp.lt.s32.totalorder %s24, 2
      %s586 = scalar_select %p585, %s24, 2
      %s587 = scalar_lea.vmem %s12, %s586
      %p588 = scmp.lt.s32.totalorder %s24, 2
      %s589 = scalar_select %p588, %s24, 2
      %s590 = smul.addr %s589, 2
      %s591 = scalar_lea.vmem %s13, %s590
      %v593 = vld [vmem:[%s0] sm:$0xf]
      %v594 = vld [vmem:[%s0 + $0x4] sm:$0xf]
      %v595 = vld [vmem:[%s0 + $0x8] sm:$0xf]
      %v596 = vld [vmem:[%s0 + $0xc] sm:$0xf]
      %v597 = vld [vmem:[%s0 + $0x10] sm:$0xf]
      %v598 = vld [vmem:[%s0 + $0x14] sm:$0xf]
      %v599 = vld [vmem:[%s0 + $0x18] sm:$0xf]
      %v600 = vld [vmem:[%s0 + $0x1c] sm:$0xf]
      %v601 = vld [vmem:[%s0 + $0x20] sm:$0xf]
      %v602 = vld [vmem:[%s0 + $0x24] sm:$0xf]
      %v603 = vld [vmem:[%s0 + $0x28] sm:$0xf]
      %v604 = vld [vmem:[%s0 + $0x2c] sm:$0xf]
      %v605 = vld [vmem:[%s0 + $0x30] sm:$0xf]
      %v606 = vld [vmem:[%s0 + $0x34] sm:$0xf]
      %v607 = vld [vmem:[%s0 + $0x38] sm:$0xf]
      %v608 = vld [vmem:[%s0 + $0x3c] sm:$0xf]
      %v609 = vld [vmem:[%s0 + $0x40] sm:$0xf]
      %v610 = vld [vmem:[%s0 + $0x44] sm:$0xf]
      %v611 = vld [vmem:[%s0 + $0x48] sm:$0xf]
      %v612 = vld [vmem:[%s0 + $0x4c] sm:$0xf]
      %v613 = vld [vmem:[%s0 + $0x50] sm:$0xf]
      %v614 = vld [vmem:[%s0 + $0x54] sm:$0xf]
      %v615 = vld [vmem:[%s0 + $0x58] sm:$0xf]
      %v616 = vld [vmem:[%s0 + $0x5c] sm:$0xf]
      %v617 = vld [vmem:[%s0 + $0x60] sm:$0xf]
      %v618 = vld [vmem:[%s0 + $0x64] sm:$0xf]
      %v619 = vld [vmem:[%s0 + $0x68] sm:$0xf]
      %v620 = vld [vmem:[%s0 + $0x6c] sm:$0xf]
      %v621 = vld [vmem:[%s0 + $0x70] sm:$0xf]
      %v622 = vld [vmem:[%s0 + $0x74] sm:$0xf]
      %v623 = vld [vmem:[%s0 + $0x78] sm:$0xf]
      %v624 = vld [vmem:[%s0 + $0x7c] sm:$0xf]
      %v625 = vld [vmem:[%s0 + $0x80] sm:$0xf]
      %v626 = vld [vmem:[%s0 + $0x84] sm:$0xf]
      %v627 = vld [vmem:[%s0 + $0x88] sm:$0xf]
      %v628 = vld [vmem:[%s0 + $0x8c] sm:$0xf]
      %v629 = vld [vmem:[%s0 + $0x90] sm:$0xf]
      %v630 = vld [vmem:[%s0 + $0x94] sm:$0xf]
      %v631 = vld [vmem:[%s0 + $0x98] sm:$0xf]
      %v632 = vld [vmem:[%s0 + $0x9c] sm:$0xf]
      %v633 = vld [vmem:[%s0 + $0xa0] sm:$0xf]
      %v634 = vld [vmem:[%s0 + $0xa4] sm:$0xf]
      %v635 = vld [vmem:[%s0 + $0xa8] sm:$0xf]
      %v636 = vld [vmem:[%s0 + $0xac] sm:$0xf]
      %v637 = vld [vmem:[%s0 + $0xb0] sm:$0xf]
      %v638 = vld [vmem:[%s0 + $0xb4] sm:$0xf]
      %v639 = vld [vmem:[%s0 + $0xb8] sm:$0xf]
      %v640 = vld [vmem:[%s0 + $0xbc] sm:$0xf]
      %v641 = vld [vmem:[%s0 + $0xc0] sm:$0xf]
      %v642 = vld [vmem:[%s0 + $0xc4] sm:$0xf]
      %v643 = vld [vmem:[%s0 + $0xc8] sm:$0xf]
      %v644 = vld [vmem:[%s0 + $0xcc] sm:$0xf]
      %v645 = vld [vmem:[%s0 + $0xd0] sm:$0xf]
      %v646 = vld [vmem:[%s0 + $0xd4] sm:$0xf]
      %v647 = vld [vmem:[%s0 + $0xd8] sm:$0xf]
      %v648 = vld [vmem:[%s0 + $0xdc] sm:$0xf]
      %v649 = vld [vmem:[%s0 + $0xe0] sm:$0xf]
      %v650 = vld [vmem:[%s0 + $0xe4] sm:$0xf]
      %v651 = vld [vmem:[%s0 + $0xe8] sm:$0xf]
      %v652 = vld [vmem:[%s0 + $0xec] sm:$0xf]
      %v653 = vld [vmem:[%s0 + $0xf0] sm:$0xf]
      %v654 = vld [vmem:[%s0 + $0xf4] sm:$0xf]
      %v655 = vld [vmem:[%s0 + $0xf8] sm:$0xf]
      %v656 = vld [vmem:[%s0 + $0xfc] sm:$0xf]
      %v657 = vld [vmem:[%s551] sm:$0xf]
      %v658 = vld [vmem:[%s551 + $0x4] sm:$0xf]
      %v659 = vld [vmem:[%s551 + $0x8] sm:$0xf]
      %v660 = vld [vmem:[%s551 + $0xc] sm:$0xf]
      %v661 = vld [vmem:[%s551 + $0x10] sm:$0x3]
      %v662 = vld [vmem:[%s554] sm:$0x1]
      %v664 = vlaneseq
      %v665 = vshrl.u32 %v664, 7
      %v666 = vsub.s32 0, %v665
      %v667 = vrot.slane %v662, %v666
      %v733 = vunpack.c.l.b16 %v593
      %v734 = vunpack.c.l.b16 %v594
      %v735 = vunpack.c.l.b16 %v595
      %v736 = vunpack.c.l.b16 %v596
      %v737 = vunpack.c.l.b16 %v597
      %v738 = vunpack.c.l.b16 %v598
      %v739 = vunpack.c.l.b16 %v599
      %v740 = vunpack.c.l.b16 %v600
      %v741 = vunpack.c.l.b16 %v601
      %v742 = vunpack.c.l.b16 %v602
      %v743 = vunpack.c.l.b16 %v603
      %v744 = vunpack.c.l.b16 %v604
      %v745 = vunpack.c.l.b16 %v605
      %v746 = vunpack.c.l.b16 %v606
      %v747 = vunpack.c.l.b16 %v607
      %v748 = vunpack.c.l.b16 %v608
      %v749 = vunpack.c.l.b16 %v609
      %v750 = vunpack.c.l.b16 %v610
      %v751 = vunpack.c.l.b16 %v611
      %v752 = vunpack.c.l.b16 %v612
      %v753 = vunpack.c.l.b16 %v613
      %v754 = vunpack.c.l.b16 %v614
      %v755 = vunpack.c.l.b16 %v615
      %v756 = vunpack.c.l.b16 %v616
      %v757 = vunpack.c.l.b16 %v617
      %v758 = vunpack.c.l.b16 %v618
      %v759 = vunpack.c.l.b16 %v619
      %v760 = vunpack.c.l.b16 %v620
      %v761 = vunpack.c.l.b16 %v621
      %v762 = vunpack.c.l.b16 %v622
      %v763 = vunpack.c.l.b16 %v623
      %v764 = vunpack.c.l.b16 %v624
      %v765 = vunpack.c.l.b16 %v625
      %v766 = vunpack.c.l.b16 %v626
      %v767 = vunpack.c.l.b16 %v627
      %v768 = vunpack.c.l.b16 %v628
      %v769 = vunpack.c.l.b16 %v629
      %v770 = vunpack.c.l.b16 %v630
      %v771 = vunpack.c.l.b16 %v631
      %v772 = vunpack.c.l.b16 %v632
      %v773 = vunpack.c.l.b16 %v633
      %v774 = vunpack.c.l.b16 %v634
      %v775 = vunpack.c.l.b16 %v635
      %v776 = vunpack.c.l.b16 %v636
      %v777 = vunpack.c.l.b16 %v637
      %v778 = vunpack.c.l.b16 %v638
      %v779 = vunpack.c.l.b16 %v639
      %v780 = vunpack.c.l.b16 %v640
      %v781 = vunpack.c.l.b16 %v641
      %v782 = vunpack.c.l.b16 %v642
      %v783 = vunpack.c.l.b16 %v643
      %v784 = vunpack.c.l.b16 %v644
      %v785 = vunpack.c.l.b16 %v645
      %v786 = vunpack.c.l.b16 %v646
      %v787 = vunpack.c.l.b16 %v647
      %v788 = vunpack.c.l.b16 %v648
      %v789 = vunpack.c.l.b16 %v649
      %v790 = vunpack.c.l.b16 %v650
      %v791 = vunpack.c.l.b16 %v651
      %v792 = vunpack.c.l.b16 %v652
      %v793 = vunpack.c.l.b16 %v653
      %v794 = vunpack.c.l.b16 %v654
      %v795 = vunpack.c.l.b16 %v655
      %v796 = vunpack.c.l.b16 %v656
      %v797 = vpack.c.b16 %v734, %v733
      %v798 = vpack.c.b16 %v736, %v735
      %v799 = vpack.c.b16 %v738, %v737
      %v800 = vpack.c.b16 %v740, %v739
      %v801 = vpack.c.b16 %v742, %v741
      %v802 = vpack.c.b16 %v744, %v743
      %v803 = vpack.c.b16 %v746, %v745
      %v804 = vpack.c.b16 %v748, %v747
      %v805 = vpack.c.b16 %v750, %v749
      %v806 = vpack.c.b16 %v752, %v751
      %v807 = vpack.c.b16 %v754, %v753
      %v808 = vpack.c.b16 %v756, %v755
      %v809 = vpack.c.b16 %v758, %v757
      %v810 = vpack.c.b16 %v760, %v759
      %v811 = vpack.c.b16 %v762, %v761
      %v812 = vpack.c.b16 %v764, %v763
      %v813 = vpack.c.b16 %v766, %v765
      %v814 = vpack.c.b16 %v768, %v767
      %v815 = vpack.c.b16 %v770, %v769
      %v816 = vpack.c.b16 %v772, %v771
      %v817 = vpack.c.b16 %v774, %v773
      %v818 = vpack.c.b16 %v776, %v775
      %v819 = vpack.c.b16 %v778, %v777
      %v820 = vpack.c.b16 %v780, %v779
      %v821 = vpack.c.b16 %v782, %v781
      %v822 = vpack.c.b16 %v784, %v783
      %v823 = vpack.c.b16 %v786, %v785
      %v824 = vpack.c.b16 %v788, %v787
      %v825 = vpack.c.b16 %v790, %v789
      %v826 = vpack.c.b16 %v792, %v791
      %v827 = vpack.c.b16 %v794, %v793
      %v828 = vpack.c.b16 %v796, %v795
      %v834 = vunpack.c.l.b16 %v657
      %v835 = vunpack.c.l.b16 %v658
      %v836 = vunpack.c.l.b16 %v659
      %v837 = vunpack.c.l.b16 %v660
      %v838 = vunpack.c.l.b16 %v661
      %v839 = vpack.c.b16 %v835, %v834
      %v840 = vpack.c.b16 %v837, %v836
      %v841 = vpack.c.b16 %v838, %v838
      %vm844 = vcmask 293888
      %v846 = vsel %vm844, %v797, 0
      %v849 = vsel %vm844, %v798, 0
      %v852 = vsel %vm844, %v799, 0
      %v855 = vsel %vm844, %v800, 0
      %v858 = vsel %vm844, %v801, 0
      %v861 = vsel %vm844, %v802, 0
      %v864 = vsel %vm844, %v803, 0
      %v867 = vsel %vm844, %v804, 0
      %v870 = vsel %vm844, %v805, 0
      %v873 = vsel %vm844, %v806, 0
      %v876 = vsel %vm844, %v807, 0
      %v879 = vsel %vm844, %v808, 0
      %v882 = vsel %vm844, %v809, 0
      %v885 = vsel %vm844, %v810, 0
      %v888 = vsel %vm844, %v811, 0
      %v891 = vsel %vm844, %v812, 0
      %v894 = vsel %vm844, %v813, 0
      %v897 = vsel %vm844, %v814, 0
      %v900 = vsel %vm844, %v815, 0
      %v903 = vsel %vm844, %v816, 0
      %v906 = vsel %vm844, %v817, 0
      %v909 = vsel %vm844, %v818, 0
      %v912 = vsel %vm844, %v819, 0
      %v915 = vsel %vm844, %v820, 0
      %v918 = vsel %vm844, %v821, 0
      %v921 = vsel %vm844, %v822, 0
      %v924 = vsel %vm844, %v823, 0
      %v927 = vsel %vm844, %v824, 0
      %v930 = vsel %vm844, %v825, 0
      %v933 = vsel %vm844, %v826, 0
      %v936 = vsel %vm844, %v827, 0
      %v939 = vsel %vm844, %v828, 0
      %vm941 = vcmask 1041408
      %v943 = vsel %vm941, %v841, 0
      %945 = vmatprep.subr.bf16.mxu0 0
      %946 = vmatpush1.bf16.msra.mxu0 %v839
      %947 = vmatprep.subr.bf16.mxu0 0
      %948 = vmatpush1.bf16.msra.mxu0 %v840
      %949 = vmatprep.subr.bf16.mxu0 0
      %950 = vmatpush1.bf16.msra.mxu0 %v943
      %951 = vmatprep.subr.bf16.mxu0 0
      %952 = vmatpush1.bf16.msra.mxu0 0
      %953 = vmatprep.subr.bf16.mxu0 0
      %954 = vmatpush1.bf16.msra.mxu0 0
      %955 = vmatprep.subr.bf16.mxu0 0
      %956 = vmatpush1.bf16.msra.mxu0 0
      %957 = vmatprep.subr.bf16.mxu0 0
      %958 = vmatpush1.bf16.msra.mxu0 0
      %959 = vmatprep.subr.bf16.mxu0 0
      %960 = vmatpush1.bf16.msra.mxu0 0
      %961 = vmatprep.subr.bf16.mxu0 0
      %962 = vmatpush1.bf16.msra.mxu0 0
      %963 = vmatprep.subr.bf16.mxu0 0
      %964 = vmatpush1.bf16.msra.mxu0 0
      %965 = vmatprep.subr.bf16.mxu0 0
      %966 = vmatpush1.bf16.msra.mxu0 0
      %967 = vmatprep.subr.bf16.mxu0 0
      %968 = vmatpush1.bf16.msra.mxu0 0
      %969 = vmatprep.subr.bf16.mxu0 0
      %970 = vmatpush1.bf16.msra.mxu0 0
      %971 = vmatprep.subr.bf16.mxu0 0
      %972 = vmatpush1.bf16.msra.mxu0 0
      %973 = vmatprep.subr.bf16.mxu0 0
      %974 = vmatpush1.bf16.msra.mxu0 0
      %975 = vmatprep.subr.bf16.mxu0 0
      %976 = vmatpush1.bf16.msra.mxu0 0
      %977 = vmatprep.mubr.bf16.mxu0 0
      %978 = vmatmul.mubr.bf16.gmra.mrb[0].mxu0 %v846
      %v979 = vpop.f32.mrb[0].mxu0
      %v980 = vadd.f32 %v667, %v979
      %v981 = vpop.f32.mrb[0].mxu0
      %v982 = vpop.f32.mrb[0].mxu0
      %v983 = vadd.f32 %v667, %v982
      %v984 = vpop.f32.mrb[0].mxu0
      %985 = vmatprep.mubr.bf16.mxu0 0
      %986 = vmatmul.mubr.bf16.gmra.mrb[0].mxu0 %v849
      %v987 = vpop.f32.mrb[0].mxu0
      %v988 = vadd.f32 %v667, %v987
      %v989 = vpop.f32.mrb[0].mxu0
      %v990 = vpop.f32.mrb[0].mxu0
      %v991 = vadd.f32 %v667, %v990
      %v992 = vpop.f32.mrb[0].mxu0
      %993 = vmatprep.mubr.bf16.mxu0 0
      %994 = vmatmul.mubr.bf16.gmra.mrb[0].mxu0 %v852
      %v995 = vpop.f32.mrb[0].mxu0
      %v996 = vadd.f32 %v667, %v995
      %v997 = vpop.f32.mrb[0].mxu0
      %v998 = vpop.f32.mrb[0].mxu0
      %v999 = vadd.f32 %v667, %v998
      %v1000 = vpop.f32.mrb[0].mxu0
      %1001 = vmatprep.mubr.bf16.mxu0 0
      %1002 = vmatmul.mubr.bf16.gmra.mrb[0].mxu0 %v855
      %v1003 = vpop.f32.mrb[0].mxu0
      %v1004 = vadd.f32 %v667, %v1003
      %v1005 = vpop.f32.mrb[0].mxu0
      %v1006 = vpop.f32.mrb[0].mxu0
      %v1007 = vadd.f32 %v667, %v1006
      %v1008 = vpop.f32.mrb[0].mxu0
      %1009 = vmatprep.mubr.bf16.mxu0 0
      %1010 = vmatmul.mubr.bf16.gmra.mrb[0].mxu0 %v858
      %v1011 = vpop.f32.mrb[0].mxu0
      %v1012 = vadd.f32 %v667, %v1011
      %v1013 = vpop.f32.mrb[0].mxu0
      %v1014 = vpop.f32.mrb[0].mxu0
      %v1015 = vadd.f32 %v667, %v1014
      %v1016 = vpop.f32.mrb[0].mxu0
      %1017 = vmatprep.mubr.bf16.mxu0 0
      %1018 = vmatmul.mubr.bf16.gmra.mrb[0].mxu0 %v861
      %v1019 = vpop.f32.mrb[0].mxu0
      %v1020 = vadd.f32 %v667, %v1019
      %v1021 = vpop.f32.mrb[0].mxu0
      %v1022 = vpop.f32.mrb[0].mxu0
      %v1023 = vadd.f32 %v667, %v1022
      %v1024 = vpop.f32.mrb[0].mxu0
      %1025 = vmatprep.mubr.bf16.mxu0 0
      %1026 = vmatmul.mubr.bf16.gmra.mrb[0].mxu0 %v864
      %v1027 = vpop.f32.mrb[0].mxu0
      %v1028 = vadd.f32 %v667, %v1027
      %v1029 = vpop.f32.mrb[0].mxu0
      %v1030 = vpop.f32.mrb[0].mxu0
      %v1031 = vadd.f32 %v667, %v1030
      %v1032 = vpop.f32.mrb[0].mxu0
      %1033 = vmatprep.mubr.bf16.mxu0 0
      %1034 = vmatmul.mubr.bf16.gmra.mrb[0].mxu0 %v867
      %v1035 = vpop.f32.mrb[0].mxu0
      %v1036 = vadd.f32 %v667, %v1035
      %v1037 = vpop.f32.mrb[0].mxu0
      %v1038 = vpop.f32.mrb[0].mxu0
      %v1039 = vadd.f32 %v667, %v1038
      %v1040 = vpop.f32.mrb[0].mxu0
      %1041 = vmatprep.mubr.bf16.mxu0 0
      %1042 = vmatmul.mubr.bf16.gmra.mrb[0].mxu0 %v870
      %v1043 = vpop.f32.mrb[0].mxu0
      %v1044 = vadd.f32 %v667, %v1043
      %v1045 = vpop.f32.mrb[0].mxu0
      %v1046 = vpop.f32.mrb[0].mxu0
      %v1047 = vadd.f32 %v667, %v1046
      %v1048 = vpop.f32.mrb[0].mxu0
      %1049 = vmatprep.mubr.bf16.mxu0 0
      %1050 = vmatmul.mubr.bf16.gmra.mrb[0].mxu0 %v873
      %v1051 = vpop.f32.mrb[0].mxu0
      %v1052 = vadd.f32 %v667, %v1051
      %v1053 = vpop.f32.mrb[0].mxu0
      %v1054 = vpop.f32.mrb[0].mxu0
      %v1055 = vadd.f32 %v667, %v1054
      %v1056 = vpop.f32.mrb[0].mxu0
      %1057 = vmatprep.mubr.bf16.mxu0 0
      %1058 = vmatmul.mubr.bf16.gmra.mrb[0].mxu0 %v876
      %v1059 = vpop.f32.mrb[0].mxu0
      %v1060 = vadd.f32 %v667, %v1059
      %v1061 = vpop.f32.mrb[0].mxu0
      %v1062 = vpop.f32.mrb[0].mxu0
      %v1063 = vadd.f32 %v667, %v1062
      %v1064 = vpop.f32.mrb[0].mxu0
      %1065 = vmatprep.mubr.bf16.mxu0 0
      %1066 = vmatmul.mubr.bf16.gmra.mrb[0].mxu0 %v879
      %v1067 = vpop.f32.mrb[0].mxu0
      %v1068 = vadd.f32 %v667, %v1067
      %v1069 = vpop.f32.mrb[0].mxu0
      %v1070 = vpop.f32.mrb[0].mxu0
      %v1071 = vadd.f32 %v667, %v1070
      %v1072 = vpop.f32.mrb[0].mxu0
      %1073 = vmatprep.mubr.bf16.mxu0 0
      %1074 = vmatmul.mubr.bf16.gmra.mrb[0].mxu0 %v882
      %v1075 = vpop.f32.mrb[0].mxu0
      %v1076 = vadd.f32 %v667, %v1075
      %v1077 = vpop.f32.mrb[0].mxu0
      %v1078 = vpop.f32.mrb[0].mxu0
      %v1079 = vadd.f32 %v667, %v1078
      %v1080 = vpop.f32.mrb[0].mxu0
      %1081 = vmatprep.mubr.bf16.mxu0 0
      %1082 = vmatmul.mubr.bf16.gmra.mrb[0].mxu0 %v885
      %v1083 = vpop.f32.mrb[0].mxu0
      %v1084 = vadd.f32 %v667, %v1083
      %v1085 = vpop.f32.mrb[0].mxu0
      %v1086 = vpop.f32.mrb[0].mxu0
      %v1087 = vadd.f32 %v667, %v1086
      %v1088 = vpop.f32.mrb[0].mxu0
      %1089 = vmatprep.mubr.bf16.mxu0 0
      %1090 = vmatmul.mubr.bf16.gmra.mrb[0].mxu0 %v888
      %v1091 = vpop.f32.mrb[0].mxu0
      %v1092 = vadd.f32 %v667, %v1091
      %v1093 = vpop.f32.mrb[0].mxu0
      %v1094 = vpop.f32.mrb[0].mxu0
      %v1095 = vadd.f32 %v667, %v1094
      %v1096 = vpop.f32.mrb[0].mxu0
      %1097 = vmatprep.mubr.bf16.mxu0 0
      %1098 = vmatmul.mubr.bf16.gmra.mrb[0].mxu0 %v891
      %v1099 = vpop.f32.mrb[0].mxu0
      %v1100 = vadd.f32 %v667, %v1099
      %v1101 = vpop.f32.mrb[0].mxu0
      %v1102 = vpop.f32.mrb[0].mxu0
      %v1103 = vadd.f32 %v667, %v1102
      %v1104 = vpop.f32.mrb[0].mxu0
      %1105 = vmatprep.mubr.bf16.mxu0 0
      %1106 = vmatmul.mubr.bf16.gmra.mrb[0].mxu0 %v894
      %v1107 = vpop.f32.mrb[0].mxu0
      %v1108 = vadd.f32 %v667, %v1107
      %v1109 = vpop.f32.mrb[0].mxu0
      %v1110 = vpop.f32.mrb[0].mxu0
      %v1111 = vadd.f32 %v667, %v1110
      %v1112 = vpop.f32.mrb[0].mxu0
      %1113 = vmatprep.mubr.bf16.mxu0 0
      %1114 = vmatmul.mubr.bf16.gmra.mrb[0].mxu0 %v897
      %v1115 = vpop.f32.mrb[0].mxu0
      %v1116 = vadd.f32 %v667, %v1115
      %v1117 = vpop.f32.mrb[0].mxu0
      %v1118 = vpop.f32.mrb[0].mxu0
      %v1119 = vadd.f32 %v667, %v1118
      %v1120 = vpop.f32.mrb[0].mxu0
      %1121 = vmatprep.mubr.bf16.mxu0 0
      %1122 = vmatmul.mubr.bf16.gmra.mrb[0].mxu0 %v900
      %v1123 = vpop.f32.mrb[0].mxu0
      %v1124 = vadd.f32 %v667, %v1123
      %v1125 = vpop.f32.mrb[0].mxu0
      %v1126 = vpop.f32.mrb[0].mxu0
      %v1127 = vadd.f32 %v667, %v1126
      %v1128 = vpop.f32.mrb[0].mxu0
      %1129 = vmatprep.mubr.bf16.mxu0 0
      %1130 = vmatmul.mubr.bf16.gmra.mrb[0].mxu0 %v903
      %v1131 = vpop.f32.mrb[0].mxu0
      %v1132 = vadd.f32 %v667, %v1131
      %v1133 = vpop.f32.mrb[0].mxu0
      %v1134 = vpop.f32.mrb[0].mxu0
      %v1135 = vadd.f32 %v667, %v1134
      %v1136 = vpop.f32.mrb[0].mxu0
      %1137 = vmatprep.mubr.bf16.mxu0 0
      %1138 = vmatmul.mubr.bf16.gmra.mrb[0].mxu0 %v906
      %v1139 = vpop.f32.mrb[0].mxu0
      %v1140 = vadd.f32 %v667, %v1139
      %v1141 = vpop.f32.mrb[0].mxu0
      %v1142 = vpop.f32.mrb[0].mxu0
      %v1143 = vadd.f32 %v667, %v1142
      %v1144 = vpop.f32.mrb[0].mxu0
      %1145 = vmatprep.mubr.bf16.mxu0 0
      %1146 = vmatmul.mubr.bf16.gmra.mrb[0].mxu0 %v909
      %v1147 = vpop.f32.mrb[0].mxu0
      %v1148 = vadd.f32 %v667, %v1147
      %v1149 = vpop.f32.mrb[0].mxu0
      %v1150 = vpop.f32.mrb[0].mxu0
      %v1151 = vadd.f32 %v667, %v1150
      %v1152 = vpop.f32.mrb[0].mxu0
      %1153 = vmatprep.mubr.bf16.mxu0 0
      %1154 = vmatmul.mubr.bf16.gmra.mrb[0].mxu0 %v912
      %v1155 = vpop.f32.mrb[0].mxu0
      %v1156 = vadd.f32 %v667, %v1155
      %v1157 = vpop.f32.mrb[0].mxu0
      %v1158 = vpop.f32.mrb[0].mxu0
      %v1159 = vadd.f32 %v667, %v1158
      %v1160 = vpop.f32.mrb[0].mxu0
      %1161 = vmatprep.mubr.bf16.mxu0 0
      %1162 = vmatmul.mubr.bf16.gmra.mrb[0].mxu0 %v915
      %v1163 = vpop.f32.mrb[0].mxu0
      %v1164 = vadd.f32 %v667, %v1163
      %v1165 = vpop.f32.mrb[0].mxu0
      %v1166 = vpop.f32.mrb[0].mxu0
      %v1167 = vadd.f32 %v667, %v1166
      %v1168 = vpop.f32.mrb[0].mxu0
      %1169 = vmatprep.mubr.bf16.mxu0 0
      %1170 = vmatmul.mubr.bf16.gmra.mrb[0].mxu0 %v918
      %v1171 = vpop.f32.mrb[0].mxu0
      %v1172 = vadd.f32 %v667, %v1171
      %v1173 = vpop.f32.mrb[0].mxu0
      %v1174 = vpop.f32.mrb[0].mxu0
      %v1175 = vadd.f32 %v667, %v1174
      %v1176 = vpop.f32.mrb[0].mxu0
      %1177 = vmatprep.mubr.bf16.mxu0 0
      %1178 = vmatmul.mubr.bf16.gmra.mrb[0].mxu0 %v921
      %v1179 = vpop.f32.mrb[0].mxu0
      %v1180 = vadd.f32 %v667, %v1179
      %v1181 = vpop.f32.mrb[0].mxu0
      %v1182 = vpop.f32.mrb[0].mxu0
      %v1183 = vadd.f32 %v667, %v1182
      %v1184 = vpop.f32.mrb[0].mxu0
      %1185 = vmatprep.mubr.bf16.mxu0 0
      %1186 = vmatmul.mubr.bf16.gmra.mrb[0].mxu0 %v924
      %v1187 = vpop.f32.mrb[0].mxu0
      %v1188 = vadd.f32 %v667, %v1187
      %v1189 = vpop.f32.mrb[0].mxu0
      %v1190 = vpop.f32.mrb[0].mxu0
      %v1191 = vadd.f32 %v667, %v1190
      %v1192 = vpop.f32.mrb[0].mxu0
      %1193 = vmatprep.mubr.bf16.mxu0 0
      %1194 = vmatmul.mubr.bf16.gmra.mrb[0].mxu0 %v927
      %v1195 = vpop.f32.mrb[0].mxu0
      %v1196 = vadd.f32 %v667, %v1195
      %v1197 = vpop.f32.mrb[0].mxu0
      %v1198 = vpop.f32.mrb[0].mxu0
      %v1199 = vadd.f32 %v667, %v1198
      %v1200 = vpop.f32.mrb[0].mxu0
      %1201 = vmatprep.mubr.bf16.mxu0 0
      %1202 = vmatmul.mubr.bf16.gmra.mrb[0].mxu0 %v930
      %v1203 = vpop.f32.mrb[0].mxu0
      %v1204 = vadd.f32 %v667, %v1203
      %v1205 = vpop.f32.mrb[0].mxu0
      %v1206 = vpop.f32.mrb[0].mxu0
      %v1207 = vadd.f32 %v667, %v1206
      %v1208 = vpop.f32.mrb[0].mxu0
      %1209 = vmatprep.mubr.bf16.mxu0 0
      %1210 = vmatmul.mubr.bf16.gmra.mrb[0].mxu0 %v933
      %v1211 = vpop.f32.mrb[0].mxu0
      %v1212 = vadd.f32 %v667, %v1211
      %v1213 = vpop.f32.mrb[0].mxu0
      %v1214 = vpop.f32.mrb[0].mxu0
      %v1215 = vadd.f32 %v667, %v1214
      %v1216 = vpop.f32.mrb[0].mxu0
      %1217 = vmatprep.mubr.bf16.mxu0 0
      %1218 = vmatmul.mubr.bf16.gmra.mrb[0].mxu0 %v936
      %v1219 = vpop.f32.mrb[0].mxu0
      %v1220 = vadd.f32 %v667, %v1219
      %v1221 = vpop.f32.mrb[0].mxu0
      %v1222 = vpop.f32.mrb[0].mxu0
      %v1223 = vadd.f32 %v667, %v1222
      %v1224 = vpop.f32.mrb[0].mxu0
      %1225 = vmatprep.mubr.bf16.mxu0 0
      %1226 = vmatmul.mubr.bf16.gmra.mrb[0].mxu0 %v939
      %v1227 = vpop.f32.mrb[0].mxu0
      %v1228 = vadd.f32 %v667, %v1227
      %v1229 = vpop.f32.mrb[0].mxu0
      %v1230 = vpop.f32.mrb[0].mxu0
      %v1231 = vadd.f32 %v667, %v1230
      %v1232 = vpop.f32.mrb[0].mxu0
      %1233 = vdwg.mxu0
      %v1234 = vmax.f32 %v980, 0.0
      %v1235 = vmax.f32 %v983, 0.0
      %v1236 = vmax.f32 %v988, 0.0
      %v1237 = vmax.f32 %v991, 0.0
      %v1238 = vmax.f32 %v996, 0.0
      %v1239 = vmax.f32 %v999, 0.0
      %v1240 = vmax.f32 %v1004, 0.0
      %v1241 = vmax.f32 %v1007, 0.0
      %v1242 = vmax.f32 %v1012, 0.0
      %v1243 = vmax.f32 %v1015, 0.0
      %v1244 = vmax.f32 %v1020, 0.0
      %v1245 = vmax.f32 %v1023, 0.0
      %v1246 = vmax.f32 %v1028, 0.0
      %v1247 = vmax.f32 %v1031, 0.0
      %v1248 = vmax.f32 %v1036, 0.0
      %v1249 = vmax.f32 %v1039, 0.0
      %v1250 = vmax.f32 %v1044, 0.0
      %v1251 = vmax.f32 %v1047, 0.0
      %v1252 = vmax.f32 %v1052, 0.0
      %v1253 = vmax.f32 %v1055, 0.0
      %v1254 = vmax.f32 %v1060, 0.0
      %v1255 = vmax.f32 %v1063, 0.0
      %v1256 = vmax.f32 %v1068, 0.0
      %v1257 = vmax.f32 %v1071, 0.0
      %v1258 = vmax.f32 %v1076, 0.0
      %v1259 = vmax.f32 %v1079, 0.0
      %v1260 = vmax.f32 %v1084, 0.0
      %v1261 = vmax.f32 %v1087, 0.0
      %v1262 = vmax.f32 %v1092, 0.0
      %v1263 = vmax.f32 %v1095, 0.0
      %v1264 = vmax.f32 %v1100, 0.0
      %v1265 = vmax.f32 %v1103, 0.0
      %v1266 = vmax.f32 %v1108, 0.0
      %v1267 = vmax.f32 %v1111, 0.0
      %v1268 = vmax.f32 %v1116, 0.0
      %v1269 = vmax.f32 %v1119, 0.0
      %v1270 = vmax.f32 %v1124, 0.0
      %v1271 = vmax.f32 %v1127, 0.0
      %v1272 = vmax.f32 %v1132, 0.0
      %v1273 = vmax.f32 %v1135, 0.0
      %v1274 = vmax.f32 %v1140, 0.0
      %v1275 = vmax.f32 %v1143, 0.0
      %v1276 = vmax.f32 %v1148, 0.0
      %v1277 = vmax.f32 %v1151, 0.0
      %v1278 = vmax.f32 %v1156, 0.0
      %v1279 = vmax.f32 %v1159, 0.0
      %v1280 = vmax.f32 %v1164, 0.0
      %v1281 = vmax.f32 %v1167, 0.0
      %v1282 = vmax.f32 %v1172, 0.0
      %v1283 = vmax.f32 %v1175, 0.0
      %v1284 = vmax.f32 %v1180, 0.0
      %v1285 = vmax.f32 %v1183, 0.0
      %v1286 = vmax.f32 %v1188, 0.0
      %v1287 = vmax.f32 %v1191, 0.0
      %v1288 = vmax.f32 %v1196, 0.0
      %v1289 = vmax.f32 %v1199, 0.0
      %v1290 = vmax.f32 %v1204, 0.0
      %v1291 = vmax.f32 %v1207, 0.0
      %v1292 = vmax.f32 %v1212, 0.0
      %v1293 = vmax.f32 %v1215, 0.0
      %v1294 = vmax.f32 %v1220, 0.0
      %v1295 = vmax.f32 %v1223, 0.0
      %v1296 = vmax.f32 %v1228, 0.0
      %v1297 = vmax.f32 %v1231, 0.0
      %v1298 = vmax.f32 %v1234, %v1236
      %v1299 = vmax.f32 %v1235, %v1237
      %v1300 = vmax.f32 %v1238, %v1240
      %v1301 = vmax.f32 %v1239, %v1241
      %v1302 = vmax.f32 %v1242, %v1244
      %v1303 = vmax.f32 %v1243, %v1245
      %v1304 = vmax.f32 %v1246, %v1248
      %v1305 = vmax.f32 %v1247, %v1249
      %v1306 = vmax.f32 %v1250, %v1252
      %v1307 = vmax.f32 %v1251, %v1253
      %v1308 = vmax.f32 %v1254, %v1256
      %v1309 = vmax.f32 %v1255, %v1257
      %v1310 = vmax.f32 %v1258, %v1260
      %v1311 = vmax.f32 %v1259, %v1261
      %v1312 = vmax.f32 %v1262, %v1264
      %v1313 = vmax.f32 %v1263, %v1265
      %v1314 = vmax.f32 %v1266, %v1268
      %v1315 = vmax.f32 %v1267, %v1269
      %v1316 = vmax.f32 %v1270, %v1272
      %v1317 = vmax.f32 %v1271, %v1273
      %v1318 = vmax.f32 %v1274, %v1276
      %v1319 = vmax.f32 %v1275, %v1277
      %v1320 = vmax.f32 %v1278, %v1280
      %v1321 = vmax.f32 %v1279, %v1281
      %v1322 = vmax.f32 %v1282, %v1284
      %v1323 = vmax.f32 %v1283, %v1285
      %v1324 = vmax.f32 %v1286, %v1288
      %v1325 = vmax.f32 %v1287, %v1289
      %v1326 = vmax.f32 %v1290, %v1292
      %v1327 = vmax.f32 %v1291, %v1293
      %v1328 = vmax.f32 %v1294, %v1296
      %v1329 = vmax.f32 %v1295, %v1297
      %v1362 = vcombine.high %v1298, %v1298
      %v1364 = vunpack.c.l.s4 1983009808
      %v1365 = vunpack.c.0.s8 %v1364
      %v1366 = vlaneseq
      %v1367 = vshrl.u32 %v1366, 7
      %v1368 = vsub.s32 %v1365, %v1367
      %v1369 = vrot.slane %v1298, %v1368
      %v1371 = vunpack.c.l.s4 1983009808
      %v1372 = vunpack.c.0.s8 %v1371
      %v1373 = vlaneseq
      %v1374 = vshrl.u32 %v1373, 7
      %v1375 = vsub.s32 %v1372, %v1374
      %v1376 = vrot.slane %v1362, %v1375
      %v1377 = vcombine.high %v1369, %v1369
      %v1378 = vcombine.high %v1376, %v1376
      %v1379 = vcombine.high %v1299, %v1299
      %v1381 = vunpack.c.l.s4 1983009808
      %v1382 = vunpack.c.0.s8 %v1381
      %v1383 = vlaneseq
      %v1384 = vshrl.u32 %v1383, 7
      %v1385 = vsub.s32 %v1382, %v1384
      %v1386 = vrot.slane %v1299, %v1385
      %v1388 = vunpack.c.l.s4 1983009808
      %v1389 = vunpack.c.0.s8 %v1388
      %v1390 = vlaneseq
      %v1391 = vshrl.u32 %v1390, 7
      %v1392 = vsub.s32 %v1389, %v1391
      %v1393 = vrot.slane %v1379, %v1392
      %v1394 = vcombine.high %v1386, %v1386
      %v1395 = vcombine.high %v1393, %v1393
      %v1396 = vcombine.high %v1300, %v1300
      %v1398 = vunpack.c.l.s4 1983009808
      %v1399 = vunpack.c.0.s8 %v1398
      %v1400 = vlaneseq
      %v1401 = vshrl.u32 %v1400, 7
      %v1402 = vsub.s32 %v1399, %v1401
      %v1403 = vrot.slane %v1300, %v1402
      %v1405 = vunpack.c.l.s4 1983009808
      %v1406 = vunpack.c.0.s8 %v1405
      %v1407 = vlaneseq
      %v1408 = vshrl.u32 %v1407, 7
      %v1409 = vsub.s32 %v1406, %v1408
      %v1410 = vrot.slane %v1396, %v1409
      %v1411 = vcombine.high %v1403, %v1403
      %v1412 = vcombine.high %v1410, %v1410
      %v1413 = vcombine.high %v1301, %v1301
      %v1415 = vunpack.c.l.s4 1983009808
      %v1416 = vunpack.c.0.s8 %v1415
      %v1417 = vlaneseq
      %v1418 = vshrl.u32 %v1417, 7
      %v1419 = vsub.s32 %v1416, %v1418
      %v1420 = vrot.slane %v1301, %v1419
      %v1422 = vunpack.c.l.s4 1983009808
      %v1423 = vunpack.c.0.s8 %v1422
      %v1424 = vlaneseq
      %v1425 = vshrl.u32 %v1424, 7
      %v1426 = vsub.s32 %v1423, %v1425
      %v1427 = vrot.slane %v1413, %v1426
      %v1428 = vcombine.high %v1420, %v1420
      %v1429 = vcombine.high %v1427, %v1427
      %v1430 = vcombine.high %v1302, %v1302
      %v1432 = vunpack.c.l.s4 1983009808
      %v1433 = vunpack.c.0.s8 %v1432
      %v1434 = vlaneseq
      %v1435 = vshrl.u32 %v1434, 7
      %v1436 = vsub.s32 %v1433, %v1435
      %v1437 = vrot.slane %v1302, %v1436
      %v1439 = vunpack.c.l.s4 1983009808
      %v1440 = vunpack.c.0.s8 %v1439
      %v1441 = vlaneseq
      %v1442 = vshrl.u32 %v1441, 7
      %v1443 = vsub.s32 %v1440, %v1442
      %v1444 = vrot.slane %v1430, %v1443
      %v1445 = vcombine.high %v1437, %v1437
      %v1446 = vcombine.high %v1444, %v1444
      %v1447 = vcombine.high %v1303, %v1303
      %v1449 = vunpack.c.l.s4 1983009808
      %v1450 = vunpack.c.0.s8 %v1449
      %v1451 = vlaneseq
      %v1452 = vshrl.u32 %v1451, 7
      %v1453 = vsub.s32 %v1450, %v1452
      %v1454 = vrot.slane %v1303, %v1453
      %v1456 = vunpack.c.l.s4 1983009808
      %v1457 = vunpack.c.0.s8 %v1456
      %v1458 = vlaneseq
      %v1459 = vshrl.u32 %v1458, 7
      %v1460 = vsub.s32 %v1457, %v1459
      %v1461 = vrot.slane %v1447, %v1460
      %v1462 = vcombine.high %v1454, %v1454
      %v1463 = vcombine.high %v1461, %v1461
      %v1464 = vcombine.high %v1304, %v1304
      %v1466 = vunpack.c.l.s4 1983009808
      %v1467 = vunpack.c.0.s8 %v1466
      %v1468 = vlaneseq
      %v1469 = vshrl.u32 %v1468, 7
      %v1470 = vsub.s32 %v1467, %v1469
      %v1471 = vrot.slane %v1304, %v1470
      %v1473 = vunpack.c.l.s4 1983009808
      %v1474 = vunpack.c.0.s8 %v1473
      %v1475 = vlaneseq
      %v1476 = vshrl.u32 %v1475, 7
      %v1477 = vsub.s32 %v1474, %v1476
      %v1478 = vrot.slane %v1464, %v1477
      %v1479 = vcombine.high %v1471, %v1471
      %v1480 = vcombine.high %v1478, %v1478
      %v1481 = vcombine.high %v1305, %v1305
      %v1483 = vunpack.c.l.s4 1983009808
      %v1484 = vunpack.c.0.s8 %v1483
      %v1485 = vlaneseq
      %v1486 = vshrl.u32 %v1485, 7
      %v1487 = vsub.s32 %v1484, %v1486
      %v1488 = vrot.slane %v1305, %v1487
      %v1490 = vunpack.c.l.s4 1983009808
      %v1491 = vunpack.c.0.s8 %v1490
      %v1492 = vlaneseq
      %v1493 = vshrl.u32 %v1492, 7
      %v1494 = vsub.s32 %v1491, %v1493
      %v1495 = vrot.slane %v1481, %v1494
      %v1496 = vcombine.high %v1488, %v1488
      %v1497 = vcombine.high %v1495, %v1495
      %v1498 = vcombine.high %v1306, %v1306
      %v1500 = vunpack.c.l.s4 1983009808
      %v1501 = vunpack.c.0.s8 %v1500
      %v1502 = vlaneseq
      %v1503 = vshrl.u32 %v1502, 7
      %v1504 = vsub.s32 %v1501, %v1503
      %v1505 = vrot.slane %v1306, %v1504
      %v1507 = vunpack.c.l.s4 1983009808
      %v1508 = vunpack.c.0.s8 %v1507
      %v1509 = vlaneseq
      %v1510 = vshrl.u32 %v1509, 7
      %v1511 = vsub.s32 %v1508, %v1510
      %v1512 = vrot.slane %v1498, %v1511
      %v1513 = vcombine.high %v1505, %v1505
      %v1514 = vcombine.high %v1512, %v1512
      %v1515 = vcombine.high %v1307, %v1307
      %v1517 = vunpack.c.l.s4 1983009808
      %v1518 = vunpack.c.0.s8 %v1517
      %v1519 = vlaneseq
      %v1520 = vshrl.u32 %v1519, 7
      %v1521 = vsub.s32 %v1518, %v1520
      %v1522 = vrot.slane %v1307, %v1521
      %v1524 = vunpack.c.l.s4 1983009808
      %v1525 = vunpack.c.0.s8 %v1524
      %v1526 = vlaneseq
      %v1527 = vshrl.u32 %v1526, 7
      %v1528 = vsub.s32 %v1525, %v1527
      %v1529 = vrot.slane %v1515, %v1528
      %v1530 = vcombine.high %v1522, %v1522
      %v1531 = vcombine.high %v1529, %v1529
      %v1532 = vcombine.high %v1308, %v1308
      %v1534 = vunpack.c.l.s4 1983009808
      %v1535 = vunpack.c.0.s8 %v1534
      %v1536 = vlaneseq
      %v1537 = vshrl.u32 %v1536, 7
      %v1538 = vsub.s32 %v1535, %v1537
      %v1539 = vrot.slane %v1308, %v1538
      %v1541 = vunpack.c.l.s4 1983009808
      %v1542 = vunpack.c.0.s8 %v1541
      %v1543 = vlaneseq
      %v1544 = vshrl.u32 %v1543, 7
      %v1545 = vsub.s32 %v1542, %v1544
      %v1546 = vrot.slane %v1532, %v1545
      %v1547 = vcombine.high %v1539, %v1539
      %v1548 = vcombine.high %v1546, %v1546
      %v1549 = vcombine.high %v1309, %v1309
      %v1551 = vunpack.c.l.s4 1983009808
      %v1552 = vunpack.c.0.s8 %v1551
      %v1553 = vlaneseq
      %v1554 = vshrl.u32 %v1553, 7
      %v1555 = vsub.s32 %v1552, %v1554
      %v1556 = vrot.slane %v1309, %v1555
      %v1558 = vunpack.c.l.s4 1983009808
      %v1559 = vunpack.c.0.s8 %v1558
      %v1560 = vlaneseq
      %v1561 = vshrl.u32 %v1560, 7
      %v1562 = vsub.s32 %v1559, %v1561
      %v1563 = vrot.slane %v1549, %v1562
      %v1564 = vcombine.high %v1556, %v1556
      %v1565 = vcombine.high %v1563, %v1563
      %v1566 = vcombine.high %v1310, %v1310
      %v1568 = vunpack.c.l.s4 1983009808
      %v1569 = vunpack.c.0.s8 %v1568
      %v1570 = vlaneseq
      %v1571 = vshrl.u32 %v1570, 7
      %v1572 = vsub.s32 %v1569, %v1571
      %v1573 = vrot.slane %v1310, %v1572
      %v1575 = vunpack.c.l.s4 1983009808
      %v1576 = vunpack.c.0.s8 %v1575
      %v1577 = vlaneseq
      %v1578 = vshrl.u32 %v1577, 7
      %v1579 = vsub.s32 %v1576, %v1578
      %v1580 = vrot.slane %v1566, %v1579
      %v1581 = vcombine.high %v1573, %v1573
      %v1582 = vcombine.high %v1580, %v1580
      %v1583 = vcombine.high %v1311, %v1311
      %v1585 = vunpack.c.l.s4 1983009808
      %v1586 = vunpack.c.0.s8 %v1585
      %v1587 = vlaneseq
      %v1588 = vshrl.u32 %v1587, 7
      %v1589 = vsub.s32 %v1586, %v1588
      %v1590 = vrot.slane %v1311, %v1589
      %v1592 = vunpack.c.l.s4 1983009808
      %v1593 = vunpack.c.0.s8 %v1592
      %v1594 = vlaneseq
      %v1595 = vshrl.u32 %v1594, 7
      %v1596 = vsub.s32 %v1593, %v1595
      %v1597 = vrot.slane %v1583, %v1596
      %v1598 = vcombine.high %v1590, %v1590
      %v1599 = vcombine.high %v1597, %v1597
      %v1600 = vcombine.high %v1312, %v1312
      %v1602 = vunpack.c.l.s4 1983009808
      %v1603 = vunpack.c.0.s8 %v1602
      %v1604 = vlaneseq
      %v1605 = vshrl.u32 %v1604, 7
      %v1606 = vsub.s32 %v1603, %v1605
      %v1607 = vrot.slane %v1312, %v1606
      %v1609 = vunpack.c.l.s4 1983009808
      %v1610 = vunpack.c.0.s8 %v1609
      %v1611 = vlaneseq
      %v1612 = vshrl.u32 %v1611, 7
      %v1613 = vsub.s32 %v1610, %v1612
      %v1614 = vrot.slane %v1600, %v1613
      %v1615 = vcombine.high %v1607, %v1607
      %v1616 = vcombine.high %v1614, %v1614
      %v1617 = vcombine.high %v1313, %v1313
      %v1619 = vunpack.c.l.s4 1983009808
      %v1620 = vunpack.c.0.s8 %v1619
      %v1621 = vlaneseq
      %v1622 = vshrl.u32 %v1621, 7
      %v1623 = vsub.s32 %v1620, %v1622
      %v1624 = vrot.slane %v1313, %v1623
      %v1626 = vunpack.c.l.s4 1983009808
      %v1627 = vunpack.c.0.s8 %v1626
      %v1628 = vlaneseq
      %v1629 = vshrl.u32 %v1628, 7
      %v1630 = vsub.s32 %v1627, %v1629
      %v1631 = vrot.slane %v1617, %v1630
      %v1632 = vcombine.high %v1624, %v1624
      %v1633 = vcombine.high %v1631, %v1631
      %v1634 = vcombine.high %v1314, %v1314
      %v1636 = vunpack.c.l.s4 1983009808
      %v1637 = vunpack.c.0.s8 %v1636
      %v1638 = vlaneseq
      %v1639 = vshrl.u32 %v1638, 7
      %v1640 = vsub.s32 %v1637, %v1639
      %v1641 = vrot.slane %v1314, %v1640
      %v1643 = vunpack.c.l.s4 1983009808
      %v1644 = vunpack.c.0.s8 %v1643
      %v1645 = vlaneseq
      %v1646 = vshrl.u32 %v1645, 7
      %v1647 = vsub.s32 %v1644, %v1646
      %v1648 = vrot.slane %v1634, %v1647
      %v1649 = vcombine.high %v1641, %v1641
      %v1650 = vcombine.high %v1648, %v1648
      %v1651 = vcombine.high %v1315, %v1315
      %v1653 = vunpack.c.l.s4 1983009808
      %v1654 = vunpack.c.0.s8 %v1653
      %v1655 = vlaneseq
      %v1656 = vshrl.u32 %v1655, 7
      %v1657 = vsub.s32 %v1654, %v1656
      %v1658 = vrot.slane %v1315, %v1657
      %v1660 = vunpack.c.l.s4 1983009808
      %v1661 = vunpack.c.0.s8 %v1660
      %v1662 = vlaneseq
      %v1663 = vshrl.u32 %v1662, 7
      %v1664 = vsub.s32 %v1661, %v1663
      %v1665 = vrot.slane %v1651, %v1664
      %v1666 = vcombine.high %v1658, %v1658
      %v1667 = vcombine.high %v1665, %v1665
      %v1668 = vcombine.high %v1316, %v1316
      %v1670 = vunpack.c.l.s4 1983009808
      %v1671 = vunpack.c.0.s8 %v1670
      %v1672 = vlaneseq
      %v1673 = vshrl.u32 %v1672, 7
      %v1674 = vsub.s32 %v1671, %v1673
      %v1675 = vrot.slane %v1316, %v1674
      %v1677 = vunpack.c.l.s4 1983009808
      %v1678 = vunpack.c.0.s8 %v1677
      %v1679 = vlaneseq
      %v1680 = vshrl.u32 %v1679, 7
      %v1681 = vsub.s32 %v1678, %v1680
      %v1682 = vrot.slane %v1668, %v1681
      %v1683 = vcombine.high %v1675, %v1675
      %v1684 = vcombine.high %v1682, %v1682
      %v1685 = vcombine.high %v1317, %v1317
      %v1687 = vunpack.c.l.s4 1983009808
      %v1688 = vunpack.c.0.s8 %v1687
      %v1689 = vlaneseq
      %v1690 = vshrl.u32 %v1689, 7
      %v1691 = vsub.s32 %v1688, %v1690
      %v1692 = vrot.slane %v1317, %v1691
      %v1694 = vunpack.c.l.s4 1983009808
      %v1695 = vunpack.c.0.s8 %v1694
      %v1696 = vlaneseq
      %v1697 = vshrl.u32 %v1696, 7
      %v1698 = vsub.s32 %v1695, %v1697
      %v1699 = vrot.slane %v1685, %v1698
      %v1700 = vcombine.high %v1692, %v1692
      %v1701 = vcombine.high %v1699, %v1699
      %v1702 = vcombine.high %v1318, %v1318
      %v1704 = vunpack.c.l.s4 1983009808
      %v1705 = vunpack.c.0.s8 %v1704
      %v1706 = vlaneseq
      %v1707 = vshrl.u32 %v1706, 7
      %v1708 = vsub.s32 %v1705, %v1707
      %v1709 = vrot.slane %v1318, %v1708
      %v1711 = vunpack.c.l.s4 1983009808
      %v1712 = vunpack.c.0.s8 %v1711
      %v1713 = vlaneseq
      %v1714 = vshrl.u32 %v1713, 7
      %v1715 = vsub.s32 %v1712, %v1714
      %v1716 = vrot.slane %v1702, %v1715
      %v1717 = vcombine.high %v1709, %v1709
      %v1718 = vcombine.high %v1716, %v1716
      %v1719 = vcombine.high %v1319, %v1319
      %v1721 = vunpack.c.l.s4 1983009808
      %v1722 = vunpack.c.0.s8 %v1721
      %v1723 = vlaneseq
      %v1724 = vshrl.u32 %v1723, 7
      %v1725 = vsub.s32 %v1722, %v1724
      %v1726 = vrot.slane %v1319, %v1725
      %v1728 = vunpack.c.l.s4 1983009808
      %v1729 = vunpack.c.0.s8 %v1728
      %v1730 = vlaneseq
      %v1731 = vshrl.u32 %v1730, 7
      %v1732 = vsub.s32 %v1729, %v1731
      %v1733 = vrot.slane %v1719, %v1732
      %v1734 = vcombine.high %v1726, %v1726
      %v1735 = vcombine.high %v1733, %v1733
      %v1736 = vcombine.high %v1320, %v1320
      %v1738 = vunpack.c.l.s4 1983009808
      %v1739 = vunpack.c.0.s8 %v1738
      %v1740 = vlaneseq
      %v1741 = vshrl.u32 %v1740, 7
      %v1742 = vsub.s32 %v1739, %v1741
      %v1743 = vrot.slane %v1320, %v1742
      %v1745 = vunpack.c.l.s4 1983009808
      %v1746 = vunpack.c.0.s8 %v1745
      %v1747 = vlaneseq
      %v1748 = vshrl.u32 %v1747, 7
      %v1749 = vsub.s32 %v1746, %v1748
      %v1750 = vrot.slane %v1736, %v1749
      %v1751 = vcombine.high %v1743, %v1743
      %v1752 = vcombine.high %v1750, %v1750
      %v1753 = vcombine.high %v1321, %v1321
      %v1755 = vunpack.c.l.s4 1983009808
      %v1756 = vunpack.c.0.s8 %v1755
      %v1757 = vlaneseq
      %v1758 = vshrl.u32 %v1757, 7
      %v1759 = vsub.s32 %v1756, %v1758
      %v1760 = vrot.slane %v1321, %v1759
      %v1762 = vunpack.c.l.s4 1983009808
      %v1763 = vunpack.c.0.s8 %v1762
      %v1764 = vlaneseq
      %v1765 = vshrl.u32 %v1764, 7
      %v1766 = vsub.s32 %v1763, %v1765
      %v1767 = vrot.slane %v1753, %v1766
      %v1768 = vcombine.high %v1760, %v1760
      %v1769 = vcombine.high %v1767, %v1767
      %v1770 = vcombine.high %v1322, %v1322
      %v1772 = vunpack.c.l.s4 1983009808
      %v1773 = vunpack.c.0.s8 %v1772
      %v1774 = vlaneseq
      %v1775 = vshrl.u32 %v1774, 7
      %v1776 = vsub.s32 %v1773, %v1775
      %v1777 = vrot.slane %v1322, %v1776
      %v1779 = vunpack.c.l.s4 1983009808
      %v1780 = vunpack.c.0.s8 %v1779
      %v1781 = vlaneseq
      %v1782 = vshrl.u32 %v1781, 7
      %v1783 = vsub.s32 %v1780, %v1782
      %v1784 = vrot.slane %v1770, %v1783
      %v1785 = vcombine.high %v1777, %v1777
      %v1786 = vcombine.high %v1784, %v1784
      %v1787 = vcombine.high %v1323, %v1323
      %v1789 = vunpack.c.l.s4 1983009808
      %v1790 = vunpack.c.0.s8 %v1789
      %v1791 = vlaneseq
      %v1792 = vshrl.u32 %v1791, 7
      %v1793 = vsub.s32 %v1790, %v1792
      %v1794 = vrot.slane %v1323, %v1793
      %v1796 = vunpack.c.l.s4 1983009808
      %v1797 = vunpack.c.0.s8 %v1796
      %v1798 = vlaneseq
      %v1799 = vshrl.u32 %v1798, 7
      %v1800 = vsub.s32 %v1797, %v1799
      %v1801 = vrot.slane %v1787, %v1800
      %v1802 = vcombine.high %v1794, %v1794
      %v1803 = vcombine.high %v1801, %v1801
      %v1804 = vcombine.high %v1324, %v1324
      %v1806 = vunpack.c.l.s4 1983009808
      %v1807 = vunpack.c.0.s8 %v1806
      %v1808 = vlaneseq
      %v1809 = vshrl.u32 %v1808, 7
      %v1810 = vsub.s32 %v1807, %v1809
      %v1811 = vrot.slane %v1324, %v1810
      %v1813 = vunpack.c.l.s4 1983009808
      %v1814 = vunpack.c.0.s8 %v1813
      %v1815 = vlaneseq
      %v1816 = vshrl.u32 %v1815, 7
      %v1817 = vsub.s32 %v1814, %v1816
      %v1818 = vrot.slane %v1804, %v1817
      %v1819 = vcombine.high %v1811, %v1811
      %v1820 = vcombine.high %v1818, %v1818
      %v1821 = vcombine.high %v1325, %v1325
      %v1823 = vunpack.c.l.s4 1983009808
      %v1824 = vunpack.c.0.s8 %v1823
      %v1825 = vlaneseq
      %v1826 = vshrl.u32 %v1825, 7
      %v1827 = vsub.s32 %v1824, %v1826
      %v1828 = vrot.slane %v1325, %v1827
      %v1830 = vunpack.c.l.s4 1983009808
      %v1831 = vunpack.c.0.s8 %v1830
      %v1832 = vlaneseq
      %v1833 = vshrl.u32 %v1832, 7
      %v1834 = vsub.s32 %v1831, %v1833
      %v1835 = vrot.slane %v1821, %v1834
      %v1836 = vcombine.high %v1828, %v1828
      %v1837 = vcombine.high %v1835, %v1835
      %v1838 = vcombine.high %v1326, %v1326
      %v1840 = vunpack.c.l.s4 1983009808
      %v1841 = vunpack.c.0.s8 %v1840
      %v1842 = vlaneseq
      %v1843 = vshrl.u32 %v1842, 7
      %v1844 = vsub.s32 %v1841, %v1843
      %v1845 = vrot.slane %v1326, %v1844
      %v1847 = vunpack.c.l.s4 1983009808
      %v1848 = vunpack.c.0.s8 %v1847
      %v1849 = vlaneseq
      %v1850 = vshrl.u32 %v1849, 7
      %v1851 = vsub.s32 %v1848, %v1850
      %v1852 = vrot.slane %v1838, %v1851
      %v1853 = vcombine.high %v1845, %v1845
      %v1854 = vcombine.high %v1852, %v1852
      %v1855 = vcombine.high %v1327, %v1327
      %v1857 = vunpack.c.l.s4 1983009808
      %v1858 = vunpack.c.0.s8 %v1857
      %v1859 = vlaneseq
      %v1860 = vshrl.u32 %v1859, 7
      %v1861 = vsub.s32 %v1858, %v1860
      %v1862 = vrot.slane %v1327, %v1861
      %v1864 = vunpack.c.l.s4 1983009808
      %v1865 = vunpack.c.0.s8 %v1864
      %v1866 = vlaneseq
      %v1867 = vshrl.u32 %v1866, 7
      %v1868 = vsub.s32 %v1865, %v1867
      %v1869 = vrot.slane %v1855, %v1868
      %v1870 = vcombine.high %v1862, %v1862
      %v1871 = vcombine.high %v1869, %v1869
      %v1872 = vcombine.high %v1328, %v1328
      %v1874 = vunpack.c.l.s4 1983009808
      %v1875 = vunpack.c.0.s8 %v1874
      %v1876 = vlaneseq
      %v1877 = vshrl.u32 %v1876, 7
      %v1878 = vsub.s32 %v1875, %v1877
      %v1879 = vrot.slane %v1328, %v1878
      %v1881 = vunpack.c.l.s4 1983009808
      %v1882 = vunpack.c.0.s8 %v1881
      %v1883 = vlaneseq
      %v1884 = vshrl.u32 %v1883, 7
      %v1885 = vsub.s32 %v1882, %v1884
      %v1886 = vrot.slane %v1872, %v1885
      %v1887 = vcombine.high %v1879, %v1879
      %v1888 = vcombine.high %v1886, %v1886
      %v1889 = vcombine.high %v1329, %v1329
      %v1891 = vunpack.c.l.s4 1983009808
      %v1892 = vunpack.c.0.s8 %v1891
      %v1893 = vlaneseq
      %v1894 = vshrl.u32 %v1893, 7
      %v1895 = vsub.s32 %v1892, %v1894
      %v1896 = vrot.slane %v1329, %v1895
      %v1898 = vunpack.c.l.s4 1983009808
      %v1899 = vunpack.c.0.s8 %v1898
      %v1900 = vlaneseq
      %v1901 = vshrl.u32 %v1900, 7
      %v1902 = vsub.s32 %v1899, %v1901
      %v1903 = vrot.slane %v1889, %v1902
      %v1904 = vcombine.high %v1896, %v1896
      %v1905 = vcombine.high %v1903, %v1903
      %v2034 = vsel %vm941, %v1369, -inf
      %v2035 = vrot.slane %v2034, 4
      %v2036 = vmax.f32 %v2034, %v2035
      %v2037 = vrot.slane %v2036, 2
      %v2038 = vmax.f32 %v2036, %v2037
      %v2039 = vrot.slane %v2038, 1
      %v2040 = vmax.f32 %v2038, %v2039
      %v2041 = vsel %vm941, %v1377, -inf
      %v2042 = vrot.slane %v2041, 4
      %v2043 = vmax.f32 %v2041, %v2042
      %v2044 = vrot.slane %v2043, 2
      %v2045 = vmax.f32 %v2043, %v2044
      %v2046 = vrot.slane %v2045, 1
      %v2047 = vmax.f32 %v2045, %v2046
      %v2048 = vsel %vm941, %v1376, -inf
      %v2049 = vrot.slane %v2048, 4
      %v2050 = vmax.f32 %v2048, %v2049
      %v2051 = vrot.slane %v2050, 2
      %v2052 = vmax.f32 %v2050, %v2051
      %v2053 = vrot.slane %v2052, 1
      %v2054 = vmax.f32 %v2052, %v2053
      %v2055 = vsel %vm941, %v1378, -inf
      %v2056 = vrot.slane %v2055, 4
      %v2057 = vmax.f32 %v2055, %v2056
      %v2058 = vrot.slane %v2057, 2
      %v2059 = vmax.f32 %v2057, %v2058
      %v2060 = vrot.slane %v2059, 1
      %v2061 = vmax.f32 %v2059, %v2060
      %v2062 = vsel %vm941, %v1386, -inf
      %v2063 = vrot.slane %v2062, 4
      %v2064 = vmax.f32 %v2062, %v2063
      %v2065 = vrot.slane %v2064, 2
      %v2066 = vmax.f32 %v2064, %v2065
      %v2067 = vrot.slane %v2066, 1
      %v2068 = vmax.f32 %v2066, %v2067
      %v2069 = vsel %vm941, %v1394, -inf
      %v2070 = vrot.slane %v2069, 4
      %v2071 = vmax.f32 %v2069, %v2070
      %v2072 = vrot.slane %v2071, 2
      %v2073 = vmax.f32 %v2071, %v2072
      %v2074 = vrot.slane %v2073, 1
      %v2075 = vmax.f32 %v2073, %v2074
      %v2076 = vsel %vm941, %v1393, -inf
      %v2077 = vrot.slane %v2076, 4
      %v2078 = vmax.f32 %v2076, %v2077
      %v2079 = vrot.slane %v2078, 2
      %v2080 = vmax.f32 %v2078, %v2079
      %v2081 = vrot.slane %v2080, 1
      %v2082 = vmax.f32 %v2080, %v2081
      %v2083 = vsel %vm941, %v1395, -inf
      %v2084 = vrot.slane %v2083, 4
      %v2085 = vmax.f32 %v2083, %v2084
      %v2086 = vrot.slane %v2085, 2
      %v2087 = vmax.f32 %v2085, %v2086
      %v2088 = vrot.slane %v2087, 1
      %v2089 = vmax.f32 %v2087, %v2088
      %v2090 = vsel %vm941, %v1403, -inf
      %v2091 = vrot.slane %v2090, 4
      %v2092 = vmax.f32 %v2090, %v2091
      %v2093 = vrot.slane %v2092, 2
      %v2094 = vmax.f32 %v2092, %v2093
      %v2095 = vrot.slane %v2094, 1
      %v2096 = vmax.f32 %v2094, %v2095
      %v2097 = vsel %vm941, %v1411, -inf
      %v2098 = vrot.slane %v2097, 4
      %v2099 = vmax.f32 %v2097, %v2098
      %v2100 = vrot.slane %v2099, 2
      %v2101 = vmax.f32 %v2099, %v2100
      %v2102 = vrot.slane %v2101, 1
      %v2103 = vmax.f32 %v2101, %v2102
      %v2104 = vsel %vm941, %v1410, -inf
      %v2105 = vrot.slane %v2104, 4
      %v2106 = vmax.f32 %v2104, %v2105
      %v2107 = vrot.slane %v2106, 2
      %v2108 = vmax.f32 %v2106, %v2107
      %v2109 = vrot.slane %v2108, 1
      %v2110 = vmax.f32 %v2108, %v2109
      %v2111 = vsel %vm941, %v1412, -inf
      %v2112 = vrot.slane %v2111, 4
      %v2113 = vmax.f32 %v2111, %v2112
      %v2114 = vrot.slane %v2113, 2
      %v2115 = vmax.f32 %v2113, %v2114
      %v2116 = vrot.slane %v2115, 1
      %v2117 = vmax.f32 %v2115, %v2116
      %v2118 = vsel %vm941, %v1420, -inf
      %v2119 = vrot.slane %v2118, 4
      %v2120 = vmax.f32 %v2118, %v2119
      %v2121 = vrot.slane %v2120, 2
      %v2122 = vmax.f32 %v2120, %v2121
      %v2123 = vrot.slane %v2122, 1
      %v2124 = vmax.f32 %v2122, %v2123
      %v2125 = vsel %vm941, %v1428, -inf
      %v2126 = vrot.slane %v2125, 4
      %v2127 = vmax.f32 %v2125, %v2126
      %v2128 = vrot.slane %v2127, 2
      %v2129 = vmax.f32 %v2127, %v2128
      %v2130 = vrot.slane %v2129, 1
      %v2131 = vmax.f32 %v2129, %v2130
      %v2132 = vsel %vm941, %v1427, -inf
      %v2133 = vrot.slane %v2132, 4
      %v2134 = vmax.f32 %v2132, %v2133
      %v2135 = vrot.slane %v2134, 2
      %v2136 = vmax.f32 %v2134, %v2135
      %v2137 = vrot.slane %v2136, 1
      %v2138 = vmax.f32 %v2136, %v2137
      %v2139 = vsel %vm941, %v1429, -inf
      %v2140 = vrot.slane %v2139, 4
      %v2141 = vmax.f32 %v2139, %v2140
      %v2142 = vrot.slane %v2141, 2
      %v2143 = vmax.f32 %v2141, %v2142
      %v2144 = vrot.slane %v2143, 1
      %v2145 = vmax.f32 %v2143, %v2144
      %v2146 = vsel %vm941, %v1437, -inf
      %v2147 = vrot.slane %v2146, 4
      %v2148 = vmax.f32 %v2146, %v2147
      %v2149 = vrot.slane %v2148, 2
      %v2150 = vmax.f32 %v2148, %v2149
      %v2151 = vrot.slane %v2150, 1
      %v2152 = vmax.f32 %v2150, %v2151
      %v2153 = vsel %vm941, %v1445, -inf
      %v2154 = vrot.slane %v2153, 4
      %v2155 = vmax.f32 %v2153, %v2154
      %v2156 = vrot.slane %v2155, 2
      %v2157 = vmax.f32 %v2155, %v2156
      %v2158 = vrot.slane %v2157, 1
      %v2159 = vmax.f32 %v2157, %v2158
      %v2160 = vsel %vm941, %v1444, -inf
      %v2161 = vrot.slane %v2160, 4
      %v2162 = vmax.f32 %v2160, %v2161
      %v2163 = vrot.slane %v2162, 2
      %v2164 = vmax.f32 %v2162, %v2163
      %v2165 = vrot.slane %v2164, 1
      %v2166 = vmax.f32 %v2164, %v2165
      %v2167 = vsel %vm941, %v1446, -inf
      %v2168 = vrot.slane %v2167, 4
      %v2169 = vmax.f32 %v2167, %v2168
      %v2170 = vrot.slane %v2169, 2
      %v2171 = vmax.f32 %v2169, %v2170
      %v2172 = vrot.slane %v2171, 1
      %v2173 = vmax.f32 %v2171, %v2172
      %v2174 = vsel %vm941, %v1454, -inf
      %v2175 = vrot.slane %v2174, 4
      %v2176 = vmax.f32 %v2174, %v2175
      %v2177 = vrot.slane %v2176, 2
      %v2178 = vmax.f32 %v2176, %v2177
      %v2179 = vrot.slane %v2178, 1
      %v2180 = vmax.f32 %v2178, %v2179
      %v2181 = vsel %vm941, %v1462, -inf
      %v2182 = vrot.slane %v2181, 4
      %v2183 = vmax.f32 %v2181, %v2182
      %v2184 = vrot.slane %v2183, 2
      %v2185 = vmax.f32 %v2183, %v2184
      %v2186 = vrot.slane %v2185, 1
      %v2187 = vmax.f32 %v2185, %v2186
      %v2188 = vsel %vm941, %v1461, -inf
      %v2189 = vrot.slane %v2188, 4
      %v2190 = vmax.f32 %v2188, %v2189
      %v2191 = vrot.slane %v2190, 2
      %v2192 = vmax.f32 %v2190, %v2191
      %v2193 = vrot.slane %v2192, 1
      %v2194 = vmax.f32 %v2192, %v2193
      %v2195 = vsel %vm941, %v1463, -inf
      %v2196 = vrot.slane %v2195, 4
      %v2197 = vmax.f32 %v2195, %v2196
      %v2198 = vrot.slane %v2197, 2
      %v2199 = vmax.f32 %v2197, %v2198
      %v2200 = vrot.slane %v2199, 1
      %v2201 = vmax.f32 %v2199, %v2200
      %v2202 = vsel %vm941, %v1471, -inf
      %v2203 = vrot.slane %v2202, 4
      %v2204 = vmax.f32 %v2202, %v2203
      %v2205 = vrot.slane %v2204, 2
      %v2206 = vmax.f32 %v2204, %v2205
      %v2207 = vrot.slane %v2206, 1
      %v2208 = vmax.f32 %v2206, %v2207
      %v2209 = vsel %vm941, %v1479, -inf
      %v2210 = vrot.slane %v2209, 4
      %v2211 = vmax.f32 %v2209, %v2210
      %v2212 = vrot.slane %v2211, 2
      %v2213 = vmax.f32 %v2211, %v2212
      %v2214 = vrot.slane %v2213, 1
      %v2215 = vmax.f32 %v2213, %v2214
      %v2216 = vsel %vm941, %v1478, -inf
      %v2217 = vrot.slane %v2216, 4
      %v2218 = vmax.f32 %v2216, %v2217
      %v2219 = vrot.slane %v2218, 2
      %v2220 = vmax.f32 %v2218, %v2219
      %v2221 = vrot.slane %v2220, 1
      %v2222 = vmax.f32 %v2220, %v2221
      %v2223 = vsel %vm941, %v1480, -inf
      %v2224 = vrot.slane %v2223, 4
      %v2225 = vmax.f32 %v2223, %v2224
      %v2226 = vrot.slane %v2225, 2
      %v2227 = vmax.f32 %v2225, %v2226
      %v2228 = vrot.slane %v2227, 1
      %v2229 = vmax.f32 %v2227, %v2228
      %v2230 = vsel %vm941, %v1488, -inf
      %v2231 = vrot.slane %v2230, 4
      %v2232 = vmax.f32 %v2230, %v2231
      %v2233 = vrot.slane %v2232, 2
      %v2234 = vmax.f32 %v2232, %v2233
      %v2235 = vrot.slane %v2234, 1
      %v2236 = vmax.f32 %v2234, %v2235
      %v2237 = vsel %vm941, %v1496, -inf
      %v2238 = vrot.slane %v2237, 4
      %v2239 = vmax.f32 %v2237, %v2238
      %v2240 = vrot.slane %v2239, 2
      %v2241 = vmax.f32 %v2239, %v2240
      %v2242 = vrot.slane %v2241, 1
      %v2243 = vmax.f32 %v2241, %v2242
      %v2244 = vsel %vm941, %v1495, -inf
      %v2245 = vrot.slane %v2244, 4
      %v2246 = vmax.f32 %v2244, %v2245
      %v2247 = vrot.slane %v2246, 2
      %v2248 = vmax.f32 %v2246, %v2247
      %v2249 = vrot.slane %v2248, 1
      %v2250 = vmax.f32 %v2248, %v2249
      %v2251 = vsel %vm941, %v1497, -inf
      %v2252 = vrot.slane %v2251, 4
      %v2253 = vmax.f32 %v2251, %v2252
      %v2254 = vrot.slane %v2253, 2
      %v2255 = vmax.f32 %v2253, %v2254
      %v2256 = vrot.slane %v2255, 1
      %v2257 = vmax.f32 %v2255, %v2256
      %v2258 = vsel %vm941, %v1505, -inf
      %v2259 = vrot.slane %v2258, 4
      %v2260 = vmax.f32 %v2258, %v2259
      %v2261 = vrot.slane %v2260, 2
      %v2262 = vmax.f32 %v2260, %v2261
      %v2263 = vrot.slane %v2262, 1
      %v2264 = vmax.f32 %v2262, %v2263
      %v2265 = vsel %vm941, %v1513, -inf
      %v2266 = vrot.slane %v2265, 4
      %v2267 = vmax.f32 %v2265, %v2266
      %v2268 = vrot.slane %v2267, 2
      %v2269 = vmax.f32 %v2267, %v2268
      %v2270 = vrot.slane %v2269, 1
      %v2271 = vmax.f32 %v2269, %v2270
      %v2272 = vsel %vm941, %v1512, -inf
      %v2273 = vrot.slane %v2272, 4
      %v2274 = vmax.f32 %v2272, %v2273
      %v2275 = vrot.slane %v2274, 2
      %v2276 = vmax.f32 %v2274, %v2275
      %v2277 = vrot.slane %v2276, 1
      %v2278 = vmax.f32 %v2276, %v2277
      %v2279 = vsel %vm941, %v1514, -inf
      %v2280 = vrot.slane %v2279, 4
      %v2281 = vmax.f32 %v2279, %v2280
      %v2282 = vrot.slane %v2281, 2
      %v2283 = vmax.f32 %v2281, %v2282
      %v2284 = vrot.slane %v2283, 1
      %v2285 = vmax.f32 %v2283, %v2284
      %v2286 = vsel %vm941, %v1522, -inf
      %v2287 = vrot.slane %v2286, 4
      %v2288 = vmax.f32 %v2286, %v2287
      %v2289 = vrot.slane %v2288, 2
      %v2290 = vmax.f32 %v2288, %v2289
      %v2291 = vrot.slane %v2290, 1
      %v2292 = vmax.f32 %v2290, %v2291
      %v2293 = vsel %vm941, %v1530, -inf
      %v2294 = vrot.slane %v2293, 4
      %v2295 = vmax.f32 %v2293, %v2294
      %v2296 = vrot.slane %v2295, 2
      %v2297 = vmax.f32 %v2295, %v2296
      %v2298 = vrot.slane %v2297, 1
      %v2299 = vmax.f32 %v2297, %v2298
      %v2300 = vsel %vm941, %v1529, -inf
      %v2301 = vrot.slane %v2300, 4
      %v2302 = vmax.f32 %v2300, %v2301
      %v2303 = vrot.slane %v2302, 2
      %v2304 = vmax.f32 %v2302, %v2303
      %v2305 = vrot.slane %v2304, 1
      %v2306 = vmax.f32 %v2304, %v2305
      %v2307 = vsel %vm941, %v1531, -inf
      %v2308 = vrot.slane %v2307, 4
      %v2309 = vmax.f32 %v2307, %v2308
      %v2310 = vrot.slane %v2309, 2
      %v2311 = vmax.f32 %v2309, %v2310
      %v2312 = vrot.slane %v2311, 1
      %v2313 = vmax.f32 %v2311, %v2312
      %v2314 = vsel %vm941, %v1539, -inf
      %v2315 = vrot.slane %v2314, 4
      %v2316 = vmax.f32 %v2314, %v2315
      %v2317 = vrot.slane %v2316, 2
      %v2318 = vmax.f32 %v2316, %v2317
      %v2319 = vrot.slane %v2318, 1
      %v2320 = vmax.f32 %v2318, %v2319
      %v2321 = vsel %vm941, %v1547, -inf
      %v2322 = vrot.slane %v2321, 4
      %v2323 = vmax.f32 %v2321, %v2322
      %v2324 = vrot.slane %v2323, 2
      %v2325 = vmax.f32 %v2323, %v2324
      %v2326 = vrot.slane %v2325, 1
      %v2327 = vmax.f32 %v2325, %v2326
      %v2328 = vsel %vm941, %v1546, -inf
      %v2329 = vrot.slane %v2328, 4
      %v2330 = vmax.f32 %v2328, %v2329
      %v2331 = vrot.slane %v2330, 2
      %v2332 = vmax.f32 %v2330, %v2331
      %v2333 = vrot.slane %v2332, 1
      %v2334 = vmax.f32 %v2332, %v2333
      %v2335 = vsel %vm941, %v1548, -inf
      %v2336 = vrot.slane %v2335, 4
      %v2337 = vmax.f32 %v2335, %v2336
      %v2338 = vrot.slane %v2337, 2
      %v2339 = vmax.f32 %v2337, %v2338
      %v2340 = vrot.slane %v2339, 1
      %v2341 = vmax.f32 %v2339, %v2340
      %v2342 = vsel %vm941, %v1556, -inf
      %v2343 = vrot.slane %v2342, 4
      %v2344 = vmax.f32 %v2342, %v2343
      %v2345 = vrot.slane %v2344, 2
      %v2346 = vmax.f32 %v2344, %v2345
      %v2347 = vrot.slane %v2346, 1
      %v2348 = vmax.f32 %v2346, %v2347
      %v2349 = vsel %vm941, %v1564, -inf
      %v2350 = vrot.slane %v2349, 4
      %v2351 = vmax.f32 %v2349, %v2350
      %v2352 = vrot.slane %v2351, 2
      %v2353 = vmax.f32 %v2351, %v2352
      %v2354 = vrot.slane %v2353, 1
      %v2355 = vmax.f32 %v2353, %v2354
      %v2356 = vsel %vm941, %v1563, -inf
      %v2357 = vrot.slane %v2356, 4
      %v2358 = vmax.f32 %v2356, %v2357
      %v2359 = vrot.slane %v2358, 2
      %v2360 = vmax.f32 %v2358, %v2359
      %v2361 = vrot.slane %v2360, 1
      %v2362 = vmax.f32 %v2360, %v2361
      %v2363 = vsel %vm941, %v1565, -inf
      %v2364 = vrot.slane %v2363, 4
      %v2365 = vmax.f32 %v2363, %v2364
      %v2366 = vrot.slane %v2365, 2
      %v2367 = vmax.f32 %v2365, %v2366
      %v2368 = vrot.slane %v2367, 1
      %v2369 = vmax.f32 %v2367, %v2368
      %v2370 = vsel %vm941, %v1573, -inf
      %v2371 = vrot.slane %v2370, 4
      %v2372 = vmax.f32 %v2370, %v2371
      %v2373 = vrot.slane %v2372, 2
      %v2374 = vmax.f32 %v2372, %v2373
      %v2375 = vrot.slane %v2374, 1
      %v2376 = vmax.f32 %v2374, %v2375
      %v2377 = vsel %vm941, %v1581, -inf
      %v2378 = vrot.slane %v2377, 4
      %v2379 = vmax.f32 %v2377, %v2378
      %v2380 = vrot.slane %v2379, 2
      %v2381 = vmax.f32 %v2379, %v2380
      %v2382 = vrot.slane %v2381, 1
      %v2383 = vmax.f32 %v2381, %v2382
      %v2384 = vsel %vm941, %v1580, -inf
      %v2385 = vrot.slane %v2384, 4
      %v2386 = vmax.f32 %v2384, %v2385
      %v2387 = vrot.slane %v2386, 2
      %v2388 = vmax.f32 %v2386, %v2387
      %v2389 = vrot.slane %v2388, 1
      %v2390 = vmax.f32 %v2388, %v2389
      %v2391 = vsel %vm941, %v1582, -inf
      %v2392 = vrot.slane %v2391, 4
      %v2393 = vmax.f32 %v2391, %v2392
      %v2394 = vrot.slane %v2393, 2
      %v2395 = vmax.f32 %v2393, %v2394
      %v2396 = vrot.slane %v2395, 1
      %v2397 = vmax.f32 %v2395, %v2396
      %v2398 = vsel %vm941, %v1590, -inf
      %v2399 = vrot.slane %v2398, 4
      %v2400 = vmax.f32 %v2398, %v2399
      %v2401 = vrot.slane %v2400, 2
      %v2402 = vmax.f32 %v2400, %v2401
      %v2403 = vrot.slane %v2402, 1
      %v2404 = vmax.f32 %v2402, %v2403
      %v2405 = vsel %vm941, %v1598, -inf
      %v2406 = vrot.slane %v2405, 4
      %v2407 = vmax.f32 %v2405, %v2406
      %v2408 = vrot.slane %v2407, 2
      %v2409 = vmax.f32 %v2407, %v2408
      %v2410 = vrot.slane %v2409, 1
      %v2411 = vmax.f32 %v2409, %v2410
      %v2412 = vsel %vm941, %v1597, -inf
      %v2413 = vrot.slane %v2412, 4
      %v2414 = vmax.f32 %v2412, %v2413
      %v2415 = vrot.slane %v2414, 2
      %v2416 = vmax.f32 %v2414, %v2415
      %v2417 = vrot.slane %v2416, 1
      %v2418 = vmax.f32 %v2416, %v2417
      %v2419 = vsel %vm941, %v1599, -inf
      %v2420 = vrot.slane %v2419, 4
      %v2421 = vmax.f32 %v2419, %v2420
      %v2422 = vrot.slane %v2421, 2
      %v2423 = vmax.f32 %v2421, %v2422
      %v2424 = vrot.slane %v2423, 1
      %v2425 = vmax.f32 %v2423, %v2424
      %v2426 = vsel %vm941, %v1607, -inf
      %v2427 = vrot.slane %v2426, 4
      %v2428 = vmax.f32 %v2426, %v2427
      %v2429 = vrot.slane %v2428, 2
      %v2430 = vmax.f32 %v2428, %v2429
      %v2431 = vrot.slane %v2430, 1
      %v2432 = vmax.f32 %v2430, %v2431
      %v2433 = vsel %vm941, %v1615, -inf
      %v2434 = vrot.slane %v2433, 4
      %v2435 = vmax.f32 %v2433, %v2434
      %v2436 = vrot.slane %v2435, 2
      %v2437 = vmax.f32 %v2435, %v2436
      %v2438 = vrot.slane %v2437, 1
      %v2439 = vmax.f32 %v2437, %v2438
      %v2440 = vsel %vm941, %v1614, -inf
      %v2441 = vrot.slane %v2440, 4
      %v2442 = vmax.f32 %v2440, %v2441
      %v2443 = vrot.slane %v2442, 2
      %v2444 = vmax.f32 %v2442, %v2443
      %v2445 = vrot.slane %v2444, 1
      %v2446 = vmax.f32 %v2444, %v2445
      %v2447 = vsel %vm941, %v1616, -inf
      %v2448 = vrot.slane %v2447, 4
      %v2449 = vmax.f32 %v2447, %v2448
      %v2450 = vrot.slane %v2449, 2
      %v2451 = vmax.f32 %v2449, %v2450
      %v2452 = vrot.slane %v2451, 1
      %v2453 = vmax.f32 %v2451, %v2452
      %v2454 = vsel %vm941, %v1624, -inf
      %v2455 = vrot.slane %v2454, 4
      %v2456 = vmax.f32 %v2454, %v2455
      %v2457 = vrot.slane %v2456, 2
      %v2458 = vmax.f32 %v2456, %v2457
      %v2459 = vrot.slane %v2458, 1
      %v2460 = vmax.f32 %v2458, %v2459
      %v2461 = vsel %vm941, %v1632, -inf
      %v2462 = vrot.slane %v2461, 4
      %v2463 = vmax.f32 %v2461, %v2462
      %v2464 = vrot.slane %v2463, 2
      %v2465 = vmax.f32 %v2463, %v2464
      %v2466 = vrot.slane %v2465, 1
      %v2467 = vmax.f32 %v2465, %v2466
      %v2468 = vsel %vm941, %v1631, -inf
      %v2469 = vrot.slane %v2468, 4
      %v2470 = vmax.f32 %v2468, %v2469
      %v2471 = vrot.slane %v2470, 2
      %v2472 = vmax.f32 %v2470, %v2471
      %v2473 = vrot.slane %v2472, 1
      %v2474 = vmax.f32 %v2472, %v2473
      %v2475 = vsel %vm941, %v1633, -inf
      %v2476 = vrot.slane %v2475, 4
      %v2477 = vmax.f32 %v2475, %v2476
      %v2478 = vrot.slane %v2477, 2
      %v2479 = vmax.f32 %v2477, %v2478
      %v2480 = vrot.slane %v2479, 1
      %v2481 = vmax.f32 %v2479, %v2480
      %v2482 = vsel %vm941, %v1641, -inf
      %v2483 = vrot.slane %v2482, 4
      %v2484 = vmax.f32 %v2482, %v2483
      %v2485 = vrot.slane %v2484, 2
      %v2486 = vmax.f32 %v2484, %v2485
      %v2487 = vrot.slane %v2486, 1
      %v2488 = vmax.f32 %v2486, %v2487
      %v2489 = vsel %vm941, %v1649, -inf
      %v2490 = vrot.slane %v2489, 4
      %v2491 = vmax.f32 %v2489, %v2490
      %v2492 = vrot.slane %v2491, 2
      %v2493 = vmax.f32 %v2491, %v2492
      %v2494 = vrot.slane %v2493, 1
      %v2495 = vmax.f32 %v2493, %v2494
      %v2496 = vsel %vm941, %v1648, -inf
      %v2497 = vrot.slane %v2496, 4
      %v2498 = vmax.f32 %v2496, %v2497
      %v2499 = vrot.slane %v2498, 2
      %v2500 = vmax.f32 %v2498, %v2499
      %v2501 = vrot.slane %v2500, 1
      %v2502 = vmax.f32 %v2500, %v2501
      %v2503 = vsel %vm941, %v1650, -inf
      %v2504 = vrot.slane %v2503, 4
      %v2505 = vmax.f32 %v2503, %v2504
      %v2506 = vrot.slane %v2505, 2
      %v2507 = vmax.f32 %v2505, %v2506
      %v2508 = vrot.slane %v2507, 1
      %v2509 = vmax.f32 %v2507, %v2508
      %v2510 = vsel %vm941, %v1658, -inf
      %v2511 = vrot.slane %v2510, 4
      %v2512 = vmax.f32 %v2510, %v2511
      %v2513 = vrot.slane %v2512, 2
      %v2514 = vmax.f32 %v2512, %v2513
      %v2515 = vrot.slane %v2514, 1
      %v2516 = vmax.f32 %v2514, %v2515
      %v2517 = vsel %vm941, %v1666, -inf
      %v2518 = vrot.slane %v2517, 4
      %v2519 = vmax.f32 %v2517, %v2518
      %v2520 = vrot.slane %v2519, 2
      %v2521 = vmax.f32 %v2519, %v2520
      %v2522 = vrot.slane %v2521, 1
      %v2523 = vmax.f32 %v2521, %v2522
      %v2524 = vsel %vm941, %v1665, -inf
      %v2525 = vrot.slane %v2524, 4
      %v2526 = vmax.f32 %v2524, %v2525
      %v2527 = vrot.slane %v2526, 2
      %v2528 = vmax.f32 %v2526, %v2527
      %v2529 = vrot.slane %v2528, 1
      %v2530 = vmax.f32 %v2528, %v2529
      %v2531 = vsel %vm941, %v1667, -inf
      %v2532 = vrot.slane %v2531, 4
      %v2533 = vmax.f32 %v2531, %v2532
      %v2534 = vrot.slane %v2533, 2
      %v2535 = vmax.f32 %v2533, %v2534
      %v2536 = vrot.slane %v2535, 1
      %v2537 = vmax.f32 %v2535, %v2536
      %v2538 = vsel %vm941, %v1675, -inf
      %v2539 = vrot.slane %v2538, 4
      %v2540 = vmax.f32 %v2538, %v2539
      %v2541 = vrot.slane %v2540, 2
      %v2542 = vmax.f32 %v2540, %v2541
      %v2543 = vrot.slane %v2542, 1
      %v2544 = vmax.f32 %v2542, %v2543
      %v2545 = vsel %vm941, %v1683, -inf
      %v2546 = vrot.slane %v2545, 4
      %v2547 = vmax.f32 %v2545, %v2546
      %v2548 = vrot.slane %v2547, 2
      %v2549 = vmax.f32 %v2547, %v2548
      %v2550 = vrot.slane %v2549, 1
      %v2551 = vmax.f32 %v2549, %v2550
      %v2552 = vsel %vm941, %v1682, -inf
      %v2553 = vrot.slane %v2552, 4
      %v2554 = vmax.f32 %v2552, %v2553
      %v2555 = vrot.slane %v2554, 2
      %v2556 = vmax.f32 %v2554, %v2555
      %v2557 = vrot.slane %v2556, 1
      %v2558 = vmax.f32 %v2556, %v2557
      %v2559 = vsel %vm941, %v1684, -inf
      %v2560 = vrot.slane %v2559, 4
      %v2561 = vmax.f32 %v2559, %v2560
      %v2562 = vrot.slane %v2561, 2
      %v2563 = vmax.f32 %v2561, %v2562
      %v2564 = vrot.slane %v2563, 1
      %v2565 = vmax.f32 %v2563, %v2564
      %v2566 = vsel %vm941, %v1692, -inf
      %v2567 = vrot.slane %v2566, 4
      %v2568 = vmax.f32 %v2566, %v2567
      %v2569 = vrot.slane %v2568, 2
      %v2570 = vmax.f32 %v2568, %v2569
      %v2571 = vrot.slane %v2570, 1
      %v2572 = vmax.f32 %v2570, %v2571
      %v2573 = vsel %vm941, %v1700, -inf
      %v2574 = vrot.slane %v2573, 4
      %v2575 = vmax.f32 %v2573, %v2574
      %v2576 = vrot.slane %v2575, 2
      %v2577 = vmax.f32 %v2575, %v2576
      %v2578 = vrot.slane %v2577, 1
      %v2579 = vmax.f32 %v2577, %v2578
      %v2580 = vsel %vm941, %v1699, -inf
      %v2581 = vrot.slane %v2580, 4
      %v2582 = vmax.f32 %v2580, %v2581
      %v2583 = vrot.slane %v2582, 2
      %v2584 = vmax.f32 %v2582, %v2583
      %v2585 = vrot.slane %v2584, 1
      %v2586 = vmax.f32 %v2584, %v2585
      %v2587 = vsel %vm941, %v1701, -inf
      %v2588 = vrot.slane %v2587, 4
      %v2589 = vmax.f32 %v2587, %v2588
      %v2590 = vrot.slane %v2589, 2
      %v2591 = vmax.f32 %v2589, %v2590
      %v2592 = vrot.slane %v2591, 1
      %v2593 = vmax.f32 %v2591, %v2592
      %v2594 = vsel %vm941, %v1709, -inf
      %v2595 = vrot.slane %v2594, 4
      %v2596 = vmax.f32 %v2594, %v2595
      %v2597 = vrot.slane %v2596, 2
      %v2598 = vmax.f32 %v2596, %v2597
      %v2599 = vrot.slane %v2598, 1
      %v2600 = vmax.f32 %v2598, %v2599
      %v2601 = vsel %vm941, %v1717, -inf
      %v2602 = vrot.slane %v2601, 4
      %v2603 = vmax.f32 %v2601, %v2602
      %v2604 = vrot.slane %v2603, 2
      %v2605 = vmax.f32 %v2603, %v2604
      %v2606 = vrot.slane %v2605, 1
      %v2607 = vmax.f32 %v2605, %v2606
      %v2608 = vsel %vm941, %v1716, -inf
      %v2609 = vrot.slane %v2608, 4
      %v2610 = vmax.f32 %v2608, %v2609
      %v2611 = vrot.slane %v2610, 2
      %v2612 = vmax.f32 %v2610, %v2611
      %v2613 = vrot.slane %v2612, 1
      %v2614 = vmax.f32 %v2612, %v2613
      %v2615 = vsel %vm941, %v1718, -inf
      %v2616 = vrot.slane %v2615, 4
      %v2617 = vmax.f32 %v2615, %v2616
      %v2618 = vrot.slane %v2617, 2
      %v2619 = vmax.f32 %v2617, %v2618
      %v2620 = vrot.slane %v2619, 1
      %v2621 = vmax.f32 %v2619, %v2620
      %v2622 = vsel %vm941, %v1726, -inf
      %v2623 = vrot.slane %v2622, 4
      %v2624 = vmax.f32 %v2622, %v2623
      %v2625 = vrot.slane %v2624, 2
      %v2626 = vmax.f32 %v2624, %v2625
      %v2627 = vrot.slane %v2626, 1
      %v2628 = vmax.f32 %v2626, %v2627
      %v2629 = vsel %vm941, %v1734, -inf
      %v2630 = vrot.slane %v2629, 4
      %v2631 = vmax.f32 %v2629, %v2630
      %v2632 = vrot.slane %v2631, 2
      %v2633 = vmax.f32 %v2631, %v2632
      %v2634 = vrot.slane %v2633, 1
      %v2635 = vmax.f32 %v2633, %v2634
      %v2636 = vsel %vm941, %v1733, -inf
      %v2637 = vrot.slane %v2636, 4
      %v2638 = vmax.f32 %v2636, %v2637
      %v2639 = vrot.slane %v2638, 2
      %v2640 = vmax.f32 %v2638, %v2639
      %v2641 = vrot.slane %v2640, 1
      %v2642 = vmax.f32 %v2640, %v2641
      %v2643 = vsel %vm941, %v1735, -inf
      %v2644 = vrot.slane %v2643, 4
      %v2645 = vmax.f32 %v2643, %v2644
      %v2646 = vrot.slane %v2645, 2
      %v2647 = vmax.f32 %v2645, %v2646
      %v2648 = vrot.slane %v2647, 1
      %v2649 = vmax.f32 %v2647, %v2648
      %v2650 = vsel %vm941, %v1743, -inf
      %v2651 = vrot.slane %v2650, 4
      %v2652 = vmax.f32 %v2650, %v2651
      %v2653 = vrot.slane %v2652, 2
      %v2654 = vmax.f32 %v2652, %v2653
      %v2655 = vrot.slane %v2654, 1
      %v2656 = vmax.f32 %v2654, %v2655
      %v2657 = vsel %vm941, %v1751, -inf
      %v2658 = vrot.slane %v2657, 4
      %v2659 = vmax.f32 %v2657, %v2658
      %v2660 = vrot.slane %v2659, 2
      %v2661 = vmax.f32 %v2659, %v2660
      %v2662 = vrot.slane %v2661, 1
      %v2663 = vmax.f32 %v2661, %v2662
      %v2664 = vsel %vm941, %v1750, -inf
      %v2665 = vrot.slane %v2664, 4
      %v2666 = vmax.f32 %v2664, %v2665
      %v2667 = vrot.slane %v2666, 2
      %v2668 = vmax.f32 %v2666, %v2667
      %v2669 = vrot.slane %v2668, 1
      %v2670 = vmax.f32 %v2668, %v2669
      %v2671 = vsel %vm941, %v1752, -inf
      %v2672 = vrot.slane %v2671, 4
      %v2673 = vmax.f32 %v2671, %v2672
      %v2674 = vrot.slane %v2673, 2
      %v2675 = vmax.f32 %v2673, %v2674
      %v2676 = vrot.slane %v2675, 1
      %v2677 = vmax.f32 %v2675, %v2676
      %v2678 = vsel %vm941, %v1760, -inf
      %v2679 = vrot.slane %v2678, 4
      %v2680 = vmax.f32 %v2678, %v2679
      %v2681 = vrot.slane %v2680, 2
      %v2682 = vmax.f32 %v2680, %v2681
      %v2683 = vrot.slane %v2682, 1
      %v2684 = vmax.f32 %v2682, %v2683
      %v2685 = vsel %vm941, %v1768, -inf
      %v2686 = vrot.slane %v2685, 4
      %v2687 = vmax.f32 %v2685, %v2686
      %v2688 = vrot.slane %v2687, 2
      %v2689 = vmax.f32 %v2687, %v2688
      %v2690 = vrot.slane %v2689, 1
      %v2691 = vmax.f32 %v2689, %v2690
      %v2692 = vsel %vm941, %v1767, -inf
      %v2693 = vrot.slane %v2692, 4
      %v2694 = vmax.f32 %v2692, %v2693
      %v2695 = vrot.slane %v2694, 2
      %v2696 = vmax.f32 %v2694, %v2695
      %v2697 = vrot.slane %v2696, 1
      %v2698 = vmax.f32 %v2696, %v2697
      %v2699 = vsel %vm941, %v1769, -inf
      %v2700 = vrot.slane %v2699, 4
      %v2701 = vmax.f32 %v2699, %v2700
      %v2702 = vrot.slane %v2701, 2
      %v2703 = vmax.f32 %v2701, %v2702
      %v2704 = vrot.slane %v2703, 1
      %v2705 = vmax.f32 %v2703, %v2704
      %v2706 = vsel %vm941, %v1777, -inf
      %v2707 = vrot.slane %v2706, 4
      %v2708 = vmax.f32 %v2706, %v2707
      %v2709 = vrot.slane %v2708, 2
      %v2710 = vmax.f32 %v2708, %v2709
      %v2711 = vrot.slane %v2710, 1
      %v2712 = vmax.f32 %v2710, %v2711
      %v2713 = vsel %vm941, %v1785, -inf
      %v2714 = vrot.slane %v2713, 4
      %v2715 = vmax.f32 %v2713, %v2714
      %v2716 = vrot.slane %v2715, 2
      %v2717 = vmax.f32 %v2715, %v2716
      %v2718 = vrot.slane %v2717, 1
      %v2719 = vmax.f32 %v2717, %v2718
      %v2720 = vsel %vm941, %v1784, -inf
      %v2721 = vrot.slane %v2720, 4
      %v2722 = vmax.f32 %v2720, %v2721
      %v2723 = vrot.slane %v2722, 2
      %v2724 = vmax.f32 %v2722, %v2723
      %v2725 = vrot.slane %v2724, 1
      %v2726 = vmax.f32 %v2724, %v2725
      %v2727 = vsel %vm941, %v1786, -inf
      %v2728 = vrot.slane %v2727, 4
      %v2729 = vmax.f32 %v2727, %v2728
      %v2730 = vrot.slane %v2729, 2
      %v2731 = vmax.f32 %v2729, %v2730
      %v2732 = vrot.slane %v2731, 1
      %v2733 = vmax.f32 %v2731, %v2732
      %v2734 = vsel %vm941, %v1794, -inf
      %v2735 = vrot.slane %v2734, 4
      %v2736 = vmax.f32 %v2734, %v2735
      %v2737 = vrot.slane %v2736, 2
      %v2738 = vmax.f32 %v2736, %v2737
      %v2739 = vrot.slane %v2738, 1
      %v2740 = vmax.f32 %v2738, %v2739
      %v2741 = vsel %vm941, %v1802, -inf
      %v2742 = vrot.slane %v2741, 4
      %v2743 = vmax.f32 %v2741, %v2742
      %v2744 = vrot.slane %v2743, 2
      %v2745 = vmax.f32 %v2743, %v2744
      %v2746 = vrot.slane %v2745, 1
      %v2747 = vmax.f32 %v2745, %v2746
      %v2748 = vsel %vm941, %v1801, -inf
      %v2749 = vrot.slane %v2748, 4
      %v2750 = vmax.f32 %v2748, %v2749
      %v2751 = vrot.slane %v2750, 2
      %v2752 = vmax.f32 %v2750, %v2751
      %v2753 = vrot.slane %v2752, 1
      %v2754 = vmax.f32 %v2752, %v2753
      %v2755 = vsel %vm941, %v1803, -inf
      %v2756 = vrot.slane %v2755, 4
      %v2757 = vmax.f32 %v2755, %v2756
      %v2758 = vrot.slane %v2757, 2
      %v2759 = vmax.f32 %v2757, %v2758
      %v2760 = vrot.slane %v2759, 1
      %v2761 = vmax.f32 %v2759, %v2760
      %v2762 = vsel %vm941, %v1811, -inf
      %v2763 = vrot.slane %v2762, 4
      %v2764 = vmax.f32 %v2762, %v2763
      %v2765 = vrot.slane %v2764, 2
      %v2766 = vmax.f32 %v2764, %v2765
      %v2767 = vrot.slane %v2766, 1
      %v2768 = vmax.f32 %v2766, %v2767
      %v2769 = vsel %vm941, %v1819, -inf
      %v2770 = vrot.slane %v2769, 4
      %v2771 = vmax.f32 %v2769, %v2770
      %v2772 = vrot.slane %v2771, 2
      %v2773 = vmax.f32 %v2771, %v2772
      %v2774 = vrot.slane %v2773, 1
      %v2775 = vmax.f32 %v2773, %v2774
      %v2776 = vsel %vm941, %v1818, -inf
      %v2777 = vrot.slane %v2776, 4
      %v2778 = vmax.f32 %v2776, %v2777
      %v2779 = vrot.slane %v2778, 2
      %v2780 = vmax.f32 %v2778, %v2779
      %v2781 = vrot.slane %v2780, 1
      %v2782 = vmax.f32 %v2780, %v2781
      %v2783 = vsel %vm941, %v1820, -inf
      %v2784 = vrot.slane %v2783, 4
      %v2785 = vmax.f32 %v2783, %v2784
      %v2786 = vrot.slane %v2785, 2
      %v2787 = vmax.f32 %v2785, %v2786
      %v2788 = vrot.slane %v2787, 1
      %v2789 = vmax.f32 %v2787, %v2788
      %v2790 = vsel %vm941, %v1828, -inf
      %v2791 = vrot.slane %v2790, 4
      %v2792 = vmax.f32 %v2790, %v2791
      %v2793 = vrot.slane %v2792, 2
      %v2794 = vmax.f32 %v2792, %v2793
      %v2795 = vrot.slane %v2794, 1
      %v2796 = vmax.f32 %v2794, %v2795
      %v2797 = vsel %vm941, %v1836, -inf
      %v2798 = vrot.slane %v2797, 4
      %v2799 = vmax.f32 %v2797, %v2798
      %v2800 = vrot.slane %v2799, 2
      %v2801 = vmax.f32 %v2799, %v2800
      %v2802 = vrot.slane %v2801, 1
      %v2803 = vmax.f32 %v2801, %v2802
      %v2804 = vsel %vm941, %v1835, -inf
      %v2805 = vrot.slane %v2804, 4
      %v2806 = vmax.f32 %v2804, %v2805
      %v2807 = vrot.slane %v2806, 2
      %v2808 = vmax.f32 %v2806, %v2807
      %v2809 = vrot.slane %v2808, 1
      %v2810 = vmax.f32 %v2808, %v2809
      %v2811 = vsel %vm941, %v1837, -inf
      %v2812 = vrot.slane %v2811, 4
      %v2813 = vmax.f32 %v2811, %v2812
      %v2814 = vrot.slane %v2813, 2
      %v2815 = vmax.f32 %v2813, %v2814
      %v2816 = vrot.slane %v2815, 1
      %v2817 = vmax.f32 %v2815, %v2816
      %v2818 = vsel %vm941, %v1845, -inf
      %v2819 = vrot.slane %v2818, 4
      %v2820 = vmax.f32 %v2818, %v2819
      %v2821 = vrot.slane %v2820, 2
      %v2822 = vmax.f32 %v2820, %v2821
      %v2823 = vrot.slane %v2822, 1
      %v2824 = vmax.f32 %v2822, %v2823
      %v2825 = vsel %vm941, %v1853, -inf
      %v2826 = vrot.slane %v2825, 4
      %v2827 = vmax.f32 %v2825, %v2826
      %v2828 = vrot.slane %v2827, 2
      %v2829 = vmax.f32 %v2827, %v2828
      %v2830 = vrot.slane %v2829, 1
      %v2831 = vmax.f32 %v2829, %v2830
      %v2832 = vsel %vm941, %v1852, -inf
      %v2833 = vrot.slane %v2832, 4
      %v2834 = vmax.f32 %v2832, %v2833
      %v2835 = vrot.slane %v2834, 2
      %v2836 = vmax.f32 %v2834, %v2835
      %v2837 = vrot.slane %v2836, 1
      %v2838 = vmax.f32 %v2836, %v2837
      %v2839 = vsel %vm941, %v1854, -inf
      %v2840 = vrot.slane %v2839, 4
      %v2841 = vmax.f32 %v2839, %v2840
      %v2842 = vrot.slane %v2841, 2
      %v2843 = vmax.f32 %v2841, %v2842
      %v2844 = vrot.slane %v2843, 1
      %v2845 = vmax.f32 %v2843, %v2844
      %v2846 = vsel %vm941, %v1862, -inf
      %v2847 = vrot.slane %v2846, 4
      %v2848 = vmax.f32 %v2846, %v2847
      %v2849 = vrot.slane %v2848, 2
      %v2850 = vmax.f32 %v2848, %v2849
      %v2851 = vrot.slane %v2850, 1
      %v2852 = vmax.f32 %v2850, %v2851
      %v2853 = vsel %vm941, %v1870, -inf
      %v2854 = vrot.slane %v2853, 4
      %v2855 = vmax.f32 %v2853, %v2854
      %v2856 = vrot.slane %v2855, 2
      %v2857 = vmax.f32 %v2855, %v2856
      %v2858 = vrot.slane %v2857, 1
      %v2859 = vmax.f32 %v2857, %v2858
      %v2860 = vsel %vm941, %v1869, -inf
      %v2861 = vrot.slane %v2860, 4
      %v2862 = vmax.f32 %v2860, %v2861
      %v2863 = vrot.slane %v2862, 2
      %v2864 = vmax.f32 %v2862, %v2863
      %v2865 = vrot.slane %v2864, 1
      %v2866 = vmax.f32 %v2864, %v2865
      %v2867 = vsel %vm941, %v1871, -inf
      %v2868 = vrot.slane %v2867, 4
      %v2869 = vmax.f32 %v2867, %v2868
      %v2870 = vrot.slane %v2869, 2
      %v2871 = vmax.f32 %v2869, %v2870
      %v2872 = vrot.slane %v2871, 1
      %v2873 = vmax.f32 %v2871, %v2872
      %v2874 = vsel %vm941, %v1879, -inf
      %v2875 = vrot.slane %v2874, 4
      %v2876 = vmax.f32 %v2874, %v2875
      %v2877 = vrot.slane %v2876, 2
      %v2878 = vmax.f32 %v2876, %v2877
      %v2879 = vrot.slane %v2878, 1
      %v2880 = vmax.f32 %v2878, %v2879
      %v2881 = vsel %vm941, %v1887, -inf
      %v2882 = vrot.slane %v2881, 4
      %v2883 = vmax.f32 %v2881, %v2882
      %v2884 = vrot.slane %v2883, 2
      %v2885 = vmax.f32 %v2883, %v2884
      %v2886 = vrot.slane %v2885, 1
      %v2887 = vmax.f32 %v2885, %v2886
      %v2888 = vsel %vm941, %v1886, -inf
      %v2889 = vrot.slane %v2888, 4
      %v2890 = vmax.f32 %v2888, %v2889
      %v2891 = vrot.slane %v2890, 2
      %v2892 = vmax.f32 %v2890, %v2891
      %v2893 = vrot.slane %v2892, 1
      %v2894 = vmax.f32 %v2892, %v2893
      %v2895 = vsel %vm941, %v1888, -inf
      %v2896 = vrot.slane %v2895, 4
      %v2897 = vmax.f32 %v2895, %v2896
      %v2898 = vrot.slane %v2897, 2
      %v2899 = vmax.f32 %v2897, %v2898
      %v2900 = vrot.slane %v2899, 1
      %v2901 = vmax.f32 %v2899, %v2900
      %v2902 = vsel %vm941, %v1896, -inf
      %v2903 = vrot.slane %v2902, 4
      %v2904 = vmax.f32 %v2902, %v2903
      %v2905 = vrot.slane %v2904, 2
      %v2906 = vmax.f32 %v2904, %v2905
      %v2907 = vrot.slane %v2906, 1
      %v2908 = vmax.f32 %v2906, %v2907
      %v2909 = vsel %vm941, %v1904, -inf
      %v2910 = vrot.slane %v2909, 4
      %v2911 = vmax.f32 %v2909, %v2910
      %v2912 = vrot.slane %v2911, 2
      %v2913 = vmax.f32 %v2911, %v2912
      %v2914 = vrot.slane %v2913, 1
      %v2915 = vmax.f32 %v2913, %v2914
      %v2916 = vsel %vm941, %v1903, -inf
      %v2917 = vrot.slane %v2916, 4
      %v2918 = vmax.f32 %v2916, %v2917
      %v2919 = vrot.slane %v2918, 2
      %v2920 = vmax.f32 %v2918, %v2919
      %v2921 = vrot.slane %v2920, 1
      %v2922 = vmax.f32 %v2920, %v2921
      %v2923 = vsel %vm941, %v1905, -inf
      %v2924 = vrot.slane %v2923, 4
      %v2925 = vmax.f32 %v2923, %v2924
      %v2926 = vrot.slane %v2925, 2
      %v2927 = vmax.f32 %v2925, %v2926
      %v2928 = vrot.slane %v2927, 1
      %v2929 = vmax.f32 %v2927, %v2928
      %v2930 = vld [vmem:[%s1] sm:$0xf]
      %v2931 = vld [vmem:[%s1 + $0x4] sm:$0xf]
      %v2932 = vld [vmem:[%s1 + $0x8] sm:$0xf]
      %v2933 = vld [vmem:[%s1 + $0xc] sm:$0xf]
      %v2934 = vld [vmem:[%s1 + $0x10] sm:$0xf]
      %v2935 = vld [vmem:[%s1 + $0x14] sm:$0xf]
      %v2936 = vld [vmem:[%s1 + $0x18] sm:$0xf]
      %v2937 = vld [vmem:[%s1 + $0x1c] sm:$0xf]
      %v2938 = vld [vmem:[%s1 + $0x20] sm:$0xf]
      %v2939 = vld [vmem:[%s1 + $0x24] sm:$0xf]
      %v2940 = vld [vmem:[%s1 + $0x28] sm:$0xf]
      %v2941 = vld [vmem:[%s1 + $0x2c] sm:$0xf]
      %v2942 = vld [vmem:[%s1 + $0x30] sm:$0xf]
      %v2943 = vld [vmem:[%s1 + $0x34] sm:$0xf]
      %v2944 = vld [vmem:[%s1 + $0x38] sm:$0xf]
      %v2945 = vld [vmem:[%s1 + $0x3c] sm:$0xf]
      %v2946 = vld [vmem:[%s1 + $0x40] sm:$0xf]
      %v2947 = vld [vmem:[%s1 + $0x44] sm:$0xf]
      %v2948 = vld [vmem:[%s1 + $0x48] sm:$0xf]
      %v2949 = vld [vmem:[%s1 + $0x4c] sm:$0xf]
      %v2950 = vld [vmem:[%s1 + $0x50] sm:$0xf]
      %v2951 = vld [vmem:[%s1 + $0x54] sm:$0xf]
      %v2952 = vld [vmem:[%s1 + $0x58] sm:$0xf]
      %v2953 = vld [vmem:[%s1 + $0x5c] sm:$0xf]
      %v2954 = vld [vmem:[%s1 + $0x60] sm:$0xf]
      %v2955 = vpack.c.bf16 %v2040, %v2040
      %v2956 = vpack.c.bf16 %v2047, %v2047
      %v2957 = vpack.c.bf16 %v2054, %v2054
      %v2958 = vpack.c.bf16 %v2061, %v2061
      %v2959 = vpack.c.bf16 %v2068, %v2068
      %v2960 = vpack.c.bf16 %v2075, %v2075
      %v2961 = vpack.c.bf16 %v2082, %v2082
      %v2962 = vpack.c.bf16 %v2089, %v2089
      %v2963 = vpack.c.bf16 %v2096, %v2096
      %v2964 = vpack.c.bf16 %v2103, %v2103
      %v2965 = vpack.c.bf16 %v2110, %v2110
      %v2966 = vpack.c.bf16 %v2117, %v2117
      %v2967 = vpack.c.bf16 %v2124, %v2124
      %v2968 = vpack.c.bf16 %v2131, %v2131
      %v2969 = vpack.c.bf16 %v2138, %v2138
      %v2970 = vpack.c.bf16 %v2145, %v2145
      %v2971 = vpack.c.bf16 %v2152, %v2152
      %v2972 = vpack.c.bf16 %v2159, %v2159
      %v2973 = vpack.c.bf16 %v2166, %v2166
      %v2974 = vpack.c.bf16 %v2173, %v2173
      %v2975 = vpack.c.bf16 %v2180, %v2180
      %v2976 = vpack.c.bf16 %v2187, %v2187
      %v2977 = vpack.c.bf16 %v2194, %v2194
      %v2978 = vpack.c.bf16 %v2201, %v2201
      %v2979 = vpack.c.bf16 %v2208, %v2208
      %v2980 = vpack.c.bf16 %v2215, %v2215
      %v2981 = vpack.c.bf16 %v2222, %v2222
      %v2982 = vpack.c.bf16 %v2229, %v2229
      %v2983 = vpack.c.bf16 %v2236, %v2236
      %v2984 = vpack.c.bf16 %v2243, %v2243
      %v2985 = vpack.c.bf16 %v2250, %v2250
      %v2986 = vpack.c.bf16 %v2257, %v2257
      %v2987 = vpack.c.bf16 %v2264, %v2264
      %v2988 = vpack.c.bf16 %v2271, %v2271
      %v2989 = vpack.c.bf16 %v2278, %v2278
      %v2990 = vpack.c.bf16 %v2285, %v2285
      %v2991 = vpack.c.bf16 %v2292, %v2292
      %v2992 = vpack.c.bf16 %v2299, %v2299
      %v2993 = vpack.c.bf16 %v2306, %v2306
      %v2994 = vpack.c.bf16 %v2313, %v2313
      %v2995 = vpack.c.bf16 %v2320, %v2320
      %v2996 = vpack.c.bf16 %v2327, %v2327
      %v2997 = vpack.c.bf16 %v2334, %v2334
      %v2998 = vpack.c.bf16 %v2341, %v2341
      %v2999 = vpack.c.bf16 %v2348, %v2348
      %v3000 = vpack.c.bf16 %v2355, %v2355
      %v3001 = vpack.c.bf16 %v2362, %v2362
      %v3002 = vpack.c.bf16 %v2369, %v2369
      %v3003 = vpack.c.bf16 %v2376, %v2376
      %v3004 = vpack.c.bf16 %v2383, %v2383
      %v3005 = vpack.c.bf16 %v2390, %v2390
      %v3006 = vpack.c.bf16 %v2397, %v2397
      %v3007 = vpack.c.bf16 %v2404, %v2404
      %v3008 = vpack.c.bf16 %v2411, %v2411
      %v3009 = vpack.c.bf16 %v2418, %v2418
      %v3010 = vpack.c.bf16 %v2425, %v2425
      %v3011 = vpack.c.bf16 %v2432, %v2432
      %v3012 = vpack.c.bf16 %v2439, %v2439
      %v3013 = vpack.c.bf16 %v2446, %v2446
      %v3014 = vpack.c.bf16 %v2453, %v2453
      %v3015 = vpack.c.bf16 %v2460, %v2460
      %v3016 = vpack.c.bf16 %v2467, %v2467
      %v3017 = vpack.c.bf16 %v2474, %v2474
      %v3018 = vpack.c.bf16 %v2481, %v2481
      %v3019 = vpack.c.bf16 %v2488, %v2488
      %v3020 = vpack.c.bf16 %v2495, %v2495
      %v3021 = vpack.c.bf16 %v2502, %v2502
      %v3022 = vpack.c.bf16 %v2509, %v2509
      %v3023 = vpack.c.bf16 %v2516, %v2516
      %v3024 = vpack.c.bf16 %v2523, %v2523
      %v3025 = vpack.c.bf16 %v2530, %v2530
      %v3026 = vpack.c.bf16 %v2537, %v2537
      %v3027 = vpack.c.bf16 %v2544, %v2544
      %v3028 = vpack.c.bf16 %v2551, %v2551
      %v3029 = vpack.c.bf16 %v2558, %v2558
      %v3030 = vpack.c.bf16 %v2565, %v2565
      %v3031 = vpack.c.bf16 %v2572, %v2572
      %v3032 = vpack.c.bf16 %v2579, %v2579
      %v3033 = vpack.c.bf16 %v2586, %v2586
      %v3034 = vpack.c.bf16 %v2593, %v2593
      %v3035 = vpack.c.bf16 %v2600, %v2600
      %v3036 = vpack.c.bf16 %v2607, %v2607
      %v3037 = vpack.c.bf16 %v2614, %v2614
      %v3038 = vpack.c.bf16 %v2621, %v2621
      %v3039 = vpack.c.bf16 %v2628, %v2628
      %v3040 = vpack.c.bf16 %v2635, %v2635
      %v3041 = vpack.c.bf16 %v2642, %v2642
      %v3042 = vpack.c.bf16 %v2649, %v2649
      %v3043 = vpack.c.bf16 %v2656, %v2656
      %v3044 = vpack.c.bf16 %v2663, %v2663
      %v3045 = vpack.c.bf16 %v2670, %v2670
      %v3046 = vpack.c.bf16 %v2677, %v2677
      %v3047 = vpack.c.bf16 %v2684, %v2684
      %v3048 = vpack.c.bf16 %v2691, %v2691
      %v3049 = vpack.c.bf16 %v2698, %v2698
      %v3050 = vpack.c.bf16 %v2705, %v2705
      %v3051 = vpack.c.bf16 %v2712, %v2712
      %v3052 = vpack.c.bf16 %v2719, %v2719
      %v3053 = vpack.c.bf16 %v2726, %v2726
      %v3054 = vpack.c.bf16 %v2733, %v2733
      %v3055 = vpack.c.bf16 %v2740, %v2740
      %v3056 = vpack.c.bf16 %v2747, %v2747
      %v3057 = vpack.c.bf16 %v2754, %v2754
      %v3058 = vpack.c.bf16 %v2761, %v2761
      %v3059 = vpack.c.bf16 %v2768, %v2768
      %v3060 = vpack.c.bf16 %v2775, %v2775
      %v3061 = vpack.c.bf16 %v2782, %v2782
      %v3062 = vpack.c.bf16 %v2789, %v2789
      %v3063 = vpack.c.bf16 %v2796, %v2796
      %v3064 = vpack.c.bf16 %v2803, %v2803
      %v3065 = vpack.c.bf16 %v2810, %v2810
      %v3066 = vpack.c.bf16 %v2817, %v2817
      %v3067 = vpack.c.bf16 %v2824, %v2824
      %v3068 = vpack.c.bf16 %v2831, %v2831
      %v3069 = vpack.c.bf16 %v2838, %v2838
      %v3070 = vpack.c.bf16 %v2845, %v2845
      %v3071 = vpack.c.bf16 %v2852, %v2852
      %v3072 = vpack.c.bf16 %v2859, %v2859
      %v3073 = vpack.c.bf16 %v2866, %v2866
      %v3074 = vpack.c.bf16 %v2873, %v2873
      %v3075 = vpack.c.bf16 %v2880, %v2880
      %v3076 = vpack.c.bf16 %v2887, %v2887
      %v3077 = vpack.c.bf16 %v2894, %v2894
      %v3078 = vpack.c.bf16 %v2901, %v2901
      %v3079 = vpack.c.bf16 %v2908, %v2908
      %v3080 = vpack.c.bf16 %v2915, %v2915
      %v3081 = vpack.c.bf16 %v2922, %v2922
      %v3082 = vpack.c.bf16 %v2929, %v2929
      %v3108 = vunpack.c.l.b16 %v2930
      %v3109 = vunpack.c.l.b16 %v2931
      %v3110 = vunpack.c.l.b16 %v2932
      %v3111 = vunpack.c.l.b16 %v2933
      %v3112 = vunpack.c.l.b16 %v2934
      %v3113 = vunpack.c.l.b16 %v2935
      %v3114 = vunpack.c.l.b16 %v2936
      %v3115 = vunpack.c.l.b16 %v2937
      %v3116 = vunpack.c.l.b16 %v2938
      %v3117 = vunpack.c.l.b16 %v2939
      %v3118 = vunpack.c.l.b16 %v2940
      %v3119 = vunpack.c.l.b16 %v2941
      %v3120 = vunpack.c.l.b16 %v2942
      %v3121 = vunpack.c.l.b16 %v2943
      %v3122 = vunpack.c.l.b16 %v2944
      %v3123 = vunpack.c.l.b16 %v2945
      %v3124 = vunpack.c.l.b16 %v2946
      %v3125 = vunpack.c.l.b16 %v2947
      %v3126 = vunpack.c.l.b16 %v2948
      %v3127 = vunpack.c.l.b16 %v2949
      %v3128 = vunpack.c.l.b16 %v2950
      %v3129 = vunpack.c.l.b16 %v2951
      %v3130 = vunpack.c.l.b16 %v2952
      %v3131 = vunpack.c.l.b16 %v2953
      %v3132 = vunpack.c.l.b16 %v2954
      %v3133 = vpack.c.b16 %v3109, %v3108
      %v3134 = vpack.c.b16 %v3111, %v3110
      %v3135 = vpack.c.b16 %v3113, %v3112
      %v3136 = vpack.c.b16 %v3115, %v3114
      %v3137 = vpack.c.b16 %v3117, %v3116
      %v3138 = vpack.c.b16 %v3119, %v3118
      %v3139 = vpack.c.b16 %v3121, %v3120
      %v3140 = vpack.c.b16 %v3123, %v3122
      %v3141 = vpack.c.b16 %v3125, %v3124
      %v3142 = vpack.c.b16 %v3127, %v3126
      %v3143 = vpack.c.b16 %v3129, %v3128
      %v3144 = vpack.c.b16 %v3131, %v3130
      %v3145 = vpack.c.b16 %v3132, %v3132
      %v3287 = vunpack.c.l.b16 %v2955
      %v3288 = vunpack.c.l.b16 %v2956
      %v3289 = vunpack.c.l.b16 %v2957
      %v3290 = vunpack.c.l.b16 %v2958
      %v3291 = vunpack.c.l.b16 %v2959
      %v3292 = vunpack.c.l.b16 %v2960
      %v3293 = vunpack.c.l.b16 %v2961
      %v3294 = vunpack.c.l.b16 %v2962
      %v3295 = vunpack.c.l.b16 %v2963
      %v3296 = vunpack.c.l.b16 %v2964
      %v3297 = vunpack.c.l.b16 %v2965
      %v3298 = vunpack.c.l.b16 %v2966
      %v3299 = vunpack.c.l.b16 %v2967
      %v3300 = vunpack.c.l.b16 %v2968
      %v3301 = vunpack.c.l.b16 %v2969
      %v3302 = vunpack.c.l.b16 %v2970
      %v3303 = vunpack.c.l.b16 %v2971
      %v3304 = vunpack.c.l.b16 %v2972
      %v3305 = vunpack.c.l.b16 %v2973
      %v3306 = vunpack.c.l.b16 %v2974
      %v3307 = vunpack.c.l.b16 %v2975
      %v3308 = vunpack.c.l.b16 %v2976
      %v3309 = vunpack.c.l.b16 %v2977
      %v3310 = vunpack.c.l.b16 %v2978
      %v3311 = vunpack.c.l.b16 %v2979
      %v3312 = vunpack.c.l.b16 %v2980
      %v3313 = vunpack.c.l.b16 %v2981
      %v3314 = vunpack.c.l.b16 %v2982
      %v3315 = vunpack.c.l.b16 %v2983
      %v3316 = vunpack.c.l.b16 %v2984
      %v3317 = vunpack.c.l.b16 %v2985
      %v3318 = vunpack.c.l.b16 %v2986
      %v3319 = vunpack.c.l.b16 %v2987
      %v3320 = vunpack.c.l.b16 %v2988
      %v3321 = vunpack.c.l.b16 %v2989
      %v3322 = vunpack.c.l.b16 %v2990
      %v3323 = vunpack.c.l.b16 %v2991
      %v3324 = vunpack.c.l.b16 %v2992
      %v3325 = vunpack.c.l.b16 %v2993
      %v3326 = vunpack.c.l.b16 %v2994
      %v3327 = vunpack.c.l.b16 %v2995
      %v3328 = vunpack.c.l.b16 %v2996
      %v3329 = vunpack.c.l.b16 %v2997
      %v3330 = vunpack.c.l.b16 %v2998
      %v3331 = vunpack.c.l.b16 %v2999
      %v3332 = vunpack.c.l.b16 %v3000
      %v3333 = vunpack.c.l.b16 %v3001
      %v3334 = vunpack.c.l.b16 %v3002
      %v3335 = vunpack.c.l.b16 %v3003
      %v3336 = vunpack.c.l.b16 %v3004
      %v3337 = vunpack.c.l.b16 %v3005
      %v3338 = vunpack.c.l.b16 %v3006
      %v3339 = vunpack.c.l.b16 %v3007
      %v3340 = vunpack.c.l.b16 %v3008
      %v3341 = vunpack.c.l.b16 %v3009
      %v3342 = vunpack.c.l.b16 %v3010
      %v3343 = vunpack.c.l.b16 %v3011
      %v3344 = vunpack.c.l.b16 %v3012
      %v3345 = vunpack.c.l.b16 %v3013
      %v3346 = vunpack.c.l.b16 %v3014
      %v3347 = vunpack.c.l.b16 %v3015
      %v3348 = vunpack.c.l.b16 %v3016
      %v3349 = vunpack.c.l.b16 %v3017
      %v3350 = vunpack.c.l.b16 %v3018
      %v3351 = vunpack.c.l.b16 %v3019
      %v3352 = vunpack.c.l.b16 %v3020
      %v3353 = vunpack.c.l.b16 %v3021
      %v3354 = vunpack.c.l.b16 %v3022
      %v3355 = vunpack.c.l.b16 %v3023
      %v3356 = vunpack.c.l.b16 %v3024
      %v3357 = vunpack.c.l.b16 %v3025
      %v3358 = vunpack.c.l.b16 %v3026
      %v3359 = vunpack.c.l.b16 %v3027
      %v3360 = vunpack.c.l.b16 %v3028
      %v3361 = vunpack.c.l.b16 %v3029
      %v3362 = vunpack.c.l.b16 %v3030
      %v3363 = vunpack.c.l.b16 %v3031
      %v3364 = vunpack.c.l.b16 %v3032
      %v3365 = vunpack.c.l.b16 %v3033
      %v3366 = vunpack.c.l.b16 %v3034
      %v3367 = vunpack.c.l.b16 %v3035
      %v3368 = vunpack.c.l.b16 %v3036
      %v3369 = vunpack.c.l.b16 %v3037
      %v3370 = vunpack.c.l.b16 %v3038
      %v3371 = vunpack.c.l.b16 %v3039
      %v3372 = vunpack.c.l.b16 %v3040
      %v3373 = vunpack.c.l.b16 %v3041
      %v3374 = vunpack.c.l.b16 %v3042
      %v3375 = vunpack.c.l.b16 %v3043
      %v3376 = vunpack.c.l.b16 %v3044
      %v3377 = vunpack.c.l.b16 %v3045
      %v3378 = vunpack.c.l.b16 %v3046
      %v3379 = vunpack.c.l.b16 %v3047
      %v3380 = vunpack.c.l.b16 %v3048
      %v3381 = vunpack.c.l.b16 %v3049
      %v3382 = vunpack.c.l.b16 %v3050
      %v3383 = vunpack.c.l.b16 %v3051
      %v3384 = vunpack.c.l.b16 %v3052
      %v3385 = vunpack.c.l.b16 %v3053
      %v3386 = vunpack.c.l.b16 %v3054
      %v3387 = vunpack.c.l.b16 %v3055
      %v3388 = vunpack.c.l.b16 %v3056
      %v3389 = vunpack.c.l.b16 %v3057
      %v3390 = vunpack.c.l.b16 %v3058
      %v3391 = vunpack.c.l.b16 %v3059
      %v3392 = vunpack.c.l.b16 %v3060
      %v3393 = vunpack.c.l.b16 %v3061
      %v3394 = vunpack.c.l.b16 %v3062
      %v3395 = vunpack.c.l.b16 %v3063
      %v3396 = vunpack.c.l.b16 %v3064
      %v3397 = vunpack.c.l.b16 %v3065
      %v3398 = vunpack.c.l.b16 %v3066
      %v3399 = vunpack.c.l.b16 %v3067
      %v3400 = vunpack.c.l.b16 %v3068
      %v3401 = vunpack.c.l.b16 %v3069
      %v3402 = vunpack.c.l.b16 %v3070
      %v3403 = vunpack.c.l.b16 %v3071
      %v3404 = vunpack.c.l.b16 %v3072
      %v3405 = vunpack.c.l.b16 %v3073
      %v3406 = vunpack.c.l.b16 %v3074
      %v3407 = vunpack.c.l.b16 %v3075
      %v3408 = vunpack.c.l.b16 %v3076
      %v3409 = vunpack.c.l.b16 %v3077
      %v3410 = vunpack.c.l.b16 %v3078
      %v3411 = vunpack.c.l.b16 %v3079
      %v3412 = vunpack.c.l.b16 %v3080
      %v3413 = vunpack.c.l.b16 %v3081
      %v3414 = vunpack.c.l.b16 %v3082
      %vm3415 = vcmask 1041409
      %v3416 = vsel %vm3415, %v3288, %v3287
      %vm3417 = vcmask 1042434
      %v3418 = vsel %vm3417, %v3289, %v3416
      %vm3419 = vcmask 1043459
      %v3420 = vsel %vm3419, %v3290, %v3418
      %vm3421 = vcmask 1044484
      %v3422 = vsel %vm3421, %v3291, %v3420
      %vm3423 = vcmask 1045509
      %v3424 = vsel %vm3423, %v3292, %v3422
      %vm3425 = vcmask 1046534
      %v3426 = vsel %vm3425, %v3293, %v3424
      %vm3427 = vcmask 1047559
      %v3428 = vsel %vm3427, %v3294, %v3426
      %v3429 = vsel %vm3415, %v3296, %v3295
      %v3430 = vsel %vm3417, %v3297, %v3429
      %v3431 = vsel %vm3419, %v3298, %v3430
      %v3432 = vsel %vm3421, %v3299, %v3431
      %v3433 = vsel %vm3423, %v3300, %v3432
      %v3434 = vsel %vm3425, %v3301, %v3433
      %v3435 = vsel %vm3427, %v3302, %v3434
      %v3436 = vsel %vm3415, %v3304, %v3303
      %v3437 = vsel %vm3417, %v3305, %v3436
      %v3438 = vsel %vm3419, %v3306, %v3437
      %v3439 = vsel %vm3421, %v3307, %v3438
      %v3440 = vsel %vm3423, %v3308, %v3439
      %v3441 = vsel %vm3425, %v3309, %v3440
      %v3442 = vsel %vm3427, %v3310, %v3441
      %v3443 = vsel %vm3415, %v3312, %v3311
      %v3444 = vsel %vm3417, %v3313, %v3443
      %v3445 = vsel %vm3419, %v3314, %v3444
      %v3446 = vsel %vm3421, %v3315, %v3445
      %v3447 = vsel %vm3423, %v3316, %v3446
      %v3448 = vsel %vm3425, %v3317, %v3447
      %v3449 = vsel %vm3427, %v3318, %v3448
      %v3450 = vsel %vm3415, %v3320, %v3319
      %v3451 = vsel %vm3417, %v3321, %v3450
      %v3452 = vsel %vm3419, %v3322, %v3451
      %v3453 = vsel %vm3421, %v3323, %v3452
      %v3454 = vsel %vm3423, %v3324, %v3453
      %v3455 = vsel %vm3425, %v3325, %v3454
      %v3456 = vsel %vm3427, %v3326, %v3455
      %v3457 = vsel %vm3415, %v3328, %v3327
      %v3458 = vsel %vm3417, %v3329, %v3457
      %v3459 = vsel %vm3419, %v3330, %v3458
      %v3460 = vsel %vm3421, %v3331, %v3459
      %v3461 = vsel %vm3423, %v3332, %v3460
      %v3462 = vsel %vm3425, %v3333, %v3461
      %v3463 = vsel %vm3427, %v3334, %v3462
      %v3464 = vsel %vm3415, %v3336, %v3335
      %v3465 = vsel %vm3417, %v3337, %v3464
      %v3466 = vsel %vm3419, %v3338, %v3465
      %v3467 = vsel %vm3421, %v3339, %v3466
      %v3468 = vsel %vm3423, %v3340, %v3467
      %v3469 = vsel %vm3425, %v3341, %v3468
      %v3470 = vsel %vm3427, %v3342, %v3469
      %v3471 = vsel %vm3415, %v3344, %v3343
      %v3472 = vsel %vm3417, %v3345, %v3471
      %v3473 = vsel %vm3419, %v3346, %v3472
      %v3474 = vsel %vm3421, %v3347, %v3473
      %v3475 = vsel %vm3423, %v3348, %v3474
      %v3476 = vsel %vm3425, %v3349, %v3475
      %v3477 = vsel %vm3427, %v3350, %v3476
      %v3478 = vsel %vm3415, %v3352, %v3351
      %v3479 = vsel %vm3417, %v3353, %v3478
      %v3480 = vsel %vm3419, %v3354, %v3479
      %v3481 = vsel %vm3421, %v3355, %v3480
      %v3482 = vsel %vm3423, %v3356, %v3481
      %v3483 = vsel %vm3425, %v3357, %v3482
      %v3484 = vsel %vm3427, %v3358, %v3483
      %v3485 = vsel %vm3415, %v3360, %v3359
      %v3486 = vsel %vm3417, %v3361, %v3485
      %v3487 = vsel %vm3419, %v3362, %v3486
      %v3488 = vsel %vm3421, %v3363, %v3487
      %v3489 = vsel %vm3423, %v3364, %v3488
      %v3490 = vsel %vm3425, %v3365, %v3489
      %v3491 = vsel %vm3427, %v3366, %v3490
      %v3492 = vsel %vm3415, %v3368, %v3367
      %v3493 = vsel %vm3417, %v3369, %v3492
      %v3494 = vsel %vm3419, %v3370, %v3493
      %v3495 = vsel %vm3421, %v3371, %v3494
      %v3496 = vsel %vm3423, %v3372, %v3495
      %v3497 = vsel %vm3425, %v3373, %v3496
      %v3498 = vsel %vm3427, %v3374, %v3497
      %v3499 = vsel %vm3415, %v3376, %v3375
      %v3500 = vsel %vm3417, %v3377, %v3499
      %v3501 = vsel %vm3419, %v3378, %v3500
      %v3502 = vsel %vm3421, %v3379, %v3501
      %v3503 = vsel %vm3423, %v3380, %v3502
      %v3504 = vsel %vm3425, %v3381, %v3503
      %v3505 = vsel %vm3427, %v3382, %v3504
      %v3506 = vsel %vm3415, %v3384, %v3383
      %v3507 = vsel %vm3417, %v3385, %v3506
      %v3508 = vsel %vm3419, %v3386, %v3507
      %v3509 = vsel %vm3421, %v3387, %v3508
      %v3510 = vsel %vm3423, %v3388, %v3509
      %v3511 = vsel %vm3425, %v3389, %v3510
      %v3512 = vsel %vm3427, %v3390, %v3511
      %v3513 = vsel %vm3415, %v3392, %v3391
      %v3514 = vsel %vm3417, %v3393, %v3513
      %v3515 = vsel %vm3419, %v3394, %v3514
      %v3516 = vsel %vm3421, %v3395, %v3515
      %v3517 = vsel %vm3423, %v3396, %v3516
      %v3518 = vsel %vm3425, %v3397, %v3517
      %v3519 = vsel %vm3427, %v3398, %v3518
      %v3520 = vsel %vm3415, %v3400, %v3399
      %v3521 = vsel %vm3417, %v3401, %v3520
      %v3522 = vsel %vm3419, %v3402, %v3521
      %v3523 = vsel %vm3421, %v3403, %v3522
      %v3524 = vsel %vm3423, %v3404, %v3523
      %v3525 = vsel %vm3425, %v3405, %v3524
      %v3526 = vsel %vm3427, %v3406, %v3525
      %v3527 = vsel %vm3415, %v3408, %v3407
      %v3528 = vsel %vm3417, %v3409, %v3527
      %v3529 = vsel %vm3419, %v3410, %v3528
      %v3530 = vsel %vm3421, %v3411, %v3529
      %v3531 = vsel %vm3423, %v3412, %v3530
      %v3532 = vsel %vm3425, %v3413, %v3531
      %v3533 = vsel %vm3427, %v3414, %v3532
      %v3534 = vpack.c.b16 %v3435, %v3428
      %v3535 = vpack.c.b16 %v3449, %v3442
      %v3536 = vpack.c.b16 %v3463, %v3456
      %v3537 = vpack.c.b16 %v3477, %v3470
      %v3538 = vpack.c.b16 %v3491, %v3484
      %v3539 = vpack.c.b16 %v3505, %v3498
      %v3540 = vpack.c.b16 %v3519, %v3512
      %v3541 = vpack.c.b16 %v3533, %v3526
      %3550 = vmatprep.subr.bf16.mxu0 0
      %3551 = vmatpush1.bf16.msra.mxu0 %v3534
      %3552 = vmatprep.subr.bf16.mxu0 0
      %3553 = vmatpush1.bf16.msra.mxu0 %v3535
      %3554 = vmatprep.subr.bf16.mxu0 0
      %3555 = vmatpush1.bf16.msra.mxu0 %v3536
      %3556 = vmatprep.subr.bf16.mxu0 0
      %3557 = vmatpush1.bf16.msra.mxu0 %v3537
      %3558 = vmatprep.subr.bf16.mxu0 0
      %3559 = vmatpush1.bf16.msra.mxu0 %v3538
      %3560 = vmatprep.subr.bf16.mxu0 0
      %3561 = vmatpush1.bf16.msra.mxu0 %v3539
      %3562 = vmatprep.subr.bf16.mxu0 0
      %3563 = vmatpush1.bf16.msra.mxu0 %v3540
      %3564 = vmatprep.subr.bf16.mxu0 0
      %3565 = vmatpush1.bf16.msra.mxu0 %v3541
      %3566 = vmatprep.subr.bf16.mxu0 0
      %3567 = vmatpush1.bf16.msra.mxu0 0
      %3568 = vmatprep.subr.bf16.mxu0 0
      %3569 = vmatpush1.bf16.msra.mxu0 0
      %3570 = vmatprep.subr.bf16.mxu0 0
      %3571 = vmatpush1.bf16.msra.mxu0 0
      %3572 = vmatprep.subr.bf16.mxu0 0
      %3573 = vmatpush1.bf16.msra.mxu0 0
      %3574 = vmatprep.subr.bf16.mxu0 0
      %3575 = vmatpush1.bf16.msra.mxu0 0
      %3576 = vmatprep.subr.bf16.mxu0 0
      %3577 = vmatpush1.bf16.msra.mxu0 0
      %3578 = vmatprep.subr.bf16.mxu0 0
      %3579 = vmatpush1.bf16.msra.mxu0 0
      %3580 = vmatprep.subr.bf16.mxu0 0
      %3581 = vmatpush1.bf16.msra.mxu0 0
      %3582 = vmatprep.mubr.bf16.mxu0 0
      %3583 = vmatmul.mubr.bf16.gmra.mrb[0].mxu0 %v3133
      %v3584 = vpop.f32.mrb[0].mxu0
      %v3585 = vadd.f32 0.0, %v3584
      %v3586 = vpop.f32.mrb[0].mxu0
      %v3587 = vpop.f32.mrb[0].mxu0
      %v3588 = vadd.f32 0.0, %v3587
      %v3589 = vpop.f32.mrb[0].mxu0
      %3590 = vmatprep.mubr.bf16.mxu0 0
      %3591 = vmatmul.mubr.bf16.gmra.mrb[0].mxu0 %v3134
      %v3592 = vpop.f32.mrb[0].mxu0
      %v3593 = vadd.f32 0.0, %v3592
      %v3594 = vpop.f32.mrb[0].mxu0
      %v3595 = vpop.f32.mrb[0].mxu0
      %v3596 = vadd.f32 0.0, %v3595
      %v3597 = vpop.f32.mrb[0].mxu0
      %3598 = vmatprep.mubr.bf16.mxu0 0
      %3599 = vmatmul.mubr.bf16.gmra.mrb[0].mxu0 %v3135
      %v3600 = vpop.f32.mrb[0].mxu0
      %v3601 = vadd.f32 0.0, %v3600
      %v3602 = vpop.f32.mrb[0].mxu0
      %v3603 = vpop.f32.mrb[0].mxu0
      %v3604 = vadd.f32 0.0, %v3603
      %v3605 = vpop.f32.mrb[0].mxu0
      %3606 = vmatprep.mubr.bf16.mxu0 0
      %3607 = vmatmul.mubr.bf16.gmra.mrb[0].mxu0 %v3136
      %v3608 = vpop.f32.mrb[0].mxu0
      %v3609 = vadd.f32 0.0, %v3608
      %v3610 = vpop.f32.mrb[0].mxu0
      %v3611 = vpop.f32.mrb[0].mxu0
      %v3612 = vadd.f32 0.0, %v3611
      %v3613 = vpop.f32.mrb[0].mxu0
      %3614 = vmatprep.mubr.bf16.mxu0 0
      %3615 = vmatmul.mubr.bf16.gmra.mrb[0].mxu0 %v3137
      %v3616 = vpop.f32.mrb[0].mxu0
      %v3617 = vadd.f32 0.0, %v3616
      %v3618 = vpop.f32.mrb[0].mxu0
      %v3619 = vpop.f32.mrb[0].mxu0
      %v3620 = vadd.f32 0.0, %v3619
      %v3621 = vpop.f32.mrb[0].mxu0
      %3622 = vmatprep.mubr.bf16.mxu0 0
      %3623 = vmatmul.mubr.bf16.gmra.mrb[0].mxu0 %v3138
      %v3624 = vpop.f32.mrb[0].mxu0
      %v3625 = vadd.f32 0.0, %v3624
      %v3626 = vpop.f32.mrb[0].mxu0
      %v3627 = vpop.f32.mrb[0].mxu0
      %v3628 = vadd.f32 0.0, %v3627
      %v3629 = vpop.f32.mrb[0].mxu0
      %3630 = vmatprep.mubr.bf16.mxu0 0
      %3631 = vmatmul.mubr.bf16.gmra.mrb[0].mxu0 %v3139
      %v3632 = vpop.f32.mrb[0].mxu0
      %v3633 = vadd.f32 0.0, %v3632
      %v3634 = vpop.f32.mrb[0].mxu0
      %v3635 = vpop.f32.mrb[0].mxu0
      %v3636 = vadd.f32 0.0, %v3635
      %v3637 = vpop.f32.mrb[0].mxu0
      %3638 = vmatprep.mubr.bf16.mxu0 0
      %3639 = vmatmul.mubr.bf16.gmra.mrb[0].mxu0 %v3140
      %v3640 = vpop.f32.mrb[0].mxu0
      %v3641 = vadd.f32 0.0, %v3640
      %v3642 = vpop.f32.mrb[0].mxu0
      %v3643 = vpop.f32.mrb[0].mxu0
      %v3644 = vadd.f32 0.0, %v3643
      %v3645 = vpop.f32.mrb[0].mxu0
      %3646 = vmatprep.mubr.bf16.mxu0 0
      %3647 = vmatmul.mubr.bf16.gmra.mrb[0].mxu0 %v3141
      %v3648 = vpop.f32.mrb[0].mxu0
      %v3649 = vadd.f32 0.0, %v3648
      %v3650 = vpop.f32.mrb[0].mxu0
      %v3651 = vpop.f32.mrb[0].mxu0
      %v3652 = vadd.f32 0.0, %v3651
      %v3653 = vpop.f32.mrb[0].mxu0
      %3654 = vmatprep.mubr.bf16.mxu0 0
      %3655 = vmatmul.mubr.bf16.gmra.mrb[0].mxu0 %v3142
      %v3656 = vpop.f32.mrb[0].mxu0
      %v3657 = vadd.f32 0.0, %v3656
      %v3658 = vpop.f32.mrb[0].mxu0
      %v3659 = vpop.f32.mrb[0].mxu0
      %v3660 = vadd.f32 0.0, %v3659
      %v3661 = vpop.f32.mrb[0].mxu0
      %3662 = vmatprep.mubr.bf16.mxu0 0
      %3663 = vmatmul.mubr.bf16.gmra.mrb[0].mxu0 %v3143
      %v3664 = vpop.f32.mrb[0].mxu0
      %v3665 = vadd.f32 0.0, %v3664
      %v3666 = vpop.f32.mrb[0].mxu0
      %v3667 = vpop.f32.mrb[0].mxu0
      %v3668 = vadd.f32 0.0, %v3667
      %v3669 = vpop.f32.mrb[0].mxu0
      %3670 = vmatprep.mubr.bf16.mxu0 0
      %3671 = vmatmul.mubr.bf16.gmra.mrb[0].mxu0 %v3144
      %v3672 = vpop.f32.mrb[0].mxu0
      %v3673 = vadd.f32 0.0, %v3672
      %v3674 = vpop.f32.mrb[0].mxu0
      %v3675 = vpop.f32.mrb[0].mxu0
      %v3676 = vadd.f32 0.0, %v3675
      %v3677 = vpop.f32.mrb[0].mxu0
      %3678 = vmatprep.mubr.bf16.mxu0 0
      %3679 = vmatmul.mubr.bf16.gmra.mrb[0].mxu0 %v3145
      %v3680 = vpop.f32.mrb[0].mxu0
      %v3681 = vadd.f32 0.0, %v3680
      %v3682 = vpop.f32.mrb[0].mxu0
      %v3683 = vpop.f32.mrb[0].mxu0
      %v3684 = vpop.f32.mrb[0].mxu0
      %3685 = vdwg.mxu0
      %v3686 = vpack.c.bf16 %v3588, %v3585
      %v3687 = vpack.c.bf16 %v3596, %v3593
      %v3688 = vpack.c.bf16 %v3604, %v3601
      %v3689 = vpack.c.bf16 %v3612, %v3609
      %v3690 = vpack.c.bf16 %v3620, %v3617
      %v3691 = vpack.c.bf16 %v3628, %v3625
      %v3692 = vpack.c.bf16 %v3636, %v3633
      %v3693 = vpack.c.bf16 %v3644, %v3641
      %v3694 = vpack.c.bf16 %v3652, %v3649
      %v3695 = vpack.c.bf16 %v3660, %v3657
      %v3696 = vpack.c.bf16 %v3668, %v3665
      %v3697 = vpack.c.bf16 %v3676, %v3673
      %v3698 = vpack.c.bf16 %v3681, %v3681
      %v3712 = vcombine.high %v3686, %v3686
      %v3714 = vunpack.c.l.s4 1966171168
      %v3715 = vunpack.c.0.s8 %v3714
      %v3716 = vlaneseq
      %v3717 = vshrl.u32 %v3716, 7
      %v3718 = vsub.s32 %v3715, %v3717
      %v3719 = vrot.slane %v3686, %v3718
      %v3721 = vunpack.c.l.s4 1966171168
      %v3722 = vunpack.c.0.s8 %v3721
      %v3723 = vlaneseq
      %v3724 = vshrl.u32 %v3723, 7
      %v3725 = vsub.s32 %v3722, %v3724
      %v3726 = vrot.slane %v3712, %v3725
      %v3727 = vcombine.high %v3719, %v3719
      %v3728 = vcombine.high %v3726, %v3726
      %v3730 = vunpack.c.l.s4 1966171168
      %v3731 = vunpack.c.0.s8 %v3730
      %v3732 = vlaneseq
      %v3733 = vshrl.u32 %v3732, 7
      %v3734 = vsub.s32 %v3731, %v3733
      %v3735 = vrot.slane %v3719, %v3734
      %v3737 = vunpack.c.l.s4 1966171168
      %v3738 = vunpack.c.0.s8 %v3737
      %v3739 = vlaneseq
      %v3740 = vshrl.u32 %v3739, 7
      %v3741 = vsub.s32 %v3738, %v3740
      %v3742 = vrot.slane %v3726, %v3741
      %v3744 = vunpack.c.l.s4 1966171168
      %v3745 = vunpack.c.0.s8 %v3744
      %v3746 = vlaneseq
      %v3747 = vshrl.u32 %v3746, 7
      %v3748 = vsub.s32 %v3745, %v3747
      %v3749 = vrot.slane %v3727, %v3748
      %v3751 = vunpack.c.l.s4 1966171168
      %v3752 = vunpack.c.0.s8 %v3751
      %v3753 = vlaneseq
      %v3754 = vshrl.u32 %v3753, 7
      %v3755 = vsub.s32 %v3752, %v3754
      %v3756 = vrot.slane %v3728, %v3755
      %v3757 = vcombine.high %v3735, %v3735
      %v3758 = vcombine.high %v3742, %v3742
      %v3759 = vcombine.high %v3749, %v3749
      %v3760 = vcombine.high %v3756, %v3756
      %v3761 = vcombine.high %v3687, %v3687
      %v3763 = vunpack.c.l.s4 1966171168
      %v3764 = vunpack.c.0.s8 %v3763
      %v3765 = vlaneseq
      %v3766 = vshrl.u32 %v3765, 7
      %v3767 = vsub.s32 %v3764, %v3766
      %v3768 = vrot.slane %v3687, %v3767
      %v3770 = vunpack.c.l.s4 1966171168
      %v3771 = vunpack.c.0.s8 %v3770
      %v3772 = vlaneseq
      %v3773 = vshrl.u32 %v3772, 7
      %v3774 = vsub.s32 %v3771, %v3773
      %v3775 = vrot.slane %v3761, %v3774
      %v3776 = vcombine.high %v3768, %v3768
      %v3777 = vcombine.high %v3775, %v3775
      %v3779 = vunpack.c.l.s4 1966171168
      %v3780 = vunpack.c.0.s8 %v3779
      %v3781 = vlaneseq
      %v3782 = vshrl.u32 %v3781, 7
      %v3783 = vsub.s32 %v3780, %v3782
      %v3784 = vrot.slane %v3768, %v3783
      %v3786 = vunpack.c.l.s4 1966171168
      %v3787 = vunpack.c.0.s8 %v3786
      %v3788 = vlaneseq
      %v3789 = vshrl.u32 %v3788, 7
      %v3790 = vsub.s32 %v3787, %v3789
      %v3791 = vrot.slane %v3775, %v3790
      %v3793 = vunpack.c.l.s4 1966171168
      %v3794 = vunpack.c.0.s8 %v3793
      %v3795 = vlaneseq
      %v3796 = vshrl.u32 %v3795, 7
      %v3797 = vsub.s32 %v3794, %v3796
      %v3798 = vrot.slane %v3776, %v3797
      %v3800 = vunpack.c.l.s4 1966171168
      %v3801 = vunpack.c.0.s8 %v3800
      %v3802 = vlaneseq
      %v3803 = vshrl.u32 %v3802, 7
      %v3804 = vsub.s32 %v3801, %v3803
      %v3805 = vrot.slane %v3777, %v3804
      %v3806 = vcombine.high %v3784, %v3784
      %v3807 = vcombine.high %v3791, %v3791
      %v3808 = vcombine.high %v3798, %v3798
      %v3809 = vcombine.high %v3805, %v3805
      %v3810 = vcombine.high %v3688, %v3688
      %v3812 = vunpack.c.l.s4 1966171168
      %v3813 = vunpack.c.0.s8 %v3812
      %v3814 = vlaneseq
      %v3815 = vshrl.u32 %v3814, 7
      %v3816 = vsub.s32 %v3813, %v3815
      %v3817 = vrot.slane %v3688, %v3816
      %v3819 = vunpack.c.l.s4 1966171168
      %v3820 = vunpack.c.0.s8 %v3819
      %v3821 = vlaneseq
      %v3822 = vshrl.u32 %v3821, 7
      %v3823 = vsub.s32 %v3820, %v3822
      %v3824 = vrot.slane %v3810, %v3823
      %v3825 = vcombine.high %v3817, %v3817
      %v3826 = vcombine.high %v3824, %v3824
      %v3828 = vunpack.c.l.s4 1966171168
      %v3829 = vunpack.c.0.s8 %v3828
      %v3830 = vlaneseq
      %v3831 = vshrl.u32 %v3830, 7
      %v3832 = vsub.s32 %v3829, %v3831
      %v3833 = vrot.slane %v3817, %v3832
      %v3835 = vunpack.c.l.s4 1966171168
      %v3836 = vunpack.c.0.s8 %v3835
      %v3837 = vlaneseq
      %v3838 = vshrl.u32 %v3837, 7
      %v3839 = vsub.s32 %v3836, %v3838
      %v3840 = vrot.slane %v3824, %v3839
      %v3842 = vunpack.c.l.s4 1966171168
      %v3843 = vunpack.c.0.s8 %v3842
      %v3844 = vlaneseq
      %v3845 = vshrl.u32 %v3844, 7
      %v3846 = vsub.s32 %v3843, %v3845
      %v3847 = vrot.slane %v3825, %v3846
      %v3849 = vunpack.c.l.s4 1966171168
      %v3850 = vunpack.c.0.s8 %v3849
      %v3851 = vlaneseq
      %v3852 = vshrl.u32 %v3851, 7
      %v3853 = vsub.s32 %v3850, %v3852
      %v3854 = vrot.slane %v3826, %v3853
      %v3855 = vcombine.high %v3833, %v3833
      %v3856 = vcombine.high %v3840, %v3840
      %v3857 = vcombine.high %v3847, %v3847
      %v3858 = vcombine.high %v3854, %v3854
      %v3859 = vcombine.high %v3689, %v3689
      %v3861 = vunpack.c.l.s4 1966171168
      %v3862 = vunpack.c.0.s8 %v3861
      %v3863 = vlaneseq
      %v3864 = vshrl.u32 %v3863, 7
      %v3865 = vsub.s32 %v3862, %v3864
      %v3866 = vrot.slane %v3689, %v3865
      %v3868 = vunpack.c.l.s4 1966171168
      %v3869 = vunpack.c.0.s8 %v3868
      %v3870 = vlaneseq
      %v3871 = vshrl.u32 %v3870, 7
      %v3872 = vsub.s32 %v3869, %v3871
      %v3873 = vrot.slane %v3859, %v3872
      %v3874 = vcombine.high %v3866, %v3866
      %v3875 = vcombine.high %v3873, %v3873
      %v3877 = vunpack.c.l.s4 1966171168
      %v3878 = vunpack.c.0.s8 %v3877
      %v3879 = vlaneseq
      %v3880 = vshrl.u32 %v3879, 7
      %v3881 = vsub.s32 %v3878, %v3880
      %v3882 = vrot.slane %v3866, %v3881
      %v3884 = vunpack.c.l.s4 1966171168
      %v3885 = vunpack.c.0.s8 %v3884
      %v3886 = vlaneseq
      %v3887 = vshrl.u32 %v3886, 7
      %v3888 = vsub.s32 %v3885, %v3887
      %v3889 = vrot.slane %v3873, %v3888
      %v3891 = vunpack.c.l.s4 1966171168
      %v3892 = vunpack.c.0.s8 %v3891
      %v3893 = vlaneseq
      %v3894 = vshrl.u32 %v3893, 7
      %v3895 = vsub.s32 %v3892, %v3894
      %v3896 = vrot.slane %v3874, %v3895
      %v3898 = vunpack.c.l.s4 1966171168
      %v3899 = vunpack.c.0.s8 %v3898
      %v3900 = vlaneseq
      %v3901 = vshrl.u32 %v3900, 7
      %v3902 = vsub.s32 %v3899, %v3901
      %v3903 = vrot.slane %v3875, %v3902
      %v3904 = vcombine.high %v3882, %v3882
      %v3905 = vcombine.high %v3889, %v3889
      %v3906 = vcombine.high %v3896, %v3896
      %v3907 = vcombine.high %v3903, %v3903
      %v3908 = vcombine.high %v3690, %v3690
      %v3910 = vunpack.c.l.s4 1966171168
      %v3911 = vunpack.c.0.s8 %v3910
      %v3912 = vlaneseq
      %v3913 = vshrl.u32 %v3912, 7
      %v3914 = vsub.s32 %v3911, %v3913
      %v3915 = vrot.slane %v3690, %v3914
      %v3917 = vunpack.c.l.s4 1966171168
      %v3918 = vunpack.c.0.s8 %v3917
      %v3919 = vlaneseq
      %v3920 = vshrl.u32 %v3919, 7
      %v3921 = vsub.s32 %v3918, %v3920
      %v3922 = vrot.slane %v3908, %v3921
      %v3923 = vcombine.high %v3915, %v3915
      %v3924 = vcombine.high %v3922, %v3922
      %v3926 = vunpack.c.l.s4 1966171168
      %v3927 = vunpack.c.0.s8 %v3926
      %v3928 = vlaneseq
      %v3929 = vshrl.u32 %v3928, 7
      %v3930 = vsub.s32 %v3927, %v3929
      %v3931 = vrot.slane %v3915, %v3930
      %v3933 = vunpack.c.l.s4 1966171168
      %v3934 = vunpack.c.0.s8 %v3933
      %v3935 = vlaneseq
      %v3936 = vshrl.u32 %v3935, 7
      %v3937 = vsub.s32 %v3934, %v3936
      %v3938 = vrot.slane %v3922, %v3937
      %v3940 = vunpack.c.l.s4 1966171168
      %v3941 = vunpack.c.0.s8 %v3940
      %v3942 = vlaneseq
      %v3943 = vshrl.u32 %v3942, 7
      %v3944 = vsub.s32 %v3941, %v3943
      %v3945 = vrot.slane %v3923, %v3944
      %v3947 = vunpack.c.l.s4 1966171168
      %v3948 = vunpack.c.0.s8 %v3947
      %v3949 = vlaneseq
      %v3950 = vshrl.u32 %v3949, 7
      %v3951 = vsub.s32 %v3948, %v3950
      %v3952 = vrot.slane %v3924, %v3951
      %v3953 = vcombine.high %v3931, %v3931
      %v3954 = vcombine.high %v3938, %v3938
      %v3955 = vcombine.high %v3945, %v3945
      %v3956 = vcombine.high %v3952, %v3952
      %v3957 = vcombine.high %v3691, %v3691
      %v3959 = vunpack.c.l.s4 1966171168
      %v3960 = vunpack.c.0.s8 %v3959
      %v3961 = vlaneseq
      %v3962 = vshrl.u32 %v3961, 7
      %v3963 = vsub.s32 %v3960, %v3962
      %v3964 = vrot.slane %v3691, %v3963
      %v3966 = vunpack.c.l.s4 1966171168
      %v3967 = vunpack.c.0.s8 %v3966
      %v3968 = vlaneseq
      %v3969 = vshrl.u32 %v3968, 7
      %v3970 = vsub.s32 %v3967, %v3969
      %v3971 = vrot.slane %v3957, %v3970
      %v3972 = vcombine.high %v3964, %v3964
      %v3973 = vcombine.high %v3971, %v3971
      %v3975 = vunpack.c.l.s4 1966171168
      %v3976 = vunpack.c.0.s8 %v3975
      %v3977 = vlaneseq
      %v3978 = vshrl.u32 %v3977, 7
      %v3979 = vsub.s32 %v3976, %v3978
      %v3980 = vrot.slane %v3964, %v3979
      %v3982 = vunpack.c.l.s4 1966171168
      %v3983 = vunpack.c.0.s8 %v3982
      %v3984 = vlaneseq
      %v3985 = vshrl.u32 %v3984, 7
      %v3986 = vsub.s32 %v3983, %v3985
      %v3987 = vrot.slane %v3971, %v3986
      %v3989 = vunpack.c.l.s4 1966171168
      %v3990 = vunpack.c.0.s8 %v3989
      %v3991 = vlaneseq
      %v3992 = vshrl.u32 %v3991, 7
      %v3993 = vsub.s32 %v3990, %v3992
      %v3994 = vrot.slane %v3972, %v3993
      %v3996 = vunpack.c.l.s4 1966171168
      %v3997 = vunpack.c.0.s8 %v3996
      %v3998 = vlaneseq
      %v3999 = vshrl.u32 %v3998, 7
      %v4000 = vsub.s32 %v3997, %v3999
      %v4001 = vrot.slane %v3973, %v4000
      %v4002 = vcombine.high %v3980, %v3980
      %v4003 = vcombine.high %v3987, %v3987
      %v4004 = vcombine.high %v3994, %v3994
      %v4005 = vcombine.high %v4001, %v4001
      %v4006 = vcombine.high %v3692, %v3692
      %v4008 = vunpack.c.l.s4 1966171168
      %v4009 = vunpack.c.0.s8 %v4008
      %v4010 = vlaneseq
      %v4011 = vshrl.u32 %v4010, 7
      %v4012 = vsub.s32 %v4009, %v4011
      %v4013 = vrot.slane %v3692, %v4012
      %v4015 = vunpack.c.l.s4 1966171168
      %v4016 = vunpack.c.0.s8 %v4015
      %v4017 = vlaneseq
      %v4018 = vshrl.u32 %v4017, 7
      %v4019 = vsub.s32 %v4016, %v4018
      %v4020 = vrot.slane %v4006, %v4019
      %v4021 = vcombine.high %v4013, %v4013
      %v4022 = vcombine.high %v4020, %v4020
      %v4024 = vunpack.c.l.s4 1966171168
      %v4025 = vunpack.c.0.s8 %v4024
      %v4026 = vlaneseq
      %v4027 = vshrl.u32 %v4026, 7
      %v4028 = vsub.s32 %v4025, %v4027
      %v4029 = vrot.slane %v4013, %v4028
      %v4031 = vunpack.c.l.s4 1966171168
      %v4032 = vunpack.c.0.s8 %v4031
      %v4033 = vlaneseq
      %v4034 = vshrl.u32 %v4033, 7
      %v4035 = vsub.s32 %v4032, %v4034
      %v4036 = vrot.slane %v4020, %v4035
      %v4038 = vunpack.c.l.s4 1966171168
      %v4039 = vunpack.c.0.s8 %v4038
      %v4040 = vlaneseq
      %v4041 = vshrl.u32 %v4040, 7
      %v4042 = vsub.s32 %v4039, %v4041
      %v4043 = vrot.slane %v4021, %v4042
      %v4045 = vunpack.c.l.s4 1966171168
      %v4046 = vunpack.c.0.s8 %v4045
      %v4047 = vlaneseq
      %v4048 = vshrl.u32 %v4047, 7
      %v4049 = vsub.s32 %v4046, %v4048
      %v4050 = vrot.slane %v4022, %v4049
      %v4051 = vcombine.high %v4029, %v4029
      %v4052 = vcombine.high %v4036, %v4036
      %v4053 = vcombine.high %v4043, %v4043
      %v4054 = vcombine.high %v4050, %v4050
      %v4055 = vcombine.high %v3693, %v3693
      %v4057 = vunpack.c.l.s4 1966171168
      %v4058 = vunpack.c.0.s8 %v4057
      %v4059 = vlaneseq
      %v4060 = vshrl.u32 %v4059, 7
      %v4061 = vsub.s32 %v4058, %v4060
      %v4062 = vrot.slane %v3693, %v4061
      %v4064 = vunpack.c.l.s4 1966171168
      %v4065 = vunpack.c.0.s8 %v4064
      %v4066 = vlaneseq
      %v4067 = vshrl.u32 %v4066, 7
      %v4068 = vsub.s32 %v4065, %v4067
      %v4069 = vrot.slane %v4055, %v4068
      %v4070 = vcombine.high %v4062, %v4062
      %v4071 = vcombine.high %v4069, %v4069
      %v4073 = vunpack.c.l.s4 1966171168
      %v4074 = vunpack.c.0.s8 %v4073
      %v4075 = vlaneseq
      %v4076 = vshrl.u32 %v4075, 7
      %v4077 = vsub.s32 %v4074, %v4076
      %v4078 = vrot.slane %v4062, %v4077
      %v4080 = vunpack.c.l.s4 1966171168
      %v4081 = vunpack.c.0.s8 %v4080
      %v4082 = vlaneseq
      %v4083 = vshrl.u32 %v4082, 7
      %v4084 = vsub.s32 %v4081, %v4083
      %v4085 = vrot.slane %v4069, %v4084
      %v4087 = vunpack.c.l.s4 1966171168
      %v4088 = vunpack.c.0.s8 %v4087
      %v4089 = vlaneseq
      %v4090 = vshrl.u32 %v4089, 7
      %v4091 = vsub.s32 %v4088, %v4090
      %v4092 = vrot.slane %v4070, %v4091
      %v4094 = vunpack.c.l.s4 1966171168
      %v4095 = vunpack.c.0.s8 %v4094
      %v4096 = vlaneseq
      %v4097 = vshrl.u32 %v4096, 7
      %v4098 = vsub.s32 %v4095, %v4097
      %v4099 = vrot.slane %v4071, %v4098
      %v4100 = vcombine.high %v4078, %v4078
      %v4101 = vcombine.high %v4085, %v4085
      %v4102 = vcombine.high %v4092, %v4092
      %v4103 = vcombine.high %v4099, %v4099
      %v4104 = vcombine.high %v3694, %v3694
      %v4106 = vunpack.c.l.s4 1966171168
      %v4107 = vunpack.c.0.s8 %v4106
      %v4108 = vlaneseq
      %v4109 = vshrl.u32 %v4108, 7
      %v4110 = vsub.s32 %v4107, %v4109
      %v4111 = vrot.slane %v3694, %v4110
      %v4113 = vunpack.c.l.s4 1966171168
      %v4114 = vunpack.c.0.s8 %v4113
      %v4115 = vlaneseq
      %v4116 = vshrl.u32 %v4115, 7
      %v4117 = vsub.s32 %v4114, %v4116
      %v4118 = vrot.slane %v4104, %v4117
      %v4119 = vcombine.high %v4111, %v4111
      %v4120 = vcombine.high %v4118, %v4118
      %v4122 = vunpack.c.l.s4 1966171168
      %v4123 = vunpack.c.0.s8 %v4122
      %v4124 = vlaneseq
      %v4125 = vshrl.u32 %v4124, 7
      %v4126 = vsub.s32 %v4123, %v4125
      %v4127 = vrot.slane %v4111, %v4126
      %v4129 = vunpack.c.l.s4 1966171168
      %v4130 = vunpack.c.0.s8 %v4129
      %v4131 = vlaneseq
      %v4132 = vshrl.u32 %v4131, 7
      %v4133 = vsub.s32 %v4130, %v4132
      %v4134 = vrot.slane %v4118, %v4133
      %v4136 = vunpack.c.l.s4 1966171168
      %v4137 = vunpack.c.0.s8 %v4136
      %v4138 = vlaneseq
      %v4139 = vshrl.u32 %v4138, 7
      %v4140 = vsub.s32 %v4137, %v4139
      %v4141 = vrot.slane %v4119, %v4140
      %v4143 = vunpack.c.l.s4 1966171168
      %v4144 = vunpack.c.0.s8 %v4143
      %v4145 = vlaneseq
      %v4146 = vshrl.u32 %v4145, 7
      %v4147 = vsub.s32 %v4144, %v4146
      %v4148 = vrot.slane %v4120, %v4147
      %v4149 = vcombine.high %v4127, %v4127
      %v4150 = vcombine.high %v4134, %v4134
      %v4151 = vcombine.high %v4141, %v4141
      %v4152 = vcombine.high %v4148, %v4148
      %v4153 = vcombine.high %v3695, %v3695
      %v4155 = vunpack.c.l.s4 1966171168
      %v4156 = vunpack.c.0.s8 %v4155
      %v4157 = vlaneseq
      %v4158 = vshrl.u32 %v4157, 7
      %v4159 = vsub.s32 %v4156, %v4158
      %v4160 = vrot.slane %v3695, %v4159
      %v4162 = vunpack.c.l.s4 1966171168
      %v4163 = vunpack.c.0.s8 %v4162
      %v4164 = vlaneseq
      %v4165 = vshrl.u32 %v4164, 7
      %v4166 = vsub.s32 %v4163, %v4165
      %v4167 = vrot.slane %v4153, %v4166
      %v4168 = vcombine.high %v4160, %v4160
      %v4169 = vcombine.high %v4167, %v4167
      %v4171 = vunpack.c.l.s4 1966171168
      %v4172 = vunpack.c.0.s8 %v4171
      %v4173 = vlaneseq
      %v4174 = vshrl.u32 %v4173, 7
      %v4175 = vsub.s32 %v4172, %v4174
      %v4176 = vrot.slane %v4160, %v4175
      %v4178 = vunpack.c.l.s4 1966171168
      %v4179 = vunpack.c.0.s8 %v4178
      %v4180 = vlaneseq
      %v4181 = vshrl.u32 %v4180, 7
      %v4182 = vsub.s32 %v4179, %v4181
      %v4183 = vrot.slane %v4167, %v4182
      %v4185 = vunpack.c.l.s4 1966171168
      %v4186 = vunpack.c.0.s8 %v4185
      %v4187 = vlaneseq
      %v4188 = vshrl.u32 %v4187, 7
      %v4189 = vsub.s32 %v4186, %v4188
      %v4190 = vrot.slane %v4168, %v4189
      %v4192 = vunpack.c.l.s4 1966171168
      %v4193 = vunpack.c.0.s8 %v4192
      %v4194 = vlaneseq
      %v4195 = vshrl.u32 %v4194, 7
      %v4196 = vsub.s32 %v4193, %v4195
      %v4197 = vrot.slane %v4169, %v4196
      %v4198 = vcombine.high %v4176, %v4176
      %v4199 = vcombine.high %v4183, %v4183
      %v4200 = vcombine.high %v4190, %v4190
      %v4201 = vcombine.high %v4197, %v4197
      %v4202 = vcombine.high %v3696, %v3696
      %v4204 = vunpack.c.l.s4 1966171168
      %v4205 = vunpack.c.0.s8 %v4204
      %v4206 = vlaneseq
      %v4207 = vshrl.u32 %v4206, 7
      %v4208 = vsub.s32 %v4205, %v4207
      %v4209 = vrot.slane %v3696, %v4208
      %v4211 = vunpack.c.l.s4 1966171168
      %v4212 = vunpack.c.0.s8 %v4211
      %v4213 = vlaneseq
      %v4214 = vshrl.u32 %v4213, 7
      %v4215 = vsub.s32 %v4212, %v4214
      %v4216 = vrot.slane %v4202, %v4215
      %v4217 = vcombine.high %v4209, %v4209
      %v4218 = vcombine.high %v4216, %v4216
      %v4220 = vunpack.c.l.s4 1966171168
      %v4221 = vunpack.c.0.s8 %v4220
      %v4222 = vlaneseq
      %v4223 = vshrl.u32 %v4222, 7
      %v4224 = vsub.s32 %v4221, %v4223
      %v4225 = vrot.slane %v4209, %v4224
      %v4227 = vunpack.c.l.s4 1966171168
      %v4228 = vunpack.c.0.s8 %v4227
      %v4229 = vlaneseq
      %v4230 = vshrl.u32 %v4229, 7
      %v4231 = vsub.s32 %v4228, %v4230
      %v4232 = vrot.slane %v4216, %v4231
      %v4234 = vunpack.c.l.s4 1966171168
      %v4235 = vunpack.c.0.s8 %v4234
      %v4236 = vlaneseq
      %v4237 = vshrl.u32 %v4236, 7
      %v4238 = vsub.s32 %v4235, %v4237
      %v4239 = vrot.slane %v4217, %v4238
      %v4241 = vunpack.c.l.s4 1966171168
      %v4242 = vunpack.c.0.s8 %v4241
      %v4243 = vlaneseq
      %v4244 = vshrl.u32 %v4243, 7
      %v4245 = vsub.s32 %v4242, %v4244
      %v4246 = vrot.slane %v4218, %v4245
      %v4247 = vcombine.high %v4225, %v4225
      %v4248 = vcombine.high %v4232, %v4232
      %v4249 = vcombine.high %v4239, %v4239
      %v4250 = vcombine.high %v4246, %v4246
      %v4251 = vcombine.high %v3697, %v3697
      %v4253 = vunpack.c.l.s4 1966171168
      %v4254 = vunpack.c.0.s8 %v4253
      %v4255 = vlaneseq
      %v4256 = vshrl.u32 %v4255, 7
      %v4257 = vsub.s32 %v4254, %v4256
      %v4258 = vrot.slane %v3697, %v4257
      %v4260 = vunpack.c.l.s4 1966171168
      %v4261 = vunpack.c.0.s8 %v4260
      %v4262 = vlaneseq
      %v4263 = vshrl.u32 %v4262, 7
      %v4264 = vsub.s32 %v4261, %v4263
      %v4265 = vrot.slane %v4251, %v4264
      %v4266 = vcombine.high %v4258, %v4258
      %v4267 = vcombine.high %v4265, %v4265
      %v4269 = vunpack.c.l.s4 1966171168
      %v4270 = vunpack.c.0.s8 %v4269
      %v4271 = vlaneseq
      %v4272 = vshrl.u32 %v4271, 7
      %v4273 = vsub.s32 %v4270, %v4272
      %v4274 = vrot.slane %v4258, %v4273
      %v4276 = vunpack.c.l.s4 1966171168
      %v4277 = vunpack.c.0.s8 %v4276
      %v4278 = vlaneseq
      %v4279 = vshrl.u32 %v4278, 7
      %v4280 = vsub.s32 %v4277, %v4279
      %v4281 = vrot.slane %v4265, %v4280
      %v4283 = vunpack.c.l.s4 1966171168
      %v4284 = vunpack.c.0.s8 %v4283
      %v4285 = vlaneseq
      %v4286 = vshrl.u32 %v4285, 7
      %v4287 = vsub.s32 %v4284, %v4286
      %v4288 = vrot.slane %v4266, %v4287
      %v4290 = vunpack.c.l.s4 1966171168
      %v4291 = vunpack.c.0.s8 %v4290
      %v4292 = vlaneseq
      %v4293 = vshrl.u32 %v4292, 7
      %v4294 = vsub.s32 %v4291, %v4293
      %v4295 = vrot.slane %v4267, %v4294
      %v4296 = vcombine.high %v4274, %v4274
      %v4297 = vcombine.high %v4281, %v4281
      %v4298 = vcombine.high %v4288, %v4288
      %v4299 = vcombine.high %v4295, %v4295
      %v4301 = vunpack.c.l.s4 1966171168
      %v4302 = vunpack.c.0.s8 %v4301
      %v4303 = vlaneseq
      %v4304 = vshrl.u32 %v4303, 7
      %v4305 = vsub.s32 %v4302, %v4304
      %v4306 = vrot.slane %v3698, %v4305
      %v4307 = vcombine.high %v4306, %v4306
      %v4309 = vunpack.c.l.s4 1966171168
      %v4310 = vunpack.c.0.s8 %v4309
      %v4311 = vlaneseq
      %v4312 = vshrl.u32 %v4311, 7
      %v4313 = vsub.s32 %v4310, %v4312
      %v4314 = vrot.slane %v4306, %v4313
      %v4316 = vunpack.c.l.s4 1966171168
      %v4317 = vunpack.c.0.s8 %v4316
      %v4318 = vlaneseq
      %v4319 = vshrl.u32 %v4318, 7
      %v4320 = vsub.s32 %v4317, %v4319
      %v4321 = vrot.slane %v4307, %v4320
      %v4322 = vcombine.high %v4314, %v4314
      %v4323 = vcombine.high %v4321, %v4321
      %vm4324 = vsmask.f32 256
      %vm4325 = vsmask.f32 1284
      %vm4326 = vmor %vm4324, %vm4325
      %vm4327 = vsmask.f32 2312
      %vm4328 = vmor %vm4326, %vm4327
      %vm4329 = vsmask.f32 3340
      %vm4330 = vmor %vm4328, %vm4329
      %vm4331 = vsmask.f32 4368
      %vm4332 = vmor %vm4330, %vm4331
      %vm4333 = vsmask.f32 5396
      %vm4334 = vmor %vm4332, %vm4333
      %vm4335 = vsmask.f32 6424
      %vm4336 = vmor %vm4334, %vm4335
      %vm4337 = vsmask.f32 7452
      %vm4338 = vmor %vm4336, %vm4337
      %v4340 = vshrl.u32 %v3735, 16
      %v4342 = vrot.slane %v4340, 7
      %v4343 = vrot.slane %v4342, 1
      %v4345 = vshll.u32 %v3749, 16
      %v4347 = vsel %vm4338, %v4343, %v4345
      %v4348 = vshrl.u32 %v3749, 16
      %v4350 = vrot.slane %v4348, 7
      %v4351 = vrot.slane %v4350, 1
      %v4353 = vshll.u32 %v3757, 16
      %v4355 = vsel %vm4338, %v4351, %v4353
      %v4356 = vshrl.u32 %v3757, 16
      %v4358 = vrot.slane %v4356, 7
      %v4359 = vrot.slane %v4358, 1
      %v4361 = vshll.u32 %v3759, 16
      %v4363 = vsel %vm4338, %v4359, %v4361
      %v4364 = vshrl.u32 %v3759, 16
      %v4366 = vrot.slane %v4364, 7
      %v4367 = vrot.slane %v4366, 1
      %v4369 = vshll.u32 %v3742, 16
      %v4371 = vsel %vm4338, %v4367, %v4369
      %v4373 = vshrl.u32 %v3756, 16
      %v4375 = vrot.slane %v4373, 7
      %v4376 = vrot.slane %v4375, 1
      %v4378 = vshll.u32 %v3758, 16
      %v4380 = vsel %vm4338, %v4376, %v4378
      %v4381 = vshrl.u32 %v3758, 16
      %v4383 = vrot.slane %v4381, 7
      %v4384 = vrot.slane %v4383, 1
      %v4386 = vshll.u32 %v3760, 16
      %v4388 = vsel %vm4338, %v4384, %v4386
      %v4389 = vshrl.u32 %v3760, 16
      %v4391 = vrot.slane %v4389, 7
      %v4392 = vrot.slane %v4391, 1
      %v4394 = vshll.u32 %v3784, 16
      %v4396 = vsel %vm4338, %v4392, %v4394
      %v4397 = vshrl.u32 %v3784, 16
      %v4399 = vrot.slane %v4397, 7
      %v4400 = vrot.slane %v4399, 1
      %v4402 = vshll.u32 %v3798, 16
      %v4404 = vsel %vm4338, %v4400, %v4402
      %v4406 = vshrl.u32 %v3806, 16
      %v4408 = vrot.slane %v4406, 7
      %v4409 = vrot.slane %v4408, 1
      %v4411 = vshll.u32 %v3808, 16
      %v4413 = vsel %vm4338, %v4409, %v4411
      %v4414 = vshrl.u32 %v3808, 16
      %v4416 = vrot.slane %v4414, 7
      %v4417 = vrot.slane %v4416, 1
      %v4419 = vshll.u32 %v3791, 16
      %v4421 = vsel %vm4338, %v4417, %v4419
      %v4422 = vshrl.u32 %v3791, 16
      %v4424 = vrot.slane %v4422, 7
      %v4425 = vrot.slane %v4424, 1
      %v4427 = vshll.u32 %v3805, 16
      %v4429 = vsel %vm4338, %v4425, %v4427
      %v4430 = vshrl.u32 %v3805, 16
      %v4432 = vrot.slane %v4430, 7
      %v4433 = vrot.slane %v4432, 1
      %v4435 = vshll.u32 %v3807, 16
      %v4437 = vsel %vm4338, %v4433, %v4435
      %v4439 = vshrl.u32 %v3809, 16
      %v4441 = vrot.slane %v4439, 7
      %v4442 = vrot.slane %v4441, 1
      %v4444 = vshll.u32 %v3833, 16
      %v4446 = vsel %vm4338, %v4442, %v4444
      %v4447 = vshrl.u32 %v3833, 16
      %v4449 = vrot.slane %v4447, 7
      %v4450 = vrot.slane %v4449, 1
      %v4452 = vshll.u32 %v3847, 16
      %v4454 = vsel %vm4338, %v4450, %v4452
      %v4455 = vshrl.u32 %v3847, 16
      %v4457 = vrot.slane %v4455, 7
      %v4458 = vrot.slane %v4457, 1
      %v4460 = vshll.u32 %v3855, 16
      %v4462 = vsel %vm4338, %v4458, %v4460
      %v4463 = vshrl.u32 %v3855, 16
      %v4465 = vrot.slane %v4463, 7
      %v4466 = vrot.slane %v4465, 1
      %v4468 = vshll.u32 %v3857, 16
      %v4470 = vsel %vm4338, %v4466, %v4468
      %v4472 = vshrl.u32 %v3840, 16
      %v4474 = vrot.slane %v4472, 7
      %v4475 = vrot.slane %v4474, 1
      %v4477 = vshll.u32 %v3854, 16
      %v4479 = vsel %vm4338, %v4475, %v4477
      %v4480 = vshrl.u32 %v3854, 16
      %v4482 = vrot.slane %v4480, 7
      %v4483 = vrot.slane %v4482, 1
      %v4485 = vshll.u32 %v3856, 16
      %v4487 = vsel %vm4338, %v4483, %v4485
      %v4488 = vshrl.u32 %v3856, 16
      %v4490 = vrot.slane %v4488, 7
      %v4491 = vrot.slane %v4490, 1
      %v4493 = vshll.u32 %v3858, 16
      %v4495 = vsel %vm4338, %v4491, %v4493
      %v4496 = vshrl.u32 %v3858, 16
      %v4498 = vrot.slane %v4496, 7
      %v4499 = vrot.slane %v4498, 1
      %v4501 = vshll.u32 %v3882, 16
      %v4503 = vsel %vm4338, %v4499, %v4501
      %v4505 = vshrl.u32 %v3896, 16
      %v4507 = vrot.slane %v4505, 7
      %v4508 = vrot.slane %v4507, 1
      %v4510 = vshll.u32 %v3904, 16
      %v4512 = vsel %vm4338, %v4508, %v4510
      %v4513 = vshrl.u32 %v3904, 16
      %v4515 = vrot.slane %v4513, 7
      %v4516 = vrot.slane %v4515, 1
      %v4518 = vshll.u32 %v3906, 16
      %v4520 = vsel %vm4338, %v4516, %v4518
      %v4521 = vshrl.u32 %v3906, 16
      %v4523 = vrot.slane %v4521, 7
      %v4524 = vrot.slane %v4523, 1
      %v4526 = vshll.u32 %v3889, 16
      %v4528 = vsel %vm4338, %v4524, %v4526
      %v4529 = vshrl.u32 %v3889, 16
      %v4531 = vrot.slane %v4529, 7
      %v4532 = vrot.slane %v4531, 1
      %v4534 = vshll.u32 %v3903, 16
      %v4536 = vsel %vm4338, %v4532, %v4534
      %v4538 = vshrl.u32 %v3905, 16
      %v4540 = vrot.slane %v4538, 7
      %v4541 = vrot.slane %v4540, 1
      %v4543 = vshll.u32 %v3907, 16
      %v4545 = vsel %vm4338, %v4541, %v4543
      %v4546 = vshrl.u32 %v3907, 16
      %v4548 = vrot.slane %v4546, 7
      %v4549 = vrot.slane %v4548, 1
      %v4551 = vshll.u32 %v3931, 16
      %v4553 = vsel %vm4338, %v4549, %v4551
      %v4554 = vshrl.u32 %v3931, 16
      %v4556 = vrot.slane %v4554, 7
      %v4557 = vrot.slane %v4556, 1
      %v4559 = vshll.u32 %v3945, 16
      %v4561 = vsel %vm4338, %v4557, %v4559
      %v4562 = vshrl.u32 %v3945, 16
      %v4564 = vrot.slane %v4562, 7
      %v4565 = vrot.slane %v4564, 1
      %v4567 = vshll.u32 %v3953, 16
      %v4569 = vsel %vm4338, %v4565, %v4567
      %v4571 = vshrl.u32 %v3955, 16
      %v4573 = vrot.slane %v4571, 7
      %v4574 = vrot.slane %v4573, 1
      %v4576 = vshll.u32 %v3938, 16
      %v4578 = vsel %vm4338, %v4574, %v4576
      %v4579 = vshrl.u32 %v3938, 16
      %v4581 = vrot.slane %v4579, 7
      %v4582 = vrot.slane %v4581, 1
      %v4584 = vshll.u32 %v3952, 16
      %v4586 = vsel %vm4338, %v4582, %v4584
      %v4587 = vshrl.u32 %v3952, 16
      %v4589 = vrot.slane %v4587, 7
      %v4590 = vrot.slane %v4589, 1
      %v4592 = vshll.u32 %v3954, 16
      %v4594 = vsel %vm4338, %v4590, %v4592
      %v4595 = vshrl.u32 %v3954, 16
      %v4597 = vrot.slane %v4595, 7
      %v4598 = vrot.slane %v4597, 1
      %v4600 = vshll.u32 %v3956, 16
      %v4602 = vsel %vm4338, %v4598, %v4600
      %v4604 = vshrl.u32 %v4051, 16
      %v4606 = vrot.slane %v4604, 7
      %v4607 = vrot.slane %v4606, 1
      %v4609 = vshll.u32 %v4053, 16
      %v4611 = vsel %vm4338, %v4607, %v4609
      %v4612 = vshrl.u32 %v4053, 16
      %v4614 = vrot.slane %v4612, 7
      %v4615 = vrot.slane %v4614, 1
      %v4617 = vshll.u32 %v4036, 16
      %v4619 = vsel %vm4338, %v4615, %v4617
      %v4620 = vshrl.u32 %v4036, 16
      %v4622 = vrot.slane %v4620, 7
      %v4623 = vrot.slane %v4622, 1
      %v4625 = vshll.u32 %v4050, 16
      %v4627 = vsel %vm4338, %v4623, %v4625
      %v4628 = vshrl.u32 %v4050, 16
      %v4630 = vrot.slane %v4628, 7
      %v4631 = vrot.slane %v4630, 1
      %v4633 = vshll.u32 %v4052, 16
      %v4635 = vsel %vm4338, %v4631, %v4633
      %v4637 = vshrl.u32 %v4054, 16
      %v4639 = vrot.slane %v4637, 7
      %v4640 = vrot.slane %v4639, 1
      %v4642 = vshll.u32 %v4078, 16
      %v4644 = vsel %vm4338, %v4640, %v4642
      %v4645 = vshrl.u32 %v4078, 16
      %v4647 = vrot.slane %v4645, 7
      %v4648 = vrot.slane %v4647, 1
      %v4650 = vshll.u32 %v4092, 16
      %v4652 = vsel %vm4338, %v4648, %v4650
      %v4653 = vshrl.u32 %v4092, 16
      %v4655 = vrot.slane %v4653, 7
      %v4656 = vrot.slane %v4655, 1
      %v4658 = vshll.u32 %v4100, 16
      %v4660 = vsel %vm4338, %v4656, %v4658
      %v4661 = vshrl.u32 %v4100, 16
      %v4663 = vrot.slane %v4661, 7
      %v4664 = vrot.slane %v4663, 1
      %v4666 = vshll.u32 %v4102, 16
      %v4668 = vsel %vm4338, %v4664, %v4666
      %v4670 = vshrl.u32 %v4085, 16
      %v4672 = vrot.slane %v4670, 7
      %v4673 = vrot.slane %v4672, 1
      %v4675 = vshll.u32 %v4099, 16
      %v4677 = vsel %vm4338, %v4673, %v4675
      %v4678 = vshrl.u32 %v4099, 16
      %v4680 = vrot.slane %v4678, 7
      %v4681 = vrot.slane %v4680, 1
      %v4683 = vshll.u32 %v4101, 16
      %v4685 = vsel %vm4338, %v4681, %v4683
      %v4686 = vshrl.u32 %v4101, 16
      %v4688 = vrot.slane %v4686, 7
      %v4689 = vrot.slane %v4688, 1
      %v4691 = vshll.u32 %v4103, 16
      %v4693 = vsel %vm4338, %v4689, %v4691
      %v4694 = vshrl.u32 %v4103, 16
      %v4696 = vrot.slane %v4694, 7
      %v4697 = vrot.slane %v4696, 1
      %v4699 = vshll.u32 %v4127, 16
      %v4701 = vsel %vm4338, %v4697, %v4699
      %v4703 = vshrl.u32 %v4141, 16
      %v4705 = vrot.slane %v4703, 7
      %v4706 = vrot.slane %v4705, 1
      %v4708 = vshll.u32 %v4149, 16
      %v4710 = vsel %vm4338, %v4706, %v4708
      %v4711 = vshrl.u32 %v4149, 16
      %v4713 = vrot.slane %v4711, 7
      %v4714 = vrot.slane %v4713, 1
      %v4716 = vshll.u32 %v4151, 16
      %v4718 = vsel %vm4338, %v4714, %v4716
      %v4719 = vshrl.u32 %v4151, 16
      %v4721 = vrot.slane %v4719, 7
      %v4722 = vrot.slane %v4721, 1
      %v4724 = vshll.u32 %v4134, 16
      %v4726 = vsel %vm4338, %v4722, %v4724
      %v4727 = vshrl.u32 %v4134, 16
      %v4729 = vrot.slane %v4727, 7
      %v4730 = vrot.slane %v4729, 1
      %v4732 = vshll.u32 %v4148, 16
      %v4734 = vsel %vm4338, %v4730, %v4732
      %v4736 = vshrl.u32 %v4150, 16
      %v4738 = vrot.slane %v4736, 7
      %v4739 = vrot.slane %v4738, 1
      %v4741 = vshll.u32 %v4152, 16
      %v4743 = vsel %vm4338, %v4739, %v4741
      %v4744 = vshrl.u32 %v4152, 16
      %v4746 = vrot.slane %v4744, 7
      %v4747 = vrot.slane %v4746, 1
      %v4749 = vshll.u32 %v4176, 16
      %v4751 = vsel %vm4338, %v4747, %v4749
      %v4752 = vshrl.u32 %v4176, 16
      %v4754 = vrot.slane %v4752, 7
      %v4755 = vrot.slane %v4754, 1
      %v4757 = vshll.u32 %v4190, 16
      %v4759 = vsel %vm4338, %v4755, %v4757
      %v4760 = vshrl.u32 %v4190, 16
      %v4762 = vrot.slane %v4760, 7
      %v4763 = vrot.slane %v4762, 1
      %v4765 = vshll.u32 %v4198, 16
      %v4767 = vsel %vm4338, %v4763, %v4765
      %v4769 = vshrl.u32 %v4200, 16
      %v4771 = vrot.slane %v4769, 7
      %v4772 = vrot.slane %v4771, 1
      %v4774 = vshll.u32 %v4183, 16
      %v4776 = vsel %vm4338, %v4772, %v4774
      %v4777 = vshrl.u32 %v4183, 16
      %v4779 = vrot.slane %v4777, 7
      %v4780 = vrot.slane %v4779, 1
      %v4782 = vshll.u32 %v4197, 16
      %v4784 = vsel %vm4338, %v4780, %v4782
      %v4785 = vshrl.u32 %v4197, 16
      %v4787 = vrot.slane %v4785, 7
      %v4788 = vrot.slane %v4787, 1
      %v4790 = vshll.u32 %v4199, 16
      %v4792 = vsel %vm4338, %v4788, %v4790
      %v4793 = vshrl.u32 %v4199, 16
      %v4795 = vrot.slane %v4793, 7
      %v4796 = vrot.slane %v4795, 1
      %v4798 = vshll.u32 %v4201, 16
      %v4800 = vsel %vm4338, %v4796, %v4798
      %v4802 = vshrl.u32 %v4225, 16
      %v4804 = vrot.slane %v4802, 7
      %v4805 = vrot.slane %v4804, 1
      %v4807 = vshll.u32 %v4239, 16
      %v4809 = vsel %vm4338, %v4805, %v4807
      %v4810 = vshrl.u32 %v4239, 16
      %v4812 = vrot.slane %v4810, 7
      %v4813 = vrot.slane %v4812, 1
      %v4815 = vshll.u32 %v4247, 16
      %v4817 = vsel %vm4338, %v4813, %v4815
      %v4818 = vshrl.u32 %v4247, 16
      %v4820 = vrot.slane %v4818, 7
      %v4821 = vrot.slane %v4820, 1
      %v4823 = vshll.u32 %v4249, 16
      %v4825 = vsel %vm4338, %v4821, %v4823
      %v4826 = vshrl.u32 %v4249, 16
      %v4828 = vrot.slane %v4826, 7
      %v4829 = vrot.slane %v4828, 1
      %v4831 = vshll.u32 %v4232, 16
      %v4833 = vsel %vm4338, %v4829, %v4831
      %v4835 = vshrl.u32 %v4246, 16
      %v4837 = vrot.slane %v4835, 7
      %v4838 = vrot.slane %v4837, 1
      %v4840 = vshll.u32 %v4248, 16
      %v4842 = vsel %vm4338, %v4838, %v4840
      %v4843 = vshrl.u32 %v4248, 16
      %v4845 = vrot.slane %v4843, 7
      %v4846 = vrot.slane %v4845, 1
      %v4848 = vshll.u32 %v4250, 16
      %v4850 = vsel %vm4338, %v4846, %v4848
      %v4851 = vshrl.u32 %v4250, 16
      %v4853 = vrot.slane %v4851, 7
      %v4854 = vrot.slane %v4853, 1
      %v4856 = vshll.u32 %v4274, 16
      %v4858 = vsel %vm4338, %v4854, %v4856
      %v4859 = vshrl.u32 %v4274, 16
      %v4861 = vrot.slane %v4859, 7
      %v4862 = vrot.slane %v4861, 1
      %v4864 = vshll.u32 %v4288, 16
      %v4866 = vsel %vm4338, %v4862, %v4864
      %v4868 = vshrl.u32 %v3980, 16
      %v4870 = vrot.slane %v4868, 7
      %v4871 = vrot.slane %v4870, 1
      %v4873 = vshll.u32 %v3994, 16
      %v4875 = vsel %vm4338, %v4871, %v4873
      %v4876 = vshrl.u32 %v3994, 16
      %v4878 = vrot.slane %v4876, 7
      %v4879 = vrot.slane %v4878, 1
      %v4881 = vshll.u32 %v4002, 16
      %v4883 = vsel %vm4338, %v4879, %v4881
      %v4884 = vshrl.u32 %v4002, 16
      %v4886 = vrot.slane %v4884, 7
      %v4887 = vrot.slane %v4886, 1
      %v4889 = vshll.u32 %v4004, 16
      %v4891 = vsel %vm4338, %v4887, %v4889
      %v4892 = vshrl.u32 %v4004, 16
      %v4894 = vrot.slane %v4892, 7
      %v4895 = vrot.slane %v4894, 1
      %v4897 = vshll.u32 %v3987, 16
      %v4899 = vsel %vm4338, %v4895, %v4897
      %v4901 = vshrl.u32 %v4296, 16
      %v4903 = vrot.slane %v4901, 7
      %v4904 = vrot.slane %v4903, 1
      %v4906 = vshll.u32 %v4298, 16
      %v4908 = vsel %vm4338, %v4904, %v4906
      %v4909 = vshrl.u32 %v4298, 16
      %v4911 = vrot.slane %v4909, 7
      %v4912 = vrot.slane %v4911, 1
      %v4914 = vshll.u32 %v4281, 16
      %v4916 = vsel %vm4338, %v4912, %v4914
      %v4917 = vshrl.u32 %v4281, 16
      %v4919 = vrot.slane %v4917, 7
      %v4920 = vrot.slane %v4919, 1
      %v4922 = vshll.u32 %v4295, 16
      %v4924 = vsel %vm4338, %v4920, %v4922
      %v4925 = vshrl.u32 %v4295, 16
      %v4927 = vrot.slane %v4925, 7
      %v4928 = vrot.slane %v4927, 1
      %v4930 = vshll.u32 %v4297, 16
      %v4932 = vsel %vm4338, %v4928, %v4930
      %v4934 = vshrl.u32 %v4001, 16
      %v4936 = vrot.slane %v4934, 7
      %v4937 = vrot.slane %v4936, 1
      %v4939 = vshll.u32 %v4003, 16
      %v4941 = vsel %vm4338, %v4937, %v4939
      %v4942 = vshrl.u32 %v4003, 16
      %v4944 = vrot.slane %v4942, 7
      %v4945 = vrot.slane %v4944, 1
      %v4947 = vshll.u32 %v4005, 16
      %v4949 = vsel %vm4338, %v4945, %v4947
      %v4950 = vshrl.u32 %v4005, 16
      %v4952 = vrot.slane %v4950, 7
      %v4953 = vrot.slane %v4952, 1
      %v4955 = vshll.u32 %v4029, 16
      %v4957 = vsel %vm4338, %v4953, %v4955
      %v4958 = vshrl.u32 %v4029, 16
      %v4960 = vrot.slane %v4958, 7
      %v4961 = vrot.slane %v4960, 1
      %v4963 = vshll.u32 %v4043, 16
      %v4965 = vsel %vm4338, %v4961, %v4963
      %v4967 = vshrl.u32 %v4299, 16
      %v4969 = vrot.slane %v4967, 7
      %v4970 = vrot.slane %v4969, 1
      %v4972 = vshll.u32 %v4314, 16
      %v4974 = vsel %vm4338, %v4970, %v4972
      %v4975 = vshrl.u32 %v4314, 16
      %v4977 = vrot.slane %v4975, 7
      %v4978 = vrot.slane %v4977, 1
      %v4980 = vshll.u32 %v4321, 16
      %v4982 = vsel %vm4338, %v4978, %v4980
      %v4983 = vshrl.u32 %v4321, 16
      %v4985 = vrot.slane %v4983, 7
      %v4986 = vrot.slane %v4985, 1
      %v4988 = vshll.u32 %v4322, 16
      %v4990 = vsel %vm4338, %v4986, %v4988
      %v4991 = vshrl.u32 %v4322, 16
      %v4993 = vrot.slane %v4991, 7
      %v4994 = vrot.slane %v4993, 1
      %v4996 = vshll.u32 %v4323, 16
      %v4998 = vsel %vm4338, %v4994, %v4996
      %v4999 = vcombine.low %v3735, %v3749
      %v5000 = vcombine.low %v3757, %v3759
      %v5001 = vcombine.low %v3756, %v3758
      %v5002 = vcombine.low %v3760, %v3784
      %v5004 = vunpack.c.l.s4 1966171168
      %v5005 = vunpack.c.0.s8 %v5004
      %v5006 = vlaneseq
      %v5007 = vshrl.u32 %v5006, 7
      %v5008 = vsub.s32 %v5005, %v5007
      %v5009 = vrot.slane %v4999, %v5008
      %v5011 = vunpack.c.l.s4 1966171168
      %v5012 = vunpack.c.0.s8 %v5011
      %v5013 = vlaneseq
      %v5014 = vshrl.u32 %v5013, 7
      %v5015 = vsub.s32 %v5012, %v5014
      %v5016 = vrot.slane %v5000, %v5015
      %v5018 = vunpack.c.l.s4 1966171168
      %v5019 = vunpack.c.0.s8 %v5018
      %v5020 = vlaneseq
      %v5021 = vshrl.u32 %v5020, 7
      %v5022 = vsub.s32 %v5019, %v5021
      %v5023 = vrot.slane %v5001, %v5022
      %v5025 = vunpack.c.l.s4 1966171168
      %v5026 = vunpack.c.0.s8 %v5025
      %v5027 = vlaneseq
      %v5028 = vshrl.u32 %v5027, 7
      %v5029 = vsub.s32 %v5026, %v5028
      %v5030 = vrot.slane %v5002, %v5029
      %v5031 = vcombine.low %v5009, %v5016
      %v5032 = vcombine.low %v5023, %v5030
      %v5034 = vunpack.c.l.s4 1966171168
      %v5035 = vunpack.c.0.s8 %v5034
      %v5036 = vlaneseq
      %v5037 = vshrl.u32 %v5036, 7
      %v5038 = vsub.s32 %v5035, %v5037
      %v5039 = vrot.slane %v5031, %v5038
      %v5041 = vunpack.c.l.s4 1966171168
      %v5042 = vunpack.c.0.s8 %v5041
      %v5043 = vlaneseq
      %v5044 = vshrl.u32 %v5043, 7
      %v5045 = vsub.s32 %v5042, %v5044
      %v5046 = vrot.slane %v5032, %v5045
      %v5047 = vcombine.low %v5039, %v5046
      %v5048 = vcombine.low %v3806, %v3808
      %v5049 = vcombine.low %v3791, %v3805
      %v5050 = vcombine.low %v3809, %v3833
      %v5051 = vcombine.low %v3847, %v3855
      %v5053 = vunpack.c.l.s4 1966171168
      %v5054 = vunpack.c.0.s8 %v5053
      %v5055 = vlaneseq
      %v5056 = vshrl.u32 %v5055, 7
      %v5057 = vsub.s32 %v5054, %v5056
      %v5058 = vrot.slane %v5048, %v5057
      %v5060 = vunpack.c.l.s4 1966171168
      %v5061 = vunpack.c.0.s8 %v5060
      %v5062 = vlaneseq
      %v5063 = vshrl.u32 %v5062, 7
      %v5064 = vsub.s32 %v5061, %v5063
      %v5065 = vrot.slane %v5049, %v5064
      %v5067 = vunpack.c.l.s4 1966171168
      %v5068 = vunpack.c.0.s8 %v5067
      %v5069 = vlaneseq
      %v5070 = vshrl.u32 %v5069, 7
      %v5071 = vsub.s32 %v5068, %v5070
      %v5072 = vrot.slane %v5050, %v5071
      %v5074 = vunpack.c.l.s4 1966171168
      %v5075 = vunpack.c.0.s8 %v5074
      %v5076 = vlaneseq
      %v5077 = vshrl.u32 %v5076, 7
      %v5078 = vsub.s32 %v5075, %v5077
      %v5079 = vrot.slane %v5051, %v5078
      %v5080 = vcombine.low %v5058, %v5065
      %v5081 = vcombine.low %v5072, %v5079
      %v5083 = vunpack.c.l.s4 1966171168
      %v5084 = vunpack.c.0.s8 %v5083
      %v5085 = vlaneseq
      %v5086 = vshrl.u32 %v5085, 7
      %v5087 = vsub.s32 %v5084, %v5086
      %v5088 = vrot.slane %v5080, %v5087
      %v5090 = vunpack.c.l.s4 1966171168
      %v5091 = vunpack.c.0.s8 %v5090
      %v5092 = vlaneseq
      %v5093 = vshrl.u32 %v5092, 7
      %v5094 = vsub.s32 %v5091, %v5093
      %v5095 = vrot.slane %v5081, %v5094
      %v5096 = vcombine.low %v5088, %v5095
      %v5097 = vcombine.low %v3840, %v3854
      %v5098 = vcombine.low %v3856, %v3858
      %v5099 = vcombine.low %v3896, %v3904
      %v5100 = vcombine.low %v3906, %v3889
      %v5102 = vunpack.c.l.s4 1966171168
      %v5103 = vunpack.c.0.s8 %v5102
      %v5104 = vlaneseq
      %v5105 = vshrl.u32 %v5104, 7
      %v5106 = vsub.s32 %v5103, %v5105
      %v5107 = vrot.slane %v5097, %v5106
      %v5109 = vunpack.c.l.s4 1966171168
      %v5110 = vunpack.c.0.s8 %v5109
      %v5111 = vlaneseq
      %v5112 = vshrl.u32 %v5111, 7
      %v5113 = vsub.s32 %v5110, %v5112
      %v5114 = vrot.slane %v5098, %v5113
      %v5116 = vunpack.c.l.s4 1966171168
      %v5117 = vunpack.c.0.s8 %v5116
      %v5118 = vlaneseq
      %v5119 = vshrl.u32 %v5118, 7
      %v5120 = vsub.s32 %v5117, %v5119
      %v5121 = vrot.slane %v5099, %v5120
      %v5123 = vunpack.c.l.s4 1966171168
      %v5124 = vunpack.c.0.s8 %v5123
      %v5125 = vlaneseq
      %v5126 = vshrl.u32 %v5125, 7
      %v5127 = vsub.s32 %v5124, %v5126
      %v5128 = vrot.slane %v5100, %v5127
      %v5129 = vcombine.low %v5107, %v5114
      %v5130 = vcombine.low %v5121, %v5128
      %v5132 = vunpack.c.l.s4 1966171168
      %v5133 = vunpack.c.0.s8 %v5132
      %v5134 = vlaneseq
      %v5135 = vshrl.u32 %v5134, 7
      %v5136 = vsub.s32 %v5133, %v5135
      %v5137 = vrot.slane %v5129, %v5136
      %v5139 = vunpack.c.l.s4 1966171168
      %v5140 = vunpack.c.0.s8 %v5139
      %v5141 = vlaneseq
      %v5142 = vshrl.u32 %v5141, 7
      %v5143 = vsub.s32 %v5140, %v5142
      %v5144 = vrot.slane %v5130, %v5143
      %v5145 = vcombine.low %v5137, %v5144
      %v5146 = vcombine.low %v3905, %v3907
      %v5147 = vcombine.low %v3931, %v3945
      %v5148 = vcombine.low %v3955, %v3938
      %v5149 = vcombine.low %v3952, %v3954
      %v5151 = vunpack.c.l.s4 1966171168
      %v5152 = vunpack.c.0.s8 %v5151
      %v5153 = vlaneseq
      %v5154 = vshrl.u32 %v5153, 7
      %v5155 = vsub.s32 %v5152, %v5154
      %v5156 = vrot.slane %v5146, %v5155
      %v5158 = vunpack.c.l.s4 1966171168
      %v5159 = vunpack.c.0.s8 %v5158
      %v5160 = vlaneseq
      %v5161 = vshrl.u32 %v5160, 7
      %v5162 = vsub.s32 %v5159, %v5161
      %v5163 = vrot.slane %v5147, %v5162
      %v5165 = vunpack.c.l.s4 1966171168
      %v5166 = vunpack.c.0.s8 %v5165
      %v5167 = vlaneseq
      %v5168 = vshrl.u32 %v5167, 7
      %v5169 = vsub.s32 %v5166, %v5168
      %v5170 = vrot.slane %v5148, %v5169
      %v5172 = vunpack.c.l.s4 1966171168
      %v5173 = vunpack.c.0.s8 %v5172
      %v5174 = vlaneseq
      %v5175 = vshrl.u32 %v5174, 7
      %v5176 = vsub.s32 %v5173, %v5175
      %v5177 = vrot.slane %v5149, %v5176
      %v5178 = vcombine.low %v5156, %v5163
      %v5179 = vcombine.low %v5170, %v5177
      %v5181 = vunpack.c.l.s4 1966171168
      %v5182 = vunpack.c.0.s8 %v5181
      %v5183 = vlaneseq
      %v5184 = vshrl.u32 %v5183, 7
      %v5185 = vsub.s32 %v5182, %v5184
      %v5186 = vrot.slane %v5178, %v5185
      %v5188 = vunpack.c.l.s4 1966171168
      %v5189 = vunpack.c.0.s8 %v5188
      %v5190 = vlaneseq
      %v5191 = vshrl.u32 %v5190, 7
      %v5192 = vsub.s32 %v5189, %v5191
      %v5193 = vrot.slane %v5179, %v5192
      %v5194 = vcombine.low %v5186, %v5193
      %v5195 = vcombine.low %v4051, %v4053
      %v5196 = vcombine.low %v4036, %v4050
      %v5197 = vcombine.low %v4054, %v4078
      %v5198 = vcombine.low %v4092, %v4100
      %v5200 = vunpack.c.l.s4 1966171168
      %v5201 = vunpack.c.0.s8 %v5200
      %v5202 = vlaneseq
      %v5203 = vshrl.u32 %v5202, 7
      %v5204 = vsub.s32 %v5201, %v5203
      %v5205 = vrot.slane %v5195, %v5204
      %v5207 = vunpack.c.l.s4 1966171168
      %v5208 = vunpack.c.0.s8 %v5207
      %v5209 = vlaneseq
      %v5210 = vshrl.u32 %v5209, 7
      %v5211 = vsub.s32 %v5208, %v5210
      %v5212 = vrot.slane %v5196, %v5211
      %v5214 = vunpack.c.l.s4 1966171168
      %v5215 = vunpack.c.0.s8 %v5214
      %v5216 = vlaneseq
      %v5217 = vshrl.u32 %v5216, 7
      %v5218 = vsub.s32 %v5215, %v5217
      %v5219 = vrot.slane %v5197, %v5218
      %v5221 = vunpack.c.l.s4 1966171168
      %v5222 = vunpack.c.0.s8 %v5221
      %v5223 = vlaneseq
      %v5224 = vshrl.u32 %v5223, 7
      %v5225 = vsub.s32 %v5222, %v5224
      %v5226 = vrot.slane %v5198, %v5225
      %v5227 = vcombine.low %v5205, %v5212
      %v5228 = vcombine.low %v5219, %v5226
      %v5230 = vunpack.c.l.s4 1966171168
      %v5231 = vunpack.c.0.s8 %v5230
      %v5232 = vlaneseq
      %v5233 = vshrl.u32 %v5232, 7
      %v5234 = vsub.s32 %v5231, %v5233
      %v5235 = vrot.slane %v5227, %v5234
      %v5237 = vunpack.c.l.s4 1966171168
      %v5238 = vunpack.c.0.s8 %v5237
      %v5239 = vlaneseq
      %v5240 = vshrl.u32 %v5239, 7
      %v5241 = vsub.s32 %v5238, %v5240
      %v5242 = vrot.slane %v5228, %v5241
      %v5243 = vcombine.low %v5235, %v5242
      %v5244 = vcombine.low %v4085, %v4099
      %v5245 = vcombine.low %v4101, %v4103
      %v5246 = vcombine.low %v4141, %v4149
      %v5247 = vcombine.low %v4151, %v4134
      %v5249 = vunpack.c.l.s4 1966171168
      %v5250 = vunpack.c.0.s8 %v5249
      %v5251 = vlaneseq
      %v5252 = vshrl.u32 %v5251, 7
      %v5253 = vsub.s32 %v5250, %v5252
      %v5254 = vrot.slane %v5244, %v5253
      %v5256 = vunpack.c.l.s4 1966171168
      %v5257 = vunpack.c.0.s8 %v5256
      %v5258 = vlaneseq
      %v5259 = vshrl.u32 %v5258, 7
      %v5260 = vsub.s32 %v5257, %v5259
      %v5261 = vrot.slane %v5245, %v5260
      %v5263 = vunpack.c.l.s4 1966171168
      %v5264 = vunpack.c.0.s8 %v5263
      %v5265 = vlaneseq
      %v5266 = vshrl.u32 %v5265, 7
      %v5267 = vsub.s32 %v5264, %v5266
      %v5268 = vrot.slane %v5246, %v5267
      %v5270 = vunpack.c.l.s4 1966171168
      %v5271 = vunpack.c.0.s8 %v5270
      %v5272 = vlaneseq
      %v5273 = vshrl.u32 %v5272, 7
      %v5274 = vsub.s32 %v5271, %v5273
      %v5275 = vrot.slane %v5247, %v5274
      %v5276 = vcombine.low %v5254, %v5261
      %v5277 = vcombine.low %v5268, %v5275
      %v5279 = vunpack.c.l.s4 1966171168
      %v5280 = vunpack.c.0.s8 %v5279
      %v5281 = vlaneseq
      %v5282 = vshrl.u32 %v5281, 7
      %v5283 = vsub.s32 %v5280, %v5282
      %v5284 = vrot.slane %v5276, %v5283
      %v5286 = vunpack.c.l.s4 1966171168
      %v5287 = vunpack.c.0.s8 %v5286
      %v5288 = vlaneseq
      %v5289 = vshrl.u32 %v5288, 7
      %v5290 = vsub.s32 %v5287, %v5289
      %v5291 = vrot.slane %v5277, %v5290
      %v5292 = vcombine.low %v5284, %v5291
      %v5293 = vcombine.low %v4150, %v4152
      %v5294 = vcombine.low %v4176, %v4190
      %v5295 = vcombine.low %v4200, %v4183
      %v5296 = vcombine.low %v4197, %v4199
      %v5298 = vunpack.c.l.s4 1966171168
      %v5299 = vunpack.c.0.s8 %v5298
      %v5300 = vlaneseq
      %v5301 = vshrl.u32 %v5300, 7
      %v5302 = vsub.s32 %v5299, %v5301
      %v5303 = vrot.slane %v5293, %v5302
      %v5305 = vunpack.c.l.s4 1966171168
      %v5306 = vunpack.c.0.s8 %v5305
      %v5307 = vlaneseq
      %v5308 = vshrl.u32 %v5307, 7
      %v5309 = vsub.s32 %v5306, %v5308
      %v5310 = vrot.slane %v5294, %v5309
      %v5312 = vunpack.c.l.s4 1966171168
      %v5313 = vunpack.c.0.s8 %v5312
      %v5314 = vlaneseq
      %v5315 = vshrl.u32 %v5314, 7
      %v5316 = vsub.s32 %v5313, %v5315
      %v5317 = vrot.slane %v5295, %v5316
      %v5319 = vunpack.c.l.s4 1966171168
      %v5320 = vunpack.c.0.s8 %v5319
      %v5321 = vlaneseq
      %v5322 = vshrl.u32 %v5321, 7
      %v5323 = vsub.s32 %v5320, %v5322
      %v5324 = vrot.slane %v5296, %v5323
      %v5325 = vcombine.low %v5303, %v5310
      %v5326 = vcombine.low %v5317, %v5324
      %v5328 = vunpack.c.l.s4 1966171168
      %v5329 = vunpack.c.0.s8 %v5328
      %v5330 = vlaneseq
      %v5331 = vshrl.u32 %v5330, 7
      %v5332 = vsub.s32 %v5329, %v5331
      %v5333 = vrot.slane %v5325, %v5332
      %v5335 = vunpack.c.l.s4 1966171168
      %v5336 = vunpack.c.0.s8 %v5335
      %v5337 = vlaneseq
      %v5338 = vshrl.u32 %v5337, 7
      %v5339 = vsub.s32 %v5336, %v5338
      %v5340 = vrot.slane %v5326, %v5339
      %v5341 = vcombine.low %v5333, %v5340
      %v5342 = vcombine.low %v4225, %v4239
      %v5343 = vcombine.low %v4247, %v4249
      %v5344 = vcombine.low %v4246, %v4248
      %v5345 = vcombine.low %v4250, %v4274
      %v5347 = vunpack.c.l.s4 1966171168
      %v5348 = vunpack.c.0.s8 %v5347
      %v5349 = vlaneseq
      %v5350 = vshrl.u32 %v5349, 7
      %v5351 = vsub.s32 %v5348, %v5350
      %v5352 = vrot.slane %v5342, %v5351
      %v5354 = vunpack.c.l.s4 1966171168
      %v5355 = vunpack.c.0.s8 %v5354
      %v5356 = vlaneseq
      %v5357 = vshrl.u32 %v5356, 7
      %v5358 = vsub.s32 %v5355, %v5357
      %v5359 = vrot.slane %v5343, %v5358
      %v5361 = vunpack.c.l.s4 1966171168
      %v5362 = vunpack.c.0.s8 %v5361
      %v5363 = vlaneseq
      %v5364 = vshrl.u32 %v5363, 7
      %v5365 = vsub.s32 %v5362, %v5364
      %v5366 = vrot.slane %v5344, %v5365
      %v5368 = vunpack.c.l.s4 1966171168
      %v5369 = vunpack.c.0.s8 %v5368
      %v5370 = vlaneseq
      %v5371 = vshrl.u32 %v5370, 7
      %v5372 = vsub.s32 %v5369, %v5371
      %v5373 = vrot.slane %v5345, %v5372
      %v5374 = vcombine.low %v5352, %v5359
      %v5375 = vcombine.low %v5366, %v5373
      %v5377 = vunpack.c.l.s4 1966171168
      %v5378 = vunpack.c.0.s8 %v5377
      %v5379 = vlaneseq
      %v5380 = vshrl.u32 %v5379, 7
      %v5381 = vsub.s32 %v5378, %v5380
      %v5382 = vrot.slane %v5374, %v5381
      %v5384 = vunpack.c.l.s4 1966171168
      %v5385 = vunpack.c.0.s8 %v5384
      %v5386 = vlaneseq
      %v5387 = vshrl.u32 %v5386, 7
      %v5388 = vsub.s32 %v5385, %v5387
      %v5389 = vrot.slane %v5375, %v5388
      %v5390 = vcombine.low %v5382, %v5389
      %v5399 = vcombine.low %v4347, %v4355
      %v5400 = vcombine.low %v4363, %v4371
      %v5401 = vcombine.low %v4380, %v4388
      %v5402 = vcombine.low %v4396, %v4404
      %v5404 = vunpack.c.l.s4 1966171168
      %v5405 = vunpack.c.0.s8 %v5404
      %v5406 = vlaneseq
      %v5407 = vshrl.u32 %v5406, 7
      %v5408 = vsub.s32 %v5405, %v5407
      %v5409 = vrot.slane %v5399, %v5408
      %v5411 = vunpack.c.l.s4 1966171168
      %v5412 = vunpack.c.0.s8 %v5411
      %v5413 = vlaneseq
      %v5414 = vshrl.u32 %v5413, 7
      %v5415 = vsub.s32 %v5412, %v5414
      %v5416 = vrot.slane %v5400, %v5415
      %v5418 = vunpack.c.l.s4 1966171168
      %v5419 = vunpack.c.0.s8 %v5418
      %v5420 = vlaneseq
      %v5421 = vshrl.u32 %v5420, 7
      %v5422 = vsub.s32 %v5419, %v5421
      %v5423 = vrot.slane %v5401, %v5422
      %v5425 = vunpack.c.l.s4 1966171168
      %v5426 = vunpack.c.0.s8 %v5425
      %v5427 = vlaneseq
      %v5428 = vshrl.u32 %v5427, 7
      %v5429 = vsub.s32 %v5426, %v5428
      %v5430 = vrot.slane %v5402, %v5429
      %v5431 = vcombine.low %v5409, %v5416
      %v5432 = vcombine.low %v5423, %v5430
      %v5434 = vunpack.c.l.s4 1966171168
      %v5435 = vunpack.c.0.s8 %v5434
      %v5436 = vlaneseq
      %v5437 = vshrl.u32 %v5436, 7
      %v5438 = vsub.s32 %v5435, %v5437
      %v5439 = vrot.slane %v5431, %v5438
      %v5441 = vunpack.c.l.s4 1966171168
      %v5442 = vunpack.c.0.s8 %v5441
      %v5443 = vlaneseq
      %v5444 = vshrl.u32 %v5443, 7
      %v5445 = vsub.s32 %v5442, %v5444
      %v5446 = vrot.slane %v5432, %v5445
      %v5447 = vcombine.low %v5439, %v5446
      %v5448 = vcombine.low %v4413, %v4421
      %v5449 = vcombine.low %v4429, %v4437
      %v5450 = vcombine.low %v4446, %v4454
      %v5451 = vcombine.low %v4462, %v4470
      %v5453 = vunpack.c.l.s4 1966171168
      %v5454 = vunpack.c.0.s8 %v5453
      %v5455 = vlaneseq
      %v5456 = vshrl.u32 %v5455, 7
      %v5457 = vsub.s32 %v5454, %v5456
      %v5458 = vrot.slane %v5448, %v5457
      %v5460 = vunpack.c.l.s4 1966171168
      %v5461 = vunpack.c.0.s8 %v5460
      %v5462 = vlaneseq
      %v5463 = vshrl.u32 %v5462, 7
      %v5464 = vsub.s32 %v5461, %v5463
      %v5465 = vrot.slane %v5449, %v5464
      %v5467 = vunpack.c.l.s4 1966171168
      %v5468 = vunpack.c.0.s8 %v5467
      %v5469 = vlaneseq
      %v5470 = vshrl.u32 %v5469, 7
      %v5471 = vsub.s32 %v5468, %v5470
      %v5472 = vrot.slane %v5450, %v5471
      %v5474 = vunpack.c.l.s4 1966171168
      %v5475 = vunpack.c.0.s8 %v5474
      %v5476 = vlaneseq
      %v5477 = vshrl.u32 %v5476, 7
      %v5478 = vsub.s32 %v5475, %v5477
      %v5479 = vrot.slane %v5451, %v5478
      %v5480 = vcombine.low %v5458, %v5465
      %v5481 = vcombine.low %v5472, %v5479
      %v5483 = vunpack.c.l.s4 1966171168
      %v5484 = vunpack.c.0.s8 %v5483
      %v5485 = vlaneseq
      %v5486 = vshrl.u32 %v5485, 7
      %v5487 = vsub.s32 %v5484, %v5486
      %v5488 = vrot.slane %v5480, %v5487
      %v5490 = vunpack.c.l.s4 1966171168
      %v5491 = vunpack.c.0.s8 %v5490
      %v5492 = vlaneseq
      %v5493 = vshrl.u32 %v5492, 7
      %v5494 = vsub.s32 %v5491, %v5493
      %v5495 = vrot.slane %v5481, %v5494
      %v5496 = vcombine.low %v5488, %v5495
      %v5497 = vcombine.low %v4479, %v4487
      %v5498 = vcombine.low %v4495, %v4503
      %v5499 = vcombine.low %v4512, %v4520
      %v5500 = vcombine.low %v4528, %v4536
      %v5502 = vunpack.c.l.s4 1966171168
      %v5503 = vunpack.c.0.s8 %v5502
      %v5504 = vlaneseq
      %v5505 = vshrl.u32 %v5504, 7
      %v5506 = vsub.s32 %v5503, %v5505
      %v5507 = vrot.slane %v5497, %v5506
      %v5509 = vunpack.c.l.s4 1966171168
      %v5510 = vunpack.c.0.s8 %v5509
      %v5511 = vlaneseq
      %v5512 = vshrl.u32 %v5511, 7
      %v5513 = vsub.s32 %v5510, %v5512
      %v5514 = vrot.slane %v5498, %v5513
      %v5516 = vunpack.c.l.s4 1966171168
      %v5517 = vunpack.c.0.s8 %v5516
      %v5518 = vlaneseq
      %v5519 = vshrl.u32 %v5518, 7
      %v5520 = vsub.s32 %v5517, %v5519
      %v5521 = vrot.slane %v5499, %v5520
      %v5523 = vunpack.c.l.s4 1966171168
      %v5524 = vunpack.c.0.s8 %v5523
      %v5525 = vlaneseq
      %v5526 = vshrl.u32 %v5525, 7
      %v5527 = vsub.s32 %v5524, %v5526
      %v5528 = vrot.slane %v5500, %v5527
      %v5529 = vcombine.low %v5507, %v5514
      %v5530 = vcombine.low %v5521, %v5528
      %v5532 = vunpack.c.l.s4 1966171168
      %v5533 = vunpack.c.0.s8 %v5532
      %v5534 = vlaneseq
      %v5535 = vshrl.u32 %v5534, 7
      %v5536 = vsub.s32 %v5533, %v5535
      %v5537 = vrot.slane %v5529, %v5536
      %v5539 = vunpack.c.l.s4 1966171168
      %v5540 = vunpack.c.0.s8 %v5539
      %v5541 = vlaneseq
      %v5542 = vshrl.u32 %v5541, 7
      %v5543 = vsub.s32 %v5540, %v5542
      %v5544 = vrot.slane %v5530, %v5543
      %v5545 = vcombine.low %v5537, %v5544
      %v5546 = vcombine.low %v4545, %v4553
      %v5547 = vcombine.low %v4561, %v4569
      %v5548 = vcombine.low %v4578, %v4586
      %v5549 = vcombine.low %v4594, %v4602
      %v5551 = vunpack.c.l.s4 1966171168
      %v5552 = vunpack.c.0.s8 %v5551
      %v5553 = vlaneseq
      %v5554 = vshrl.u32 %v5553, 7
      %v5555 = vsub.s32 %v5552, %v5554
      %v5556 = vrot.slane %v5546, %v5555
      %v5558 = vunpack.c.l.s4 1966171168
      %v5559 = vunpack.c.0.s8 %v5558
      %v5560 = vlaneseq
      %v5561 = vshrl.u32 %v5560, 7
      %v5562 = vsub.s32 %v5559, %v5561
      %v5563 = vrot.slane %v5547, %v5562
      %v5565 = vunpack.c.l.s4 1966171168
      %v5566 = vunpack.c.0.s8 %v5565
      %v5567 = vlaneseq
      %v5568 = vshrl.u32 %v5567, 7
      %v5569 = vsub.s32 %v5566, %v5568
      %v5570 = vrot.slane %v5548, %v5569
      %v5572 = vunpack.c.l.s4 1966171168
      %v5573 = vunpack.c.0.s8 %v5572
      %v5574 = vlaneseq
      %v5575 = vshrl.u32 %v5574, 7
      %v5576 = vsub.s32 %v5573, %v5575
      %v5577 = vrot.slane %v5549, %v5576
      %v5578 = vcombine.low %v5556, %v5563
      %v5579 = vcombine.low %v5570, %v5577
      %v5581 = vunpack.c.l.s4 1966171168
      %v5582 = vunpack.c.0.s8 %v5581
      %v5583 = vlaneseq
      %v5584 = vshrl.u32 %v5583, 7
      %v5585 = vsub.s32 %v5582, %v5584
      %v5586 = vrot.slane %v5578, %v5585
      %v5588 = vunpack.c.l.s4 1966171168
      %v5589 = vunpack.c.0.s8 %v5588
      %v5590 = vlaneseq
      %v5591 = vshrl.u32 %v5590, 7
      %v5592 = vsub.s32 %v5589, %v5591
      %v5593 = vrot.slane %v5579, %v5592
      %v5594 = vcombine.low %v5586, %v5593
      %v5595 = vcombine.low %v4611, %v4619
      %v5596 = vcombine.low %v4627, %v4635
      %v5597 = vcombine.low %v4644, %v4652
      %v5598 = vcombine.low %v4660, %v4668
      %v5600 = vunpack.c.l.s4 1966171168
      %v5601 = vunpack.c.0.s8 %v5600
      %v5602 = vlaneseq
      %v5603 = vshrl.u32 %v5602, 7
      %v5604 = vsub.s32 %v5601, %v5603
      %v5605 = vrot.slane %v5595, %v5604
      %v5607 = vunpack.c.l.s4 1966171168
      %v5608 = vunpack.c.0.s8 %v5607
      %v5609 = vlaneseq
      %v5610 = vshrl.u32 %v5609, 7
      %v5611 = vsub.s32 %v5608, %v5610
      %v5612 = vrot.slane %v5596, %v5611
      %v5614 = vunpack.c.l.s4 1966171168
      %v5615 = vunpack.c.0.s8 %v5614
      %v5616 = vlaneseq
      %v5617 = vshrl.u32 %v5616, 7
      %v5618 = vsub.s32 %v5615, %v5617
      %v5619 = vrot.slane %v5597, %v5618
      %v5621 = vunpack.c.l.s4 1966171168
      %v5622 = vunpack.c.0.s8 %v5621
      %v5623 = vlaneseq
      %v5624 = vshrl.u32 %v5623, 7
      %v5625 = vsub.s32 %v5622, %v5624
      %v5626 = vrot.slane %v5598, %v5625
      %v5627 = vcombine.low %v5605, %v5612
      %v5628 = vcombine.low %v5619, %v5626
      %v5630 = vunpack.c.l.s4 1966171168
      %v5631 = vunpack.c.0.s8 %v5630
      %v5632 = vlaneseq
      %v5633 = vshrl.u32 %v5632, 7
      %v5634 = vsub.s32 %v5631, %v5633
      %v5635 = vrot.slane %v5627, %v5634
      %v5637 = vunpack.c.l.s4 1966171168
      %v5638 = vunpack.c.0.s8 %v5637
      %v5639 = vlaneseq
      %v5640 = vshrl.u32 %v5639, 7
      %v5641 = vsub.s32 %v5638, %v5640
      %v5642 = vrot.slane %v5628, %v5641
      %v5643 = vcombine.low %v5635, %v5642
      %v5644 = vcombine.low %v4677, %v4685
      %v5645 = vcombine.low %v4693, %v4701
      %v5646 = vcombine.low %v4710, %v4718
      %v5647 = vcombine.low %v4726, %v4734
      %v5649 = vunpack.c.l.s4 1966171168
      %v5650 = vunpack.c.0.s8 %v5649
      %v5651 = vlaneseq
      %v5652 = vshrl.u32 %v5651, 7
      %v5653 = vsub.s32 %v5650, %v5652
      %v5654 = vrot.slane %v5644, %v5653
      %v5656 = vunpack.c.l.s4 1966171168
      %v5657 = vunpack.c.0.s8 %v5656
      %v5658 = vlaneseq
      %v5659 = vshrl.u32 %v5658, 7
      %v5660 = vsub.s32 %v5657, %v5659
      %v5661 = vrot.slane %v5645, %v5660
      %v5663 = vunpack.c.l.s4 1966171168
      %v5664 = vunpack.c.0.s8 %v5663
      %v5665 = vlaneseq
      %v5666 = vshrl.u32 %v5665, 7
      %v5667 = vsub.s32 %v5664, %v5666
      %v5668 = vrot.slane %v5646, %v5667
      %v5670 = vunpack.c.l.s4 1966171168
      %v5671 = vunpack.c.0.s8 %v5670
      %v5672 = vlaneseq
      %v5673 = vshrl.u32 %v5672, 7
      %v5674 = vsub.s32 %v5671, %v5673
      %v5675 = vrot.slane %v5647, %v5674
      %v5676 = vcombine.low %v5654, %v5661
      %v5677 = vcombine.low %v5668, %v5675
      %v5679 = vunpack.c.l.s4 1966171168
      %v5680 = vunpack.c.0.s8 %v5679
      %v5681 = vlaneseq
      %v5682 = vshrl.u32 %v5681, 7
      %v5683 = vsub.s32 %v5680, %v5682
      %v5684 = vrot.slane %v5676, %v5683
      %v5686 = vunpack.c.l.s4 1966171168
      %v5687 = vunpack.c.0.s8 %v5686
      %v5688 = vlaneseq
      %v5689 = vshrl.u32 %v5688, 7
      %v5690 = vsub.s32 %v5687, %v5689
      %v5691 = vrot.slane %v5677, %v5690
      %v5692 = vcombine.low %v5684, %v5691
      %v5693 = vcombine.low %v4743, %v4751
      %v5694 = vcombine.low %v4759, %v4767
      %v5695 = vcombine.low %v4776, %v4784
      %v5696 = vcombine.low %v4792, %v4800
      %v5698 = vunpack.c.l.s4 1966171168
      %v5699 = vunpack.c.0.s8 %v5698
      %v5700 = vlaneseq
      %v5701 = vshrl.u32 %v5700, 7
      %v5702 = vsub.s32 %v5699, %v5701
      %v5703 = vrot.slane %v5693, %v5702
      %v5705 = vunpack.c.l.s4 1966171168
      %v5706 = vunpack.c.0.s8 %v5705
      %v5707 = vlaneseq
      %v5708 = vshrl.u32 %v5707, 7
      %v5709 = vsub.s32 %v5706, %v5708
      %v5710 = vrot.slane %v5694, %v5709
      %v5712 = vunpack.c.l.s4 1966171168
      %v5713 = vunpack.c.0.s8 %v5712
      %v5714 = vlaneseq
      %v5715 = vshrl.u32 %v5714, 7
      %v5716 = vsub.s32 %v5713, %v5715
      %v5717 = vrot.slane %v5695, %v5716
      %v5719 = vunpack.c.l.s4 1966171168
      %v5720 = vunpack.c.0.s8 %v5719
      %v5721 = vlaneseq
      %v5722 = vshrl.u32 %v5721, 7
      %v5723 = vsub.s32 %v5720, %v5722
      %v5724 = vrot.slane %v5696, %v5723
      %v5725 = vcombine.low %v5703, %v5710
      %v5726 = vcombine.low %v5717, %v5724
      %v5728 = vunpack.c.l.s4 1966171168
      %v5729 = vunpack.c.0.s8 %v5728
      %v5730 = vlaneseq
      %v5731 = vshrl.u32 %v5730, 7
      %v5732 = vsub.s32 %v5729, %v5731
      %v5733 = vrot.slane %v5725, %v5732
      %v5735 = vunpack.c.l.s4 1966171168
      %v5736 = vunpack.c.0.s8 %v5735
      %v5737 = vlaneseq
      %v5738 = vshrl.u32 %v5737, 7
      %v5739 = vsub.s32 %v5736, %v5738
      %v5740 = vrot.slane %v5726, %v5739
      %v5741 = vcombine.low %v5733, %v5740
      %v5742 = vcombine.low %v4809, %v4817
      %v5743 = vcombine.low %v4825, %v4833
      %v5744 = vcombine.low %v4842, %v4850
      %v5745 = vcombine.low %v4858, %v4866
      %v5747 = vunpack.c.l.s4 1966171168
      %v5748 = vunpack.c.0.s8 %v5747
      %v5749 = vlaneseq
      %v5750 = vshrl.u32 %v5749, 7
      %v5751 = vsub.s32 %v5748, %v5750
      %v5752 = vrot.slane %v5742, %v5751
      %v5754 = vunpack.c.l.s4 1966171168
      %v5755 = vunpack.c.0.s8 %v5754
      %v5756 = vlaneseq
      %v5757 = vshrl.u32 %v5756, 7
      %v5758 = vsub.s32 %v5755, %v5757
      %v5759 = vrot.slane %v5743, %v5758
      %v5761 = vunpack.c.l.s4 1966171168
      %v5762 = vunpack.c.0.s8 %v5761
      %v5763 = vlaneseq
      %v5764 = vshrl.u32 %v5763, 7
      %v5765 = vsub.s32 %v5762, %v5764
      %v5766 = vrot.slane %v5744, %v5765
      %v5768 = vunpack.c.l.s4 1966171168
      %v5769 = vunpack.c.0.s8 %v5768
      %v5770 = vlaneseq
      %v5771 = vshrl.u32 %v5770, 7
      %v5772 = vsub.s32 %v5769, %v5771
      %v5773 = vrot.slane %v5745, %v5772
      %v5774 = vcombine.low %v5752, %v5759
      %v5775 = vcombine.low %v5766, %v5773
      %v5777 = vunpack.c.l.s4 1966171168
      %v5778 = vunpack.c.0.s8 %v5777
      %v5779 = vlaneseq
      %v5780 = vshrl.u32 %v5779, 7
      %v5781 = vsub.s32 %v5778, %v5780
      %v5782 = vrot.slane %v5774, %v5781
      %v5784 = vunpack.c.l.s4 1966171168
      %v5785 = vunpack.c.0.s8 %v5784
      %v5786 = vlaneseq
      %v5787 = vshrl.u32 %v5786, 7
      %v5788 = vsub.s32 %v5785, %v5787
      %v5789 = vrot.slane %v5775, %v5788
      %v5790 = vcombine.low %v5782, %v5789
      %v5799 = vcombine.low %v3749, %v3757
      %v5800 = vcombine.low %v3759, %v3742
      %v5801 = vcombine.low %v3758, %v3760
      %v5802 = vcombine.low %v3784, %v3798
      %v5804 = vunpack.c.l.s4 1966171168
      %v5805 = vunpack.c.0.s8 %v5804
      %v5806 = vlaneseq
      %v5807 = vshrl.u32 %v5806, 7
      %v5808 = vsub.s32 %v5805, %v5807
      %v5809 = vrot.slane %v5799, %v5808
      %v5811 = vunpack.c.l.s4 1966171168
      %v5812 = vunpack.c.0.s8 %v5811
      %v5813 = vlaneseq
      %v5814 = vshrl.u32 %v5813, 7
      %v5815 = vsub.s32 %v5812, %v5814
      %v5816 = vrot.slane %v5800, %v5815
      %v5818 = vunpack.c.l.s4 1966171168
      %v5819 = vunpack.c.0.s8 %v5818
      %v5820 = vlaneseq
      %v5821 = vshrl.u32 %v5820, 7
      %v5822 = vsub.s32 %v5819, %v5821
      %v5823 = vrot.slane %v5801, %v5822
      %v5825 = vunpack.c.l.s4 1966171168
      %v5826 = vunpack.c.0.s8 %v5825
      %v5827 = vlaneseq
      %v5828 = vshrl.u32 %v5827, 7
      %v5829 = vsub.s32 %v5826, %v5828
      %v5830 = vrot.slane %v5802, %v5829
      %v5831 = vcombine.low %v5809, %v5816
      %v5832 = vcombine.low %v5823, %v5830
      %v5834 = vunpack.c.l.s4 1966171168
      %v5835 = vunpack.c.0.s8 %v5834
      %v5836 = vlaneseq
      %v5837 = vshrl.u32 %v5836, 7
      %v5838 = vsub.s32 %v5835, %v5837
      %v5839 = vrot.slane %v5831, %v5838
      %v5841 = vunpack.c.l.s4 1966171168
      %v5842 = vunpack.c.0.s8 %v5841
      %v5843 = vlaneseq
      %v5844 = vshrl.u32 %v5843, 7
      %v5845 = vsub.s32 %v5842, %v5844
      %v5846 = vrot.slane %v5832, %v5845
      %v5847 = vcombine.low %v5839, %v5846
      %v5848 = vcombine.low %v3808, %v3791
      %v5849 = vcombine.low %v3805, %v3807
      %v5850 = vcombine.low %v3833, %v3847
      %v5851 = vcombine.low %v3855, %v3857
      %v5853 = vunpack.c.l.s4 1966171168
      %v5854 = vunpack.c.0.s8 %v5853
      %v5855 = vlaneseq
      %v5856 = vshrl.u32 %v5855, 7
      %v5857 = vsub.s32 %v5854, %v5856
      %v5858 = vrot.slane %v5848, %v5857
      %v5860 = vunpack.c.l.s4 1966171168
      %v5861 = vunpack.c.0.s8 %v5860
      %v5862 = vlaneseq
      %v5863 = vshrl.u32 %v5862, 7
      %v5864 = vsub.s32 %v5861, %v5863
      %v5865 = vrot.slane %v5849, %v5864
      %v5867 = vunpack.c.l.s4 1966171168
      %v5868 = vunpack.c.0.s8 %v5867
      %v5869 = vlaneseq
      %v5870 = vshrl.u32 %v5869, 7
      %v5871 = vsub.s32 %v5868, %v5870
      %v5872 = vrot.slane %v5850, %v5871
      %v5874 = vunpack.c.l.s4 1966171168
      %v5875 = vunpack.c.0.s8 %v5874
      %v5876 = vlaneseq
      %v5877 = vshrl.u32 %v5876, 7
      %v5878 = vsub.s32 %v5875, %v5877
      %v5879 = vrot.slane %v5851, %v5878
      %v5880 = vcombine.low %v5858, %v5865
      %v5881 = vcombine.low %v5872, %v5879
      %v5883 = vunpack.c.l.s4 1966171168
      %v5884 = vunpack.c.0.s8 %v5883
      %v5885 = vlaneseq
      %v5886 = vshrl.u32 %v5885, 7
      %v5887 = vsub.s32 %v5884, %v5886
      %v5888 = vrot.slane %v5880, %v5887
      %v5890 = vunpack.c.l.s4 1966171168
      %v5891 = vunpack.c.0.s8 %v5890
      %v5892 = vlaneseq
      %v5893 = vshrl.u32 %v5892, 7
      %v5894 = vsub.s32 %v5891, %v5893
      %v5895 = vrot.slane %v5881, %v5894
      %v5896 = vcombine.low %v5888, %v5895
      %v5897 = vcombine.low %v3854, %v3856
      %v5898 = vcombine.low %v3858, %v3882
      %v5899 = vcombine.low %v3904, %v3906
      %v5900 = vcombine.low %v3889, %v3903
      %v5902 = vunpack.c.l.s4 1966171168
      %v5903 = vunpack.c.0.s8 %v5902
      %v5904 = vlaneseq
      %v5905 = vshrl.u32 %v5904, 7
      %v5906 = vsub.s32 %v5903, %v5905
      %v5907 = vrot.slane %v5897, %v5906
      %v5909 = vunpack.c.l.s4 1966171168
      %v5910 = vunpack.c.0.s8 %v5909
      %v5911 = vlaneseq
      %v5912 = vshrl.u32 %v5911, 7
      %v5913 = vsub.s32 %v5910, %v5912
      %v5914 = vrot.slane %v5898, %v5913
      %v5916 = vunpack.c.l.s4 1966171168
      %v5917 = vunpack.c.0.s8 %v5916
      %v5918 = vlaneseq
      %v5919 = vshrl.u32 %v5918, 7
      %v5920 = vsub.s32 %v5917, %v5919
      %v5921 = vrot.slane %v5899, %v5920
      %v5923 = vunpack.c.l.s4 1966171168
      %v5924 = vunpack.c.0.s8 %v5923
      %v5925 = vlaneseq
      %v5926 = vshrl.u32 %v5925, 7
      %v5927 = vsub.s32 %v5924, %v5926
      %v5928 = vrot.slane %v5900, %v5927
      %v5929 = vcombine.low %v5907, %v5914
      %v5930 = vcombine.low %v5921, %v5928
      %v5932 = vunpack.c.l.s4 1966171168
      %v5933 = vunpack.c.0.s8 %v5932
      %v5934 = vlaneseq
      %v5935 = vshrl.u32 %v5934, 7
      %v5936 = vsub.s32 %v5933, %v5935
      %v5937 = vrot.slane %v5929, %v5936
      %v5939 = vunpack.c.l.s4 1966171168
      %v5940 = vunpack.c.0.s8 %v5939
      %v5941 = vlaneseq
      %v5942 = vshrl.u32 %v5941, 7
      %v5943 = vsub.s32 %v5940, %v5942
      %v5944 = vrot.slane %v5930, %v5943
      %v5945 = vcombine.low %v5937, %v5944
      %v5946 = vcombine.low %v3907, %v3931
      %v5947 = vcombine.low %v3945, %v3953
      %v5948 = vcombine.low %v3938, %v3952
      %v5949 = vcombine.low %v3954, %v3956
      %v5951 = vunpack.c.l.s4 1966171168
      %v5952 = vunpack.c.0.s8 %v5951
      %v5953 = vlaneseq
      %v5954 = vshrl.u32 %v5953, 7
      %v5955 = vsub.s32 %v5952, %v5954
      %v5956 = vrot.slane %v5946, %v5955
      %v5958 = vunpack.c.l.s4 1966171168
      %v5959 = vunpack.c.0.s8 %v5958
      %v5960 = vlaneseq
      %v5961 = vshrl.u32 %v5960, 7
      %v5962 = vsub.s32 %v5959, %v5961
      %v5963 = vrot.slane %v5947, %v5962
      %v5965 = vunpack.c.l.s4 1966171168
      %v5966 = vunpack.c.0.s8 %v5965
      %v5967 = vlaneseq
      %v5968 = vshrl.u32 %v5967, 7
      %v5969 = vsub.s32 %v5966, %v5968
      %v5970 = vrot.slane %v5948, %v5969
      %v5972 = vunpack.c.l.s4 1966171168
      %v5973 = vunpack.c.0.s8 %v5972
      %v5974 = vlaneseq
      %v5975 = vshrl.u32 %v5974, 7
      %v5976 = vsub.s32 %v5973, %v5975
      %v5977 = vrot.slane %v5949, %v5976
      %v5978 = vcombine.low %v5956, %v5963
      %v5979 = vcombine.low %v5970, %v5977
      %v5981 = vunpack.c.l.s4 1966171168
      %v5982 = vunpack.c.0.s8 %v5981
      %v5983 = vlaneseq
      %v5984 = vshrl.u32 %v5983, 7
      %v5985 = vsub.s32 %v5982, %v5984
      %v5986 = vrot.slane %v5978, %v5985
      %v5988 = vunpack.c.l.s4 1966171168
      %v5989 = vunpack.c.0.s8 %v5988
      %v5990 = vlaneseq
      %v5991 = vshrl.u32 %v5990, 7
      %v5992 = vsub.s32 %v5989, %v5991
      %v5993 = vrot.slane %v5979, %v5992
      %v5994 = vcombine.low %v5986, %v5993
      %v5995 = vcombine.low %v4053, %v4036
      %v5996 = vcombine.low %v4050, %v4052
      %v5997 = vcombine.low %v4078, %v4092
      %v5998 = vcombine.low %v4100, %v4102
      %v6000 = vunpack.c.l.s4 1966171168
      %v6001 = vunpack.c.0.s8 %v6000
      %v6002 = vlaneseq
      %v6003 = vshrl.u32 %v6002, 7
      %v6004 = vsub.s32 %v6001, %v6003
      %v6005 = vrot.slane %v5995, %v6004
      %v6007 = vunpack.c.l.s4 1966171168
      %v6008 = vunpack.c.0.s8 %v6007
      %v6009 = vlaneseq
      %v6010 = vshrl.u32 %v6009, 7
      %v6011 = vsub.s32 %v6008, %v6010
      %v6012 = vrot.slane %v5996, %v6011
      %v6014 = vunpack.c.l.s4 1966171168
      %v6015 = vunpack.c.0.s8 %v6014
      %v6016 = vlaneseq
      %v6017 = vshrl.u32 %v6016, 7
      %v6018 = vsub.s32 %v6015, %v6017
      %v6019 = vrot.slane %v5997, %v6018
      %v6021 = vunpack.c.l.s4 1966171168
      %v6022 = vunpack.c.0.s8 %v6021
      %v6023 = vlaneseq
      %v6024 = vshrl.u32 %v6023, 7
      %v6025 = vsub.s32 %v6022, %v6024
      %v6026 = vrot.slane %v5998, %v6025
      %v6027 = vcombine.low %v6005, %v6012
      %v6028 = vcombine.low %v6019, %v6026
      %v6030 = vunpack.c.l.s4 1966171168
      %v6031 = vunpack.c.0.s8 %v6030
      %v6032 = vlaneseq
      %v6033 = vshrl.u32 %v6032, 7
      %v6034 = vsub.s32 %v6031, %v6033
      %v6035 = vrot.slane %v6027, %v6034
      %v6037 = vunpack.c.l.s4 1966171168
      %v6038 = vunpack.c.0.s8 %v6037
      %v6039 = vlaneseq
      %v6040 = vshrl.u32 %v6039, 7
      %v6041 = vsub.s32 %v6038, %v6040
      %v6042 = vrot.slane %v6028, %v6041
      %v6043 = vcombine.low %v6035, %v6042
      %v6044 = vcombine.low %v4099, %v4101
      %v6045 = vcombine.low %v4103, %v4127
      %v6046 = vcombine.low %v4149, %v4151
      %v6047 = vcombine.low %v4134, %v4148
      %v6049 = vunpack.c.l.s4 1966171168
      %v6050 = vunpack.c.0.s8 %v6049
      %v6051 = vlaneseq
      %v6052 = vshrl.u32 %v6051, 7
      %v6053 = vsub.s32 %v6050, %v6052
      %v6054 = vrot.slane %v6044, %v6053
      %v6056 = vunpack.c.l.s4 1966171168
      %v6057 = vunpack.c.0.s8 %v6056
      %v6058 = vlaneseq
      %v6059 = vshrl.u32 %v6058, 7
      %v6060 = vsub.s32 %v6057, %v6059
      %v6061 = vrot.slane %v6045, %v6060
      %v6063 = vunpack.c.l.s4 1966171168
      %v6064 = vunpack.c.0.s8 %v6063
      %v6065 = vlaneseq
      %v6066 = vshrl.u32 %v6065, 7
      %v6067 = vsub.s32 %v6064, %v6066
      %v6068 = vrot.slane %v6046, %v6067
      %v6070 = vunpack.c.l.s4 1966171168
      %v6071 = vunpack.c.0.s8 %v6070
      %v6072 = vlaneseq
      %v6073 = vshrl.u32 %v6072, 7
      %v6074 = vsub.s32 %v6071, %v6073
      %v6075 = vrot.slane %v6047, %v6074
      %v6076 = vcombine.low %v6054, %v6061
      %v6077 = vcombine.low %v6068, %v6075
      %v6079 = vunpack.c.l.s4 1966171168
      %v6080 = vunpack.c.0.s8 %v6079
      %v6081 = vlaneseq
      %v6082 = vshrl.u32 %v6081, 7
      %v6083 = vsub.s32 %v6080, %v6082
      %v6084 = vrot.slane %v6076, %v6083
      %v6086 = vunpack.c.l.s4 1966171168
      %v6087 = vunpack.c.0.s8 %v6086
      %v6088 = vlaneseq
      %v6089 = vshrl.u32 %v6088, 7
      %v6090 = vsub.s32 %v6087, %v6089
      %v6091 = vrot.slane %v6077, %v6090
      %v6092 = vcombine.low %v6084, %v6091
      %v6093 = vcombine.low %v4152, %v4176
      %v6094 = vcombine.low %v4190, %v4198
      %v6095 = vcombine.low %v4183, %v4197
      %v6096 = vcombine.low %v4199, %v4201
      %v6098 = vunpack.c.l.s4 1966171168
      %v6099 = vunpack.c.0.s8 %v6098
      %v6100 = vlaneseq
      %v6101 = vshrl.u32 %v6100, 7
      %v6102 = vsub.s32 %v6099, %v6101
      %v6103 = vrot.slane %v6093, %v6102
      %v6105 = vunpack.c.l.s4 1966171168
      %v6106 = vunpack.c.0.s8 %v6105
      %v6107 = vlaneseq
      %v6108 = vshrl.u32 %v6107, 7
      %v6109 = vsub.s32 %v6106, %v6108
      %v6110 = vrot.slane %v6094, %v6109
      %v6112 = vunpack.c.l.s4 1966171168
      %v6113 = vunpack.c.0.s8 %v6112
      %v6114 = vlaneseq
      %v6115 = vshrl.u32 %v6114, 7
      %v6116 = vsub.s32 %v6113, %v6115
      %v6117 = vrot.slane %v6095, %v6116
      %v6119 = vunpack.c.l.s4 1966171168
      %v6120 = vunpack.c.0.s8 %v6119
      %v6121 = vlaneseq
      %v6122 = vshrl.u32 %v6121, 7
      %v6123 = vsub.s32 %v6120, %v6122
      %v6124 = vrot.slane %v6096, %v6123
      %v6125 = vcombine.low %v6103, %v6110
      %v6126 = vcombine.low %v6117, %v6124
      %v6128 = vunpack.c.l.s4 1966171168
      %v6129 = vunpack.c.0.s8 %v6128
      %v6130 = vlaneseq
      %v6131 = vshrl.u32 %v6130, 7
      %v6132 = vsub.s32 %v6129, %v6131
      %v6133 = vrot.slane %v6125, %v6132
      %v6135 = vunpack.c.l.s4 1966171168
      %v6136 = vunpack.c.0.s8 %v6135
      %v6137 = vlaneseq
      %v6138 = vshrl.u32 %v6137, 7
      %v6139 = vsub.s32 %v6136, %v6138
      %v6140 = vrot.slane %v6126, %v6139
      %v6141 = vcombine.low %v6133, %v6140
      %v6142 = vcombine.low %v4239, %v4247
      %v6143 = vcombine.low %v4249, %v4232
      %v6144 = vcombine.low %v4248, %v4250
      %v6145 = vcombine.low %v4274, %v4288
      %v6147 = vunpack.c.l.s4 1966171168
      %v6148 = vunpack.c.0.s8 %v6147
      %v6149 = vlaneseq
      %v6150 = vshrl.u32 %v6149, 7
      %v6151 = vsub.s32 %v6148, %v6150
      %v6152 = vrot.slane %v6142, %v6151
      %v6154 = vunpack.c.l.s4 1966171168
      %v6155 = vunpack.c.0.s8 %v6154
      %v6156 = vlaneseq
      %v6157 = vshrl.u32 %v6156, 7
      %v6158 = vsub.s32 %v6155, %v6157
      %v6159 = vrot.slane %v6143, %v6158
      %v6161 = vunpack.c.l.s4 1966171168
      %v6162 = vunpack.c.0.s8 %v6161
      %v6163 = vlaneseq
      %v6164 = vshrl.u32 %v6163, 7
      %v6165 = vsub.s32 %v6162, %v6164
      %v6166 = vrot.slane %v6144, %v6165
      %v6168 = vunpack.c.l.s4 1966171168
      %v6169 = vunpack.c.0.s8 %v6168
      %v6170 = vlaneseq
      %v6171 = vshrl.u32 %v6170, 7
      %v6172 = vsub.s32 %v6169, %v6171
      %v6173 = vrot.slane %v6145, %v6172
      %v6174 = vcombine.low %v6152, %v6159
      %v6175 = vcombine.low %v6166, %v6173
      %v6177 = vunpack.c.l.s4 1966171168
      %v6178 = vunpack.c.0.s8 %v6177
      %v6179 = vlaneseq
      %v6180 = vshrl.u32 %v6179, 7
      %v6181 = vsub.s32 %v6178, %v6180
      %v6182 = vrot.slane %v6174, %v6181
      %v6184 = vunpack.c.l.s4 1966171168
      %v6185 = vunpack.c.0.s8 %v6184
      %v6186 = vlaneseq
      %v6187 = vshrl.u32 %v6186, 7
      %v6188 = vsub.s32 %v6185, %v6187
      %v6189 = vrot.slane %v6175, %v6188
      %v6190 = vcombine.low %v6182, %v6189
      %v6199 = vcombine.low %v5046, %v5088
      %v6200 = vcombine.low %v5095, %v5137
      %v6201 = vcombine.low %v5144, %v5186
      %v6202 = vcombine.low %v3980, %v3994
      %v6203 = vcombine.low %v4002, %v4004
      %v6205 = vunpack.c.l.s4 1966171168
      %v6206 = vunpack.c.0.s8 %v6205
      %v6207 = vlaneseq
      %v6208 = vshrl.u32 %v6207, 7
      %v6209 = vsub.s32 %v6206, %v6208
      %v6210 = vrot.slane %v6202, %v6209
      %v6212 = vunpack.c.l.s4 1966171168
      %v6213 = vunpack.c.0.s8 %v6212
      %v6214 = vlaneseq
      %v6215 = vshrl.u32 %v6214, 7
      %v6216 = vsub.s32 %v6213, %v6215
      %v6217 = vrot.slane %v6203, %v6216
      %v6218 = vcombine.low %v6210, %v6217
      %v6220 = vunpack.c.l.s4 1966171168
      %v6221 = vunpack.c.0.s8 %v6220
      %v6222 = vlaneseq
      %v6223 = vshrl.u32 %v6222, 7
      %v6224 = vsub.s32 %v6221, %v6223
      %v6225 = vrot.slane %v6218, %v6224
      %v6226 = vcombine.low %v5193, %v6225
      %v6227 = vcombine.low %v5242, %v5284
      %v6228 = vcombine.low %v5291, %v5333
      %v6229 = vcombine.low %v5340, %v5382
      %v6230 = vcombine.low %v4296, %v4298
      %v6231 = vcombine.low %v4281, %v4295
      %v6233 = vunpack.c.l.s4 1966171168
      %v6234 = vunpack.c.0.s8 %v6233
      %v6235 = vlaneseq
      %v6236 = vshrl.u32 %v6235, 7
      %v6237 = vsub.s32 %v6234, %v6236
      %v6238 = vrot.slane %v6230, %v6237
      %v6240 = vunpack.c.l.s4 1966171168
      %v6241 = vunpack.c.0.s8 %v6240
      %v6242 = vlaneseq
      %v6243 = vshrl.u32 %v6242, 7
      %v6244 = vsub.s32 %v6241, %v6243
      %v6245 = vrot.slane %v6231, %v6244
      %v6246 = vcombine.low %v6238, %v6245
      %v6248 = vunpack.c.l.s4 1966171168
      %v6249 = vunpack.c.0.s8 %v6248
      %v6250 = vlaneseq
      %v6251 = vshrl.u32 %v6250, 7
      %v6252 = vsub.s32 %v6249, %v6251
      %v6253 = vrot.slane %v6246, %v6252
      %v6254 = vcombine.low %v5389, %v6253
      %v6263 = vcombine.low %v5446, %v5488
      %v6264 = vcombine.low %v5495, %v5537
      %v6265 = vcombine.low %v5544, %v5586
      %v6266 = vcombine.low %v4875, %v4883
      %v6267 = vcombine.low %v4891, %v4899
      %v6269 = vunpack.c.l.s4 1966171168
      %v6270 = vunpack.c.0.s8 %v6269
      %v6271 = vlaneseq
      %v6272 = vshrl.u32 %v6271, 7
      %v6273 = vsub.s32 %v6270, %v6272
      %v6274 = vrot.slane %v6266, %v6273
      %v6276 = vunpack.c.l.s4 1966171168
      %v6277 = vunpack.c.0.s8 %v6276
      %v6278 = vlaneseq
      %v6279 = vshrl.u32 %v6278, 7
      %v6280 = vsub.s32 %v6277, %v6279
      %v6281 = vrot.slane %v6267, %v6280
      %v6282 = vcombine.low %v6274, %v6281
      %v6284 = vunpack.c.l.s4 1966171168
      %v6285 = vunpack.c.0.s8 %v6284
      %v6286 = vlaneseq
      %v6287 = vshrl.u32 %v6286, 7
      %v6288 = vsub.s32 %v6285, %v6287
      %v6289 = vrot.slane %v6282, %v6288
      %v6290 = vcombine.low %v5593, %v6289
      %v6291 = vcombine.low %v5642, %v5684
      %v6292 = vcombine.low %v5691, %v5733
      %v6293 = vcombine.low %v5740, %v5782
      %v6294 = vcombine.low %v4908, %v4916
      %v6295 = vcombine.low %v4924, %v4932
      %v6297 = vunpack.c.l.s4 1966171168
      %v6298 = vunpack.c.0.s8 %v6297
      %v6299 = vlaneseq
      %v6300 = vshrl.u32 %v6299, 7
      %v6301 = vsub.s32 %v6298, %v6300
      %v6302 = vrot.slane %v6294, %v6301
      %v6304 = vunpack.c.l.s4 1966171168
      %v6305 = vunpack.c.0.s8 %v6304
      %v6306 = vlaneseq
      %v6307 = vshrl.u32 %v6306, 7
      %v6308 = vsub.s32 %v6305, %v6307
      %v6309 = vrot.slane %v6295, %v6308
      %v6310 = vcombine.low %v6302, %v6309
      %v6312 = vunpack.c.l.s4 1966171168
      %v6313 = vunpack.c.0.s8 %v6312
      %v6314 = vlaneseq
      %v6315 = vshrl.u32 %v6314, 7
      %v6316 = vsub.s32 %v6313, %v6315
      %v6317 = vrot.slane %v6310, %v6316
      %v6318 = vcombine.low %v5789, %v6317
      %v6327 = vcombine.low %v5846, %v5888
      %v6328 = vcombine.low %v5895, %v5937
      %v6329 = vcombine.low %v5944, %v5986
      %v6330 = vcombine.low %v3994, %v4002
      %v6331 = vcombine.low %v4004, %v3987
      %v6333 = vunpack.c.l.s4 1966171168
      %v6334 = vunpack.c.0.s8 %v6333
      %v6335 = vlaneseq
      %v6336 = vshrl.u32 %v6335, 7
      %v6337 = vsub.s32 %v6334, %v6336
      %v6338 = vrot.slane %v6330, %v6337
      %v6340 = vunpack.c.l.s4 1966171168
      %v6341 = vunpack.c.0.s8 %v6340
      %v6342 = vlaneseq
      %v6343 = vshrl.u32 %v6342, 7
      %v6344 = vsub.s32 %v6341, %v6343
      %v6345 = vrot.slane %v6331, %v6344
      %v6346 = vcombine.low %v6338, %v6345
      %v6348 = vunpack.c.l.s4 1966171168
      %v6349 = vunpack.c.0.s8 %v6348
      %v6350 = vlaneseq
      %v6351 = vshrl.u32 %v6350, 7
      %v6352 = vsub.s32 %v6349, %v6351
      %v6353 = vrot.slane %v6346, %v6352
      %v6354 = vcombine.low %v5993, %v6353
      %v6355 = vcombine.low %v6042, %v6084
      %v6356 = vcombine.low %v6091, %v6133
      %v6357 = vcombine.low %v6140, %v6182
      %v6358 = vcombine.low %v4298, %v4281
      %v6359 = vcombine.low %v4295, %v4297
      %v6361 = vunpack.c.l.s4 1966171168
      %v6362 = vunpack.c.0.s8 %v6361
      %v6363 = vlaneseq
      %v6364 = vshrl.u32 %v6363, 7
      %v6365 = vsub.s32 %v6362, %v6364
      %v6366 = vrot.slane %v6358, %v6365
      %v6368 = vunpack.c.l.s4 1966171168
      %v6369 = vunpack.c.0.s8 %v6368
      %v6370 = vlaneseq
      %v6371 = vshrl.u32 %v6370, 7
      %v6372 = vsub.s32 %v6369, %v6371
      %v6373 = vrot.slane %v6359, %v6372
      %v6374 = vcombine.low %v6366, %v6373
      %v6376 = vunpack.c.l.s4 1966171168
      %v6377 = vunpack.c.0.s8 %v6376
      %v6378 = vlaneseq
      %v6379 = vshrl.u32 %v6378, 7
      %v6380 = vsub.s32 %v6377, %v6379
      %v6381 = vrot.slane %v6374, %v6380
      %v6382 = vcombine.low %v6189, %v6381
      %v6391 = vcombine.low %v4001, %v4003
      %v6392 = vcombine.low %v4005, %v4029
      %v6394 = vunpack.c.l.s4 1966171168
      %v6395 = vunpack.c.0.s8 %v6394
      %v6396 = vlaneseq
      %v6397 = vshrl.u32 %v6396, 7
      %v6398 = vsub.s32 %v6395, %v6397
      %v6399 = vrot.slane %v6391, %v6398
      %v6401 = vunpack.c.l.s4 1966171168
      %v6402 = vunpack.c.0.s8 %v6401
      %v6403 = vlaneseq
      %v6404 = vshrl.u32 %v6403, 7
      %v6405 = vsub.s32 %v6402, %v6404
      %v6406 = vrot.slane %v6392, %v6405
      %v6407 = vcombine.low %v6399, %v6406
      %v6409 = vunpack.c.l.s4 1966171168
      %v6410 = vunpack.c.0.s8 %v6409
      %v6411 = vlaneseq
      %v6412 = vshrl.u32 %v6411, 7
      %v6413 = vsub.s32 %v6410, %v6412
      %v6414 = vrot.slane %v6407, %v6413
      %v6415 = vcombine.low %v6225, %v6414
      %v6416 = vcombine.low %v4299, %v4314
      %v6417 = vcombine.low %v4321, %v4322
      %v6419 = vunpack.c.l.s4 1966171168
      %v6420 = vunpack.c.0.s8 %v6419
      %v6421 = vlaneseq
      %v6422 = vshrl.u32 %v6421, 7
      %v6423 = vsub.s32 %v6420, %v6422
      %v6424 = vrot.slane %v6416, %v6423
      %v6426 = vunpack.c.l.s4 1966171168
      %v6427 = vunpack.c.0.s8 %v6426
      %v6428 = vlaneseq
      %v6429 = vshrl.u32 %v6428, 7
      %v6430 = vsub.s32 %v6427, %v6429
      %v6431 = vrot.slane %v6417, %v6430
      %v6432 = vcombine.low %v6424, %v6431
      %v6434 = vunpack.c.l.s4 1966171168
      %v6435 = vunpack.c.0.s8 %v6434
      %v6436 = vlaneseq
      %v6437 = vshrl.u32 %v6436, 7
      %v6438 = vsub.s32 %v6435, %v6437
      %v6439 = vrot.slane %v6432, %v6438
      %v6440 = vcombine.low %v6253, %v6439
      %v6443 = vcombine.low %v4941, %v4949
      %v6444 = vcombine.low %v4957, %v4965
      %v6446 = vunpack.c.l.s4 1966171168
      %v6447 = vunpack.c.0.s8 %v6446
      %v6448 = vlaneseq
      %v6449 = vshrl.u32 %v6448, 7
      %v6450 = vsub.s32 %v6447, %v6449
      %v6451 = vrot.slane %v6443, %v6450
      %v6453 = vunpack.c.l.s4 1966171168
      %v6454 = vunpack.c.0.s8 %v6453
      %v6455 = vlaneseq
      %v6456 = vshrl.u32 %v6455, 7
      %v6457 = vsub.s32 %v6454, %v6456
      %v6458 = vrot.slane %v6444, %v6457
      %v6459 = vcombine.low %v6451, %v6458
      %v6461 = vunpack.c.l.s4 1966171168
      %v6462 = vunpack.c.0.s8 %v6461
      %v6463 = vlaneseq
      %v6464 = vshrl.u32 %v6463, 7
      %v6465 = vsub.s32 %v6462, %v6464
      %v6466 = vrot.slane %v6459, %v6465
      %v6467 = vcombine.low %v6289, %v6466
      %v6468 = vcombine.low %v4974, %v4982
      %v6469 = vcombine.low %v4990, %v4998
      %v6471 = vunpack.c.l.s4 1966171168
      %v6472 = vunpack.c.0.s8 %v6471
      %v6473 = vlaneseq
      %v6474 = vshrl.u32 %v6473, 7
      %v6475 = vsub.s32 %v6472, %v6474
      %v6476 = vrot.slane %v6468, %v6475
      %v6478 = vunpack.c.l.s4 1966171168
      %v6479 = vunpack.c.0.s8 %v6478
      %v6480 = vlaneseq
      %v6481 = vshrl.u32 %v6480, 7
      %v6482 = vsub.s32 %v6479, %v6481
      %v6483 = vrot.slane %v6469, %v6482
      %v6484 = vcombine.low %v6476, %v6483
      %v6486 = vunpack.c.l.s4 1966171168
      %v6487 = vunpack.c.0.s8 %v6486
      %v6488 = vlaneseq
      %v6489 = vshrl.u32 %v6488, 7
      %v6490 = vsub.s32 %v6487, %v6489
      %v6491 = vrot.slane %v6484, %v6490
      %v6492 = vcombine.low %v6317, %v6491
      %v6495 = vcombine.low %v4003, %v4005
      %v6496 = vcombine.low %v4029, %v4043
      %v6498 = vunpack.c.l.s4 1966171168
      %v6499 = vunpack.c.0.s8 %v6498
      %v6500 = vlaneseq
      %v6501 = vshrl.u32 %v6500, 7
      %v6502 = vsub.s32 %v6499, %v6501
      %v6503 = vrot.slane %v6495, %v6502
      %v6505 = vunpack.c.l.s4 1966171168
      %v6506 = vunpack.c.0.s8 %v6505
      %v6507 = vlaneseq
      %v6508 = vshrl.u32 %v6507, 7
      %v6509 = vsub.s32 %v6506, %v6508
      %v6510 = vrot.slane %v6496, %v6509
      %v6511 = vcombine.low %v6503, %v6510
      %v6513 = vunpack.c.l.s4 1966171168
      %v6514 = vunpack.c.0.s8 %v6513
      %v6515 = vlaneseq
      %v6516 = vshrl.u32 %v6515, 7
      %v6517 = vsub.s32 %v6514, %v6516
      %v6518 = vrot.slane %v6511, %v6517
      %v6519 = vcombine.low %v6353, %v6518
      %v6520 = vcombine.low %v4314, %v4321
      %v6521 = vcombine.low %v4322, %v4323
      %v6523 = vunpack.c.l.s4 1966171168
      %v6524 = vunpack.c.0.s8 %v6523
      %v6525 = vlaneseq
      %v6526 = vshrl.u32 %v6525, 7
      %v6527 = vsub.s32 %v6524, %v6526
      %v6528 = vrot.slane %v6520, %v6527
      %v6530 = vunpack.c.l.s4 1966171168
      %v6531 = vunpack.c.0.s8 %v6530
      %v6532 = vlaneseq
      %v6533 = vshrl.u32 %v6532, 7
      %v6534 = vsub.s32 %v6531, %v6533
      %v6535 = vrot.slane %v6521, %v6534
      %v6536 = vcombine.low %v6528, %v6535
      %v6538 = vunpack.c.l.s4 1966171168
      %v6539 = vunpack.c.0.s8 %v6538
      %v6540 = vlaneseq
      %v6541 = vshrl.u32 %v6540, 7
      %v6542 = vsub.s32 %v6539, %v6541
      %v6543 = vrot.slane %v6536, %v6542
      %v6544 = vcombine.low %v6381, %v6543
      %v6547 = vld [vmem:[%s559] sm:$0xf]
      %v6548 = vld [vmem:[%s559 + $0x4] sm:$0xf]
      %v6549 = vld [vmem:[%s559 + $0x8] sm:$0xf]
      %v6550 = vld [vmem:[%s559 + $0xc] sm:$0xf]
      %v6551 = vld [vmem:[%s559 + $0x10] sm:$0xf]
      %v6552 = vld [vmem:[%s559 + $0x14] sm:$0xf]
      %v6553 = vld [vmem:[%s559 + $0x18] sm:$0xf]
      %v6554 = vld [vmem:[%s559 + $0x1c] sm:$0xf]
      %v6555 = vld [vmem:[%s559 + $0x20] sm:$0xf]
      %v6556 = vld [vmem:[%s559 + $0x24] sm:$0xf]
      %v6557 = vld [vmem:[%s559 + $0x28] sm:$0xf]
      %v6558 = vld [vmem:[%s559 + $0x2c] sm:$0xf]
      %v6559 = vld [vmem:[%s559 + $0x30] sm:$0xf]
      %v6560 = vld [vmem:[%s559 + $0x34] sm:$0xf]
      %v6561 = vld [vmem:[%s559 + $0x38] sm:$0xf]
      %v6562 = vld [vmem:[%s559 + $0x3c] sm:$0xf]
      %v6563 = vld [vmem:[%s559 + $0x40] sm:$0xf]
      %v6564 = vld [vmem:[%s559 + $0x44] sm:$0xf]
      %v6565 = vld [vmem:[%s559 + $0x48] sm:$0xf]
      %v6566 = vld [vmem:[%s559 + $0x4c] sm:$0xf]
      %v6567 = vld [vmem:[%s559 + $0x50] sm:$0xf]
      %v6568 = vld [vmem:[%s559 + $0x54] sm:$0xf]
      %v6569 = vld [vmem:[%s559 + $0x58] sm:$0xf]
      %v6570 = vld [vmem:[%s559 + $0x5c] sm:$0xf]
      %v6571 = vld [vmem:[%s559 + $0x60] sm:$0xf]
      %v6572 = vld [vmem:[%s559 + $0x64] sm:$0xf]
      %v6573 = vld [vmem:[%s559 + $0x68] sm:$0xf]
      %v6574 = vld [vmem:[%s559 + $0x6c] sm:$0xf]
      %v6575 = vld [vmem:[%s559 + $0x70] sm:$0xf]
      %v6576 = vld [vmem:[%s559 + $0x74] sm:$0xf]
      %v6577 = vld [vmem:[%s559 + $0x78] sm:$0xf]
      %v6578 = vld [vmem:[%s559 + $0x7c] sm:$0xf]
      %v6579 = vld [vmem:[%s559 + $0x80] sm:$0xf]
      %v6580 = vld [vmem:[%s559 + $0x84] sm:$0xf]
      %v6581 = vld [vmem:[%s559 + $0x88] sm:$0xf]
      %v6582 = vld [vmem:[%s559 + $0x8c] sm:$0xf]
      %v6583 = vld [vmem:[%s559 + $0x90] sm:$0xf]
      %v6584 = vld [vmem:[%s559 + $0x94] sm:$0xf]
      %v6585 = vld [vmem:[%s559 + $0x98] sm:$0xf]
      %v6586 = vld [vmem:[%s559 + $0x9c] sm:$0xf]
      %v6587 = vld [vmem:[%s559 + $0xa0] sm:$0xf]
      %v6588 = vld [vmem:[%s559 + $0xa4] sm:$0xf]
      %v6589 = vld [vmem:[%s559 + $0xa8] sm:$0xf]
      %v6590 = vld [vmem:[%s559 + $0xac] sm:$0xf]
      %v6591 = vld [vmem:[%s559 + $0xb0] sm:$0xf]
      %v6592 = vld [vmem:[%s559 + $0xb4] sm:$0xf]
      %v6593 = vld [vmem:[%s559 + $0xb8] sm:$0xf]
      %v6594 = vld [vmem:[%s559 + $0xbc] sm:$0xf]
      %v6595 = vld [vmem:[%s559 + $0xc0] sm:$0xf]
      %v6596 = vld [vmem:[%s559 + $0xc4] sm:$0xf]
      %v6597 = vld [vmem:[%s559 + $0xc8] sm:$0xf]
      %v6598 = vld [vmem:[%s559 + $0xcc] sm:$0xf]
      %v6599 = vld [vmem:[%s559 + $0xd0] sm:$0xf]
      %v6600 = vld [vmem:[%s559 + $0xd4] sm:$0xf]
      %v6601 = vld [vmem:[%s559 + $0xd8] sm:$0xf]
      %v6602 = vld [vmem:[%s559 + $0xdc] sm:$0xf]
      %v6603 = vld [vmem:[%s559 + $0xe0] sm:$0xf]
      %v6604 = vld [vmem:[%s559 + $0xe4] sm:$0xf]
      %v6605 = vld [vmem:[%s559 + $0xe8] sm:$0xf]
      %v6606 = vld [vmem:[%s559 + $0xec] sm:$0xf]
      %v6607 = vld [vmem:[%s559 + $0xf0] sm:$0xf]
      %v6608 = vld [vmem:[%s559 + $0xf4] sm:$0xf]
      %v6609 = vld [vmem:[%s559 + $0xf8] sm:$0xf]
      %v6610 = vld [vmem:[%s559 + $0xfc] sm:$0xf]
      %v6611 = vld [vmem:[%s559 + $0x100] sm:$0xf]
      %v6612 = vld [vmem:[%s559 + $0x104] sm:$0xf]
      %v6613 = vld [vmem:[%s559 + $0x108] sm:$0xf]
      %v6614 = vld [vmem:[%s559 + $0x10c] sm:$0xf]
      %v6615 = vld [vmem:[%s559 + $0x110] sm:$0xf]
      %v6616 = vld [vmem:[%s559 + $0x114] sm:$0xf]
      %v6617 = vld [vmem:[%s559 + $0x118] sm:$0xf]
      %v6618 = vld [vmem:[%s559 + $0x11c] sm:$0xf]
      %v6619 = vld [vmem:[%s559 + $0x120] sm:$0xf]
      %v6620 = vld [vmem:[%s559 + $0x124] sm:$0xf]
      %v6621 = vld [vmem:[%s559 + $0x128] sm:$0xf]
      %v6622 = vld [vmem:[%s559 + $0x12c] sm:$0xf]
      %v6623 = vld [vmem:[%s559 + $0x130] sm:$0xf]
      %v6624 = vld [vmem:[%s559 + $0x134] sm:$0xf]
      %v6625 = vld [vmem:[%s559 + $0x138] sm:$0xf]
      %v6626 = vld [vmem:[%s559 + $0x13c] sm:$0xf]
      %v6627 = vld [vmem:[%s559 + $0x140] sm:$0xf]
      %v6628 = vld [vmem:[%s559 + $0x144] sm:$0xf]
      %v6629 = vld [vmem:[%s559 + $0x148] sm:$0xf]
      %v6630 = vld [vmem:[%s559 + $0x14c] sm:$0xf]
      %v6631 = vld [vmem:[%s559 + $0x150] sm:$0xf]
      %v6632 = vld [vmem:[%s559 + $0x154] sm:$0xf]
      %v6633 = vld [vmem:[%s559 + $0x158] sm:$0xf]
      %v6634 = vld [vmem:[%s559 + $0x15c] sm:$0xf]
      %v6635 = vld [vmem:[%s559 + $0x160] sm:$0xf]
      %v6636 = vld [vmem:[%s559 + $0x164] sm:$0xf]
      %v6637 = vld [vmem:[%s559 + $0x168] sm:$0xf]
      %v6638 = vld [vmem:[%s559 + $0x16c] sm:$0xf]
      %v6639 = vld [vmem:[%s559 + $0x170] sm:$0xf]
      %v6640 = vld [vmem:[%s559 + $0x174] sm:$0xf]
      %v6641 = vld [vmem:[%s559 + $0x178] sm:$0xf]
      %v6642 = vld [vmem:[%s559 + $0x17c] sm:$0xf]
      %v6643 = vld [vmem:[%s559 + $0x180] sm:$0xf]
      %v6644 = vld [vmem:[%s559 + $0x184] sm:$0xf]
      %v6645 = vld [vmem:[%s559 + $0x188] sm:$0xf]
      %v6646 = vld [vmem:[%s559 + $0x18c] sm:$0xf]
      %v6647 = vld [vmem:[%s559 + $0x190] sm:$0xf]
      %v6648 = vld [vmem:[%s559 + $0x194] sm:$0xf]
      %v6649 = vld [vmem:[%s559 + $0x198] sm:$0xf]
      %v6650 = vld [vmem:[%s559 + $0x19c] sm:$0xf]
      %v6651 = vld [vmem:[%s559 + $0x1a0] sm:$0xf]
      %v6652 = vld [vmem:[%s559 + $0x1a4] sm:$0xf]
      %v6653 = vld [vmem:[%s559 + $0x1a8] sm:$0xf]
      %v6654 = vld [vmem:[%s559 + $0x1ac] sm:$0xf]
      %v6655 = vld [vmem:[%s559 + $0x1b0] sm:$0xf]
      %v6656 = vld [vmem:[%s559 + $0x1b4] sm:$0xf]
      %v6657 = vld [vmem:[%s559 + $0x1b8] sm:$0xf]
      %v6658 = vld [vmem:[%s559 + $0x1bc] sm:$0xf]
      %v6659 = vld [vmem:[%s559 + $0x1c0] sm:$0xf]
      %v6660 = vld [vmem:[%s559 + $0x1c4] sm:$0xf]
      %v6661 = vld [vmem:[%s559 + $0x1c8] sm:$0xf]
      %v6662 = vld [vmem:[%s559 + $0x1cc] sm:$0xf]
      %v6663 = vld [vmem:[%s559 + $0x1d0] sm:$0xf]
      %v6664 = vld [vmem:[%s559 + $0x1d4] sm:$0xf]
      %v6665 = vld [vmem:[%s559 + $0x1d8] sm:$0xf]
      %v6666 = vld [vmem:[%s559 + $0x1dc] sm:$0xf]
      %v6667 = vld [vmem:[%s559 + $0x1e0] sm:$0xf]
      %v6668 = vld [vmem:[%s559 + $0x1e4] sm:$0xf]
      %v6669 = vld [vmem:[%s559 + $0x1e8] sm:$0xf]
      %v6670 = vld [vmem:[%s559 + $0x1ec] sm:$0xf]
      %v6671 = vld [vmem:[%s559 + $0x1f0] sm:$0xf]
      %v6672 = vld [vmem:[%s559 + $0x1f4] sm:$0xf]
      %v6673 = vld [vmem:[%s559 + $0x1f8] sm:$0xf]
      %v6674 = vld [vmem:[%s559 + $0x1fc] sm:$0xf]
      %v6675 = vld [vmem:[%s559 + $0x200] sm:$0xf]
      %v6676 = vld [vmem:[%s559 + $0x204] sm:$0xf]
      %v6677 = vld [vmem:[%s559 + $0x208] sm:$0xf]
      %v6678 = vld [vmem:[%s559 + $0x20c] sm:$0xf]
      %v6679 = vld [vmem:[%s559 + $0x210] sm:$0xf]
      %v6680 = vld [vmem:[%s559 + $0x214] sm:$0xf]
      %v6681 = vld [vmem:[%s559 + $0x218] sm:$0xf]
      %v6682 = vld [vmem:[%s559 + $0x21c] sm:$0xf]
      %v6683 = vld [vmem:[%s559 + $0x220] sm:$0xf]
      %v6684 = vld [vmem:[%s559 + $0x224] sm:$0xf]
      %v6685 = vld [vmem:[%s559 + $0x228] sm:$0xf]
      %v6686 = vld [vmem:[%s559 + $0x22c] sm:$0xf]
      %v6687 = vld [vmem:[%s559 + $0x230] sm:$0xf]
      %v6688 = vld [vmem:[%s559 + $0x234] sm:$0xf]
      %v6689 = vld [vmem:[%s559 + $0x238] sm:$0xf]
      %v6690 = vld [vmem:[%s559 + $0x23c] sm:$0xf]
      %v6691 = vld [vmem:[%s562] sm:$0x1]
      %v6693 = vlaneseq
      %v6694 = vshrl.u32 %v6693, 7
      %v6695 = vsub.s32 0, %v6694
      %v6696 = vrot.slane %v6691, %v6695
      %v6842 = vunpack.c.l.b16 %v6547
      %v6843 = vunpack.c.l.b16 %v6548
      %v6844 = vunpack.c.l.b16 %v6549
      %v6845 = vunpack.c.l.b16 %v6550
      %v6846 = vunpack.c.l.b16 %v6551
      %v6847 = vunpack.c.l.b16 %v6552
      %v6848 = vunpack.c.l.b16 %v6553
      %v6849 = vunpack.c.l.b16 %v6554
      %v6850 = vunpack.c.l.b16 %v6555
      %v6851 = vunpack.c.l.b16 %v6556
      %v6852 = vunpack.c.l.b16 %v6557
      %v6853 = vunpack.c.l.b16 %v6558
      %v6854 = vunpack.c.l.b16 %v6559
      %v6855 = vunpack.c.l.b16 %v6560
      %v6856 = vunpack.c.l.b16 %v6561
      %v6857 = vunpack.c.l.b16 %v6562
      %v6858 = vunpack.c.l.b16 %v6563
      %v6859 = vunpack.c.l.b16 %v6564
      %v6860 = vunpack.c.l.b16 %v6565
      %v6861 = vunpack.c.l.b16 %v6566
      %v6862 = vunpack.c.l.b16 %v6567
      %v6863 = vunpack.c.l.b16 %v6568
      %v6864 = vunpack.c.l.b16 %v6569
      %v6865 = vunpack.c.l.b16 %v6570
      %v6866 = vunpack.c.l.b16 %v6571
      %v6867 = vunpack.c.l.b16 %v6572
      %v6868 = vunpack.c.l.b16 %v6573
      %v6869 = vunpack.c.l.b16 %v6574
      %v6870 = vunpack.c.l.b16 %v6575
      %v6871 = vunpack.c.l.b16 %v6576
      %v6872 = vunpack.c.l.b16 %v6577
      %v6873 = vunpack.c.l.b16 %v6578
      %v6874 = vunpack.c.l.b16 %v6579
      %v6875 = vunpack.c.l.b16 %v6580
      %v6876 = vunpack.c.l.b16 %v6581
      %v6877 = vunpack.c.l.b16 %v6582
      %v6878 = vunpack.c.l.b16 %v6583
      %v6879 = vunpack.c.l.b16 %v6584
      %v6880 = vunpack.c.l.b16 %v6585
      %v6881 = vunpack.c.l.b16 %v6586
      %v6882 = vunpack.c.l.b16 %v6587
      %v6883 = vunpack.c.l.b16 %v6588
      %v6884 = vunpack.c.l.b16 %v6589
      %v6885 = vunpack.c.l.b16 %v6590
      %v6886 = vunpack.c.l.b16 %v6591
      %v6887 = vunpack.c.l.b16 %v6592
      %v6888 = vunpack.c.l.b16 %v6593
      %v6889 = vunpack.c.l.b16 %v6594
      %v6890 = vunpack.c.l.b16 %v6595
      %v6891 = vunpack.c.l.b16 %v6596
      %v6892 = vunpack.c.l.b16 %v6597
      %v6893 = vunpack.c.l.b16 %v6598
      %v6894 = vunpack.c.l.b16 %v6599
      %v6895 = vunpack.c.l.b16 %v6600
      %v6896 = vunpack.c.l.b16 %v6601
      %v6897 = vunpack.c.l.b16 %v6602
      %v6898 = vunpack.c.l.b16 %v6603
      %v6899 = vunpack.c.l.b16 %v6604
      %v6900 = vunpack.c.l.b16 %v6605
      %v6901 = vunpack.c.l.b16 %v6606
      %v6902 = vunpack.c.l.b16 %v6607
      %v6903 = vunpack.c.l.b16 %v6608
      %v6904 = vunpack.c.l.b16 %v6609
      %v6905 = vunpack.c.l.b16 %v6610
      %v6906 = vunpack.c.l.b16 %v6611
      %v6907 = vunpack.c.l.b16 %v6612
      %v6908 = vunpack.c.l.b16 %v6613
      %v6909 = vunpack.c.l.b16 %v6614
      %v6910 = vunpack.c.l.b16 %v6615
      %v6911 = vunpack.c.l.b16 %v6616
      %v6912 = vunpack.c.l.b16 %v6617
      %v6913 = vunpack.c.l.b16 %v6618
      %v6914 = vunpack.c.l.b16 %v6619
      %v6915 = vunpack.c.l.b16 %v6620
      %v6916 = vunpack.c.l.b16 %v6621
      %v6917 = vunpack.c.l.b16 %v6622
      %v6918 = vunpack.c.l.b16 %v6623
      %v6919 = vunpack.c.l.b16 %v6624
      %v6920 = vunpack.c.l.b16 %v6625
      %v6921 = vunpack.c.l.b16 %v6626
      %v6922 = vunpack.c.l.b16 %v6627
      %v6923 = vunpack.c.l.b16 %v6628
      %v6924 = vunpack.c.l.b16 %v6629
      %v6925 = vunpack.c.l.b16 %v6630
      %v6926 = vunpack.c.l.b16 %v6631
      %v6927 = vunpack.c.l.b16 %v6632
      %v6928 = vunpack.c.l.b16 %v6633
      %v6929 = vunpack.c.l.b16 %v6634
      %v6930 = vunpack.c.l.b16 %v6635
      %v6931 = vunpack.c.l.b16 %v6636
      %v6932 = vunpack.c.l.b16 %v6637
      %v6933 = vunpack.c.l.b16 %v6638
      %v6934 = vunpack.c.l.b16 %v6639
      %v6935 = vunpack.c.l.b16 %v6640
      %v6936 = vunpack.c.l.b16 %v6641
      %v6937 = vunpack.c.l.b16 %v6642
      %v6938 = vunpack.c.l.b16 %v6643
      %v6939 = vunpack.c.l.b16 %v6644
      %v6940 = vunpack.c.l.b16 %v6645
      %v6941 = vunpack.c.l.b16 %v6646
      %v6942 = vunpack.c.l.b16 %v6647
      %v6943 = vunpack.c.l.b16 %v6648
      %v6944 = vunpack.c.l.b16 %v6649
      %v6945 = vunpack.c.l.b16 %v6650
      %v6946 = vunpack.c.l.b16 %v6651
      %v6947 = vunpack.c.l.b16 %v6652
      %v6948 = vunpack.c.l.b16 %v6653
      %v6949 = vunpack.c.l.b16 %v6654
      %v6950 = vunpack.c.l.b16 %v6655
      %v6951 = vunpack.c.l.b16 %v6656
      %v6952 = vunpack.c.l.b16 %v6657
      %v6953 = vunpack.c.l.b16 %v6658
      %v6954 = vunpack.c.l.b16 %v6659
      %v6955 = vunpack.c.l.b16 %v6660
      %v6956 = vunpack.c.l.b16 %v6661
      %v6957 = vunpack.c.l.b16 %v6662
      %v6958 = vunpack.c.l.b16 %v6663
      %v6959 = vunpack.c.l.b16 %v6664
      %v6960 = vunpack.c.l.b16 %v6665
      %v6961 = vunpack.c.l.b16 %v6666
      %v6962 = vunpack.c.l.b16 %v6667
      %v6963 = vunpack.c.l.b16 %v6668
      %v6964 = vunpack.c.l.b16 %v6669
      %v6965 = vunpack.c.l.b16 %v6670
      %v6966 = vunpack.c.l.b16 %v6671
      %v6967 = vunpack.c.l.b16 %v6672
      %v6968 = vunpack.c.l.b16 %v6673
      %v6969 = vunpack.c.l.b16 %v6674
      %v6970 = vunpack.c.l.b16 %v6675
      %v6971 = vunpack.c.l.b16 %v6676
      %v6972 = vunpack.c.l.b16 %v6677
      %v6973 = vunpack.c.l.b16 %v6678
      %v6974 = vunpack.c.l.b16 %v6679
      %v6975 = vunpack.c.l.b16 %v6680
      %v6976 = vunpack.c.l.b16 %v6681
      %v6977 = vunpack.c.l.b16 %v6682
      %v6978 = vunpack.c.l.b16 %v6683
      %v6979 = vunpack.c.l.b16 %v6684
      %v6980 = vunpack.c.l.b16 %v6685
      %v6981 = vunpack.c.l.b16 %v6686
      %v6982 = vunpack.c.l.b16 %v6687
      %v6983 = vunpack.c.l.b16 %v6688
      %v6984 = vunpack.c.l.b16 %v6689
      %v6985 = vunpack.c.l.b16 %v6690
      %v6986 = vpack.c.b16 %v6843, %v6842
      %v6987 = vpack.c.b16 %v6845, %v6844
      %v6988 = vpack.c.b16 %v6847, %v6846
      %v6989 = vpack.c.b16 %v6849, %v6848
      %v6990 = vpack.c.b16 %v6851, %v6850
      %v6991 = vpack.c.b16 %v6853, %v6852
      %v6992 = vpack.c.b16 %v6855, %v6854
      %v6993 = vpack.c.b16 %v6857, %v6856
      %v6994 = vpack.c.b16 %v6859, %v6858
      %v6995 = vpack.c.b16 %v6861, %v6860
      %v6996 = vpack.c.b16 %v6863, %v6862
      %v6997 = vpack.c.b16 %v6865, %v6864
      %v6998 = vpack.c.b16 %v6867, %v6866
      %v6999 = vpack.c.b16 %v6869, %v6868
      %v7000 = vpack.c.b16 %v6871, %v6870
      %v7001 = vpack.c.b16 %v6873, %v6872
      %v7002 = vpack.c.b16 %v6875, %v6874
      %v7003 = vpack.c.b16 %v6877, %v6876
      %v7004 = vpack.c.b16 %v6879, %v6878
      %v7005 = vpack.c.b16 %v6881, %v6880
      %v7006 = vpack.c.b16 %v6883, %v6882
      %v7007 = vpack.c.b16 %v6885, %v6884
      %v7008 = vpack.c.b16 %v6887, %v6886
      %v7009 = vpack.c.b16 %v6889, %v6888
      %v7010 = vpack.c.b16 %v6891, %v6890
      %v7011 = vpack.c.b16 %v6893, %v6892
      %v7012 = vpack.c.b16 %v6895, %v6894
      %v7013 = vpack.c.b16 %v6897, %v6896
      %v7014 = vpack.c.b16 %v6899, %v6898
      %v7015 = vpack.c.b16 %v6901, %v6900
      %v7016 = vpack.c.b16 %v6903, %v6902
      %v7017 = vpack.c.b16 %v6905, %v6904
      %v7018 = vpack.c.b16 %v6907, %v6906
      %v7019 = vpack.c.b16 %v6909, %v6908
      %v7020 = vpack.c.b16 %v6911, %v6910
      %v7021 = vpack.c.b16 %v6913, %v6912
      %v7022 = vpack.c.b16 %v6915, %v6914
      %v7023 = vpack.c.b16 %v6917, %v6916
      %v7024 = vpack.c.b16 %v6919, %v6918
      %v7025 = vpack.c.b16 %v6921, %v6920
      %v7026 = vpack.c.b16 %v6923, %v6922
      %v7027 = vpack.c.b16 %v6925, %v6924
      %v7028 = vpack.c.b16 %v6927, %v6926
      %v7029 = vpack.c.b16 %v6929, %v6928
      %v7030 = vpack.c.b16 %v6931, %v6930
      %v7031 = vpack.c.b16 %v6933, %v6932
      %v7032 = vpack.c.b16 %v6935, %v6934
      %v7033 = vpack.c.b16 %v6937, %v6936
      %v7034 = vpack.c.b16 %v6939, %v6938
      %v7035 = vpack.c.b16 %v6941, %v6940
      %v7036 = vpack.c.b16 %v6943, %v6942
      %v7037 = vpack.c.b16 %v6945, %v6944
      %v7038 = vpack.c.b16 %v6947, %v6946
      %v7039 = vpack.c.b16 %v6949, %v6948
      %v7040 = vpack.c.b16 %v6951, %v6950
      %v7041 = vpack.c.b16 %v6953, %v6952
      %v7042 = vpack.c.b16 %v6955, %v6954
      %v7043 = vpack.c.b16 %v6957, %v6956
      %v7044 = vpack.c.b16 %v6959, %v6958
      %v7045 = vpack.c.b16 %v6961, %v6960
      %v7046 = vpack.c.b16 %v6963, %v6962
      %v7047 = vpack.c.b16 %v6965, %v6964
      %v7048 = vpack.c.b16 %v6967, %v6966
      %v7049 = vpack.c.b16 %v6969, %v6968
      %v7050 = vpack.c.b16 %v6971, %v6970
      %v7051 = vpack.c.b16 %v6973, %v6972
      %v7052 = vpack.c.b16 %v6975, %v6974
      %v7053 = vpack.c.b16 %v6977, %v6976
      %v7054 = vpack.c.b16 %v6979, %v6978
      %v7055 = vpack.c.b16 %v6981, %v6980
      %v7056 = vpack.c.b16 %v6983, %v6982
      %v7057 = vpack.c.b16 %v6985, %v6984
      %7130 = vmatprep.subr.bf16.mxu0 0
      %7131 = vmatpush1.bf16.msra.mxu0 %v6986
      %7132 = vmatprep.subr.bf16.mxu0 0
      %7133 = vmatpush1.bf16.msra.mxu0 %v6987
      %7134 = vmatprep.subr.bf16.mxu0 0
      %7135 = vmatpush1.bf16.msra.mxu0 %v6988
      %7136 = vmatprep.subr.bf16.mxu0 0
      %7137 = vmatpush1.bf16.msra.mxu0 %v6989
      %7138 = vmatprep.subr.bf16.mxu0 0
      %7139 = vmatpush1.bf16.msra.mxu0 %v6990
      %7140 = vmatprep.subr.bf16.mxu0 0
      %7141 = vmatpush1.bf16.msra.mxu0 %v6991
      %7142 = vmatprep.subr.bf16.mxu0 0
      %7143 = vmatpush1.bf16.msra.mxu0 %v6992
      %7144 = vmatprep.subr.bf16.mxu0 0
      %7145 = vmatpush1.bf16.msra.mxu0 %v6993
      %7146 = vmatprep.subr.bf16.mxu0 0
      %7147 = vmatpush1.bf16.msra.mxu0 %v6994
      %7148 = vmatprep.subr.bf16.mxu0 0
      %7149 = vmatpush1.bf16.msra.mxu0 %v6995
      %7150 = vmatprep.subr.bf16.mxu0 0
      %7151 = vmatpush1.bf16.msra.mxu0 %v6996
      %7152 = vmatprep.subr.bf16.mxu0 0
      %7153 = vmatpush1.bf16.msra.mxu0 %v6997
      %7154 = vmatprep.subr.bf16.mxu0 0
      %7155 = vmatpush1.bf16.msra.mxu0 %v6998
      %7156 = vmatprep.subr.bf16.mxu0 0
      %7157 = vmatpush1.bf16.msra.mxu0 %v6999
      %7158 = vmatprep.subr.bf16.mxu0 0
      %7159 = vmatpush1.bf16.msra.mxu0 %v7000
      %7160 = vmatprep.subr.bf16.mxu0 0
      %7161 = vmatpush1.bf16.msra.mxu0 %v7001
      %7162 = vmatprep.mubr.bf16.mxu0 %v5447
      %7163 = vmatmul.mubr.bf16.gmra.mrb[0].mxu0 %v5047
      %v7164 = vpop.f32.mrb[0].mxu0
      %v7165 = vadd.f32 %v6696, %v7164
      %v7166 = vpop.f32.mrb[0].mxu0
      %v7167 = vpop.f32.mrb[0].mxu0
      %v7168 = vadd.f32 %v6696, %v7167
      %v7169 = vpop.f32.mrb[0].mxu0
      %7170 = vmatprep.mubr.bf16.mxu0 %v5496
      %7171 = vmatmul.mubr.bf16.gmra.mrb[0].mxu0 %v5096
      %v7172 = vpop.f32.mrb[0].mxu0
      %v7173 = vadd.f32 %v6696, %v7172
      %v7174 = vpop.f32.mrb[0].mxu0
      %v7175 = vpop.f32.mrb[0].mxu0
      %v7176 = vadd.f32 %v6696, %v7175
      %v7177 = vpop.f32.mrb[0].mxu0
      %7178 = vmatprep.mubr.bf16.mxu0 %v5545
      %7179 = vmatmul.mubr.bf16.gmra.mrb[0].mxu0 %v5145
      %v7180 = vpop.f32.mrb[0].mxu0
      %v7181 = vadd.f32 %v6696, %v7180
      %v7182 = vpop.f32.mrb[0].mxu0
      %v7183 = vpop.f32.mrb[0].mxu0
      %v7184 = vadd.f32 %v6696, %v7183
      %v7185 = vpop.f32.mrb[0].mxu0
      %7186 = vmatprep.mubr.bf16.mxu0 %v5594
      %7187 = vmatmul.mubr.bf16.gmra.mrb[0].mxu0 %v5194
      %v7188 = vpop.f32.mrb[0].mxu0
      %v7189 = vadd.f32 %v6696, %v7188
      %v7190 = vpop.f32.mrb[0].mxu0
      %v7191 = vpop.f32.mrb[0].mxu0
      %v7192 = vadd.f32 %v6696, %v7191
      %v7193 = vpop.f32.mrb[0].mxu0
      %7194 = vmatprep.mubr.bf16.mxu0 %v5643
      %7195 = vmatmul.mubr.bf16.gmra.mrb[0].mxu0 %v5243
      %v7196 = vpop.f32.mrb[0].mxu0
      %v7197 = vadd.f32 %v6696, %v7196
      %v7198 = vpop.f32.mrb[0].mxu0
      %v7199 = vpop.f32.mrb[0].mxu0
      %v7200 = vadd.f32 %v6696, %v7199
      %v7201 = vpop.f32.mrb[0].mxu0
      %7202 = vmatprep.mubr.bf16.mxu0 %v5692
      %7203 = vmatmul.mubr.bf16.gmra.mrb[0].mxu0 %v5292
      %v7204 = vpop.f32.mrb[0].mxu0
      %v7205 = vadd.f32 %v6696, %v7204
      %v7206 = vpop.f32.mrb[0].mxu0
      %v7207 = vpop.f32.mrb[0].mxu0
      %v7208 = vadd.f32 %v6696, %v7207
      %v7209 = vpop.f32.mrb[0].mxu0
      %7210 = vmatprep.mubr.bf16.mxu0 %v5741
      %7211 = vmatmul.mubr.bf16.gmra.mrb[0].mxu0 %v5341
      %v7212 = vpop.f32.mrb[0].mxu0
      %v7213 = vadd.f32 %v6696, %v7212
      %v7214 = vpop.f32.mrb[0].mxu0
      %v7215 = vpop.f32.mrb[0].mxu0
      %v7216 = vadd.f32 %v6696, %v7215
      %v7217 = vpop.f32.mrb[0].mxu0
      %7218 = vmatprep.mubr.bf16.mxu0 %v5790
      %7219 = vmatmul.mubr.bf16.gmra.mrb[0].mxu0 %v5390
      %v7220 = vpop.f32.mrb[0].mxu0
      %v7221 = vadd.f32 %v6696, %v7220
      %v7222 = vpop.f32.mrb[0].mxu0
      %v7223 = vpop.f32.mrb[0].mxu0
      %v7224 = vadd.f32 %v6696, %v7223
      %v7225 = vpop.f32.mrb[0].mxu0
      %7226 = vdwg.mxu0
      %7227 = vmatprep.subr.bf16.mxu0 0
      %7228 = vmatpush1.bf16.msra.mxu0 %v7002
      %7229 = vmatprep.subr.bf16.mxu0 0
      %7230 = vmatpush1.bf16.msra.mxu0 %v7003
      %7231 = vmatprep.subr.bf16.mxu0 0
      %7232 = vmatpush1.bf16.msra.mxu0 %v7004
      %7233 = vmatprep.subr.bf16.mxu0 0
      %7234 = vmatpush1.bf16.msra.mxu0 %v7005
      %7235 = vmatprep.subr.bf16.mxu0 0
      %7236 = vmatpush1.bf16.msra.mxu0 %v7006
      %7237 = vmatprep.subr.bf16.mxu0 0
      %7238 = vmatpush1.bf16.msra.mxu0 %v7007
      %7239 = vmatprep.subr.bf16.mxu0 0
      %7240 = vmatpush1.bf16.msra.mxu0 %v7008
      %7241 = vmatprep.subr.bf16.mxu0 0
      %7242 = vmatpush1.bf16.msra.mxu0 %v7009
      %7243 = vmatprep.subr.bf16.mxu0 0
      %7244 = vmatpush1.bf16.msra.mxu0 %v7010
      %7245 = vmatprep.subr.bf16.mxu0 0
      %7246 = vmatpush1.bf16.msra.mxu0 %v7011
      %7247 = vmatprep.subr.bf16.mxu0 0
      %7248 = vmatpush1.bf16.msra.mxu0 %v7012
      %7249 = vmatprep.subr.bf16.mxu0 0
      %7250 = vmatpush1.bf16.msra.mxu0 %v7013
      %7251 = vmatprep.subr.bf16.mxu0 0
      %7252 = vmatpush1.bf16.msra.mxu0 %v7014
      %7253 = vmatprep.subr.bf16.mxu0 0
      %7254 = vmatpush1.bf16.msra.mxu0 %v7015
      %7255 = vmatprep.subr.bf16.mxu0 0
      %7256 = vmatpush1.bf16.msra.mxu0 %v7016
      %7257 = vmatprep.subr.bf16.mxu0 0
      %7258 = vmatpush1.bf16.msra.mxu0 %v7017
      %7259 = vmatprep.mubr.bf16.mxu0 %v6199
      %7260 = vmatmul.mubr.bf16.gmra.mrb[0].mxu0 %v5847
      %v7261 = vpop.f32.mrb[0].mxu0
      %v7262 = vadd.f32 %v7165, %v7261
      %v7263 = vpop.f32.mrb[0].mxu0
      %v7264 = vpop.f32.mrb[0].mxu0
      %v7265 = vadd.f32 %v7168, %v7264
      %v7266 = vpop.f32.mrb[0].mxu0
      %7267 = vmatprep.mubr.bf16.mxu0 %v6200
      %7268 = vmatmul.mubr.bf16.gmra.mrb[0].mxu0 %v5896
      %v7269 = vpop.f32.mrb[0].mxu0
      %v7270 = vadd.f32 %v7173, %v7269
      %v7271 = vpop.f32.mrb[0].mxu0
      %v7272 = vpop.f32.mrb[0].mxu0
      %v7273 = vadd.f32 %v7176, %v7272
      %v7274 = vpop.f32.mrb[0].mxu0
      %7275 = vmatprep.mubr.bf16.mxu0 %v6201
      %7276 = vmatmul.mubr.bf16.gmra.mrb[0].mxu0 %v5945
      %v7277 = vpop.f32.mrb[0].mxu0
      %v7278 = vadd.f32 %v7181, %v7277
      %v7279 = vpop.f32.mrb[0].mxu0
      %v7280 = vpop.f32.mrb[0].mxu0
      %v7281 = vadd.f32 %v7184, %v7280
      %v7282 = vpop.f32.mrb[0].mxu0
      %7283 = vmatprep.mubr.bf16.mxu0 %v6226
      %7284 = vmatmul.mubr.bf16.gmra.mrb[0].mxu0 %v5994
      %v7285 = vpop.f32.mrb[0].mxu0
      %v7286 = vadd.f32 %v7189, %v7285
      %v7287 = vpop.f32.mrb[0].mxu0
      %v7288 = vpop.f32.mrb[0].mxu0
      %v7289 = vadd.f32 %v7192, %v7288
      %v7290 = vpop.f32.mrb[0].mxu0
      %7291 = vmatprep.mubr.bf16.mxu0 %v6227
      %7292 = vmatmul.mubr.bf16.gmra.mrb[0].mxu0 %v6043
      %v7293 = vpop.f32.mrb[0].mxu0
      %v7294 = vadd.f32 %v7197, %v7293
      %v7295 = vpop.f32.mrb[0].mxu0
      %v7296 = vpop.f32.mrb[0].mxu0
      %v7297 = vadd.f32 %v7200, %v7296
      %v7298 = vpop.f32.mrb[0].mxu0
      %7299 = vmatprep.mubr.bf16.mxu0 %v6228
      %7300 = vmatmul.mubr.bf16.gmra.mrb[0].mxu0 %v6092
      %v7301 = vpop.f32.mrb[0].mxu0
      %v7302 = vadd.f32 %v7205, %v7301
      %v7303 = vpop.f32.mrb[0].mxu0
      %v7304 = vpop.f32.mrb[0].mxu0
      %v7305 = vadd.f32 %v7208, %v7304
      %v7306 = vpop.f32.mrb[0].mxu0
      %7307 = vmatprep.mubr.bf16.mxu0 %v6229
      %7308 = vmatmul.mubr.bf16.gmra.mrb[0].mxu0 %v6141
      %v7309 = vpop.f32.mrb[0].mxu0
      %v7310 = vadd.f32 %v7213, %v7309
      %v7311 = vpop.f32.mrb[0].mxu0
      %v7312 = vpop.f32.mrb[0].mxu0
      %v7313 = vadd.f32 %v7216, %v7312
      %v7314 = vpop.f32.mrb[0].mxu0
      %7315 = vmatprep.mubr.bf16.mxu0 %v6254
      %7316 = vmatmul.mubr.bf16.gmra.mrb[0].mxu0 %v6190
      %v7317 = vpop.f32.mrb[0].mxu0
      %v7318 = vadd.f32 %v7221, %v7317
      %v7319 = vpop.f32.mrb[0].mxu0
      %v7320 = vpop.f32.mrb[0].mxu0
      %v7321 = vadd.f32 %v7224, %v7320
      %v7322 = vpop.f32.mrb[0].mxu0
      %7323 = vdwg.mxu0
      %7324 = vmatprep.subr.bf16.mxu0 0
      %7325 = vmatpush1.bf16.msra.mxu0 %v7018
      %7326 = vmatprep.subr.bf16.mxu0 0
      %7327 = vmatpush1.bf16.msra.mxu0 %v7019
      %7328 = vmatprep.subr.bf16.mxu0 0
      %7329 = vmatpush1.bf16.msra.mxu0 %v7020
      %7330 = vmatprep.subr.bf16.mxu0 0
      %7331 = vmatpush1.bf16.msra.mxu0 %v7021
      %7332 = vmatprep.subr.bf16.mxu0 0
      %7333 = vmatpush1.bf16.msra.mxu0 %v7022
      %7334 = vmatprep.subr.bf16.mxu0 0
      %7335 = vmatpush1.bf16.msra.mxu0 %v7023
      %7336 = vmatprep.subr.bf16.mxu0 0
      %7337 = vmatpush1.bf16.msra.mxu0 %v7024
      %7338 = vmatprep.subr.bf16.mxu0 0
      %7339 = vmatpush1.bf16.msra.mxu0 %v7025
      %7340 = vmatprep.subr.bf16.mxu0 0
      %7341 = vmatpush1.bf16.msra.mxu0 %v7026
      %7342 = vmatprep.subr.bf16.mxu0 0
      %7343 = vmatpush1.bf16.msra.mxu0 %v7027
      %7344 = vmatprep.subr.bf16.mxu0 0
      %7345 = vmatpush1.bf16.msra.mxu0 %v7028
      %7346 = vmatprep.subr.bf16.mxu0 0
      %7347 = vmatpush1.bf16.msra.mxu0 %v7029
      %7348 = vmatprep.subr.bf16.mxu0 0
      %7349 = vmatpush1.bf16.msra.mxu0 %v7030
      %7350 = vmatprep.subr.bf16.mxu0 0
      %7351 = vmatpush1.bf16.msra.mxu0 %v7031
      %7352 = vmatprep.subr.bf16.mxu0 0
      %7353 = vmatpush1.bf16.msra.mxu0 %v7032
      %7354 = vmatprep.subr.bf16.mxu0 0
      %7355 = vmatpush1.bf16.msra.mxu0 %v7033
      %7356 = vmatprep.mubr.bf16.mxu0 %v6327
      %7357 = vmatmul.mubr.bf16.gmra.mrb[0].mxu0 %v6263
      %v7358 = vpop.f32.mrb[0].mxu0
      %v7359 = vadd.f32 %v7262, %v7358
      %v7360 = vpop.f32.mrb[0].mxu0
      %v7361 = vpop.f32.mrb[0].mxu0
      %v7362 = vadd.f32 %v7265, %v7361
      %v7363 = vpop.f32.mrb[0].mxu0
      %7364 = vmatprep.mubr.bf16.mxu0 %v6328
      %7365 = vmatmul.mubr.bf16.gmra.mrb[0].mxu0 %v6264
      %v7366 = vpop.f32.mrb[0].mxu0
      %v7367 = vadd.f32 %v7270, %v7366
      %v7368 = vpop.f32.mrb[0].mxu0
      %v7369 = vpop.f32.mrb[0].mxu0
      %v7370 = vadd.f32 %v7273, %v7369
      %v7371 = vpop.f32.mrb[0].mxu0
      %7372 = vmatprep.mubr.bf16.mxu0 %v6329
      %7373 = vmatmul.mubr.bf16.gmra.mrb[0].mxu0 %v6265
      %v7374 = vpop.f32.mrb[0].mxu0
      %v7375 = vadd.f32 %v7278, %v7374
      %v7376 = vpop.f32.mrb[0].mxu0
      %v7377 = vpop.f32.mrb[0].mxu0
      %v7378 = vadd.f32 %v7281, %v7377
      %v7379 = vpop.f32.mrb[0].mxu0
      %7380 = vmatprep.mubr.bf16.mxu0 %v6354
      %7381 = vmatmul.mubr.bf16.gmra.mrb[0].mxu0 %v6290
      %v7382 = vpop.f32.mrb[0].mxu0
      %v7383 = vadd.f32 %v7286, %v7382
      %v7384 = vpop.f32.mrb[0].mxu0
      %v7385 = vpop.f32.mrb[0].mxu0
      %v7386 = vadd.f32 %v7289, %v7385
      %v7387 = vpop.f32.mrb[0].mxu0
      %7388 = vmatprep.mubr.bf16.mxu0 %v6355
      %7389 = vmatmul.mubr.bf16.gmra.mrb[0].mxu0 %v6291
      %v7390 = vpop.f32.mrb[0].mxu0
      %v7391 = vadd.f32 %v7294, %v7390
      %v7392 = vpop.f32.mrb[0].mxu0
      %v7393 = vpop.f32.mrb[0].mxu0
      %v7394 = vadd.f32 %v7297, %v7393
      %v7395 = vpop.f32.mrb[0].mxu0
      %7396 = vmatprep.mubr.bf16.mxu0 %v6356
      %7397 = vmatmul.mubr.bf16.gmra.mrb[0].mxu0 %v6292
      %v7398 = vpop.f32.mrb[0].mxu0
      %v7399 = vadd.f32 %v7302, %v7398
      %v7400 = vpop.f32.mrb[0].mxu0
      %v7401 = vpop.f32.mrb[0].mxu0
      %v7402 = vadd.f32 %v7305, %v7401
      %v7403 = vpop.f32.mrb[0].mxu0
      %7404 = vmatprep.mubr.bf16.mxu0 %v6357
      %7405 = vmatmul.mubr.bf16.gmra.mrb[0].mxu0 %v6293
      %v7406 = vpop.f32.mrb[0].mxu0
      %v7407 = vadd.f32 %v7310, %v7406
      %v7408 = vpop.f32.mrb[0].mxu0
      %v7409 = vpop.f32.mrb[0].mxu0
      %v7410 = vadd.f32 %v7313, %v7409
      %v7411 = vpop.f32.mrb[0].mxu0
      %7412 = vmatprep.mubr.bf16.mxu0 %v6382
      %7413 = vmatmul.mubr.bf16.gmra.mrb[0].mxu0 %v6318
      %v7414 = vpop.f32.mrb[0].mxu0
      %v7415 = vadd.f32 %v7318, %v7414
      %v7416 = vpop.f32.mrb[0].mxu0
      %v7417 = vpop.f32.mrb[0].mxu0
      %v7418 = vadd.f32 %v7321, %v7417
      %v7419 = vpop.f32.mrb[0].mxu0
      %7420 = vdwg.mxu0
      %7421 = vmatprep.subr.bf16.mxu0 0
      %7422 = vmatpush1.bf16.msra.mxu0 %v7034
      %7423 = vmatprep.subr.bf16.mxu0 0
      %7424 = vmatpush1.bf16.msra.mxu0 %v7035
      %7425 = vmatprep.subr.bf16.mxu0 0
      %7426 = vmatpush1.bf16.msra.mxu0 %v7036
      %7427 = vmatprep.subr.bf16.mxu0 0
      %7428 = vmatpush1.bf16.msra.mxu0 %v7037
      %7429 = vmatprep.subr.bf16.mxu0 0
      %7430 = vmatpush1.bf16.msra.mxu0 %v7038
      %7431 = vmatprep.subr.bf16.mxu0 0
      %7432 = vmatpush1.bf16.msra.mxu0 %v7039
      %7433 = vmatprep.subr.bf16.mxu0 0
      %7434 = vmatpush1.bf16.msra.mxu0 %v7040
      %7435 = vmatprep.subr.bf16.mxu0 0
      %7436 = vmatpush1.bf16.msra.mxu0 %v7041
      %7437 = vmatprep.subr.bf16.mxu0 0
      %7438 = vmatpush1.bf16.msra.mxu0 %v7042
      %7439 = vmatprep.subr.bf16.mxu0 0
      %7440 = vmatpush1.bf16.msra.mxu0 %v7043
      %7441 = vmatprep.subr.bf16.mxu0 0
      %7442 = vmatpush1.bf16.msra.mxu0 %v7044
      %7443 = vmatprep.subr.bf16.mxu0 0
      %7444 = vmatpush1.bf16.msra.mxu0 %v7045
      %7445 = vmatprep.subr.bf16.mxu0 0
      %7446 = vmatpush1.bf16.msra.mxu0 %v7046
      %7447 = vmatprep.subr.bf16.mxu0 0
      %7448 = vmatpush1.bf16.msra.mxu0 %v7047
      %7449 = vmatprep.subr.bf16.mxu0 0
      %7450 = vmatpush1.bf16.msra.mxu0 %v7048
      %7451 = vmatprep.subr.bf16.mxu0 0
      %7452 = vmatpush1.bf16.msra.mxu0 %v7049
      %7453 = vmatprep.mubr.bf16.mxu0 %v5496
      %7454 = vmatmul.mubr.bf16.gmra.mrb[0].mxu0 %v5096
      %v7455 = vpop.f32.mrb[0].mxu0
      %v7456 = vadd.f32 %v7359, %v7455
      %v7457 = vpop.f32.mrb[0].mxu0
      %v7458 = vpop.f32.mrb[0].mxu0
      %v7459 = vadd.f32 %v7362, %v7458
      %v7460 = vpop.f32.mrb[0].mxu0
      %7461 = vmatprep.mubr.bf16.mxu0 %v5545
      %7462 = vmatmul.mubr.bf16.gmra.mrb[0].mxu0 %v5145
      %v7463 = vpop.f32.mrb[0].mxu0
      %v7464 = vadd.f32 %v7367, %v7463
      %v7465 = vpop.f32.mrb[0].mxu0
      %v7466 = vpop.f32.mrb[0].mxu0
      %v7467 = vadd.f32 %v7370, %v7466
      %v7468 = vpop.f32.mrb[0].mxu0
      %7469 = vmatprep.mubr.bf16.mxu0 %v5594
      %7470 = vmatmul.mubr.bf16.gmra.mrb[0].mxu0 %v5194
      %v7471 = vpop.f32.mrb[0].mxu0
      %v7472 = vadd.f32 %v7375, %v7471
      %v7473 = vpop.f32.mrb[0].mxu0
      %v7474 = vpop.f32.mrb[0].mxu0
      %v7475 = vadd.f32 %v7378, %v7474
      %v7476 = vpop.f32.mrb[0].mxu0
      %7477 = vmatprep.mubr.bf16.mxu0 %v6467
      %7478 = vmatmul.mubr.bf16.gmra.mrb[0].mxu0 %v6415
      %v7479 = vpop.f32.mrb[0].mxu0
      %v7480 = vadd.f32 %v7383, %v7479
      %v7481 = vpop.f32.mrb[0].mxu0
      %v7482 = vpop.f32.mrb[0].mxu0
      %v7483 = vadd.f32 %v7386, %v7482
      %v7484 = vpop.f32.mrb[0].mxu0
      %7485 = vmatprep.mubr.bf16.mxu0 %v5692
      %7486 = vmatmul.mubr.bf16.gmra.mrb[0].mxu0 %v5292
      %v7487 = vpop.f32.mrb[0].mxu0
      %v7488 = vadd.f32 %v7391, %v7487
      %v7489 = vpop.f32.mrb[0].mxu0
      %v7490 = vpop.f32.mrb[0].mxu0
      %v7491 = vadd.f32 %v7394, %v7490
      %v7492 = vpop.f32.mrb[0].mxu0
      %7493 = vmatprep.mubr.bf16.mxu0 %v5741
      %7494 = vmatmul.mubr.bf16.gmra.mrb[0].mxu0 %v5341
      %v7495 = vpop.f32.mrb[0].mxu0
      %v7496 = vadd.f32 %v7399, %v7495
      %v7497 = vpop.f32.mrb[0].mxu0
      %v7498 = vpop.f32.mrb[0].mxu0
      %v7499 = vadd.f32 %v7402, %v7498
      %v7500 = vpop.f32.mrb[0].mxu0
      %7501 = vmatprep.mubr.bf16.mxu0 %v5790
      %7502 = vmatmul.mubr.bf16.gmra.mrb[0].mxu0 %v5390
      %v7503 = vpop.f32.mrb[0].mxu0
      %v7504 = vadd.f32 %v7407, %v7503
      %v7505 = vpop.f32.mrb[0].mxu0
      %v7506 = vpop.f32.mrb[0].mxu0
      %v7507 = vadd.f32 %v7410, %v7506
      %v7508 = vpop.f32.mrb[0].mxu0
      %7509 = vmatprep.mubr.bf16.mxu0 %v6492
      %7510 = vmatmul.mubr.bf16.gmra.mrb[0].mxu0 %v6440
      %v7511 = vpop.f32.mrb[0].mxu0
      %v7512 = vadd.f32 %v7415, %v7511
      %v7513 = vpop.f32.mrb[0].mxu0
      %v7514 = vpop.f32.mrb[0].mxu0
      %v7515 = vadd.f32 %v7418, %v7514
      %v7516 = vpop.f32.mrb[0].mxu0
      %7517 = vdwg.mxu0
      %7518 = vmatprep.subr.bf16.mxu0 0
      %7519 = vmatpush1.bf16.msra.mxu0 %v7050
      %7520 = vmatprep.subr.bf16.mxu0 0
      %7521 = vmatpush1.bf16.msra.mxu0 %v7051
      %7522 = vmatprep.subr.bf16.mxu0 0
      %7523 = vmatpush1.bf16.msra.mxu0 %v7052
      %7524 = vmatprep.subr.bf16.mxu0 0
      %7525 = vmatpush1.bf16.msra.mxu0 %v7053
      %7526 = vmatprep.subr.bf16.mxu0 0
      %7527 = vmatpush1.bf16.msra.mxu0 %v7054
      %7528 = vmatprep.subr.bf16.mxu0 0
      %7529 = vmatpush1.bf16.msra.mxu0 %v7055
      %7530 = vmatprep.subr.bf16.mxu0 0
      %7531 = vmatpush1.bf16.msra.mxu0 %v7056
      %7532 = vmatprep.subr.bf16.mxu0 0
      %7533 = vmatpush1.bf16.msra.mxu0 %v7057
      %7534 = vmatprep.subr.bf16.mxu0 0
      %7535 = vmatpush1.bf16.msra.mxu0 0
      %7536 = vmatprep.subr.bf16.mxu0 0
      %7537 = vmatpush1.bf16.msra.mxu0 0
      %7538 = vmatprep.subr.bf16.mxu0 0
      %7539 = vmatpush1.bf16.msra.mxu0 0
      %7540 = vmatprep.subr.bf16.mxu0 0
      %7541 = vmatpush1.bf16.msra.mxu0 0
      %7542 = vmatprep.subr.bf16.mxu0 0
      %7543 = vmatpush1.bf16.msra.mxu0 0
      %7544 = vmatprep.subr.bf16.mxu0 0
      %7545 = vmatpush1.bf16.msra.mxu0 0
      %7546 = vmatprep.subr.bf16.mxu0 0
      %7547 = vmatpush1.bf16.msra.mxu0 0
      %7548 = vmatprep.subr.bf16.mxu0 0
      %7549 = vmatpush1.bf16.msra.mxu0 0
      %7550 = vmatprep.mubr.bf16.mxu0 0
      %7551 = vmatmul.mubr.bf16.gmra.mrb[0].mxu0 %v5896
      %v7552 = vpop.f32.mrb[0].mxu0
      %v7553 = vadd.f32 %v7456, %v7552
      %v7554 = vpop.f32.mrb[0].mxu0
      %v7555 = vpop.f32.mrb[0].mxu0
      %v7556 = vadd.f32 %v7459, %v7555
      %v7557 = vpop.f32.mrb[0].mxu0
      %7558 = vmatprep.mubr.bf16.mxu0 0
      %7559 = vmatmul.mubr.bf16.gmra.mrb[0].mxu0 %v5945
      %v7560 = vpop.f32.mrb[0].mxu0
      %v7561 = vadd.f32 %v7464, %v7560
      %v7562 = vpop.f32.mrb[0].mxu0
      %v7563 = vpop.f32.mrb[0].mxu0
      %v7564 = vadd.f32 %v7467, %v7563
      %v7565 = vpop.f32.mrb[0].mxu0
      %7566 = vmatprep.mubr.bf16.mxu0 0
      %7567 = vmatmul.mubr.bf16.gmra.mrb[0].mxu0 %v5994
      %v7568 = vpop.f32.mrb[0].mxu0
      %v7569 = vadd.f32 %v7472, %v7568
      %v7570 = vpop.f32.mrb[0].mxu0
      %v7571 = vpop.f32.mrb[0].mxu0
      %v7572 = vadd.f32 %v7475, %v7571
      %v7573 = vpop.f32.mrb[0].mxu0
      %7574 = vmatprep.mubr.bf16.mxu0 0
      %7575 = vmatmul.mubr.bf16.gmra.mrb[0].mxu0 %v6519
      %v7576 = vpop.f32.mrb[0].mxu0
      %v7577 = vadd.f32 %v7480, %v7576
      %v7578 = vpop.f32.mrb[0].mxu0
      %v7579 = vpop.f32.mrb[0].mxu0
      %v7580 = vadd.f32 %v7483, %v7579
      %v7581 = vpop.f32.mrb[0].mxu0
      %7582 = vmatprep.mubr.bf16.mxu0 0
      %7583 = vmatmul.mubr.bf16.gmra.mrb[0].mxu0 %v6092
      %v7584 = vpop.f32.mrb[0].mxu0
      %v7585 = vadd.f32 %v7488, %v7584
      %v7586 = vpop.f32.mrb[0].mxu0
      %v7587 = vpop.f32.mrb[0].mxu0
      %v7588 = vadd.f32 %v7491, %v7587
      %v7589 = vpop.f32.mrb[0].mxu0
      %7590 = vmatprep.mubr.bf16.mxu0 0
      %7591 = vmatmul.mubr.bf16.gmra.mrb[0].mxu0 %v6141
      %v7592 = vpop.f32.mrb[0].mxu0
      %v7593 = vadd.f32 %v7496, %v7592
      %v7594 = vpop.f32.mrb[0].mxu0
      %v7595 = vpop.f32.mrb[0].mxu0
      %v7596 = vadd.f32 %v7499, %v7595
      %v7597 = vpop.f32.mrb[0].mxu0
      %7598 = vmatprep.mubr.bf16.mxu0 0
      %7599 = vmatmul.mubr.bf16.gmra.mrb[0].mxu0 %v6190
      %v7600 = vpop.f32.mrb[0].mxu0
      %v7601 = vadd.f32 %v7504, %v7600
      %v7602 = vpop.f32.mrb[0].mxu0
      %v7603 = vpop.f32.mrb[0].mxu0
      %v7604 = vadd.f32 %v7507, %v7603
      %v7605 = vpop.f32.mrb[0].mxu0
      %7606 = vmatprep.mubr.bf16.mxu0 0
      %7607 = vmatmul.mubr.bf16.gmra.mrb[0].mxu0 %v6544
      %v7608 = vpop.f32.mrb[0].mxu0
      %v7609 = vadd.f32 %v7512, %v7608
      %v7610 = vpop.f32.mrb[0].mxu0
      %v7611 = vpop.f32.mrb[0].mxu0
      %v7612 = vadd.f32 %v7515, %v7611
      %v7613 = vpop.f32.mrb[0].mxu0
      %7614 = vdwg.mxu0
      %v7615 = vmax.f32 %v7553, 0.0
      %v7616 = vmax.f32 %v7556, 0.0
      %v7617 = vmax.f32 %v7561, 0.0
      %v7618 = vmax.f32 %v7564, 0.0
      %v7619 = vmax.f32 %v7569, 0.0
      %v7620 = vmax.f32 %v7572, 0.0
      %v7621 = vmax.f32 %v7577, 0.0
      %v7622 = vmax.f32 %v7580, 0.0
      %v7623 = vmax.f32 %v7585, 0.0
      %v7624 = vmax.f32 %v7588, 0.0
      %v7625 = vmax.f32 %v7593, 0.0
      %v7626 = vmax.f32 %v7596, 0.0
      %v7627 = vmax.f32 %v7601, 0.0
      %v7628 = vmax.f32 %v7604, 0.0
      %v7629 = vmax.f32 %v7609, 0.0
      %v7630 = vmax.f32 %v7612, 0.0
      %v7631 = vmax.f32 %v7615, %v7616
      %v7632 = vmax.f32 %v7617, %v7618
      %v7633 = vmax.f32 %v7619, %v7620
      %v7634 = vmax.f32 %v7621, %v7622
      %v7635 = vmax.f32 %v7623, %v7624
      %v7636 = vmax.f32 %v7625, %v7626
      %v7637 = vmax.f32 %v7627, %v7628
      %v7638 = vmax.f32 %v7629, %v7630
      %v7647 = vcombine.high %v7631, %v7631
      %v7649 = vunpack.c.l.s4 1983009808
      %v7650 = vunpack.c.0.s8 %v7649
      %v7651 = vlaneseq
      %v7652 = vshrl.u32 %v7651, 7
      %v7653 = vsub.s32 %v7650, %v7652
      %v7654 = vrot.slane %v7631, %v7653
      %v7656 = vunpack.c.l.s4 1983009808
      %v7657 = vunpack.c.0.s8 %v7656
      %v7658 = vlaneseq
      %v7659 = vshrl.u32 %v7658, 7
      %v7660 = vsub.s32 %v7657, %v7659
      %v7661 = vrot.slane %v7647, %v7660
      %v7662 = vcombine.high %v7654, %v7654
      %v7663 = vcombine.high %v7661, %v7661
      %v7664 = vcombine.high %v7632, %v7632
      %v7666 = vunpack.c.l.s4 1983009808
      %v7667 = vunpack.c.0.s8 %v7666
      %v7668 = vlaneseq
      %v7669 = vshrl.u32 %v7668, 7
      %v7670 = vsub.s32 %v7667, %v7669
      %v7671 = vrot.slane %v7632, %v7670
      %v7673 = vunpack.c.l.s4 1983009808
      %v7674 = vunpack.c.0.s8 %v7673
      %v7675 = vlaneseq
      %v7676 = vshrl.u32 %v7675, 7
      %v7677 = vsub.s32 %v7674, %v7676
      %v7678 = vrot.slane %v7664, %v7677
      %v7679 = vcombine.high %v7671, %v7671
      %v7680 = vcombine.high %v7678, %v7678
      %v7681 = vcombine.high %v7633, %v7633
      %v7683 = vunpack.c.l.s4 1983009808
      %v7684 = vunpack.c.0.s8 %v7683
      %v7685 = vlaneseq
      %v7686 = vshrl.u32 %v7685, 7
      %v7687 = vsub.s32 %v7684, %v7686
      %v7688 = vrot.slane %v7633, %v7687
      %v7690 = vunpack.c.l.s4 1983009808
      %v7691 = vunpack.c.0.s8 %v7690
      %v7692 = vlaneseq
      %v7693 = vshrl.u32 %v7692, 7
      %v7694 = vsub.s32 %v7691, %v7693
      %v7695 = vrot.slane %v7681, %v7694
      %v7696 = vcombine.high %v7688, %v7688
      %v7697 = vcombine.high %v7695, %v7695
      %v7698 = vcombine.high %v7634, %v7634
      %v7700 = vunpack.c.l.s4 1983009808
      %v7701 = vunpack.c.0.s8 %v7700
      %v7702 = vlaneseq
      %v7703 = vshrl.u32 %v7702, 7
      %v7704 = vsub.s32 %v7701, %v7703
      %v7705 = vrot.slane %v7634, %v7704
      %v7707 = vunpack.c.l.s4 1983009808
      %v7708 = vunpack.c.0.s8 %v7707
      %v7709 = vlaneseq
      %v7710 = vshrl.u32 %v7709, 7
      %v7711 = vsub.s32 %v7708, %v7710
      %v7712 = vrot.slane %v7698, %v7711
      %v7713 = vcombine.high %v7705, %v7705
      %v7714 = vcombine.high %v7712, %v7712
      %v7715 = vcombine.high %v7635, %v7635
      %v7717 = vunpack.c.l.s4 1983009808
      %v7718 = vunpack.c.0.s8 %v7717
      %v7719 = vlaneseq
      %v7720 = vshrl.u32 %v7719, 7
      %v7721 = vsub.s32 %v7718, %v7720
      %v7722 = vrot.slane %v7635, %v7721
      %v7724 = vunpack.c.l.s4 1983009808
      %v7725 = vunpack.c.0.s8 %v7724
      %v7726 = vlaneseq
      %v7727 = vshrl.u32 %v7726, 7
      %v7728 = vsub.s32 %v7725, %v7727
      %v7729 = vrot.slane %v7715, %v7728
      %v7730 = vcombine.high %v7722, %v7722
      %v7731 = vcombine.high %v7729, %v7729
      %v7732 = vcombine.high %v7636, %v7636
      %v7734 = vunpack.c.l.s4 1983009808
      %v7735 = vunpack.c.0.s8 %v7734
      %v7736 = vlaneseq
      %v7737 = vshrl.u32 %v7736, 7
      %v7738 = vsub.s32 %v7735, %v7737
      %v7739 = vrot.slane %v7636, %v7738
      %v7741 = vunpack.c.l.s4 1983009808
      %v7742 = vunpack.c.0.s8 %v7741
      %v7743 = vlaneseq
      %v7744 = vshrl.u32 %v7743, 7
      %v7745 = vsub.s32 %v7742, %v7744
      %v7746 = vrot.slane %v7732, %v7745
      %v7747 = vcombine.high %v7739, %v7739
      %v7748 = vcombine.high %v7746, %v7746
      %v7749 = vcombine.high %v7637, %v7637
      %v7751 = vunpack.c.l.s4 1983009808
      %v7752 = vunpack.c.0.s8 %v7751
      %v7753 = vlaneseq
      %v7754 = vshrl.u32 %v7753, 7
      %v7755 = vsub.s32 %v7752, %v7754
      %v7756 = vrot.slane %v7637, %v7755
      %v7758 = vunpack.c.l.s4 1983009808
      %v7759 = vunpack.c.0.s8 %v7758
      %v7760 = vlaneseq
      %v7761 = vshrl.u32 %v7760, 7
      %v7762 = vsub.s32 %v7759, %v7761
      %v7763 = vrot.slane %v7749, %v7762
      %v7764 = vcombine.high %v7756, %v7756
      %v7765 = vcombine.high %v7763, %v7763
      %v7766 = vcombine.high %v7638, %v7638
      %v7768 = vunpack.c.l.s4 1983009808
      %v7769 = vunpack.c.0.s8 %v7768
      %v7770 = vlaneseq
      %v7771 = vshrl.u32 %v7770, 7
      %v7772 = vsub.s32 %v7769, %v7771
      %v7773 = vrot.slane %v7638, %v7772
      %v7775 = vunpack.c.l.s4 1983009808
      %v7776 = vunpack.c.0.s8 %v7775
      %v7777 = vlaneseq
      %v7778 = vshrl.u32 %v7777, 7
      %v7779 = vsub.s32 %v7776, %v7778
      %v7780 = vrot.slane %v7766, %v7779
      %v7781 = vcombine.high %v7773, %v7773
      %v7782 = vcombine.high %v7780, %v7780
      %v7815 = vsel %vm941, %v7654, -inf
      %v7816 = vrot.slane %v7815, 4
      %v7817 = vmax.f32 %v7815, %v7816
      %v7818 = vrot.slane %v7817, 2
      %v7819 = vmax.f32 %v7817, %v7818
      %v7820 = vrot.slane %v7819, 1
      %v7821 = vmax.f32 %v7819, %v7820
      %v7822 = vsel %vm941, %v7662, -inf
      %v7823 = vrot.slane %v7822, 4
      %v7824 = vmax.f32 %v7822, %v7823
      %v7825 = vrot.slane %v7824, 2
      %v7826 = vmax.f32 %v7824, %v7825
      %v7827 = vrot.slane %v7826, 1
      %v7828 = vmax.f32 %v7826, %v7827
      %v7829 = vsel %vm941, %v7661, -inf
      %v7830 = vrot.slane %v7829, 4
      %v7831 = vmax.f32 %v7829, %v7830
      %v7832 = vrot.slane %v7831, 2
      %v7833 = vmax.f32 %v7831, %v7832
      %v7834 = vrot.slane %v7833, 1
      %v7835 = vmax.f32 %v7833, %v7834
      %v7836 = vsel %vm941, %v7663, -inf
      %v7837 = vrot.slane %v7836, 4
      %v7838 = vmax.f32 %v7836, %v7837
      %v7839 = vrot.slane %v7838, 2
      %v7840 = vmax.f32 %v7838, %v7839
      %v7841 = vrot.slane %v7840, 1
      %v7842 = vmax.f32 %v7840, %v7841
      %v7843 = vsel %vm941, %v7671, -inf
      %v7844 = vrot.slane %v7843, 4
      %v7845 = vmax.f32 %v7843, %v7844
      %v7846 = vrot.slane %v7845, 2
      %v7847 = vmax.f32 %v7845, %v7846
      %v7848 = vrot.slane %v7847, 1
      %v7849 = vmax.f32 %v7847, %v7848
      %v7850 = vsel %vm941, %v7679, -inf
      %v7851 = vrot.slane %v7850, 4
      %v7852 = vmax.f32 %v7850, %v7851
      %v7853 = vrot.slane %v7852, 2
      %v7854 = vmax.f32 %v7852, %v7853
      %v7855 = vrot.slane %v7854, 1
      %v7856 = vmax.f32 %v7854, %v7855
      %v7857 = vsel %vm941, %v7678, -inf
      %v7858 = vrot.slane %v7857, 4
      %v7859 = vmax.f32 %v7857, %v7858
      %v7860 = vrot.slane %v7859, 2
      %v7861 = vmax.f32 %v7859, %v7860
      %v7862 = vrot.slane %v7861, 1
      %v7863 = vmax.f32 %v7861, %v7862
      %v7864 = vsel %vm941, %v7680, -inf
      %v7865 = vrot.slane %v7864, 4
      %v7866 = vmax.f32 %v7864, %v7865
      %v7867 = vrot.slane %v7866, 2
      %v7868 = vmax.f32 %v7866, %v7867
      %v7869 = vrot.slane %v7868, 1
      %v7870 = vmax.f32 %v7868, %v7869
      %v7871 = vsel %vm941, %v7688, -inf
      %v7872 = vrot.slane %v7871, 4
      %v7873 = vmax.f32 %v7871, %v7872
      %v7874 = vrot.slane %v7873, 2
      %v7875 = vmax.f32 %v7873, %v7874
      %v7876 = vrot.slane %v7875, 1
      %v7877 = vmax.f32 %v7875, %v7876
      %v7878 = vsel %vm941, %v7696, -inf
      %v7879 = vrot.slane %v7878, 4
      %v7880 = vmax.f32 %v7878, %v7879
      %v7881 = vrot.slane %v7880, 2
      %v7882 = vmax.f32 %v7880, %v7881
      %v7883 = vrot.slane %v7882, 1
      %v7884 = vmax.f32 %v7882, %v7883
      %v7885 = vsel %vm941, %v7695, -inf
      %v7886 = vrot.slane %v7885, 4
      %v7887 = vmax.f32 %v7885, %v7886
      %v7888 = vrot.slane %v7887, 2
      %v7889 = vmax.f32 %v7887, %v7888
      %v7890 = vrot.slane %v7889, 1
      %v7891 = vmax.f32 %v7889, %v7890
      %v7892 = vsel %vm941, %v7697, -inf
      %v7893 = vrot.slane %v7892, 4
      %v7894 = vmax.f32 %v7892, %v7893
      %v7895 = vrot.slane %v7894, 2
      %v7896 = vmax.f32 %v7894, %v7895
      %v7897 = vrot.slane %v7896, 1
      %v7898 = vmax.f32 %v7896, %v7897
      %v7899 = vsel %vm941, %v7705, -inf
      %v7900 = vrot.slane %v7899, 4
      %v7901 = vmax.f32 %v7899, %v7900
      %v7902 = vrot.slane %v7901, 2
      %v7903 = vmax.f32 %v7901, %v7902
      %v7904 = vrot.slane %v7903, 1
      %v7905 = vmax.f32 %v7903, %v7904
      %v7906 = vsel %vm941, %v7713, -inf
      %v7907 = vrot.slane %v7906, 4
      %v7908 = vmax.f32 %v7906, %v7907
      %v7909 = vrot.slane %v7908, 2
      %v7910 = vmax.f32 %v7908, %v7909
      %v7911 = vrot.slane %v7910, 1
      %v7912 = vmax.f32 %v7910, %v7911
      %v7913 = vsel %vm941, %v7712, -inf
      %v7914 = vrot.slane %v7913, 4
      %v7915 = vmax.f32 %v7913, %v7914
      %v7916 = vrot.slane %v7915, 2
      %v7917 = vmax.f32 %v7915, %v7916
      %v7918 = vrot.slane %v7917, 1
      %v7919 = vmax.f32 %v7917, %v7918
      %v7920 = vsel %vm941, %v7714, -inf
      %v7921 = vrot.slane %v7920, 4
      %v7922 = vmax.f32 %v7920, %v7921
      %v7923 = vrot.slane %v7922, 2
      %v7924 = vmax.f32 %v7922, %v7923
      %v7925 = vrot.slane %v7924, 1
      %v7926 = vmax.f32 %v7924, %v7925
      %v7927 = vsel %vm941, %v7722, -inf
      %v7928 = vrot.slane %v7927, 4
      %v7929 = vmax.f32 %v7927, %v7928
      %v7930 = vrot.slane %v7929, 2
      %v7931 = vmax.f32 %v7929, %v7930
      %v7932 = vrot.slane %v7931, 1
      %v7933 = vmax.f32 %v7931, %v7932
      %v7934 = vsel %vm941, %v7730, -inf
      %v7935 = vrot.slane %v7934, 4
      %v7936 = vmax.f32 %v7934, %v7935
      %v7937 = vrot.slane %v7936, 2
      %v7938 = vmax.f32 %v7936, %v7937
      %v7939 = vrot.slane %v7938, 1
      %v7940 = vmax.f32 %v7938, %v7939
      %v7941 = vsel %vm941, %v7729, -inf
      %v7942 = vrot.slane %v7941, 4
      %v7943 = vmax.f32 %v7941, %v7942
      %v7944 = vrot.slane %v7943, 2
      %v7945 = vmax.f32 %v7943, %v7944
      %v7946 = vrot.slane %v7945, 1
      %v7947 = vmax.f32 %v7945, %v7946
      %v7948 = vsel %vm941, %v7731, -inf
      %v7949 = vrot.slane %v7948, 4
      %v7950 = vmax.f32 %v7948, %v7949
      %v7951 = vrot.slane %v7950, 2
      %v7952 = vmax.f32 %v7950, %v7951
      %v7953 = vrot.slane %v7952, 1
      %v7954 = vmax.f32 %v7952, %v7953
      %v7955 = vsel %vm941, %v7739, -inf
      %v7956 = vrot.slane %v7955, 4
      %v7957 = vmax.f32 %v7955, %v7956
      %v7958 = vrot.slane %v7957, 2
      %v7959 = vmax.f32 %v7957, %v7958
      %v7960 = vrot.slane %v7959, 1
      %v7961 = vmax.f32 %v7959, %v7960
      %v7962 = vsel %vm941, %v7747, -inf
      %v7963 = vrot.slane %v7962, 4
      %v7964 = vmax.f32 %v7962, %v7963
      %v7965 = vrot.slane %v7964, 2
      %v7966 = vmax.f32 %v7964, %v7965
      %v7967 = vrot.slane %v7966, 1
      %v7968 = vmax.f32 %v7966, %v7967
      %v7969 = vsel %vm941, %v7746, -inf
      %v7970 = vrot.slane %v7969, 4
      %v7971 = vmax.f32 %v7969, %v7970
      %v7972 = vrot.slane %v7971, 2
      %v7973 = vmax.f32 %v7971, %v7972
      %v7974 = vrot.slane %v7973, 1
      %v7975 = vmax.f32 %v7973, %v7974
      %v7976 = vsel %vm941, %v7748, -inf
      %v7977 = vrot.slane %v7976, 4
      %v7978 = vmax.f32 %v7976, %v7977
      %v7979 = vrot.slane %v7978, 2
      %v7980 = vmax.f32 %v7978, %v7979
      %v7981 = vrot.slane %v7980, 1
      %v7982 = vmax.f32 %v7980, %v7981
      %v7983 = vsel %vm941, %v7756, -inf
      %v7984 = vrot.slane %v7983, 4
      %v7985 = vmax.f32 %v7983, %v7984
      %v7986 = vrot.slane %v7985, 2
      %v7987 = vmax.f32 %v7985, %v7986
      %v7988 = vrot.slane %v7987, 1
      %v7989 = vmax.f32 %v7987, %v7988
      %v7990 = vsel %vm941, %v7764, -inf
      %v7991 = vrot.slane %v7990, 4
      %v7992 = vmax.f32 %v7990, %v7991
      %v7993 = vrot.slane %v7992, 2
      %v7994 = vmax.f32 %v7992, %v7993
      %v7995 = vrot.slane %v7994, 1
      %v7996 = vmax.f32 %v7994, %v7995
      %v7997 = vsel %vm941, %v7763, -inf
      %v7998 = vrot.slane %v7997, 4
      %v7999 = vmax.f32 %v7997, %v7998
      %v8000 = vrot.slane %v7999, 2
      %v8001 = vmax.f32 %v7999, %v8000
      %v8002 = vrot.slane %v8001, 1
      %v8003 = vmax.f32 %v8001, %v8002
      %v8004 = vsel %vm941, %v7765, -inf
      %v8005 = vrot.slane %v8004, 4
      %v8006 = vmax.f32 %v8004, %v8005
      %v8007 = vrot.slane %v8006, 2
      %v8008 = vmax.f32 %v8006, %v8007
      %v8009 = vrot.slane %v8008, 1
      %v8010 = vmax.f32 %v8008, %v8009
      %v8011 = vsel %vm941, %v7773, -inf
      %v8012 = vrot.slane %v8011, 4
      %v8013 = vmax.f32 %v8011, %v8012
      %v8014 = vrot.slane %v8013, 2
      %v8015 = vmax.f32 %v8013, %v8014
      %v8016 = vrot.slane %v8015, 1
      %v8017 = vmax.f32 %v8015, %v8016
      %v8018 = vsel %vm941, %v7781, -inf
      %v8019 = vrot.slane %v8018, 4
      %v8020 = vmax.f32 %v8018, %v8019
      %v8021 = vrot.slane %v8020, 2
      %v8022 = vmax.f32 %v8020, %v8021
      %v8023 = vrot.slane %v8022, 1
      %v8024 = vmax.f32 %v8022, %v8023
      %v8025 = vsel %vm941, %v7780, -inf
      %v8026 = vrot.slane %v8025, 4
      %v8027 = vmax.f32 %v8025, %v8026
      %v8028 = vrot.slane %v8027, 2
      %v8029 = vmax.f32 %v8027, %v8028
      %v8030 = vrot.slane %v8029, 1
      %v8031 = vmax.f32 %v8029, %v8030
      %v8032 = vsel %vm941, %v7782, -inf
      %v8033 = vrot.slane %v8032, 4
      %v8034 = vmax.f32 %v8032, %v8033
      %v8035 = vrot.slane %v8034, 2
      %v8036 = vmax.f32 %v8034, %v8035
      %v8037 = vrot.slane %v8036, 1
      %v8038 = vmax.f32 %v8036, %v8037
      %v8039 = vld [vmem:[%s2] sm:$0xf]
      %v8040 = vld [vmem:[%s2 + $0x4] sm:$0xf]
      %v8041 = vld [vmem:[%s2 + $0x8] sm:$0xf]
      %v8042 = vld [vmem:[%s2 + $0xc] sm:$0xf]
      %v8043 = vld [vmem:[%s2 + $0x10] sm:$0xf]
      %v8044 = vld [vmem:[%s2 + $0x14] sm:$0xf]
      %v8045 = vld [vmem:[%s2 + $0x18] sm:$0xf]
      %v8046 = vld [vmem:[%s2 + $0x1c] sm:$0xf]
      %v8047 = vld [vmem:[%s2 + $0x20] sm:$0xf]
      %v8048 = vpack.c.bf16 %v7821, %v7821
      %v8049 = vpack.c.bf16 %v7828, %v7828
      %v8050 = vpack.c.bf16 %v7835, %v7835
      %v8051 = vpack.c.bf16 %v7842, %v7842
      %v8052 = vpack.c.bf16 %v7849, %v7849
      %v8053 = vpack.c.bf16 %v7856, %v7856
      %v8054 = vpack.c.bf16 %v7863, %v7863
      %v8055 = vpack.c.bf16 %v7870, %v7870
      %v8056 = vpack.c.bf16 %v7877, %v7877
      %v8057 = vpack.c.bf16 %v7884, %v7884
      %v8058 = vpack.c.bf16 %v7891, %v7891
      %v8059 = vpack.c.bf16 %v7898, %v7898
      %v8060 = vpack.c.bf16 %v7905, %v7905
      %v8061 = vpack.c.bf16 %v7912, %v7912
      %v8062 = vpack.c.bf16 %v7919, %v7919
      %v8063 = vpack.c.bf16 %v7926, %v7926
      %v8064 = vpack.c.bf16 %v7933, %v7933
      %v8065 = vpack.c.bf16 %v7940, %v7940
      %v8066 = vpack.c.bf16 %v7947, %v7947
      %v8067 = vpack.c.bf16 %v7954, %v7954
      %v8068 = vpack.c.bf16 %v7961, %v7961
      %v8069 = vpack.c.bf16 %v7968, %v7968
      %v8070 = vpack.c.bf16 %v7975, %v7975
      %v8071 = vpack.c.bf16 %v7982, %v7982
      %v8072 = vpack.c.bf16 %v7989, %v7989
      %v8073 = vpack.c.bf16 %v7996, %v7996
      %v8074 = vpack.c.bf16 %v8003, %v8003
      %v8075 = vpack.c.bf16 %v8010, %v8010
      %v8076 = vpack.c.bf16 %v8017, %v8017
      %v8077 = vpack.c.bf16 %v8024, %v8024
      %v8078 = vpack.c.bf16 %v8031, %v8031
      %v8079 = vpack.c.bf16 %v8038, %v8038
      %v8089 = vunpack.c.l.b16 %v8039
      %v8090 = vunpack.c.l.b16 %v8040
      %v8091 = vunpack.c.l.b16 %v8041
      %v8092 = vunpack.c.l.b16 %v8042
      %v8093 = vunpack.c.l.b16 %v8043
      %v8094 = vunpack.c.l.b16 %v8044
      %v8095 = vunpack.c.l.b16 %v8045
      %v8096 = vunpack.c.l.b16 %v8046
      %v8097 = vunpack.c.l.b16 %v8047
      %v8098 = vpack.c.b16 %v8090, %v8089
      %v8099 = vpack.c.b16 %v8092, %v8091
      %v8100 = vpack.c.b16 %v8094, %v8093
      %v8101 = vpack.c.b16 %v8096, %v8095
      %v8102 = vpack.c.b16 %v8097, %v8097
      %v8135 = vunpack.c.l.b16 %v8048
      %v8136 = vunpack.c.l.b16 %v8049
      %v8137 = vunpack.c.l.b16 %v8050
      %v8138 = vunpack.c.l.b16 %v8051
      %v8139 = vunpack.c.l.b16 %v8052
      %v8140 = vunpack.c.l.b16 %v8053
      %v8141 = vunpack.c.l.b16 %v8054
      %v8142 = vunpack.c.l.b16 %v8055
      %v8143 = vunpack.c.l.b16 %v8056
      %v8144 = vunpack.c.l.b16 %v8057
      %v8145 = vunpack.c.l.b16 %v8058
      %v8146 = vunpack.c.l.b16 %v8059
      %v8147 = vunpack.c.l.b16 %v8060
      %v8148 = vunpack.c.l.b16 %v8061
      %v8149 = vunpack.c.l.b16 %v8062
      %v8150 = vunpack.c.l.b16 %v8063
      %v8151 = vunpack.c.l.b16 %v8064
      %v8152 = vunpack.c.l.b16 %v8065
      %v8153 = vunpack.c.l.b16 %v8066
      %v8154 = vunpack.c.l.b16 %v8067
      %v8155 = vunpack.c.l.b16 %v8068
      %v8156 = vunpack.c.l.b16 %v8069
      %v8157 = vunpack.c.l.b16 %v8070
      %v8158 = vunpack.c.l.b16 %v8071
      %v8159 = vunpack.c.l.b16 %v8072
      %v8160 = vunpack.c.l.b16 %v8073
      %v8161 = vunpack.c.l.b16 %v8074
      %v8162 = vunpack.c.l.b16 %v8075
      %v8163 = vunpack.c.l.b16 %v8076
      %v8164 = vunpack.c.l.b16 %v8077
      %v8165 = vunpack.c.l.b16 %v8078
      %v8166 = vunpack.c.l.b16 %v8079
      %v8167 = vsel %vm3415, %v8136, %v8135
      %v8168 = vsel %vm3417, %v8137, %v8167
      %v8169 = vsel %vm3419, %v8138, %v8168
      %v8170 = vsel %vm3421, %v8139, %v8169
      %v8171 = vsel %vm3423, %v8140, %v8170
      %v8172 = vsel %vm3425, %v8141, %v8171
      %v8173 = vsel %vm3427, %v8142, %v8172
      %v8174 = vsel %vm3415, %v8144, %v8143
      %v8175 = vsel %vm3417, %v8145, %v8174
      %v8176 = vsel %vm3419, %v8146, %v8175
      %v8177 = vsel %vm3421, %v8147, %v8176
      %v8178 = vsel %vm3423, %v8148, %v8177
      %v8179 = vsel %vm3425, %v8149, %v8178
      %v8180 = vsel %vm3427, %v8150, %v8179
      %v8181 = vsel %vm3415, %v8152, %v8151
      %v8182 = vsel %vm3417, %v8153, %v8181
      %v8183 = vsel %vm3419, %v8154, %v8182
      %v8184 = vsel %vm3421, %v8155, %v8183
      %v8185 = vsel %vm3423, %v8156, %v8184
      %v8186 = vsel %vm3425, %v8157, %v8185
      %v8187 = vsel %vm3427, %v8158, %v8186
      %v8188 = vsel %vm3415, %v8160, %v8159
      %v8189 = vsel %vm3417, %v8161, %v8188
      %v8190 = vsel %vm3419, %v8162, %v8189
      %v8191 = vsel %vm3421, %v8163, %v8190
      %v8192 = vsel %vm3423, %v8164, %v8191
      %v8193 = vsel %vm3425, %v8165, %v8192
      %v8194 = vsel %vm3427, %v8166, %v8193
      %v8195 = vpack.c.b16 %v8180, %v8173
      %v8196 = vpack.c.b16 %v8194, %v8187
      %vm8199 = vcmask 261120
      %v8201 = vsel %vm8199, %v8098, 0
      %v8204 = vsel %vm8199, %v8099, 0
      %v8207 = vsel %vm8199, %v8100, 0
      %v8210 = vsel %vm8199, %v8101, 0
      %v8213 = vsel %vm8199, %v8102, 0
      %8215 = vmatprep.subr.bf16.mxu0 0
      %8216 = vmatpush1.bf16.msra.mxu0 %v8195
      %8217 = vmatprep.subr.bf16.mxu0 0
      %8218 = vmatpush1.bf16.msra.mxu0 %v8196
      %8219 = vmatprep.subr.bf16.mxu0 0
      %8220 = vmatpush1.bf16.msra.mxu0 0
      %8221 = vmatprep.subr.bf16.mxu0 0
      %8222 = vmatpush1.bf16.msra.mxu0 0
      %8223 = vmatprep.subr.bf16.mxu0 0
      %8224 = vmatpush1.bf16.msra.mxu0 0
      %8225 = vmatprep.subr.bf16.mxu0 0
      %8226 = vmatpush1.bf16.msra.mxu0 0
      %8227 = vmatprep.subr.bf16.mxu0 0
      %8228 = vmatpush1.bf16.msra.mxu0 0
      %8229 = vmatprep.subr.bf16.mxu0 0
      %8230 = vmatpush1.bf16.msra.mxu0 0
      %8231 = vmatprep.subr.bf16.mxu0 0
      %8232 = vmatpush1.bf16.msra.mxu0 0
      %8233 = vmatprep.subr.bf16.mxu0 0
      %8234 = vmatpush1.bf16.msra.mxu0 0
      %8235 = vmatprep.subr.bf16.mxu0 0
      %8236 = vmatpush1.bf16.msra.mxu0 0
      %8237 = vmatprep.subr.bf16.mxu0 0
      %8238 = vmatpush1.bf16.msra.mxu0 0
      %8239 = vmatprep.subr.bf16.mxu0 0
      %8240 = vmatpush1.bf16.msra.mxu0 0
      %8241 = vmatprep.subr.bf16.mxu0 0
      %8242 = vmatpush1.bf16.msra.mxu0 0
      %8243 = vmatprep.subr.bf16.mxu0 0
      %8244 = vmatpush1.bf16.msra.mxu0 0
      %8245 = vmatprep.subr.bf16.mxu0 0
      %8246 = vmatpush1.bf16.msra.mxu0 0
      %8247 = vmatprep.mubr.bf16.mxu0 0
      %8248 = vmatmul.mubr.bf16.gmra.mrb[0].mxu0 %v8201
      %v8249 = vpop.f32.mrb[0].mxu0
      %v8250 = vadd.f32 0.0, %v8249
      %v8251 = vpop.f32.mrb[0].mxu0
      %v8252 = vpop.f32.mrb[0].mxu0
      %v8253 = vadd.f32 0.0, %v8252
      %v8254 = vpop.f32.mrb[0].mxu0
      %8255 = vmatprep.mubr.bf16.mxu0 0
      %8256 = vmatmul.mubr.bf16.gmra.mrb[0].mxu0 %v8204
      %v8257 = vpop.f32.mrb[0].mxu0
      %v8258 = vadd.f32 0.0, %v8257
      %v8259 = vpop.f32.mrb[0].mxu0
      %v8260 = vpop.f32.mrb[0].mxu0
      %v8261 = vadd.f32 0.0, %v8260
      %v8262 = vpop.f32.mrb[0].mxu0
      %8263 = vmatprep.mubr.bf16.mxu0 0
      %8264 = vmatmul.mubr.bf16.gmra.mrb[0].mxu0 %v8207
      %v8265 = vpop.f32.mrb[0].mxu0
      %v8266 = vadd.f32 0.0, %v8265
      %v8267 = vpop.f32.mrb[0].mxu0
      %v8268 = vpop.f32.mrb[0].mxu0
      %v8269 = vadd.f32 0.0, %v8268
      %v8270 = vpop.f32.mrb[0].mxu0
      %8271 = vmatprep.mubr.bf16.mxu0 0
      %8272 = vmatmul.mubr.bf16.gmra.mrb[0].mxu0 %v8210
      %v8273 = vpop.f32.mrb[0].mxu0
      %v8274 = vadd.f32 0.0, %v8273
      %v8275 = vpop.f32.mrb[0].mxu0
      %v8276 = vpop.f32.mrb[0].mxu0
      %v8277 = vadd.f32 0.0, %v8276
      %v8278 = vpop.f32.mrb[0].mxu0
      %8279 = vmatprep.mubr.bf16.mxu0 0
      %8280 = vmatmul.mubr.bf16.gmra.mrb[0].mxu0 %v8213
      %v8281 = vpop.f32.mrb[0].mxu0
      %v8282 = vadd.f32 0.0, %v8281
      %v8283 = vpop.f32.mrb[0].mxu0
      %v8284 = vpop.f32.mrb[0].mxu0
      %v8285 = vpop.f32.mrb[0].mxu0
      %8286 = vdwg.mxu0
      %v8287 = vpack.c.bf16 %v8253, %v8250
      %v8288 = vpack.c.bf16 %v8261, %v8258
      %v8289 = vpack.c.bf16 %v8269, %v8266
      %v8290 = vpack.c.bf16 %v8277, %v8274
      %v8291 = vpack.c.bf16 %v8282, %v8282
      %v8297 = vcombine.high %v8287, %v8287
      %v8299 = vunpack.c.l.s4 1966171168
      %v8300 = vunpack.c.0.s8 %v8299
      %v8301 = vlaneseq
      %v8302 = vshrl.u32 %v8301, 7
      %v8303 = vsub.s32 %v8300, %v8302
      %v8304 = vrot.slane %v8287, %v8303
      %v8306 = vunpack.c.l.s4 1966171168
      %v8307 = vunpack.c.0.s8 %v8306
      %v8308 = vlaneseq
      %v8309 = vshrl.u32 %v8308, 7
      %v8310 = vsub.s32 %v8307, %v8309
      %v8311 = vrot.slane %v8297, %v8310
      %v8312 = vcombine.high %v8304, %v8304
      %v8313 = vcombine.high %v8311, %v8311
      %v8315 = vunpack.c.l.s4 1966171168
      %v8316 = vunpack.c.0.s8 %v8315
      %v8317 = vlaneseq
      %v8318 = vshrl.u32 %v8317, 7
      %v8319 = vsub.s32 %v8316, %v8318
      %v8320 = vrot.slane %v8304, %v8319
      %v8322 = vunpack.c.l.s4 1966171168
      %v8323 = vunpack.c.0.s8 %v8322
      %v8324 = vlaneseq
      %v8325 = vshrl.u32 %v8324, 7
      %v8326 = vsub.s32 %v8323, %v8325
      %v8327 = vrot.slane %v8311, %v8326
      %v8329 = vunpack.c.l.s4 1966171168
      %v8330 = vunpack.c.0.s8 %v8329
      %v8331 = vlaneseq
      %v8332 = vshrl.u32 %v8331, 7
      %v8333 = vsub.s32 %v8330, %v8332
      %v8334 = vrot.slane %v8312, %v8333
      %v8336 = vunpack.c.l.s4 1966171168
      %v8337 = vunpack.c.0.s8 %v8336
      %v8338 = vlaneseq
      %v8339 = vshrl.u32 %v8338, 7
      %v8340 = vsub.s32 %v8337, %v8339
      %v8341 = vrot.slane %v8313, %v8340
      %v8342 = vcombine.high %v8320, %v8320
      %v8343 = vcombine.high %v8327, %v8327
      %v8344 = vcombine.high %v8334, %v8334
      %v8345 = vcombine.high %v8341, %v8341
      %v8346 = vcombine.high %v8288, %v8288
      %v8348 = vunpack.c.l.s4 1966171168
      %v8349 = vunpack.c.0.s8 %v8348
      %v8350 = vlaneseq
      %v8351 = vshrl.u32 %v8350, 7
      %v8352 = vsub.s32 %v8349, %v8351
      %v8353 = vrot.slane %v8288, %v8352
      %v8355 = vunpack.c.l.s4 1966171168
      %v8356 = vunpack.c.0.s8 %v8355
      %v8357 = vlaneseq
      %v8358 = vshrl.u32 %v8357, 7
      %v8359 = vsub.s32 %v8356, %v8358
      %v8360 = vrot.slane %v8346, %v8359
      %v8361 = vcombine.high %v8353, %v8353
      %v8362 = vcombine.high %v8360, %v8360
      %v8364 = vunpack.c.l.s4 1966171168
      %v8365 = vunpack.c.0.s8 %v8364
      %v8366 = vlaneseq
      %v8367 = vshrl.u32 %v8366, 7
      %v8368 = vsub.s32 %v8365, %v8367
      %v8369 = vrot.slane %v8353, %v8368
      %v8371 = vunpack.c.l.s4 1966171168
      %v8372 = vunpack.c.0.s8 %v8371
      %v8373 = vlaneseq
      %v8374 = vshrl.u32 %v8373, 7
      %v8375 = vsub.s32 %v8372, %v8374
      %v8376 = vrot.slane %v8360, %v8375
      %v8378 = vunpack.c.l.s4 1966171168
      %v8379 = vunpack.c.0.s8 %v8378
      %v8380 = vlaneseq
      %v8381 = vshrl.u32 %v8380, 7
      %v8382 = vsub.s32 %v8379, %v8381
      %v8383 = vrot.slane %v8361, %v8382
      %v8385 = vunpack.c.l.s4 1966171168
      %v8386 = vunpack.c.0.s8 %v8385
      %v8387 = vlaneseq
      %v8388 = vshrl.u32 %v8387, 7
      %v8389 = vsub.s32 %v8386, %v8388
      %v8390 = vrot.slane %v8362, %v8389
      %v8391 = vcombine.high %v8369, %v8369
      %v8392 = vcombine.high %v8376, %v8376
      %v8393 = vcombine.high %v8383, %v8383
      %v8394 = vcombine.high %v8390, %v8390
      %v8395 = vcombine.high %v8289, %v8289
      %v8397 = vunpack.c.l.s4 1966171168
      %v8398 = vunpack.c.0.s8 %v8397
      %v8399 = vlaneseq
      %v8400 = vshrl.u32 %v8399, 7
      %v8401 = vsub.s32 %v8398, %v8400
      %v8402 = vrot.slane %v8289, %v8401
      %v8404 = vunpack.c.l.s4 1966171168
      %v8405 = vunpack.c.0.s8 %v8404
      %v8406 = vlaneseq
      %v8407 = vshrl.u32 %v8406, 7
      %v8408 = vsub.s32 %v8405, %v8407
      %v8409 = vrot.slane %v8395, %v8408
      %v8410 = vcombine.high %v8402, %v8402
      %v8411 = vcombine.high %v8409, %v8409
      %v8413 = vunpack.c.l.s4 1966171168
      %v8414 = vunpack.c.0.s8 %v8413
      %v8415 = vlaneseq
      %v8416 = vshrl.u32 %v8415, 7
      %v8417 = vsub.s32 %v8414, %v8416
      %v8418 = vrot.slane %v8402, %v8417
      %v8420 = vunpack.c.l.s4 1966171168
      %v8421 = vunpack.c.0.s8 %v8420
      %v8422 = vlaneseq
      %v8423 = vshrl.u32 %v8422, 7
      %v8424 = vsub.s32 %v8421, %v8423
      %v8425 = vrot.slane %v8409, %v8424
      %v8427 = vunpack.c.l.s4 1966171168
      %v8428 = vunpack.c.0.s8 %v8427
      %v8429 = vlaneseq
      %v8430 = vshrl.u32 %v8429, 7
      %v8431 = vsub.s32 %v8428, %v8430
      %v8432 = vrot.slane %v8410, %v8431
      %v8434 = vunpack.c.l.s4 1966171168
      %v8435 = vunpack.c.0.s8 %v8434
      %v8436 = vlaneseq
      %v8437 = vshrl.u32 %v8436, 7
      %v8438 = vsub.s32 %v8435, %v8437
      %v8439 = vrot.slane %v8411, %v8438
      %v8440 = vcombine.high %v8418, %v8418
      %v8441 = vcombine.high %v8425, %v8425
      %v8442 = vcombine.high %v8432, %v8432
      %v8443 = vcombine.high %v8439, %v8439
      %v8444 = vcombine.high %v8290, %v8290
      %v8446 = vunpack.c.l.s4 1966171168
      %v8447 = vunpack.c.0.s8 %v8446
      %v8448 = vlaneseq
      %v8449 = vshrl.u32 %v8448, 7
      %v8450 = vsub.s32 %v8447, %v8449
      %v8451 = vrot.slane %v8290, %v8450
      %v8453 = vunpack.c.l.s4 1966171168
      %v8454 = vunpack.c.0.s8 %v8453
      %v8455 = vlaneseq
      %v8456 = vshrl.u32 %v8455, 7
      %v8457 = vsub.s32 %v8454, %v8456
      %v8458 = vrot.slane %v8444, %v8457
      %v8459 = vcombine.high %v8451, %v8451
      %v8460 = vcombine.high %v8458, %v8458
      %v8462 = vunpack.c.l.s4 1966171168
      %v8463 = vunpack.c.0.s8 %v8462
      %v8464 = vlaneseq
      %v8465 = vshrl.u32 %v8464, 7
      %v8466 = vsub.s32 %v8463, %v8465
      %v8467 = vrot.slane %v8451, %v8466
      %v8469 = vunpack.c.l.s4 1966171168
      %v8470 = vunpack.c.0.s8 %v8469
      %v8471 = vlaneseq
      %v8472 = vshrl.u32 %v8471, 7
      %v8473 = vsub.s32 %v8470, %v8472
      %v8474 = vrot.slane %v8458, %v8473
      %v8476 = vunpack.c.l.s4 1966171168
      %v8477 = vunpack.c.0.s8 %v8476
      %v8478 = vlaneseq
      %v8479 = vshrl.u32 %v8478, 7
      %v8480 = vsub.s32 %v8477, %v8479
      %v8481 = vrot.slane %v8459, %v8480
      %v8483 = vunpack.c.l.s4 1966171168
      %v8484 = vunpack.c.0.s8 %v8483
      %v8485 = vlaneseq
      %v8486 = vshrl.u32 %v8485, 7
      %v8487 = vsub.s32 %v8484, %v8486
      %v8488 = vrot.slane %v8460, %v8487
      %v8489 = vcombine.high %v8467, %v8467
      %v8490 = vcombine.high %v8474, %v8474
      %v8491 = vcombine.high %v8481, %v8481
      %v8492 = vcombine.high %v8488, %v8488
      %v8494 = vunpack.c.l.s4 1966171168
      %v8495 = vunpack.c.0.s8 %v8494
      %v8496 = vlaneseq
      %v8497 = vshrl.u32 %v8496, 7
      %v8498 = vsub.s32 %v8495, %v8497
      %v8499 = vrot.slane %v8291, %v8498
      %v8500 = vcombine.high %v8499, %v8499
      %v8502 = vunpack.c.l.s4 1966171168
      %v8503 = vunpack.c.0.s8 %v8502
      %v8504 = vlaneseq
      %v8505 = vshrl.u32 %v8504, 7
      %v8506 = vsub.s32 %v8503, %v8505
      %v8507 = vrot.slane %v8499, %v8506
      %v8509 = vunpack.c.l.s4 1966171168
      %v8510 = vunpack.c.0.s8 %v8509
      %v8511 = vlaneseq
      %v8512 = vshrl.u32 %v8511, 7
      %v8513 = vsub.s32 %v8510, %v8512
      %v8514 = vrot.slane %v8500, %v8513
      %v8515 = vcombine.high %v8507, %v8507
      %v8516 = vcombine.high %v8514, %v8514
      %v8518 = vshrl.u32 %v8320, 16
      %v8520 = vrot.slane %v8518, 7
      %v8521 = vrot.slane %v8520, 1
      %v8523 = vshll.u32 %v8334, 16
      %v8525 = vsel %vm4338, %v8521, %v8523
      %v8526 = vshrl.u32 %v8334, 16
      %v8528 = vrot.slane %v8526, 7
      %v8529 = vrot.slane %v8528, 1
      %v8531 = vshll.u32 %v8342, 16
      %v8533 = vsel %vm4338, %v8529, %v8531
      %v8535 = vshrl.u32 %v8344, 16
      %v8537 = vrot.slane %v8535, 7
      %v8538 = vrot.slane %v8537, 1
      %v8540 = vshll.u32 %v8327, 16
      %v8542 = vsel %vm4338, %v8538, %v8540
      %v8543 = vshrl.u32 %v8327, 16
      %v8545 = vrot.slane %v8543, 7
      %v8546 = vrot.slane %v8545, 1
      %v8548 = vshll.u32 %v8341, 16
      %v8550 = vsel %vm4338, %v8546, %v8548
      %v8552 = vshrl.u32 %v8343, 16
      %v8554 = vrot.slane %v8552, 7
      %v8555 = vrot.slane %v8554, 1
      %v8557 = vshll.u32 %v8345, 16
      %v8559 = vsel %vm4338, %v8555, %v8557
      %v8560 = vshrl.u32 %v8345, 16
      %v8562 = vrot.slane %v8560, 7
      %v8563 = vrot.slane %v8562, 1
      %v8565 = vshll.u32 %v8369, 16
      %v8567 = vsel %vm4338, %v8563, %v8565
      %v8569 = vshrl.u32 %v8383, 16
      %v8571 = vrot.slane %v8569, 7
      %v8572 = vrot.slane %v8571, 1
      %v8574 = vshll.u32 %v8391, 16
      %v8576 = vsel %vm4338, %v8572, %v8574
      %v8577 = vshrl.u32 %v8391, 16
      %v8579 = vrot.slane %v8577, 7
      %v8580 = vrot.slane %v8579, 1
      %v8582 = vshll.u32 %v8393, 16
      %v8584 = vsel %vm4338, %v8580, %v8582
      %v8586 = vshrl.u32 %v8440, 16
      %v8588 = vrot.slane %v8586, 7
      %v8589 = vrot.slane %v8588, 1
      %v8591 = vshll.u32 %v8442, 16
      %v8593 = vsel %vm4338, %v8589, %v8591
      %v8594 = vshrl.u32 %v8442, 16
      %v8596 = vrot.slane %v8594, 7
      %v8597 = vrot.slane %v8596, 1
      %v8599 = vshll.u32 %v8425, 16
      %v8601 = vsel %vm4338, %v8597, %v8599
      %v8603 = vshrl.u32 %v8439, 16
      %v8605 = vrot.slane %v8603, 7
      %v8606 = vrot.slane %v8605, 1
      %v8608 = vshll.u32 %v8441, 16
      %v8610 = vsel %vm4338, %v8606, %v8608
      %v8611 = vshrl.u32 %v8441, 16
      %v8613 = vrot.slane %v8611, 7
      %v8614 = vrot.slane %v8613, 1
      %v8616 = vshll.u32 %v8443, 16
      %v8618 = vsel %vm4338, %v8614, %v8616
      %v8620 = vshrl.u32 %v8467, 16
      %v8622 = vrot.slane %v8620, 7
      %v8623 = vrot.slane %v8622, 1
      %v8625 = vshll.u32 %v8481, 16
      %v8627 = vsel %vm4338, %v8623, %v8625
      %v8628 = vshrl.u32 %v8481, 16
      %v8630 = vrot.slane %v8628, 7
      %v8631 = vrot.slane %v8630, 1
      %v8633 = vshll.u32 %v8489, 16
      %v8635 = vsel %vm4338, %v8631, %v8633
      %v8637 = vshrl.u32 %v8491, 16
      %v8639 = vrot.slane %v8637, 7
      %v8640 = vrot.slane %v8639, 1
      %v8642 = vshll.u32 %v8474, 16
      %v8644 = vsel %vm4338, %v8640, %v8642
      %v8645 = vshrl.u32 %v8474, 16
      %v8647 = vrot.slane %v8645, 7
      %v8648 = vrot.slane %v8647, 1
      %v8650 = vshll.u32 %v8488, 16
      %v8652 = vsel %vm4338, %v8648, %v8650
      %v8654 = vshrl.u32 %v8376, 16
      %v8656 = vrot.slane %v8654, 7
      %v8657 = vrot.slane %v8656, 1
      %v8659 = vshll.u32 %v8390, 16
      %v8661 = vsel %vm4338, %v8657, %v8659
      %v8662 = vshrl.u32 %v8390, 16
      %v8664 = vrot.slane %v8662, 7
      %v8665 = vrot.slane %v8664, 1
      %v8667 = vshll.u32 %v8392, 16
      %v8669 = vsel %vm4338, %v8665, %v8667
      %v8671 = vshrl.u32 %v8490, 16
      %v8673 = vrot.slane %v8671, 7
      %v8674 = vrot.slane %v8673, 1
      %v8676 = vshll.u32 %v8492, 16
      %v8678 = vsel %vm4338, %v8674, %v8676
      %v8679 = vshrl.u32 %v8492, 16
      %v8681 = vrot.slane %v8679, 7
      %v8682 = vrot.slane %v8681, 1
      %v8684 = vshll.u32 %v8507, 16
      %v8686 = vsel %vm4338, %v8682, %v8684
      %v8688 = vshrl.u32 %v8394, 16
      %v8690 = vrot.slane %v8688, 7
      %v8691 = vrot.slane %v8690, 1
      %v8693 = vshll.u32 %v8418, 16
      %v8695 = vsel %vm4338, %v8691, %v8693
      %v8696 = vshrl.u32 %v8418, 16
      %v8698 = vrot.slane %v8696, 7
      %v8699 = vrot.slane %v8698, 1
      %v8701 = vshll.u32 %v8432, 16
      %v8703 = vsel %vm4338, %v8699, %v8701
      %v8705 = vshrl.u32 %v8514, 16
      %v8707 = vrot.slane %v8705, 7
      %v8708 = vrot.slane %v8707, 1
      %v8710 = vshll.u32 %v8515, 16
      %v8712 = vsel %vm4338, %v8708, %v8710
      %v8713 = vshrl.u32 %v8515, 16
      %v8715 = vrot.slane %v8713, 7
      %v8716 = vrot.slane %v8715, 1
      %v8718 = vshll.u32 %v8516, 16
      %v8720 = vsel %vm4338, %v8716, %v8718
      %v8721 = vcombine.low %v8320, %v8334
      %v8722 = vcombine.low %v8344, %v8327
      %v8723 = vcombine.low %v8343, %v8345
      %v8724 = vcombine.low %v8383, %v8391
      %v8726 = vunpack.c.l.s4 1966171168
      %v8727 = vunpack.c.0.s8 %v8726
      %v8728 = vlaneseq
      %v8729 = vshrl.u32 %v8728, 7
      %v8730 = vsub.s32 %v8727, %v8729
      %v8731 = vrot.slane %v8721, %v8730
      %v8733 = vunpack.c.l.s4 1966171168
      %v8734 = vunpack.c.0.s8 %v8733
      %v8735 = vlaneseq
      %v8736 = vshrl.u32 %v8735, 7
      %v8737 = vsub.s32 %v8734, %v8736
      %v8738 = vrot.slane %v8722, %v8737
      %v8740 = vunpack.c.l.s4 1966171168
      %v8741 = vunpack.c.0.s8 %v8740
      %v8742 = vlaneseq
      %v8743 = vshrl.u32 %v8742, 7
      %v8744 = vsub.s32 %v8741, %v8743
      %v8745 = vrot.slane %v8723, %v8744
      %v8747 = vunpack.c.l.s4 1966171168
      %v8748 = vunpack.c.0.s8 %v8747
      %v8749 = vlaneseq
      %v8750 = vshrl.u32 %v8749, 7
      %v8751 = vsub.s32 %v8748, %v8750
      %v8752 = vrot.slane %v8724, %v8751
      %v8753 = vcombine.low %v8731, %v8738
      %v8754 = vcombine.low %v8745, %v8752
      %v8756 = vunpack.c.l.s4 1966171168
      %v8757 = vunpack.c.0.s8 %v8756
      %v8758 = vlaneseq
      %v8759 = vshrl.u32 %v8758, 7
      %v8760 = vsub.s32 %v8757, %v8759
      %v8761 = vrot.slane %v8753, %v8760
      %v8763 = vunpack.c.l.s4 1966171168
      %v8764 = vunpack.c.0.s8 %v8763
      %v8765 = vlaneseq
      %v8766 = vshrl.u32 %v8765, 7
      %v8767 = vsub.s32 %v8764, %v8766
      %v8768 = vrot.slane %v8754, %v8767
      %v8769 = vcombine.low %v8761, %v8768
      %v8770 = vcombine.low %v8440, %v8442
      %v8771 = vcombine.low %v8439, %v8441
      %v8772 = vcombine.low %v8467, %v8481
      %v8773 = vcombine.low %v8491, %v8474
      %v8775 = vunpack.c.l.s4 1966171168
      %v8776 = vunpack.c.0.s8 %v8775
      %v8777 = vlaneseq
      %v8778 = vshrl.u32 %v8777, 7
      %v8779 = vsub.s32 %v8776, %v8778
      %v8780 = vrot.slane %v8770, %v8779
      %v8782 = vunpack.c.l.s4 1966171168
      %v8783 = vunpack.c.0.s8 %v8782
      %v8784 = vlaneseq
      %v8785 = vshrl.u32 %v8784, 7
      %v8786 = vsub.s32 %v8783, %v8785
      %v8787 = vrot.slane %v8771, %v8786
      %v8789 = vunpack.c.l.s4 1966171168
      %v8790 = vunpack.c.0.s8 %v8789
      %v8791 = vlaneseq
      %v8792 = vshrl.u32 %v8791, 7
      %v8793 = vsub.s32 %v8790, %v8792
      %v8794 = vrot.slane %v8772, %v8793
      %v8796 = vunpack.c.l.s4 1966171168
      %v8797 = vunpack.c.0.s8 %v8796
      %v8798 = vlaneseq
      %v8799 = vshrl.u32 %v8798, 7
      %v8800 = vsub.s32 %v8797, %v8799
      %v8801 = vrot.slane %v8773, %v8800
      %v8802 = vcombine.low %v8780, %v8787
      %v8803 = vcombine.low %v8794, %v8801
      %v8805 = vunpack.c.l.s4 1966171168
      %v8806 = vunpack.c.0.s8 %v8805
      %v8807 = vlaneseq
      %v8808 = vshrl.u32 %v8807, 7
      %v8809 = vsub.s32 %v8806, %v8808
      %v8810 = vrot.slane %v8802, %v8809
      %v8812 = vunpack.c.l.s4 1966171168
      %v8813 = vunpack.c.0.s8 %v8812
      %v8814 = vlaneseq
      %v8815 = vshrl.u32 %v8814, 7
      %v8816 = vsub.s32 %v8813, %v8815
      %v8817 = vrot.slane %v8803, %v8816
      %v8818 = vcombine.low %v8810, %v8817
      %v8821 = vcombine.low %v8525, %v8533
      %v8822 = vcombine.low %v8542, %v8550
      %v8823 = vcombine.low %v8559, %v8567
      %v8824 = vcombine.low %v8576, %v8584
      %v8826 = vunpack.c.l.s4 1966171168
      %v8827 = vunpack.c.0.s8 %v8826
      %v8828 = vlaneseq
      %v8829 = vshrl.u32 %v8828, 7
      %v8830 = vsub.s32 %v8827, %v8829
      %v8831 = vrot.slane %v8821, %v8830
      %v8833 = vunpack.c.l.s4 1966171168
      %v8834 = vunpack.c.0.s8 %v8833
      %v8835 = vlaneseq
      %v8836 = vshrl.u32 %v8835, 7
      %v8837 = vsub.s32 %v8834, %v8836
      %v8838 = vrot.slane %v8822, %v8837
      %v8840 = vunpack.c.l.s4 1966171168
      %v8841 = vunpack.c.0.s8 %v8840
      %v8842 = vlaneseq
      %v8843 = vshrl.u32 %v8842, 7
      %v8844 = vsub.s32 %v8841, %v8843
      %v8845 = vrot.slane %v8823, %v8844
      %v8847 = vunpack.c.l.s4 1966171168
      %v8848 = vunpack.c.0.s8 %v8847
      %v8849 = vlaneseq
      %v8850 = vshrl.u32 %v8849, 7
      %v8851 = vsub.s32 %v8848, %v8850
      %v8852 = vrot.slane %v8824, %v8851
      %v8853 = vcombine.low %v8831, %v8838
      %v8854 = vcombine.low %v8845, %v8852
      %v8856 = vunpack.c.l.s4 1966171168
      %v8857 = vunpack.c.0.s8 %v8856
      %v8858 = vlaneseq
      %v8859 = vshrl.u32 %v8858, 7
      %v8860 = vsub.s32 %v8857, %v8859
      %v8861 = vrot.slane %v8853, %v8860
      %v8863 = vunpack.c.l.s4 1966171168
      %v8864 = vunpack.c.0.s8 %v8863
      %v8865 = vlaneseq
      %v8866 = vshrl.u32 %v8865, 7
      %v8867 = vsub.s32 %v8864, %v8866
      %v8868 = vrot.slane %v8854, %v8867
      %v8869 = vcombine.low %v8861, %v8868
      %v8870 = vcombine.low %v8593, %v8601
      %v8871 = vcombine.low %v8610, %v8618
      %v8872 = vcombine.low %v8627, %v8635
      %v8873 = vcombine.low %v8644, %v8652
      %v8875 = vunpack.c.l.s4 1966171168
      %v8876 = vunpack.c.0.s8 %v8875
      %v8877 = vlaneseq
      %v8878 = vshrl.u32 %v8877, 7
      %v8879 = vsub.s32 %v8876, %v8878
      %v8880 = vrot.slane %v8870, %v8879
      %v8882 = vunpack.c.l.s4 1966171168
      %v8883 = vunpack.c.0.s8 %v8882
      %v8884 = vlaneseq
      %v8885 = vshrl.u32 %v8884, 7
      %v8886 = vsub.s32 %v8883, %v8885
      %v8887 = vrot.slane %v8871, %v8886
      %v8889 = vunpack.c.l.s4 1966171168
      %v8890 = vunpack.c.0.s8 %v8889
      %v8891 = vlaneseq
      %v8892 = vshrl.u32 %v8891, 7
      %v8893 = vsub.s32 %v8890, %v8892
      %v8894 = vrot.slane %v8872, %v8893
      %v8896 = vunpack.c.l.s4 1966171168
      %v8897 = vunpack.c.0.s8 %v8896
      %v8898 = vlaneseq
      %v8899 = vshrl.u32 %v8898, 7
      %v8900 = vsub.s32 %v8897, %v8899
      %v8901 = vrot.slane %v8873, %v8900
      %v8902 = vcombine.low %v8880, %v8887
      %v8903 = vcombine.low %v8894, %v8901
      %v8905 = vunpack.c.l.s4 1966171168
      %v8906 = vunpack.c.0.s8 %v8905
      %v8907 = vlaneseq
      %v8908 = vshrl.u32 %v8907, 7
      %v8909 = vsub.s32 %v8906, %v8908
      %v8910 = vrot.slane %v8902, %v8909
      %v8912 = vunpack.c.l.s4 1966171168
      %v8913 = vunpack.c.0.s8 %v8912
      %v8914 = vlaneseq
      %v8915 = vshrl.u32 %v8914, 7
      %v8916 = vsub.s32 %v8913, %v8915
      %v8917 = vrot.slane %v8903, %v8916
      %v8918 = vcombine.low %v8910, %v8917
      %v8921 = vcombine.low %v8334, %v8342
      %v8922 = vcombine.low %v8327, %v8341
      %v8923 = vcombine.low %v8345, %v8369
      %v8924 = vcombine.low %v8391, %v8393
      %v8926 = vunpack.c.l.s4 1966171168
      %v8927 = vunpack.c.0.s8 %v8926
      %v8928 = vlaneseq
      %v8929 = vshrl.u32 %v8928, 7
      %v8930 = vsub.s32 %v8927, %v8929
      %v8931 = vrot.slane %v8921, %v8930
      %v8933 = vunpack.c.l.s4 1966171168
      %v8934 = vunpack.c.0.s8 %v8933
      %v8935 = vlaneseq
      %v8936 = vshrl.u32 %v8935, 7
      %v8937 = vsub.s32 %v8934, %v8936
      %v8938 = vrot.slane %v8922, %v8937
      %v8940 = vunpack.c.l.s4 1966171168
      %v8941 = vunpack.c.0.s8 %v8940
      %v8942 = vlaneseq
      %v8943 = vshrl.u32 %v8942, 7
      %v8944 = vsub.s32 %v8941, %v8943
      %v8945 = vrot.slane %v8923, %v8944
      %v8947 = vunpack.c.l.s4 1966171168
      %v8948 = vunpack.c.0.s8 %v8947
      %v8949 = vlaneseq
      %v8950 = vshrl.u32 %v8949, 7
      %v8951 = vsub.s32 %v8948, %v8950
      %v8952 = vrot.slane %v8924, %v8951
      %v8953 = vcombine.low %v8931, %v8938
      %v8954 = vcombine.low %v8945, %v8952
      %v8956 = vunpack.c.l.s4 1966171168
      %v8957 = vunpack.c.0.s8 %v8956
      %v8958 = vlaneseq
      %v8959 = vshrl.u32 %v8958, 7
      %v8960 = vsub.s32 %v8957, %v8959
      %v8961 = vrot.slane %v8953, %v8960
      %v8963 = vunpack.c.l.s4 1966171168
      %v8964 = vunpack.c.0.s8 %v8963
      %v8965 = vlaneseq
      %v8966 = vshrl.u32 %v8965, 7
      %v8967 = vsub.s32 %v8964, %v8966
      %v8968 = vrot.slane %v8954, %v8967
      %v8969 = vcombine.low %v8961, %v8968
      %v8970 = vcombine.low %v8442, %v8425
      %v8971 = vcombine.low %v8441, %v8443
      %v8972 = vcombine.low %v8481, %v8489
      %v8973 = vcombine.low %v8474, %v8488
      %v8975 = vunpack.c.l.s4 1966171168
      %v8976 = vunpack.c.0.s8 %v8975
      %v8977 = vlaneseq
      %v8978 = vshrl.u32 %v8977, 7
      %v8979 = vsub.s32 %v8976, %v8978
      %v8980 = vrot.slane %v8970, %v8979
      %v8982 = vunpack.c.l.s4 1966171168
      %v8983 = vunpack.c.0.s8 %v8982
      %v8984 = vlaneseq
      %v8985 = vshrl.u32 %v8984, 7
      %v8986 = vsub.s32 %v8983, %v8985
      %v8987 = vrot.slane %v8971, %v8986
      %v8989 = vunpack.c.l.s4 1966171168
      %v8990 = vunpack.c.0.s8 %v8989
      %v8991 = vlaneseq
      %v8992 = vshrl.u32 %v8991, 7
      %v8993 = vsub.s32 %v8990, %v8992
      %v8994 = vrot.slane %v8972, %v8993
      %v8996 = vunpack.c.l.s4 1966171168
      %v8997 = vunpack.c.0.s8 %v8996
      %v8998 = vlaneseq
      %v8999 = vshrl.u32 %v8998, 7
      %v9000 = vsub.s32 %v8997, %v8999
      %v9001 = vrot.slane %v8973, %v9000
      %v9002 = vcombine.low %v8980, %v8987
      %v9003 = vcombine.low %v8994, %v9001
      %v9005 = vunpack.c.l.s4 1966171168
      %v9006 = vunpack.c.0.s8 %v9005
      %v9007 = vlaneseq
      %v9008 = vshrl.u32 %v9007, 7
      %v9009 = vsub.s32 %v9006, %v9008
      %v9010 = vrot.slane %v9002, %v9009
      %v9012 = vunpack.c.l.s4 1966171168
      %v9013 = vunpack.c.0.s8 %v9012
      %v9014 = vlaneseq
      %v9015 = vshrl.u32 %v9014, 7
      %v9016 = vsub.s32 %v9013, %v9015
      %v9017 = vrot.slane %v9003, %v9016
      %v9018 = vcombine.low %v9010, %v9017
      %v9021 = vcombine.low %v8376, %v8390
      %v9023 = vunpack.c.l.s4 1966171168
      %v9024 = vunpack.c.0.s8 %v9023
      %v9025 = vlaneseq
      %v9026 = vshrl.u32 %v9025, 7
      %v9027 = vsub.s32 %v9024, %v9026
      %v9028 = vrot.slane %v9021, %v9027
      %v9029 = vcombine.low %v8738, %v8745
      %v9030 = vcombine.low %v8752, %v9028
      %v9032 = vunpack.c.l.s4 1966171168
      %v9033 = vunpack.c.0.s8 %v9032
      %v9034 = vlaneseq
      %v9035 = vshrl.u32 %v9034, 7
      %v9036 = vsub.s32 %v9033, %v9035
      %v9037 = vrot.slane %v9029, %v9036
      %v9039 = vunpack.c.l.s4 1966171168
      %v9040 = vunpack.c.0.s8 %v9039
      %v9041 = vlaneseq
      %v9042 = vshrl.u32 %v9041, 7
      %v9043 = vsub.s32 %v9040, %v9042
      %v9044 = vrot.slane %v9030, %v9043
      %v9045 = vcombine.low %v9037, %v9044
      %v9046 = vcombine.low %v8490, %v8492
      %v9048 = vunpack.c.l.s4 1966171168
      %v9049 = vunpack.c.0.s8 %v9048
      %v9050 = vlaneseq
      %v9051 = vshrl.u32 %v9050, 7
      %v9052 = vsub.s32 %v9049, %v9051
      %v9053 = vrot.slane %v9046, %v9052
      %v9054 = vcombine.low %v8787, %v8794
      %v9055 = vcombine.low %v8801, %v9053
      %v9057 = vunpack.c.l.s4 1966171168
      %v9058 = vunpack.c.0.s8 %v9057
      %v9059 = vlaneseq
      %v9060 = vshrl.u32 %v9059, 7
      %v9061 = vsub.s32 %v9058, %v9060
      %v9062 = vrot.slane %v9054, %v9061
      %v9064 = vunpack.c.l.s4 1966171168
      %v9065 = vunpack.c.0.s8 %v9064
      %v9066 = vlaneseq
      %v9067 = vshrl.u32 %v9066, 7
      %v9068 = vsub.s32 %v9065, %v9067
      %v9069 = vrot.slane %v9055, %v9068
      %v9070 = vcombine.low %v9062, %v9069
      %v9073 = vcombine.low %v8661, %v8669
      %v9075 = vunpack.c.l.s4 1966171168
      %v9076 = vunpack.c.0.s8 %v9075
      %v9077 = vlaneseq
      %v9078 = vshrl.u32 %v9077, 7
      %v9079 = vsub.s32 %v9076, %v9078
      %v9080 = vrot.slane %v9073, %v9079
      %v9081 = vcombine.low %v8838, %v8845
      %v9082 = vcombine.low %v8852, %v9080
      %v9084 = vunpack.c.l.s4 1966171168
      %v9085 = vunpack.c.0.s8 %v9084
      %v9086 = vlaneseq
      %v9087 = vshrl.u32 %v9086, 7
      %v9088 = vsub.s32 %v9085, %v9087
      %v9089 = vrot.slane %v9081, %v9088
      %v9091 = vunpack.c.l.s4 1966171168
      %v9092 = vunpack.c.0.s8 %v9091
      %v9093 = vlaneseq
      %v9094 = vshrl.u32 %v9093, 7
      %v9095 = vsub.s32 %v9092, %v9094
      %v9096 = vrot.slane %v9082, %v9095
      %v9097 = vcombine.low %v9089, %v9096
      %v9098 = vcombine.low %v8678, %v8686
      %v9100 = vunpack.c.l.s4 1966171168
      %v9101 = vunpack.c.0.s8 %v9100
      %v9102 = vlaneseq
      %v9103 = vshrl.u32 %v9102, 7
      %v9104 = vsub.s32 %v9101, %v9103
      %v9105 = vrot.slane %v9098, %v9104
      %v9106 = vcombine.low %v8887, %v8894
      %v9107 = vcombine.low %v8901, %v9105
      %v9109 = vunpack.c.l.s4 1966171168
      %v9110 = vunpack.c.0.s8 %v9109
      %v9111 = vlaneseq
      %v9112 = vshrl.u32 %v9111, 7
      %v9113 = vsub.s32 %v9110, %v9112
      %v9114 = vrot.slane %v9106, %v9113
      %v9116 = vunpack.c.l.s4 1966171168
      %v9117 = vunpack.c.0.s8 %v9116
      %v9118 = vlaneseq
      %v9119 = vshrl.u32 %v9118, 7
      %v9120 = vsub.s32 %v9117, %v9119
      %v9121 = vrot.slane %v9107, %v9120
      %v9122 = vcombine.low %v9114, %v9121
      %v9125 = vcombine.low %v8390, %v8392
      %v9127 = vunpack.c.l.s4 1966171168
      %v9128 = vunpack.c.0.s8 %v9127
      %v9129 = vlaneseq
      %v9130 = vshrl.u32 %v9129, 7
      %v9131 = vsub.s32 %v9128, %v9130
      %v9132 = vrot.slane %v9125, %v9131
      %v9133 = vcombine.low %v8938, %v8945
      %v9134 = vcombine.low %v8952, %v9132
      %v9136 = vunpack.c.l.s4 1966171168
      %v9137 = vunpack.c.0.s8 %v9136
      %v9138 = vlaneseq
      %v9139 = vshrl.u32 %v9138, 7
      %v9140 = vsub.s32 %v9137, %v9139
      %v9141 = vrot.slane %v9133, %v9140
      %v9143 = vunpack.c.l.s4 1966171168
      %v9144 = vunpack.c.0.s8 %v9143
      %v9145 = vlaneseq
      %v9146 = vshrl.u32 %v9145, 7
      %v9147 = vsub.s32 %v9144, %v9146
      %v9148 = vrot.slane %v9134, %v9147
      %v9149 = vcombine.low %v9141, %v9148
      %v9150 = vcombine.low %v8492, %v8507
      %v9152 = vunpack.c.l.s4 1966171168
      %v9153 = vunpack.c.0.s8 %v9152
      %v9154 = vlaneseq
      %v9155 = vshrl.u32 %v9154, 7
      %v9156 = vsub.s32 %v9153, %v9155
      %v9157 = vrot.slane %v9150, %v9156
      %v9158 = vcombine.low %v8987, %v8994
      %v9159 = vcombine.low %v9001, %v9157
      %v9161 = vunpack.c.l.s4 1966171168
      %v9162 = vunpack.c.0.s8 %v9161
      %v9163 = vlaneseq
      %v9164 = vshrl.u32 %v9163, 7
      %v9165 = vsub.s32 %v9162, %v9164
      %v9166 = vrot.slane %v9158, %v9165
      %v9168 = vunpack.c.l.s4 1966171168
      %v9169 = vunpack.c.0.s8 %v9168
      %v9170 = vlaneseq
      %v9171 = vshrl.u32 %v9170, 7
      %v9172 = vsub.s32 %v9169, %v9171
      %v9173 = vrot.slane %v9159, %v9172
      %v9174 = vcombine.low %v9166, %v9173
      %v9177 = vcombine.low %v8394, %v8418
      %v9179 = vunpack.c.l.s4 1966171168
      %v9180 = vunpack.c.0.s8 %v9179
      %v9181 = vlaneseq
      %v9182 = vshrl.u32 %v9181, 7
      %v9183 = vsub.s32 %v9180, %v9182
      %v9184 = vrot.slane %v9177, %v9183
      %v9185 = vcombine.low %v9028, %v9184
      %v9187 = vunpack.c.l.s4 1966171168
      %v9188 = vunpack.c.0.s8 %v9187
      %v9189 = vlaneseq
      %v9190 = vshrl.u32 %v9189, 7
      %v9191 = vsub.s32 %v9188, %v9190
      %v9192 = vrot.slane %v9185, %v9191
      %v9193 = vcombine.low %v8768, %v9192
      %v9194 = vcombine.low %v8514, %v8515
      %v9196 = vunpack.c.l.s4 1966171168
      %v9197 = vunpack.c.0.s8 %v9196
      %v9198 = vlaneseq
      %v9199 = vshrl.u32 %v9198, 7
      %v9200 = vsub.s32 %v9197, %v9199
      %v9201 = vrot.slane %v9194, %v9200
      %v9202 = vcombine.low %v9053, %v9201
      %v9204 = vunpack.c.l.s4 1966171168
      %v9205 = vunpack.c.0.s8 %v9204
      %v9206 = vlaneseq
      %v9207 = vshrl.u32 %v9206, 7
      %v9208 = vsub.s32 %v9205, %v9207
      %v9209 = vrot.slane %v9202, %v9208
      %v9210 = vcombine.low %v8817, %v9209
      %v9213 = vcombine.low %v8695, %v8703
      %v9215 = vunpack.c.l.s4 1966171168
      %v9216 = vunpack.c.0.s8 %v9215
      %v9217 = vlaneseq
      %v9218 = vshrl.u32 %v9217, 7
      %v9219 = vsub.s32 %v9216, %v9218
      %v9220 = vrot.slane %v9213, %v9219
      %v9221 = vcombine.low %v9080, %v9220
      %v9223 = vunpack.c.l.s4 1966171168
      %v9224 = vunpack.c.0.s8 %v9223
      %v9225 = vlaneseq
      %v9226 = vshrl.u32 %v9225, 7
      %v9227 = vsub.s32 %v9224, %v9226
      %v9228 = vrot.slane %v9221, %v9227
      %v9229 = vcombine.low %v8868, %v9228
      %v9230 = vcombine.low %v8712, %v8720
      %v9232 = vunpack.c.l.s4 1966171168
      %v9233 = vunpack.c.0.s8 %v9232
      %v9234 = vlaneseq
      %v9235 = vshrl.u32 %v9234, 7
      %v9236 = vsub.s32 %v9233, %v9235
      %v9237 = vrot.slane %v9230, %v9236
      %v9238 = vcombine.low %v9105, %v9237
      %v9240 = vunpack.c.l.s4 1966171168
      %v9241 = vunpack.c.0.s8 %v9240
      %v9242 = vlaneseq
      %v9243 = vshrl.u32 %v9242, 7
      %v9244 = vsub.s32 %v9241, %v9243
      %v9245 = vrot.slane %v9238, %v9244
      %v9246 = vcombine.low %v8917, %v9245
      %v9249 = vcombine.low %v8418, %v8432
      %v9251 = vunpack.c.l.s4 1966171168
      %v9252 = vunpack.c.0.s8 %v9251
      %v9253 = vlaneseq
      %v9254 = vshrl.u32 %v9253, 7
      %v9255 = vsub.s32 %v9252, %v9254
      %v9256 = vrot.slane %v9249, %v9255
      %v9257 = vcombine.low %v9132, %v9256
      %v9259 = vunpack.c.l.s4 1966171168
      %v9260 = vunpack.c.0.s8 %v9259
      %v9261 = vlaneseq
      %v9262 = vshrl.u32 %v9261, 7
      %v9263 = vsub.s32 %v9260, %v9262
      %v9264 = vrot.slane %v9257, %v9263
      %v9265 = vcombine.low %v8968, %v9264
      %v9266 = vcombine.low %v8515, %v8516
      %v9268 = vunpack.c.l.s4 1966171168
      %v9269 = vunpack.c.0.s8 %v9268
      %v9270 = vlaneseq
      %v9271 = vshrl.u32 %v9270, 7
      %v9272 = vsub.s32 %v9269, %v9271
      %v9273 = vrot.slane %v9266, %v9272
      %v9274 = vcombine.low %v9157, %v9273
      %v9276 = vunpack.c.l.s4 1966171168
      %v9277 = vunpack.c.0.s8 %v9276
      %v9278 = vlaneseq
      %v9279 = vshrl.u32 %v9278, 7
      %v9280 = vsub.s32 %v9277, %v9279
      %v9281 = vrot.slane %v9274, %v9280
      %v9282 = vcombine.low %v9017, %v9281
      %v9285 = vld [vmem:[%s567] sm:$0xff]
      %v9286 = vld [vmem:[%s567 + $0x8] sm:$0xff]
      %v9287 = vld [vmem:[%s567 + $0x10] sm:$0xff]
      %v9288 = vld [vmem:[%s567 + $0x18] sm:$0xff]
      %v9289 = vld [vmem:[%s567 + $0x20] sm:$0xff]
      %v9290 = vld [vmem:[%s567 + $0x28] sm:$0xff]
      %v9291 = vld [vmem:[%s567 + $0x30] sm:$0xff]
      %v9292 = vld [vmem:[%s567 + $0x38] sm:$0xff]
      %v9293 = vld [vmem:[%s567 + $0x40] sm:$0xff]
      %v9294 = vld [vmem:[%s567 + $0x48] sm:$0xff]
      %v9295 = vld [vmem:[%s567 + $0x50] sm:$0xff]
      %v9296 = vld [vmem:[%s567 + $0x58] sm:$0xff]
      %v9297 = vld [vmem:[%s567 + $0x60] sm:$0xff]
      %v9298 = vld [vmem:[%s567 + $0x68] sm:$0xff]
      %v9299 = vld [vmem:[%s567 + $0x70] sm:$0xff]
      %v9300 = vld [vmem:[%s567 + $0x78] sm:$0xff]
      %v9301 = vld [vmem:[%s567 + $0x80] sm:$0xff]
      %v9302 = vld [vmem:[%s567 + $0x88] sm:$0xff]
      %v9303 = vld [vmem:[%s567 + $0x90] sm:$0xff]
      %v9304 = vld [vmem:[%s567 + $0x98] sm:$0xff]
      %v9305 = vld [vmem:[%s567 + $0xa0] sm:$0xff]
      %v9306 = vld [vmem:[%s567 + $0xa8] sm:$0xff]
      %v9307 = vld [vmem:[%s567 + $0xb0] sm:$0xff]
      %v9308 = vld [vmem:[%s567 + $0xb8] sm:$0xff]
      %v9309 = vld [vmem:[%s567 + $0xc0] sm:$0xff]
      %v9310 = vld [vmem:[%s567 + $0xc8] sm:$0xff]
      %v9311 = vld [vmem:[%s567 + $0xd0] sm:$0xff]
      %v9312 = vld [vmem:[%s567 + $0xd8] sm:$0xff]
      %v9313 = vld [vmem:[%s567 + $0xe0] sm:$0xff]
      %v9314 = vld [vmem:[%s567 + $0xe8] sm:$0xff]
      %v9315 = vld [vmem:[%s567 + $0xf0] sm:$0xff]
      %v9316 = vld [vmem:[%s567 + $0xf8] sm:$0xff]
      %v9317 = vld [vmem:[%s567 + $0x100] sm:$0xff]
      %v9318 = vld [vmem:[%s567 + $0x108] sm:$0xff]
      %v9319 = vld [vmem:[%s567 + $0x110] sm:$0xff]
      %v9320 = vld [vmem:[%s567 + $0x118] sm:$0xff]
      %v9321 = vld [vmem:[%s567 + $0x120] sm:$0xff]
      %v9322 = vld [vmem:[%s567 + $0x128] sm:$0xff]
      %v9323 = vld [vmem:[%s567 + $0x130] sm:$0xff]
      %v9324 = vld [vmem:[%s567 + $0x138] sm:$0xff]
      %v9325 = vld [vmem:[%s567 + $0x140] sm:$0xff]
      %v9326 = vld [vmem:[%s567 + $0x148] sm:$0xff]
      %v9327 = vld [vmem:[%s567 + $0x150] sm:$0xff]
      %v9328 = vld [vmem:[%s567 + $0x158] sm:$0xff]
      %v9329 = vld [vmem:[%s567 + $0x160] sm:$0xff]
      %v9330 = vld [vmem:[%s567 + $0x168] sm:$0xff]
      %v9331 = vld [vmem:[%s567 + $0x170] sm:$0xff]
      %v9332 = vld [vmem:[%s567 + $0x178] sm:$0xff]
      %v9333 = vld [vmem:[%s567 + $0x180] sm:$0xff]
      %v9334 = vld [vmem:[%s567 + $0x188] sm:$0xff]
      %v9335 = vld [vmem:[%s567 + $0x190] sm:$0xff]
      %v9336 = vld [vmem:[%s567 + $0x198] sm:$0xff]
      %v9337 = vld [vmem:[%s567 + $0x1a0] sm:$0xff]
      %v9338 = vld [vmem:[%s567 + $0x1a8] sm:$0xff]
      %v9339 = vld [vmem:[%s567 + $0x1b0] sm:$0xff]
      %v9340 = vld [vmem:[%s567 + $0x1b8] sm:$0xff]
      %v9341 = vld [vmem:[%s567 + $0x1c0] sm:$0xff]
      %v9342 = vld [vmem:[%s567 + $0x1c8] sm:$0xff]
      %v9343 = vld [vmem:[%s567 + $0x1d0] sm:$0xff]
      %v9344 = vld [vmem:[%s567 + $0x1d8] sm:$0xff]
      %v9345 = vld [vmem:[%s567 + $0x1e0] sm:$0xff]
      %v9346 = vld [vmem:[%s567 + $0x1e8] sm:$0xff]
      %v9347 = vld [vmem:[%s567 + $0x1f0] sm:$0xff]
      %v9348 = vld [vmem:[%s567 + $0x1f8] sm:$0xff]
      %v9349 = vld [vmem:[%s567 + $0x200] sm:$0xff]
      %v9350 = vld [vmem:[%s567 + $0x208] sm:$0xff]
      %v9351 = vld [vmem:[%s567 + $0x210] sm:$0xff]
      %v9352 = vld [vmem:[%s567 + $0x218] sm:$0xff]
      %v9353 = vld [vmem:[%s567 + $0x220] sm:$0xff]
      %v9354 = vld [vmem:[%s567 + $0x228] sm:$0xff]
      %v9355 = vld [vmem:[%s567 + $0x230] sm:$0xff]
      %v9356 = vld [vmem:[%s567 + $0x238] sm:$0xff]
      %v9357 = vld [vmem:[%s567 + $0x240] sm:$0xff]
      %v9358 = vld [vmem:[%s567 + $0x248] sm:$0xff]
      %v9359 = vld [vmem:[%s567 + $0x250] sm:$0xff]
      %v9360 = vld [vmem:[%s567 + $0x258] sm:$0xff]
      %v9361 = vld [vmem:[%s567 + $0x260] sm:$0xff]
      %v9362 = vld [vmem:[%s567 + $0x268] sm:$0xff]
      %v9363 = vld [vmem:[%s567 + $0x270] sm:$0xff]
      %v9364 = vld [vmem:[%s567 + $0x278] sm:$0xff]
      %v9365 = vld [vmem:[%s567 + $0x280] sm:$0xff]
      %v9366 = vld [vmem:[%s567 + $0x288] sm:$0xff]
      %v9367 = vld [vmem:[%s567 + $0x290] sm:$0xff]
      %v9368 = vld [vmem:[%s567 + $0x298] sm:$0xff]
      %v9369 = vld [vmem:[%s567 + $0x2a0] sm:$0xff]
      %v9370 = vld [vmem:[%s567 + $0x2a8] sm:$0xff]
      %v9371 = vld [vmem:[%s567 + $0x2b0] sm:$0xff]
      %v9372 = vld [vmem:[%s567 + $0x2b8] sm:$0xff]
      %v9373 = vld [vmem:[%s567 + $0x2c0] sm:$0xff]
      %v9374 = vld [vmem:[%s567 + $0x2c8] sm:$0xff]
      %v9375 = vld [vmem:[%s567 + $0x2d0] sm:$0xff]
      %v9376 = vld [vmem:[%s567 + $0x2d8] sm:$0xff]
      %v9377 = vld [vmem:[%s567 + $0x2e0] sm:$0xff]
      %v9378 = vld [vmem:[%s567 + $0x2e8] sm:$0xff]
      %v9379 = vld [vmem:[%s567 + $0x2f0] sm:$0xff]
      %v9380 = vld [vmem:[%s567 + $0x2f8] sm:$0xff]
      %v9381 = vld [vmem:[%s567 + $0x300] sm:$0xff]
      %v9382 = vld [vmem:[%s567 + $0x308] sm:$0xff]
      %v9383 = vld [vmem:[%s567 + $0x310] sm:$0xff]
      %v9384 = vld [vmem:[%s567 + $0x318] sm:$0xff]
      %v9385 = vld [vmem:[%s567 + $0x320] sm:$0xff]
      %v9386 = vld [vmem:[%s567 + $0x328] sm:$0xff]
      %v9387 = vld [vmem:[%s567 + $0x330] sm:$0xff]
      %v9388 = vld [vmem:[%s567 + $0x338] sm:$0xff]
      %v9389 = vld [vmem:[%s567 + $0x340] sm:$0xff]
      %v9390 = vld [vmem:[%s567 + $0x348] sm:$0xff]
      %v9391 = vld [vmem:[%s567 + $0x350] sm:$0xff]
      %v9392 = vld [vmem:[%s567 + $0x358] sm:$0xff]
      %v9393 = vld [vmem:[%s567 + $0x360] sm:$0xff]
      %v9394 = vld [vmem:[%s567 + $0x368] sm:$0xff]
      %v9395 = vld [vmem:[%s567 + $0x370] sm:$0xff]
      %v9396 = vld [vmem:[%s567 + $0x378] sm:$0xff]
      %v9397 = vld [vmem:[%s567 + $0x380] sm:$0xff]
      %v9398 = vld [vmem:[%s567 + $0x388] sm:$0xff]
      %v9399 = vld [vmem:[%s567 + $0x390] sm:$0xff]
      %v9400 = vld [vmem:[%s567 + $0x398] sm:$0xff]
      %v9401 = vld [vmem:[%s567 + $0x3a0] sm:$0xff]
      %v9402 = vld [vmem:[%s567 + $0x3a8] sm:$0xff]
      %v9403 = vld [vmem:[%s567 + $0x3b0] sm:$0xff]
      %v9404 = vld [vmem:[%s567 + $0x3b8] sm:$0xff]
      %v9405 = vld [vmem:[%s567 + $0x3c0] sm:$0xff]
      %v9406 = vld [vmem:[%s567 + $0x3c8] sm:$0xff]
      %v9407 = vld [vmem:[%s567 + $0x3d0] sm:$0xff]
      %v9408 = vld [vmem:[%s567 + $0x3d8] sm:$0xff]
      %v9409 = vld [vmem:[%s567 + $0x3e0] sm:$0xff]
      %v9410 = vld [vmem:[%s567 + $0x3e8] sm:$0xff]
      %v9411 = vld [vmem:[%s567 + $0x3f0] sm:$0xff]
      %v9412 = vld [vmem:[%s567 + $0x3f8] sm:$0xff]
      %v9413 = vld [vmem:[%s567 + $0x400] sm:$0xff]
      %v9414 = vld [vmem:[%s567 + $0x408] sm:$0xff]
      %v9415 = vld [vmem:[%s567 + $0x410] sm:$0xff]
      %v9416 = vld [vmem:[%s567 + $0x418] sm:$0xff]
      %v9417 = vld [vmem:[%s567 + $0x420] sm:$0xff]
      %v9418 = vld [vmem:[%s567 + $0x428] sm:$0xff]
      %v9419 = vld [vmem:[%s567 + $0x430] sm:$0xff]
      %v9420 = vld [vmem:[%s567 + $0x438] sm:$0xff]
      %v9421 = vld [vmem:[%s567 + $0x440] sm:$0xff]
      %v9422 = vld [vmem:[%s567 + $0x448] sm:$0xff]
      %v9423 = vld [vmem:[%s567 + $0x450] sm:$0xff]
      %v9424 = vld [vmem:[%s567 + $0x458] sm:$0xff]
      %v9425 = vld [vmem:[%s567 + $0x460] sm:$0xff]
      %v9426 = vld [vmem:[%s567 + $0x468] sm:$0xff]
      %v9427 = vld [vmem:[%s567 + $0x470] sm:$0xff]
      %v9428 = vld [vmem:[%s567 + $0x478] sm:$0xff]
      %v9429 = vld [vmem:[%s571] sm:$0x3]
      %v9431 = vlaneseq
      %v9432 = vshrl.u32 %v9431, 7
      %v9433 = vsub.s32 0, %v9432
      %v9434 = vrot.slane %v9429, %v9433
      %v9435 = vlaneseq
      %v9436 = vshrl.u32 %v9435, 7
      %v9437 = vsub.s32 1, %v9436
      %v9438 = vrot.slane %v9429, %v9437
      %v9585 = vunpack.c.l.b16 %v9285
      %v9586 = vunpack.c.h.b16 %v9285
      %v9587 = vunpack.c.l.b16 %v9286
      %v9588 = vunpack.c.h.b16 %v9286
      %v9589 = vunpack.c.l.b16 %v9287
      %v9590 = vunpack.c.h.b16 %v9287
      %v9591 = vunpack.c.l.b16 %v9288
      %v9592 = vunpack.c.h.b16 %v9288
      %v9593 = vunpack.c.l.b16 %v9289
      %v9594 = vunpack.c.h.b16 %v9289
      %v9595 = vunpack.c.l.b16 %v9290
      %v9596 = vunpack.c.h.b16 %v9290
      %v9597 = vunpack.c.l.b16 %v9291
      %v9598 = vunpack.c.h.b16 %v9291
      %v9599 = vunpack.c.l.b16 %v9292
      %v9600 = vunpack.c.h.b16 %v9292
      %v9601 = vunpack.c.l.b16 %v9293
      %v9602 = vunpack.c.h.b16 %v9293
      %v9603 = vunpack.c.l.b16 %v9294
      %v9604 = vunpack.c.h.b16 %v9294
      %v9605 = vunpack.c.l.b16 %v9295
      %v9606 = vunpack.c.h.b16 %v9295
      %v9607 = vunpack.c.l.b16 %v9296
      %v9608 = vunpack.c.h.b16 %v9296
      %v9609 = vunpack.c.l.b16 %v9297
      %v9610 = vunpack.c.h.b16 %v9297
      %v9611 = vunpack.c.l.b16 %v9298
      %v9612 = vunpack.c.h.b16 %v9298
      %v9613 = vunpack.c.l.b16 %v9299
      %v9614 = vunpack.c.h.b16 %v9299
      %v9615 = vunpack.c.l.b16 %v9300
      %v9616 = vunpack.c.h.b16 %v9300
      %v9617 = vunpack.c.l.b16 %v9301
      %v9618 = vunpack.c.h.b16 %v9301
      %v9619 = vunpack.c.l.b16 %v9302
      %v9620 = vunpack.c.h.b16 %v9302
      %v9621 = vunpack.c.l.b16 %v9303
      %v9622 = vunpack.c.h.b16 %v9303
      %v9623 = vunpack.c.l.b16 %v9304
      %v9624 = vunpack.c.h.b16 %v9304
      %v9625 = vunpack.c.l.b16 %v9305
      %v9626 = vunpack.c.h.b16 %v9305
      %v9627 = vunpack.c.l.b16 %v9306
      %v9628 = vunpack.c.h.b16 %v9306
      %v9629 = vunpack.c.l.b16 %v9307
      %v9630 = vunpack.c.h.b16 %v9307
      %v9631 = vunpack.c.l.b16 %v9308
      %v9632 = vunpack.c.h.b16 %v9308
      %v9633 = vunpack.c.l.b16 %v9309
      %v9634 = vunpack.c.h.b16 %v9309
      %v9635 = vunpack.c.l.b16 %v9310
      %v9636 = vunpack.c.h.b16 %v9310
      %v9637 = vunpack.c.l.b16 %v9311
      %v9638 = vunpack.c.h.b16 %v9311
      %v9639 = vunpack.c.l.b16 %v9312
      %v9640 = vunpack.c.h.b16 %v9312
      %v9641 = vunpack.c.l.b16 %v9313
      %v9642 = vunpack.c.h.b16 %v9313
      %v9643 = vunpack.c.l.b16 %v9314
      %v9644 = vunpack.c.h.b16 %v9314
      %v9645 = vunpack.c.l.b16 %v9315
      %v9646 = vunpack.c.h.b16 %v9315
      %v9647 = vunpack.c.l.b16 %v9316
      %v9648 = vunpack.c.h.b16 %v9316
      %v9649 = vunpack.c.l.b16 %v9317
      %v9650 = vunpack.c.h.b16 %v9317
      %v9651 = vunpack.c.l.b16 %v9318
      %v9652 = vunpack.c.h.b16 %v9318
      %v9653 = vunpack.c.l.b16 %v9319
      %v9654 = vunpack.c.h.b16 %v9319
      %v9655 = vunpack.c.l.b16 %v9320
      %v9656 = vunpack.c.h.b16 %v9320
      %v9657 = vunpack.c.l.b16 %v9321
      %v9658 = vunpack.c.h.b16 %v9321
      %v9659 = vunpack.c.l.b16 %v9322
      %v9660 = vunpack.c.h.b16 %v9322
      %v9661 = vunpack.c.l.b16 %v9323
      %v9662 = vunpack.c.h.b16 %v9323
      %v9663 = vunpack.c.l.b16 %v9324
      %v9664 = vunpack.c.h.b16 %v9324
      %v9665 = vunpack.c.l.b16 %v9325
      %v9666 = vunpack.c.h.b16 %v9325
      %v9667 = vunpack.c.l.b16 %v9326
      %v9668 = vunpack.c.h.b16 %v9326
      %v9669 = vunpack.c.l.b16 %v9327
      %v9670 = vunpack.c.h.b16 %v9327
      %v9671 = vunpack.c.l.b16 %v9328
      %v9672 = vunpack.c.h.b16 %v9328
      %v9673 = vunpack.c.l.b16 %v9329
      %v9674 = vunpack.c.h.b16 %v9329
      %v9675 = vunpack.c.l.b16 %v9330
      %v9676 = vunpack.c.h.b16 %v9330
      %v9677 = vunpack.c.l.b16 %v9331
      %v9678 = vunpack.c.h.b16 %v9331
      %v9679 = vunpack.c.l.b16 %v9332
      %v9680 = vunpack.c.h.b16 %v9332
      %v9681 = vunpack.c.l.b16 %v9333
      %v9682 = vunpack.c.h.b16 %v9333
      %v9683 = vunpack.c.l.b16 %v9334
      %v9684 = vunpack.c.h.b16 %v9334
      %v9685 = vunpack.c.l.b16 %v9335
      %v9686 = vunpack.c.h.b16 %v9335
      %v9687 = vunpack.c.l.b16 %v9336
      %v9688 = vunpack.c.h.b16 %v9336
      %v9689 = vunpack.c.l.b16 %v9337
      %v9690 = vunpack.c.h.b16 %v9337
      %v9691 = vunpack.c.l.b16 %v9338
      %v9692 = vunpack.c.h.b16 %v9338
      %v9693 = vunpack.c.l.b16 %v9339
      %v9694 = vunpack.c.h.b16 %v9339
      %v9695 = vunpack.c.l.b16 %v9340
      %v9696 = vunpack.c.h.b16 %v9340
      %v9697 = vunpack.c.l.b16 %v9341
      %v9698 = vunpack.c.h.b16 %v9341
      %v9699 = vunpack.c.l.b16 %v9342
      %v9700 = vunpack.c.h.b16 %v9342
      %v9701 = vunpack.c.l.b16 %v9343
      %v9702 = vunpack.c.h.b16 %v9343
      %v9703 = vunpack.c.l.b16 %v9344
      %v9704 = vunpack.c.h.b16 %v9344
      %v9705 = vunpack.c.l.b16 %v9345
      %v9706 = vunpack.c.h.b16 %v9345
      %v9707 = vunpack.c.l.b16 %v9346
      %v9708 = vunpack.c.h.b16 %v9346
      %v9709 = vunpack.c.l.b16 %v9347
      %v9710 = vunpack.c.h.b16 %v9347
      %v9711 = vunpack.c.l.b16 %v9348
      %v9712 = vunpack.c.h.b16 %v9348
      %v9713 = vunpack.c.l.b16 %v9349
      %v9714 = vunpack.c.h.b16 %v9349
      %v9715 = vunpack.c.l.b16 %v9350
      %v9716 = vunpack.c.h.b16 %v9350
      %v9717 = vunpack.c.l.b16 %v9351
      %v9718 = vunpack.c.h.b16 %v9351
      %v9719 = vunpack.c.l.b16 %v9352
      %v9720 = vunpack.c.h.b16 %v9352
      %v9721 = vunpack.c.l.b16 %v9353
      %v9722 = vunpack.c.h.b16 %v9353
      %v9723 = vunpack.c.l.b16 %v9354
      %v9724 = vunpack.c.h.b16 %v9354
      %v9725 = vunpack.c.l.b16 %v9355
      %v9726 = vunpack.c.h.b16 %v9355
      %v9727 = vunpack.c.l.b16 %v9356
      %v9728 = vunpack.c.h.b16 %v9356
      %v9729 = vunpack.c.l.b16 %v9357
      %v9730 = vunpack.c.h.b16 %v9357
      %v9731 = vunpack.c.l.b16 %v9358
      %v9732 = vunpack.c.h.b16 %v9358
      %v9733 = vunpack.c.l.b16 %v9359
      %v9734 = vunpack.c.h.b16 %v9359
      %v9735 = vunpack.c.l.b16 %v9360
      %v9736 = vunpack.c.h.b16 %v9360
      %v9737 = vunpack.c.l.b16 %v9361
      %v9738 = vunpack.c.h.b16 %v9361
      %v9739 = vunpack.c.l.b16 %v9362
      %v9740 = vunpack.c.h.b16 %v9362
      %v9741 = vunpack.c.l.b16 %v9363
      %v9742 = vunpack.c.h.b16 %v9363
      %v9743 = vunpack.c.l.b16 %v9364
      %v9744 = vunpack.c.h.b16 %v9364
      %v9745 = vunpack.c.l.b16 %v9365
      %v9746 = vunpack.c.h.b16 %v9365
      %v9747 = vunpack.c.l.b16 %v9366
      %v9748 = vunpack.c.h.b16 %v9366
      %v9749 = vunpack.c.l.b16 %v9367
      %v9750 = vunpack.c.h.b16 %v9367
      %v9751 = vunpack.c.l.b16 %v9368
      %v9752 = vunpack.c.h.b16 %v9368
      %v9753 = vunpack.c.l.b16 %v9369
      %v9754 = vunpack.c.h.b16 %v9369
      %v9755 = vunpack.c.l.b16 %v9370
      %v9756 = vunpack.c.h.b16 %v9370
      %v9757 = vunpack.c.l.b16 %v9371
      %v9758 = vunpack.c.h.b16 %v9371
      %v9759 = vunpack.c.l.b16 %v9372
      %v9760 = vunpack.c.h.b16 %v9372
      %v9761 = vunpack.c.l.b16 %v9373
      %v9762 = vunpack.c.h.b16 %v9373
      %v9763 = vunpack.c.l.b16 %v9374
      %v9764 = vunpack.c.h.b16 %v9374
      %v9765 = vunpack.c.l.b16 %v9375
      %v9766 = vunpack.c.h.b16 %v9375
      %v9767 = vunpack.c.l.b16 %v9376
      %v9768 = vunpack.c.h.b16 %v9376
      %v9769 = vunpack.c.l.b16 %v9377
      %v9770 = vunpack.c.h.b16 %v9377
      %v9771 = vunpack.c.l.b16 %v9378
      %v9772 = vunpack.c.h.b16 %v9378
      %v9773 = vunpack.c.l.b16 %v9379
      %v9774 = vunpack.c.h.b16 %v9379
      %v9775 = vunpack.c.l.b16 %v9380
      %v9776 = vunpack.c.h.b16 %v9380
      %v9777 = vunpack.c.l.b16 %v9381
      %v9778 = vunpack.c.h.b16 %v9381
      %v9779 = vunpack.c.l.b16 %v9382
      %v9780 = vunpack.c.h.b16 %v9382
      %v9781 = vunpack.c.l.b16 %v9383
      %v9782 = vunpack.c.h.b16 %v9383
      %v9783 = vunpack.c.l.b16 %v9384
      %v9784 = vunpack.c.h.b16 %v9384
      %v9785 = vunpack.c.l.b16 %v9385
      %v9786 = vunpack.c.h.b16 %v9385
      %v9787 = vunpack.c.l.b16 %v9386
      %v9788 = vunpack.c.h.b16 %v9386
      %v9789 = vunpack.c.l.b16 %v9387
      %v9790 = vunpack.c.h.b16 %v9387
      %v9791 = vunpack.c.l.b16 %v9388
      %v9792 = vunpack.c.h.b16 %v9388
      %v9793 = vunpack.c.l.b16 %v9389
      %v9794 = vunpack.c.h.b16 %v9389
      %v9795 = vunpack.c.l.b16 %v9390
      %v9796 = vunpack.c.h.b16 %v9390
      %v9797 = vunpack.c.l.b16 %v9391
      %v9798 = vunpack.c.h.b16 %v9391
      %v9799 = vunpack.c.l.b16 %v9392
      %v9800 = vunpack.c.h.b16 %v9392
      %v9801 = vunpack.c.l.b16 %v9393
      %v9802 = vunpack.c.h.b16 %v9393
      %v9803 = vunpack.c.l.b16 %v9394
      %v9804 = vunpack.c.h.b16 %v9394
      %v9805 = vunpack.c.l.b16 %v9395
      %v9806 = vunpack.c.h.b16 %v9395
      %v9807 = vunpack.c.l.b16 %v9396
      %v9808 = vunpack.c.h.b16 %v9396
      %v9809 = vunpack.c.l.b16 %v9397
      %v9810 = vunpack.c.h.b16 %v9397
      %v9811 = vunpack.c.l.b16 %v9398
      %v9812 = vunpack.c.h.b16 %v9398
      %v9813 = vunpack.c.l.b16 %v9399
      %v9814 = vunpack.c.h.b16 %v9399
      %v9815 = vunpack.c.l.b16 %v9400
      %v9816 = vunpack.c.h.b16 %v9400
      %v9817 = vunpack.c.l.b16 %v9401
      %v9818 = vunpack.c.h.b16 %v9401
      %v9819 = vunpack.c.l.b16 %v9402
      %v9820 = vunpack.c.h.b16 %v9402
      %v9821 = vunpack.c.l.b16 %v9403
      %v9822 = vunpack.c.h.b16 %v9403
      %v9823 = vunpack.c.l.b16 %v9404
      %v9824 = vunpack.c.h.b16 %v9404
      %v9825 = vunpack.c.l.b16 %v9405
      %v9826 = vunpack.c.h.b16 %v9405
      %v9827 = vunpack.c.l.b16 %v9406
      %v9828 = vunpack.c.h.b16 %v9406
      %v9829 = vunpack.c.l.b16 %v9407
      %v9830 = vunpack.c.h.b16 %v9407
      %v9831 = vunpack.c.l.b16 %v9408
      %v9832 = vunpack.c.h.b16 %v9408
      %v9833 = vunpack.c.l.b16 %v9409
      %v9834 = vunpack.c.h.b16 %v9409
      %v9835 = vunpack.c.l.b16 %v9410
      %v9836 = vunpack.c.h.b16 %v9410
      %v9837 = vunpack.c.l.b16 %v9411
      %v9838 = vunpack.c.h.b16 %v9411
      %v9839 = vunpack.c.l.b16 %v9412
      %v9840 = vunpack.c.h.b16 %v9412
      %v9841 = vunpack.c.l.b16 %v9413
      %v9842 = vunpack.c.h.b16 %v9413
      %v9843 = vunpack.c.l.b16 %v9414
      %v9844 = vunpack.c.h.b16 %v9414
      %v9845 = vunpack.c.l.b16 %v9415
      %v9846 = vunpack.c.h.b16 %v9415
      %v9847 = vunpack.c.l.b16 %v9416
      %v9848 = vunpack.c.h.b16 %v9416
      %v9849 = vunpack.c.l.b16 %v9417
      %v9850 = vunpack.c.h.b16 %v9417
      %v9851 = vunpack.c.l.b16 %v9418
      %v9852 = vunpack.c.h.b16 %v9418
      %v9853 = vunpack.c.l.b16 %v9419
      %v9854 = vunpack.c.h.b16 %v9419
      %v9855 = vunpack.c.l.b16 %v9420
      %v9856 = vunpack.c.h.b16 %v9420
      %v9857 = vunpack.c.l.b16 %v9421
      %v9858 = vunpack.c.h.b16 %v9421
      %v9859 = vunpack.c.l.b16 %v9422
      %v9860 = vunpack.c.h.b16 %v9422
      %v9861 = vunpack.c.l.b16 %v9423
      %v9862 = vunpack.c.h.b16 %v9423
      %v9863 = vunpack.c.l.b16 %v9424
      %v9864 = vunpack.c.h.b16 %v9424
      %v9865 = vunpack.c.l.b16 %v9425
      %v9866 = vunpack.c.h.b16 %v9425
      %v9867 = vunpack.c.l.b16 %v9426
      %v9868 = vunpack.c.h.b16 %v9426
      %v9869 = vunpack.c.l.b16 %v9427
      %v9870 = vunpack.c.h.b16 %v9427
      %v9871 = vunpack.c.l.b16 %v9428
      %v9872 = vunpack.c.h.b16 %v9428
      %v9873 = vpack.c.b16 %v9587, %v9585
      %v9874 = vpack.c.b16 %v9588, %v9586
      %v9875 = vpack.c.b16 %v9591, %v9589
      %v9876 = vpack.c.b16 %v9592, %v9590
      %v9877 = vpack.c.b16 %v9595, %v9593
      %v9878 = vpack.c.b16 %v9596, %v9594
      %v9879 = vpack.c.b16 %v9599, %v9597
      %v9880 = vpack.c.b16 %v9600, %v9598
      %v9881 = vpack.c.b16 %v9603, %v9601
      %v9882 = vpack.c.b16 %v9604, %v9602
      %v9883 = vpack.c.b16 %v9607, %v9605
      %v9884 = vpack.c.b16 %v9608, %v9606
      %v9885 = vpack.c.b16 %v9611, %v9609
      %v9886 = vpack.c.b16 %v9612, %v9610
      %v9887 = vpack.c.b16 %v9615, %v9613
      %v9888 = vpack.c.b16 %v9616, %v9614
      %v9889 = vpack.c.b16 %v9619, %v9617
      %v9890 = vpack.c.b16 %v9620, %v9618
      %v9891 = vpack.c.b16 %v9623, %v9621
      %v9892 = vpack.c.b16 %v9624, %v9622
      %v9893 = vpack.c.b16 %v9627, %v9625
      %v9894 = vpack.c.b16 %v9628, %v9626
      %v9895 = vpack.c.b16 %v9631, %v9629
      %v9896 = vpack.c.b16 %v9632, %v9630
      %v9897 = vpack.c.b16 %v9635, %v9633
      %v9898 = vpack.c.b16 %v9636, %v9634
      %v9899 = vpack.c.b16 %v9639, %v9637
      %v9900 = vpack.c.b16 %v9640, %v9638
      %v9901 = vpack.c.b16 %v9643, %v9641
      %v9902 = vpack.c.b16 %v9644, %v9642
      %v9903 = vpack.c.b16 %v9647, %v9645
      %v9904 = vpack.c.b16 %v9648, %v9646
      %v9905 = vpack.c.b16 %v9651, %v9649
      %v9906 = vpack.c.b16 %v9652, %v9650
      %v9907 = vpack.c.b16 %v9655, %v9653
      %v9908 = vpack.c.b16 %v9656, %v9654
      %v9909 = vpack.c.b16 %v9659, %v9657
      %v9910 = vpack.c.b16 %v9660, %v9658
      %v9911 = vpack.c.b16 %v9663, %v9661
      %v9912 = vpack.c.b16 %v9664, %v9662
      %v9913 = vpack.c.b16 %v9667, %v9665
      %v9914 = vpack.c.b16 %v9668, %v9666
      %v9915 = vpack.c.b16 %v9671, %v9669
      %v9916 = vpack.c.b16 %v9672, %v9670
      %v9917 = vpack.c.b16 %v9675, %v9673
      %v9918 = vpack.c.b16 %v9676, %v9674
      %v9919 = vpack.c.b16 %v9679, %v9677
      %v9920 = vpack.c.b16 %v9680, %v9678
      %v9921 = vpack.c.b16 %v9683, %v9681
      %v9922 = vpack.c.b16 %v9684, %v9682
      %v9923 = vpack.c.b16 %v9687, %v9685
      %v9924 = vpack.c.b16 %v9688, %v9686
      %v9925 = vpack.c.b16 %v9691, %v9689
      %v9926 = vpack.c.b16 %v9692, %v9690
      %v9927 = vpack.c.b16 %v9695, %v9693
      %v9928 = vpack.c.b16 %v9696, %v9694
      %v9929 = vpack.c.b16 %v9699, %v9697
      %v9930 = vpack.c.b16 %v9700, %v9698
      %v9931 = vpack.c.b16 %v9703, %v9701
      %v9932 = vpack.c.b16 %v9704, %v9702
      %v9933 = vpack.c.b16 %v9707, %v9705
      %v9934 = vpack.c.b16 %v9708, %v9706
      %v9935 = vpack.c.b16 %v9711, %v9709
      %v9936 = vpack.c.b16 %v9712, %v9710
      %v9937 = vpack.c.b16 %v9715, %v9713
      %v9938 = vpack.c.b16 %v9716, %v9714
      %v9939 = vpack.c.b16 %v9719, %v9717
      %v9940 = vpack.c.b16 %v9720, %v9718
      %v9941 = vpack.c.b16 %v9723, %v9721
      %v9942 = vpack.c.b16 %v9724, %v9722
      %v9943 = vpack.c.b16 %v9727, %v9725
      %v9944 = vpack.c.b16 %v9728, %v9726
      %v9945 = vpack.c.b16 %v9731, %v9729
      %v9946 = vpack.c.b16 %v9732, %v9730
      %v9947 = vpack.c.b16 %v9735, %v9733
      %v9948 = vpack.c.b16 %v9736, %v9734
      %v9949 = vpack.c.b16 %v9739, %v9737
      %v9950 = vpack.c.b16 %v9740, %v9738
      %v9951 = vpack.c.b16 %v9743, %v9741
      %v9952 = vpack.c.b16 %v9744, %v9742
      %v9953 = vpack.c.b16 %v9747, %v9745
      %v9954 = vpack.c.b16 %v9748, %v9746
      %v9955 = vpack.c.b16 %v9751, %v9749
      %v9956 = vpack.c.b16 %v9752, %v9750
      %v9957 = vpack.c.b16 %v9755, %v9753
      %v9958 = vpack.c.b16 %v9756, %v9754
      %v9959 = vpack.c.b16 %v9759, %v9757
      %v9960 = vpack.c.b16 %v9760, %v9758
      %v9961 = vpack.c.b16 %v9763, %v9761
      %v9962 = vpack.c.b16 %v9764, %v9762
      %v9963 = vpack.c.b16 %v9767, %v9765
      %v9964 = vpack.c.b16 %v9768, %v9766
      %v9965 = vpack.c.b16 %v9771, %v9769
      %v9966 = vpack.c.b16 %v9772, %v9770
      %v9967 = vpack.c.b16 %v9775, %v9773
      %v9968 = vpack.c.b16 %v9776, %v9774
      %v9969 = vpack.c.b16 %v9779, %v9777
      %v9970 = vpack.c.b16 %v9780, %v9778
      %v9971 = vpack.c.b16 %v9783, %v9781
      %v9972 = vpack.c.b16 %v9784, %v9782
      %v9973 = vpack.c.b16 %v9787, %v9785
      %v9974 = vpack.c.b16 %v9788, %v9786
      %v9975 = vpack.c.b16 %v9791, %v9789
      %v9976 = vpack.c.b16 %v9792, %v9790
      %v9977 = vpack.c.b16 %v9795, %v9793
      %v9978 = vpack.c.b16 %v9796, %v9794
      %v9979 = vpack.c.b16 %v9799, %v9797
      %v9980 = vpack.c.b16 %v9800, %v9798
      %v9981 = vpack.c.b16 %v9803, %v9801
      %v9982 = vpack.c.b16 %v9804, %v9802
      %v9983 = vpack.c.b16 %v9807, %v9805
      %v9984 = vpack.c.b16 %v9808, %v9806
      %v9985 = vpack.c.b16 %v9811, %v9809
      %v9986 = vpack.c.b16 %v9812, %v9810
      %v9987 = vpack.c.b16 %v9815, %v9813
      %v9988 = vpack.c.b16 %v9816, %v9814
      %v9989 = vpack.c.b16 %v9819, %v9817
      %v9990 = vpack.c.b16 %v9820, %v9818
      %v9991 = vpack.c.b16 %v9823, %v9821
      %v9992 = vpack.c.b16 %v9824, %v9822
      %v9993 = vpack.c.b16 %v9827, %v9825
      %v9994 = vpack.c.b16 %v9828, %v9826
      %v9995 = vpack.c.b16 %v9831, %v9829
      %v9996 = vpack.c.b16 %v9832, %v9830
      %v9997 = vpack.c.b16 %v9835, %v9833
      %v9998 = vpack.c.b16 %v9836, %v9834
      %v9999 = vpack.c.b16 %v9839, %v9837
      %v10000 = vpack.c.b16 %v9840, %v9838
      %v10001 = vpack.c.b16 %v9843, %v9841
      %v10002 = vpack.c.b16 %v9844, %v9842
      %v10003 = vpack.c.b16 %v9847, %v9845
      %v10004 = vpack.c.b16 %v9848, %v9846
      %v10005 = vpack.c.b16 %v9851, %v9849
      %v10006 = vpack.c.b16 %v9852, %v9850
      %v10007 = vpack.c.b16 %v9855, %v9853
      %v10008 = vpack.c.b16 %v9856, %v9854
      %v10009 = vpack.c.b16 %v9859, %v9857
      %v10010 = vpack.c.b16 %v9860, %v9858
      %v10011 = vpack.c.b16 %v9863, %v9861
      %v10012 = vpack.c.b16 %v9864, %v9862
      %v10013 = vpack.c.b16 %v9867, %v9865
      %v10014 = vpack.c.b16 %v9868, %v9866
      %v10015 = vpack.c.b16 %v9871, %v9869
      %v10016 = vpack.c.b16 %v9872, %v9870
      %10161 = vmatprep.subr.bf16.mxu0 %v9874
      %10162 = vmatpush1.bf16.msra.mxu0 %v9873
      %10163 = vmatprep.subr.bf16.mxu0 %v9876
      %10164 = vmatpush1.bf16.msra.mxu0 %v9875
      %10165 = vmatprep.subr.bf16.mxu0 %v9878
      %10166 = vmatpush1.bf16.msra.mxu0 %v9877
      %10167 = vmatprep.subr.bf16.mxu0 %v9880
      %10168 = vmatpush1.bf16.msra.mxu0 %v9879
      %10169 = vmatprep.subr.bf16.mxu0 %v9882
      %10170 = vmatpush1.bf16.msra.mxu0 %v9881
      %10171 = vmatprep.subr.bf16.mxu0 %v9884
      %10172 = vmatpush1.bf16.msra.mxu0 %v9883
      %10173 = vmatprep.subr.bf16.mxu0 %v9886
      %10174 = vmatpush1.bf16.msra.mxu0 %v9885
      %10175 = vmatprep.subr.bf16.mxu0 %v9888
      %10176 = vmatpush1.bf16.msra.mxu0 %v9887
      %10177 = vmatprep.subr.bf16.mxu0 %v9890
      %10178 = vmatpush1.bf16.msra.mxu0 %v9889
      %10179 = vmatprep.subr.bf16.mxu0 %v9892
      %10180 = vmatpush1.bf16.msra.mxu0 %v9891
      %10181 = vmatprep.subr.bf16.mxu0 %v9894
      %10182 = vmatpush1.bf16.msra.mxu0 %v9893
      %10183 = vmatprep.subr.bf16.mxu0 %v9896
      %10184 = vmatpush1.bf16.msra.mxu0 %v9895
      %10185 = vmatprep.subr.bf16.mxu0 %v9898
      %10186 = vmatpush1.bf16.msra.mxu0 %v9897
      %10187 = vmatprep.subr.bf16.mxu0 %v9900
      %10188 = vmatpush1.bf16.msra.mxu0 %v9899
      %10189 = vmatprep.subr.bf16.mxu0 %v9902
      %10190 = vmatpush1.bf16.msra.mxu0 %v9901
      %10191 = vmatprep.subr.bf16.mxu0 %v9904
      %10192 = vmatpush1.bf16.msra.mxu0 %v9903
      %10193 = vmatprep.mubr.bf16.mxu0 %v8869
      %10194 = vmatmul.mubr.bf16.gmra.mrb[0].mxu0 %v8769
      %v10195 = vpop.f32.mrb[0].mxu0
      %v10196 = vadd.f32 %v9434, %v10195
      %v10197 = vpop.f32.mrb[0].mxu0
      %v10198 = vadd.f32 %v9438, %v10197
      %v10199 = vpop.f32.mrb[0].mxu0
      %v10200 = vadd.f32 %v9434, %v10199
      %v10201 = vpop.f32.mrb[0].mxu0
      %v10202 = vadd.f32 %v9438, %v10201
      %10203 = vmatprep.mubr.bf16.mxu0 %v8918
      %10204 = vmatmul.mubr.bf16.gmra.mrb[0].mxu0 %v8818
      %v10205 = vpop.f32.mrb[0].mxu0
      %v10206 = vadd.f32 %v9434, %v10205
      %v10207 = vpop.f32.mrb[0].mxu0
      %v10208 = vadd.f32 %v9438, %v10207
      %v10209 = vpop.f32.mrb[0].mxu0
      %v10210 = vadd.f32 %v9434, %v10209
      %v10211 = vpop.f32.mrb[0].mxu0
      %v10212 = vadd.f32 %v9438, %v10211
      %10213 = vdwg.mxu0
      %10214 = vmatprep.subr.bf16.mxu0 %v9906
      %10215 = vmatpush1.bf16.msra.mxu0 %v9905
      %10216 = vmatprep.subr.bf16.mxu0 %v9908
      %10217 = vmatpush1.bf16.msra.mxu0 %v9907
      %10218 = vmatprep.subr.bf16.mxu0 %v9910
      %10219 = vmatpush1.bf16.msra.mxu0 %v9909
      %10220 = vmatprep.subr.bf16.mxu0 %v9912
      %10221 = vmatpush1.bf16.msra.mxu0 %v9911
      %10222 = vmatprep.subr.bf16.mxu0 %v9914
      %10223 = vmatpush1.bf16.msra.mxu0 %v9913
      %10224 = vmatprep.subr.bf16.mxu0 %v9916
      %10225 = vmatpush1.bf16.msra.mxu0 %v9915
      %10226 = vmatprep.subr.bf16.mxu0 %v9918
      %10227 = vmatpush1.bf16.msra.mxu0 %v9917
      %10228 = vmatprep.subr.bf16.mxu0 %v9920
      %10229 = vmatpush1.bf16.msra.mxu0 %v9919
      %10230 = vmatprep.subr.bf16.mxu0 %v9922
      %10231 = vmatpush1.bf16.msra.mxu0 %v9921
      %10232 = vmatprep.subr.bf16.mxu0 %v9924
      %10233 = vmatpush1.bf16.msra.mxu0 %v9923
      %10234 = vmatprep.subr.bf16.mxu0 %v9926
      %10235 = vmatpush1.bf16.msra.mxu0 %v9925
      %10236 = vmatprep.subr.bf16.mxu0 %v9928
      %10237 = vmatpush1.bf16.msra.mxu0 %v9927
      %10238 = vmatprep.subr.bf16.mxu0 %v9930
      %10239 = vmatpush1.bf16.msra.mxu0 %v9929
      %10240 = vmatprep.subr.bf16.mxu0 %v9932
      %10241 = vmatpush1.bf16.msra.mxu0 %v9931
      %10242 = vmatprep.subr.bf16.mxu0 %v9934
      %10243 = vmatpush1.bf16.msra.mxu0 %v9933
      %10244 = vmatprep.subr.bf16.mxu0 %v9936
      %10245 = vmatpush1.bf16.msra.mxu0 %v9935
      %10246 = vmatprep.mubr.bf16.mxu0 %v9045
      %10247 = vmatmul.mubr.bf16.gmra.mrb[0].mxu0 %v8969
      %v10248 = vpop.f32.mrb[0].mxu0
      %v10249 = vadd.f32 %v10196, %v10248
      %v10250 = vpop.f32.mrb[0].mxu0
      %v10251 = vadd.f32 %v10198, %v10250
      %v10252 = vpop.f32.mrb[0].mxu0
      %v10253 = vadd.f32 %v10200, %v10252
      %v10254 = vpop.f32.mrb[0].mxu0
      %v10255 = vadd.f32 %v10202, %v10254
      %10256 = vmatprep.mubr.bf16.mxu0 %v9070
      %10257 = vmatmul.mubr.bf16.gmra.mrb[0].mxu0 %v9018
      %v10258 = vpop.f32.mrb[0].mxu0
      %v10259 = vadd.f32 %v10206, %v10258
      %v10260 = vpop.f32.mrb[0].mxu0
      %v10261 = vadd.f32 %v10208, %v10260
      %v10262 = vpop.f32.mrb[0].mxu0
      %v10263 = vadd.f32 %v10210, %v10262
      %v10264 = vpop.f32.mrb[0].mxu0
      %v10265 = vadd.f32 %v10212, %v10264
      %10266 = vdwg.mxu0
      %10267 = vmatprep.subr.bf16.mxu0 %v9938
      %10268 = vmatpush1.bf16.msra.mxu0 %v9937
      %10269 = vmatprep.subr.bf16.mxu0 %v9940
      %10270 = vmatpush1.bf16.msra.mxu0 %v9939
      %10271 = vmatprep.subr.bf16.mxu0 %v9942
      %10272 = vmatpush1.bf16.msra.mxu0 %v9941
      %10273 = vmatprep.subr.bf16.mxu0 %v9944
      %10274 = vmatpush1.bf16.msra.mxu0 %v9943
      %10275 = vmatprep.subr.bf16.mxu0 %v9946
      %10276 = vmatpush1.bf16.msra.mxu0 %v9945
      %10277 = vmatprep.subr.bf16.mxu0 %v9948
      %10278 = vmatpush1.bf16.msra.mxu0 %v9947
      %10279 = vmatprep.subr.bf16.mxu0 %v9950
      %10280 = vmatpush1.bf16.msra.mxu0 %v9949
      %10281 = vmatprep.subr.bf16.mxu0 %v9952
      %10282 = vmatpush1.bf16.msra.mxu0 %v9951
      %10283 = vmatprep.subr.bf16.mxu0 %v9954
      %10284 = vmatpush1.bf16.msra.mxu0 %v9953
      %10285 = vmatprep.subr.bf16.mxu0 %v9956
      %10286 = vmatpush1.bf16.msra.mxu0 %v9955
      %10287 = vmatprep.subr.bf16.mxu0 %v9958
      %10288 = vmatpush1.bf16.msra.mxu0 %v9957
      %10289 = vmatprep.subr.bf16.mxu0 %v9960
      %10290 = vmatpush1.bf16.msra.mxu0 %v9959
      %10291 = vmatprep.subr.bf16.mxu0 %v9962
      %10292 = vmatpush1.bf16.msra.mxu0 %v9961
      %10293 = vmatprep.subr.bf16.mxu0 %v9964
      %10294 = vmatpush1.bf16.msra.mxu0 %v9963
      %10295 = vmatprep.subr.bf16.mxu0 %v9966
      %10296 = vmatpush1.bf16.msra.mxu0 %v9965
      %10297 = vmatprep.subr.bf16.mxu0 %v9968
      %10298 = vmatpush1.bf16.msra.mxu0 %v9967
      %10299 = vmatprep.mubr.bf16.mxu0 %v9149
      %10300 = vmatmul.mubr.bf16.gmra.mrb[0].mxu0 %v9097
      %v10301 = vpop.f32.mrb[0].mxu0
      %v10302 = vadd.f32 %v10249, %v10301
      %v10303 = vpop.f32.mrb[0].mxu0
      %v10304 = vadd.f32 %v10251, %v10303
      %v10305 = vpop.f32.mrb[0].mxu0
      %v10306 = vadd.f32 %v10253, %v10305
      %v10307 = vpop.f32.mrb[0].mxu0
      %v10308 = vadd.f32 %v10255, %v10307
      %10309 = vmatprep.mubr.bf16.mxu0 %v9174
      %10310 = vmatmul.mubr.bf16.gmra.mrb[0].mxu0 %v9122
      %v10311 = vpop.f32.mrb[0].mxu0
      %v10312 = vadd.f32 %v10259, %v10311
      %v10313 = vpop.f32.mrb[0].mxu0
      %v10314 = vadd.f32 %v10261, %v10313
      %v10315 = vpop.f32.mrb[0].mxu0
      %v10316 = vadd.f32 %v10263, %v10315
      %v10317 = vpop.f32.mrb[0].mxu0
      %v10318 = vadd.f32 %v10265, %v10317
      %10319 = vdwg.mxu0
      %10320 = vmatprep.subr.bf16.mxu0 %v9970
      %10321 = vmatpush1.bf16.msra.mxu0 %v9969
      %10322 = vmatprep.subr.bf16.mxu0 %v9972
      %10323 = vmatpush1.bf16.msra.mxu0 %v9971
      %10324 = vmatprep.subr.bf16.mxu0 %v9974
      %10325 = vmatpush1.bf16.msra.mxu0 %v9973
      %10326 = vmatprep.subr.bf16.mxu0 %v9976
      %10327 = vmatpush1.bf16.msra.mxu0 %v9975
      %10328 = vmatprep.subr.bf16.mxu0 %v9978
      %10329 = vmatpush1.bf16.msra.mxu0 %v9977
      %10330 = vmatprep.subr.bf16.mxu0 %v9980
      %10331 = vmatpush1.bf16.msra.mxu0 %v9979
      %10332 = vmatprep.subr.bf16.mxu0 %v9982
      %10333 = vmatpush1.bf16.msra.mxu0 %v9981
      %10334 = vmatprep.subr.bf16.mxu0 %v9984
      %10335 = vmatpush1.bf16.msra.mxu0 %v9983
      %10336 = vmatprep.subr.bf16.mxu0 %v9986
      %10337 = vmatpush1.bf16.msra.mxu0 %v9985
      %10338 = vmatprep.subr.bf16.mxu0 %v9988
      %10339 = vmatpush1.bf16.msra.mxu0 %v9987
      %10340 = vmatprep.subr.bf16.mxu0 %v9990
      %10341 = vmatpush1.bf16.msra.mxu0 %v9989
      %10342 = vmatprep.subr.bf16.mxu0 %v9992
      %10343 = vmatpush1.bf16.msra.mxu0 %v9991
      %10344 = vmatprep.subr.bf16.mxu0 %v9994
      %10345 = vmatpush1.bf16.msra.mxu0 %v9993
      %10346 = vmatprep.subr.bf16.mxu0 %v9996
      %10347 = vmatpush1.bf16.msra.mxu0 %v9995
      %10348 = vmatprep.subr.bf16.mxu0 %v9998
      %10349 = vmatpush1.bf16.msra.mxu0 %v9997
      %10350 = vmatprep.subr.bf16.mxu0 %v10000
      %10351 = vmatpush1.bf16.msra.mxu0 %v9999
      %10352 = vmatprep.mubr.bf16.mxu0 %v9229
      %10353 = vmatmul.mubr.bf16.gmra.mrb[0].mxu0 %v9193
      %v10354 = vpop.f32.mrb[0].mxu0
      %v10355 = vadd.f32 %v10302, %v10354
      %v10356 = vpop.f32.mrb[0].mxu0
      %v10357 = vadd.f32 %v10304, %v10356
      %v10358 = vpop.f32.mrb[0].mxu0
      %v10359 = vadd.f32 %v10306, %v10358
      %v10360 = vpop.f32.mrb[0].mxu0
      %v10361 = vadd.f32 %v10308, %v10360
      %10362 = vmatprep.mubr.bf16.mxu0 %v9246
      %10363 = vmatmul.mubr.bf16.gmra.mrb[0].mxu0 %v9210
      %v10364 = vpop.f32.mrb[0].mxu0
      %v10365 = vadd.f32 %v10312, %v10364
      %v10366 = vpop.f32.mrb[0].mxu0
      %v10367 = vadd.f32 %v10314, %v10366
      %v10368 = vpop.f32.mrb[0].mxu0
      %v10369 = vadd.f32 %v10316, %v10368
      %v10370 = vpop.f32.mrb[0].mxu0
      %v10371 = vadd.f32 %v10318, %v10370
      %10372 = vdwg.mxu0
      %10373 = vmatprep.subr.bf16.mxu0 %v10002
      %10374 = vmatpush1.bf16.msra.mxu0 %v10001
      %10375 = vmatprep.subr.bf16.mxu0 %v10004
      %10376 = vmatpush1.bf16.msra.mxu0 %v10003
      %10377 = vmatprep.subr.bf16.mxu0 %v10006
      %10378 = vmatpush1.bf16.msra.mxu0 %v10005
      %10379 = vmatprep.subr.bf16.mxu0 %v10008
      %10380 = vmatpush1.bf16.msra.mxu0 %v10007
      %10381 = vmatprep.subr.bf16.mxu0 %v10010
      %10382 = vmatpush1.bf16.msra.mxu0 %v10009
      %10383 = vmatprep.subr.bf16.mxu0 %v10012
      %10384 = vmatpush1.bf16.msra.mxu0 %v10011
      %10385 = vmatprep.subr.bf16.mxu0 %v10014
      %10386 = vmatpush1.bf16.msra.mxu0 %v10013
      %10387 = vmatprep.subr.bf16.mxu0 %v10016
      %10388 = vmatpush1.bf16.msra.mxu0 %v10015
      %10389 = vmatprep.subr.bf16.mxu0 0
      %10390 = vmatpush1.bf16.msra.mxu0 0
      %10391 = vmatprep.subr.bf16.mxu0 0
      %10392 = vmatpush1.bf16.msra.mxu0 0
      %10393 = vmatprep.subr.bf16.mxu0 0
      %10394 = vmatpush1.bf16.msra.mxu0 0
      %10395 = vmatprep.subr.bf16.mxu0 0
      %10396 = vmatpush1.bf16.msra.mxu0 0
      %10397 = vmatprep.subr.bf16.mxu0 0
      %10398 = vmatpush1.bf16.msra.mxu0 0
      %10399 = vmatprep.subr.bf16.mxu0 0
      %10400 = vmatpush1.bf16.msra.mxu0 0
      %10401 = vmatprep.subr.bf16.mxu0 0
      %10402 = vmatpush1.bf16.msra.mxu0 0
      %10403 = vmatprep.subr.bf16.mxu0 0
      %10404 = vmatpush1.bf16.msra.mxu0 0
      %10405 = vmatprep.mubr.bf16.mxu0 0
      %10406 = vmatmul.mubr.bf16.gmra.mrb[0].mxu0 %v9265
      %v10407 = vpop.f32.mrb[0].mxu0
      %v10408 = vadd.f32 %v10355, %v10407
      %v10409 = vpop.f32.mrb[0].mxu0
      %v10410 = vadd.f32 %v10357, %v10409
      %v10411 = vpop.f32.mrb[0].mxu0
      %v10412 = vadd.f32 %v10359, %v10411
      %v10413 = vpop.f32.mrb[0].mxu0
      %v10414 = vadd.f32 %v10361, %v10413
      %10415 = vmatprep.mubr.bf16.mxu0 0
      %10416 = vmatmul.mubr.bf16.gmra.mrb[0].mxu0 %v9282
      %v10417 = vpop.f32.mrb[0].mxu0
      %v10418 = vadd.f32 %v10365, %v10417
      %v10419 = vpop.f32.mrb[0].mxu0
      %v10420 = vadd.f32 %v10367, %v10419
      %v10421 = vpop.f32.mrb[0].mxu0
      %v10422 = vadd.f32 %v10369, %v10421
      %v10423 = vpop.f32.mrb[0].mxu0
      %v10424 = vadd.f32 %v10371, %v10423
      %10425 = vdwg.mxu0
      %v10426 = vmax.f32 %v10408, 0.0
      %v10427 = vmax.f32 %v10410, 0.0
      %v10428 = vmax.f32 %v10412, 0.0
      %v10429 = vmax.f32 %v10414, 0.0
      %v10430 = vmax.f32 %v10418, 0.0
      %v10431 = vmax.f32 %v10420, 0.0
      %v10432 = vmax.f32 %v10422, 0.0
      %v10433 = vmax.f32 %v10424, 0.0
      %v10442 = vcombine.low %v10426, %v10427
      %v10443 = vcombine.high %v10426, %v10427
      %v10444 = vcombine.low %v10428, %v10429
      %v10445 = vcombine.high %v10428, %v10429
      %v10446 = vcombine.low %v10430, %v10431
      %v10447 = vcombine.high %v10430, %v10431
      %v10448 = vcombine.low %v10432, %v10433
      %v10449 = vcombine.high %v10432, %v10433
      %v10458 = vmax.f32 %v10442, %v10443
      %v10459 = vmax.f32 %v10444, %v10445
      %v10460 = vmax.f32 %v10446, %v10447
      %v10461 = vmax.f32 %v10448, %v10449
      %v10467 = vunpack.c.l.s4 1983009808
      %v10468 = vunpack.c.0.s8 %v10467
      %v10469 = vlaneseq
      %v10470 = vshrl.u32 %v10469, 7
      %v10471 = vsub.s32 %v10468, %v10470
      %v10472 = vrot.slane %v10458, %v10471
      %v10473 = vcombine.high %v10472, %v10472
      %v10475 = vunpack.c.l.s4 1983009808
      %v10476 = vunpack.c.0.s8 %v10475
      %v10477 = vlaneseq
      %v10478 = vshrl.u32 %v10477, 7
      %v10479 = vsub.s32 %v10476, %v10478
      %v10480 = vrot.slane %v10459, %v10479
      %v10481 = vcombine.high %v10480, %v10480
      %v10483 = vunpack.c.l.s4 1983009808
      %v10484 = vunpack.c.0.s8 %v10483
      %v10485 = vlaneseq
      %v10486 = vshrl.u32 %v10485, 7
      %v10487 = vsub.s32 %v10484, %v10486
      %v10488 = vrot.slane %v10460, %v10487
      %v10489 = vcombine.high %v10488, %v10488
      %v10491 = vunpack.c.l.s4 1983009808
      %v10492 = vunpack.c.0.s8 %v10491
      %v10493 = vlaneseq
      %v10494 = vshrl.u32 %v10493, 7
      %v10495 = vsub.s32 %v10492, %v10494
      %v10496 = vrot.slane %v10461, %v10495
      %v10497 = vcombine.high %v10496, %v10496
      %v10499 = vunpack.c.l.s4 1983009808
      %v10500 = vunpack.c.0.s8 %v10499
      %v10501 = vlaneseq
      %v10502 = vshrl.u32 %v10501, 7
      %v10503 = vsub.s32 %v10500, %v10502
      %v10504 = vrot.slane %v10472, %v10503
      %v10505 = vcombine.high %v10504, %v10504
      %v10507 = vunpack.c.l.s4 1983009808
      %v10508 = vunpack.c.0.s8 %v10507
      %v10509 = vlaneseq
      %v10510 = vshrl.u32 %v10509, 7
      %v10511 = vsub.s32 %v10508, %v10510
      %v10512 = vrot.slane %v10473, %v10511
      %v10513 = vcombine.high %v10512, %v10512
      %v10515 = vunpack.c.l.s4 1983009808
      %v10516 = vunpack.c.0.s8 %v10515
      %v10517 = vlaneseq
      %v10518 = vshrl.u32 %v10517, 7
      %v10519 = vsub.s32 %v10516, %v10518
      %v10520 = vrot.slane %v10480, %v10519
      %v10521 = vcombine.high %v10520, %v10520
      %v10523 = vunpack.c.l.s4 1983009808
      %v10524 = vunpack.c.0.s8 %v10523
      %v10525 = vlaneseq
      %v10526 = vshrl.u32 %v10525, 7
      %v10527 = vsub.s32 %v10524, %v10526
      %v10528 = vrot.slane %v10481, %v10527
      %v10529 = vcombine.high %v10528, %v10528
      %v10531 = vunpack.c.l.s4 1983009808
      %v10532 = vunpack.c.0.s8 %v10531
      %v10533 = vlaneseq
      %v10534 = vshrl.u32 %v10533, 7
      %v10535 = vsub.s32 %v10532, %v10534
      %v10536 = vrot.slane %v10488, %v10535
      %v10537 = vcombine.high %v10536, %v10536
      %v10539 = vunpack.c.l.s4 1983009808
      %v10540 = vunpack.c.0.s8 %v10539
      %v10541 = vlaneseq
      %v10542 = vshrl.u32 %v10541, 7
      %v10543 = vsub.s32 %v10540, %v10542
      %v10544 = vrot.slane %v10489, %v10543
      %v10545 = vcombine.high %v10544, %v10544
      %v10547 = vunpack.c.l.s4 1983009808
      %v10548 = vunpack.c.0.s8 %v10547
      %v10549 = vlaneseq
      %v10550 = vshrl.u32 %v10549, 7
      %v10551 = vsub.s32 %v10548, %v10550
      %v10552 = vrot.slane %v10496, %v10551
      %v10553 = vcombine.high %v10552, %v10552
      %v10555 = vunpack.c.l.s4 1983009808
      %v10556 = vunpack.c.0.s8 %v10555
      %v10557 = vlaneseq
      %v10558 = vshrl.u32 %v10557, 7
      %v10559 = vsub.s32 %v10556, %v10558
      %v10560 = vrot.slane %v10497, %v10559
      %v10561 = vcombine.high %v10560, %v10560
      %v10578 = vsel %vm941, %v10504, -inf
      %v10579 = vrot.slane %v10578, 4
      %v10580 = vmax.f32 %v10578, %v10579
      %v10581 = vrot.slane %v10580, 2
      %v10582 = vmax.f32 %v10580, %v10581
      %v10583 = vrot.slane %v10582, 1
      %v10584 = vmax.f32 %v10582, %v10583
      %v10585 = vsel %vm941, %v10505, -inf
      %v10586 = vrot.slane %v10585, 4
      %v10587 = vmax.f32 %v10585, %v10586
      %v10588 = vrot.slane %v10587, 2
      %v10589 = vmax.f32 %v10587, %v10588
      %v10590 = vrot.slane %v10589, 1
      %v10591 = vmax.f32 %v10589, %v10590
      %v10592 = vsel %vm941, %v10512, -inf
      %v10593 = vrot.slane %v10592, 4
      %v10594 = vmax.f32 %v10592, %v10593
      %v10595 = vrot.slane %v10594, 2
      %v10596 = vmax.f32 %v10594, %v10595
      %v10597 = vrot.slane %v10596, 1
      %v10598 = vmax.f32 %v10596, %v10597
      %v10599 = vsel %vm941, %v10513, -inf
      %v10600 = vrot.slane %v10599, 4
      %v10601 = vmax.f32 %v10599, %v10600
      %v10602 = vrot.slane %v10601, 2
      %v10603 = vmax.f32 %v10601, %v10602
      %v10604 = vrot.slane %v10603, 1
      %v10605 = vmax.f32 %v10603, %v10604
      %v10606 = vsel %vm941, %v10520, -inf
      %v10607 = vrot.slane %v10606, 4
      %v10608 = vmax.f32 %v10606, %v10607
      %v10609 = vrot.slane %v10608, 2
      %v10610 = vmax.f32 %v10608, %v10609
      %v10611 = vrot.slane %v10610, 1
      %v10612 = vmax.f32 %v10610, %v10611
      %v10613 = vsel %vm941, %v10521, -inf
      %v10614 = vrot.slane %v10613, 4
      %v10615 = vmax.f32 %v10613, %v10614
      %v10616 = vrot.slane %v10615, 2
      %v10617 = vmax.f32 %v10615, %v10616
      %v10618 = vrot.slane %v10617, 1
      %v10619 = vmax.f32 %v10617, %v10618
      %v10620 = vsel %vm941, %v10528, -inf
      %v10621 = vrot.slane %v10620, 4
      %v10622 = vmax.f32 %v10620, %v10621
      %v10623 = vrot.slane %v10622, 2
      %v10624 = vmax.f32 %v10622, %v10623
      %v10625 = vrot.slane %v10624, 1
      %v10626 = vmax.f32 %v10624, %v10625
      %v10627 = vsel %vm941, %v10529, -inf
      %v10628 = vrot.slane %v10627, 4
      %v10629 = vmax.f32 %v10627, %v10628
      %v10630 = vrot.slane %v10629, 2
      %v10631 = vmax.f32 %v10629, %v10630
      %v10632 = vrot.slane %v10631, 1
      %v10633 = vmax.f32 %v10631, %v10632
      %v10634 = vsel %vm941, %v10536, -inf
      %v10635 = vrot.slane %v10634, 4
      %v10636 = vmax.f32 %v10634, %v10635
      %v10637 = vrot.slane %v10636, 2
      %v10638 = vmax.f32 %v10636, %v10637
      %v10639 = vrot.slane %v10638, 1
      %v10640 = vmax.f32 %v10638, %v10639
      %v10641 = vsel %vm941, %v10537, -inf
      %v10642 = vrot.slane %v10641, 4
      %v10643 = vmax.f32 %v10641, %v10642
      %v10644 = vrot.slane %v10643, 2
      %v10645 = vmax.f32 %v10643, %v10644
      %v10646 = vrot.slane %v10645, 1
      %v10647 = vmax.f32 %v10645, %v10646
      %v10648 = vsel %vm941, %v10544, -inf
      %v10649 = vrot.slane %v10648, 4
      %v10650 = vmax.f32 %v10648, %v10649
      %v10651 = vrot.slane %v10650, 2
      %v10652 = vmax.f32 %v10650, %v10651
      %v10653 = vrot.slane %v10652, 1
      %v10654 = vmax.f32 %v10652, %v10653
      %v10655 = vsel %vm941, %v10545, -inf
      %v10656 = vrot.slane %v10655, 4
      %v10657 = vmax.f32 %v10655, %v10656
      %v10658 = vrot.slane %v10657, 2
      %v10659 = vmax.f32 %v10657, %v10658
      %v10660 = vrot.slane %v10659, 1
      %v10661 = vmax.f32 %v10659, %v10660
      %v10662 = vsel %vm941, %v10552, -inf
      %v10663 = vrot.slane %v10662, 4
      %v10664 = vmax.f32 %v10662, %v10663
      %v10665 = vrot.slane %v10664, 2
      %v10666 = vmax.f32 %v10664, %v10665
      %v10667 = vrot.slane %v10666, 1
      %v10668 = vmax.f32 %v10666, %v10667
      %v10669 = vsel %vm941, %v10553, -inf
      %v10670 = vrot.slane %v10669, 4
      %v10671 = vmax.f32 %v10669, %v10670
      %v10672 = vrot.slane %v10671, 2
      %v10673 = vmax.f32 %v10671, %v10672
      %v10674 = vrot.slane %v10673, 1
      %v10675 = vmax.f32 %v10673, %v10674
      %v10676 = vsel %vm941, %v10560, -inf
      %v10677 = vrot.slane %v10676, 4
      %v10678 = vmax.f32 %v10676, %v10677
      %v10679 = vrot.slane %v10678, 2
      %v10680 = vmax.f32 %v10678, %v10679
      %v10681 = vrot.slane %v10680, 1
      %v10682 = vmax.f32 %v10680, %v10681
      %v10683 = vsel %vm941, %v10561, -inf
      %v10684 = vrot.slane %v10683, 4
      %v10685 = vmax.f32 %v10683, %v10684
      %v10686 = vrot.slane %v10685, 2
      %v10687 = vmax.f32 %v10685, %v10686
      %v10688 = vrot.slane %v10687, 1
      %v10689 = vmax.f32 %v10687, %v10688
      %v10690 = vpack.c.bf16 %v10584, %v10584
      %v10691 = vpack.c.bf16 %v10591, %v10591
      %v10692 = vpack.c.bf16 %v10598, %v10598
      %v10693 = vpack.c.bf16 %v10605, %v10605
      %v10694 = vpack.c.bf16 %v10612, %v10612
      %v10695 = vpack.c.bf16 %v10619, %v10619
      %v10696 = vpack.c.bf16 %v10626, %v10626
      %v10697 = vpack.c.bf16 %v10633, %v10633
      %v10698 = vpack.c.bf16 %v10640, %v10640
      %v10699 = vpack.c.bf16 %v10647, %v10647
      %v10700 = vpack.c.bf16 %v10654, %v10654
      %v10701 = vpack.c.bf16 %v10661, %v10661
      %v10702 = vpack.c.bf16 %v10668, %v10668
      %v10703 = vpack.c.bf16 %v10675, %v10675
      %v10704 = vpack.c.bf16 %v10682, %v10682
      %v10705 = vpack.c.bf16 %v10689, %v10689
      %v10710 = vunpack.c.l.b16 %v10690
      %v10711 = vunpack.c.l.b16 %v10691
      %v10712 = vunpack.c.l.b16 %v10698
      %v10713 = vunpack.c.l.b16 %v10699
      %v10714 = vsel %vm3415, %v10712, %v10710
      %v10715 = vsel %vm3415, %v10713, %v10711
      %v10716 = vpack.c.b16 %v10714, %v10714
      %v10717 = vpack.c.b16 %v10715, %v10715
      %v10724 = vunpack.c.l.b16 %v10692
      %v10725 = vunpack.c.l.b16 %v10693
      %v10726 = vunpack.c.l.b16 %v10700
      %v10727 = vunpack.c.l.b16 %v10701
      %v10728 = vsel %vm3415, %v10726, %v10724
      %v10729 = vsel %vm3415, %v10727, %v10725
      %v10730 = vpack.c.b16 %v10728, %v10728
      %v10731 = vpack.c.b16 %v10729, %v10729
      %v10738 = vunpack.c.l.b16 %v10694
      %v10739 = vunpack.c.l.b16 %v10695
      %v10740 = vunpack.c.l.b16 %v10702
      %v10741 = vunpack.c.l.b16 %v10703
      %v10742 = vsel %vm3415, %v10740, %v10738
      %v10743 = vsel %vm3415, %v10741, %v10739
      %v10744 = vpack.c.b16 %v10742, %v10742
      %v10745 = vpack.c.b16 %v10743, %v10743
      %v10752 = vunpack.c.l.b16 %v10696
      %v10753 = vunpack.c.l.b16 %v10697
      %v10754 = vunpack.c.l.b16 %v10704
      %v10755 = vunpack.c.l.b16 %v10705
      %v10756 = vsel %vm3415, %v10754, %v10752
      %v10757 = vsel %vm3415, %v10755, %v10753
      %v10758 = vpack.c.b16 %v10756, %v10756
      %v10759 = vpack.c.b16 %v10757, %v10757
      %v10762 = vld [vmem:[%s576] sm:$0xf]
      %v10763 = vld [vmem:[%s576 + $0x4] sm:$0xf]
      %v10764 = vld [vmem:[%s576 + $0x8] sm:$0xf]
      %v10765 = vld [vmem:[%s576 + $0xc] sm:$0xf]
      %v10766 = vld [vmem:[%s576 + $0x10] sm:$0xf]
      %v10767 = vld [vmem:[%s576 + $0x14] sm:$0xf]
      %v10768 = vld [vmem:[%s576 + $0x18] sm:$0xf]
      %v10769 = vld [vmem:[%s576 + $0x1c] sm:$0xf]
      %v10770 = vld [vmem:[%s576 + $0x20] sm:$0xf]
      %v10771 = vld [vmem:[%s576 + $0x24] sm:$0xf]
      %v10772 = vld [vmem:[%s576 + $0x28] sm:$0xf]
      %v10773 = vld [vmem:[%s576 + $0x2c] sm:$0xf]
      %v10774 = vld [vmem:[%s576 + $0x30] sm:$0xf]
      %v10775 = vld [vmem:[%s576 + $0x34] sm:$0xf]
      %v10776 = vld [vmem:[%s576 + $0x38] sm:$0xf]
      %v10777 = vld [vmem:[%s576 + $0x3c] sm:$0xf]
      %v10778 = vld [vmem:[%s576 + $0x40] sm:$0xf]
      %v10779 = vld [vmem:[%s576 + $0x44] sm:$0xf]
      %v10780 = vld [vmem:[%s576 + $0x48] sm:$0xf]
      %v10781 = vld [vmem:[%s576 + $0x4c] sm:$0xf]
      %v10782 = vld [vmem:[%s576 + $0x50] sm:$0xf]
      %v10783 = vld [vmem:[%s576 + $0x54] sm:$0xf]
      %v10784 = vld [vmem:[%s576 + $0x58] sm:$0xf]
      %v10785 = vld [vmem:[%s576 + $0x5c] sm:$0xf]
      %v10786 = vld [vmem:[%s576 + $0x60] sm:$0xf]
      %v10787 = vld [vmem:[%s576 + $0x64] sm:$0xf]
      %v10788 = vld [vmem:[%s576 + $0x68] sm:$0xf]
      %v10789 = vld [vmem:[%s576 + $0x6c] sm:$0xf]
      %v10790 = vld [vmem:[%s576 + $0x70] sm:$0xf]
      %v10791 = vld [vmem:[%s576 + $0x74] sm:$0xf]
      %v10792 = vld [vmem:[%s576 + $0x78] sm:$0xf]
      %v10793 = vld [vmem:[%s576 + $0x7c] sm:$0xf]
      %v10794 = vld [vmem:[%s576 + $0x80] sm:$0xf]
      %v10795 = vld [vmem:[%s576 + $0x84] sm:$0xf]
      %v10796 = vld [vmem:[%s576 + $0x88] sm:$0xf]
      %v10797 = vld [vmem:[%s576 + $0x8c] sm:$0xf]
      %v10798 = vld [vmem:[%s576 + $0x90] sm:$0xf]
      %v10799 = vld [vmem:[%s576 + $0x94] sm:$0xf]
      %v10800 = vld [vmem:[%s576 + $0x98] sm:$0xf]
      %v10801 = vld [vmem:[%s576 + $0x9c] sm:$0xf]
      %v10802 = vld [vmem:[%s576 + $0xa0] sm:$0xf]
      %v10803 = vld [vmem:[%s576 + $0xa4] sm:$0xf]
      %v10804 = vld [vmem:[%s576 + $0xa8] sm:$0xf]
      %v10805 = vld [vmem:[%s576 + $0xac] sm:$0xf]
      %v10806 = vld [vmem:[%s576 + $0xb0] sm:$0xf]
      %v10807 = vld [vmem:[%s576 + $0xb4] sm:$0xf]
      %v10808 = vld [vmem:[%s576 + $0xb8] sm:$0xf]
      %v10809 = vld [vmem:[%s576 + $0xbc] sm:$0xf]
      %v10810 = vld [vmem:[%s576 + $0xc0] sm:$0xf]
      %v10811 = vld [vmem:[%s576 + $0xc4] sm:$0xf]
      %v10812 = vld [vmem:[%s576 + $0xc8] sm:$0xf]
      %v10813 = vld [vmem:[%s576 + $0xcc] sm:$0xf]
      %v10814 = vld [vmem:[%s576 + $0xd0] sm:$0xf]
      %v10815 = vld [vmem:[%s576 + $0xd4] sm:$0xf]
      %v10816 = vld [vmem:[%s576 + $0xd8] sm:$0xf]
      %v10817 = vld [vmem:[%s576 + $0xdc] sm:$0xf]
      %v10818 = vld [vmem:[%s576 + $0xe0] sm:$0xf]
      %v10819 = vld [vmem:[%s576 + $0xe4] sm:$0xf]
      %v10820 = vld [vmem:[%s576 + $0xe8] sm:$0xf]
      %v10821 = vld [vmem:[%s576 + $0xec] sm:$0xf]
      %v10822 = vld [vmem:[%s576 + $0xf0] sm:$0xf]
      %v10823 = vld [vmem:[%s576 + $0xf4] sm:$0xf]
      %v10824 = vld [vmem:[%s576 + $0xf8] sm:$0xf]
      %v10825 = vld [vmem:[%s576 + $0xfc] sm:$0xf]
      %v10826 = vld [vmem:[%s576 + $0x100] sm:$0xf]
      %v10827 = vld [vmem:[%s576 + $0x104] sm:$0xf]
      %v10828 = vld [vmem:[%s576 + $0x108] sm:$0xf]
      %v10829 = vld [vmem:[%s576 + $0x10c] sm:$0xf]
      %v10830 = vld [vmem:[%s576 + $0x110] sm:$0xf]
      %v10831 = vld [vmem:[%s576 + $0x114] sm:$0xf]
      %v10832 = vld [vmem:[%s576 + $0x118] sm:$0xf]
      %v10833 = vld [vmem:[%s576 + $0x11c] sm:$0xf]
      %v10834 = vld [vmem:[%s576 + $0x120] sm:$0xf]
      %v10835 = vld [vmem:[%s576 + $0x124] sm:$0xf]
      %v10836 = vld [vmem:[%s576 + $0x128] sm:$0xf]
      %v10837 = vld [vmem:[%s576 + $0x12c] sm:$0xf]
      %v10838 = vld [vmem:[%s576 + $0x130] sm:$0xf]
      %v10839 = vld [vmem:[%s576 + $0x134] sm:$0xf]
      %v10840 = vld [vmem:[%s576 + $0x138] sm:$0xf]
      %v10841 = vld [vmem:[%s576 + $0x13c] sm:$0xf]
      %v10842 = vld [vmem:[%s576 + $0x140] sm:$0xf]
      %v10843 = vld [vmem:[%s576 + $0x144] sm:$0xf]
      %v10844 = vld [vmem:[%s576 + $0x148] sm:$0xf]
      %v10845 = vld [vmem:[%s576 + $0x14c] sm:$0xf]
      %v10846 = vld [vmem:[%s576 + $0x150] sm:$0xf]
      %v10847 = vld [vmem:[%s576 + $0x154] sm:$0xf]
      %v10848 = vld [vmem:[%s576 + $0x158] sm:$0xf]
      %v10849 = vld [vmem:[%s576 + $0x15c] sm:$0xf]
      %v10850 = vld [vmem:[%s576 + $0x160] sm:$0xf]
      %v10851 = vld [vmem:[%s576 + $0x164] sm:$0xf]
      %v10852 = vld [vmem:[%s576 + $0x168] sm:$0xf]
      %v10853 = vld [vmem:[%s576 + $0x16c] sm:$0xf]
      %v10854 = vld [vmem:[%s576 + $0x170] sm:$0xf]
      %v10855 = vld [vmem:[%s576 + $0x174] sm:$0xf]
      %v10856 = vld [vmem:[%s576 + $0x178] sm:$0xf]
      %v10857 = vld [vmem:[%s576 + $0x17c] sm:$0xf]
      %v10858 = vld [vmem:[%s576 + $0x180] sm:$0xf]
      %v10859 = vld [vmem:[%s576 + $0x184] sm:$0xf]
      %v10860 = vld [vmem:[%s576 + $0x188] sm:$0xf]
      %v10861 = vld [vmem:[%s576 + $0x18c] sm:$0xf]
      %v10862 = vld [vmem:[%s576 + $0x190] sm:$0xf]
      %v10863 = vld [vmem:[%s576 + $0x194] sm:$0xf]
      %v10864 = vld [vmem:[%s576 + $0x198] sm:$0xf]
      %v10865 = vld [vmem:[%s576 + $0x19c] sm:$0xf]
      %v10866 = vld [vmem:[%s576 + $0x1a0] sm:$0xf]
      %v10867 = vld [vmem:[%s576 + $0x1a4] sm:$0xf]
      %v10868 = vld [vmem:[%s576 + $0x1a8] sm:$0xf]
      %v10869 = vld [vmem:[%s576 + $0x1ac] sm:$0xf]
      %v10870 = vld [vmem:[%s576 + $0x1b0] sm:$0xf]
      %v10871 = vld [vmem:[%s576 + $0x1b4] sm:$0xf]
      %v10872 = vld [vmem:[%s576 + $0x1b8] sm:$0xf]
      %v10873 = vld [vmem:[%s576 + $0x1bc] sm:$0xf]
      %v10874 = vld [vmem:[%s576 + $0x1c0] sm:$0xf]
      %v10875 = vld [vmem:[%s576 + $0x1c4] sm:$0xf]
      %v10876 = vld [vmem:[%s576 + $0x1c8] sm:$0xf]
      %v10877 = vld [vmem:[%s576 + $0x1cc] sm:$0xf]
      %v10878 = vld [vmem:[%s576 + $0x1d0] sm:$0xf]
      %v10879 = vld [vmem:[%s576 + $0x1d4] sm:$0xf]
      %v10880 = vld [vmem:[%s576 + $0x1d8] sm:$0xf]
      %v10881 = vld [vmem:[%s576 + $0x1dc] sm:$0xf]
      %v10882 = vld [vmem:[%s576 + $0x1e0] sm:$0xf]
      %v10883 = vld [vmem:[%s576 + $0x1e4] sm:$0xf]
      %v10884 = vld [vmem:[%s576 + $0x1e8] sm:$0xf]
      %v10885 = vld [vmem:[%s576 + $0x1ec] sm:$0xf]
      %v10886 = vld [vmem:[%s576 + $0x1f0] sm:$0xf]
      %v10887 = vld [vmem:[%s576 + $0x1f4] sm:$0xf]
      %v10888 = vld [vmem:[%s576 + $0x1f8] sm:$0xf]
      %v10889 = vld [vmem:[%s576 + $0x1fc] sm:$0xf]
      %v10890 = vld [vmem:[%s579] sm:$0x1]
      %v10892 = vlaneseq
      %v10893 = vshrl.u32 %v10892, 7
      %v10894 = vsub.s32 0, %v10893
      %v10895 = vrot.slane %v10890, %v10894
      %v11025 = vunpack.c.l.b16 %v10762
      %v11026 = vunpack.c.l.b16 %v10763
      %v11027 = vunpack.c.l.b16 %v10764
      %v11028 = vunpack.c.l.b16 %v10765
      %v11029 = vunpack.c.l.b16 %v10766
      %v11030 = vunpack.c.l.b16 %v10767
      %v11031 = vunpack.c.l.b16 %v10768
      %v11032 = vunpack.c.l.b16 %v10769
      %v11033 = vunpack.c.l.b16 %v10770
      %v11034 = vunpack.c.l.b16 %v10771
      %v11035 = vunpack.c.l.b16 %v10772
      %v11036 = vunpack.c.l.b16 %v10773
      %v11037 = vunpack.c.l.b16 %v10774
      %v11038 = vunpack.c.l.b16 %v10775
      %v11039 = vunpack.c.l.b16 %v10776
      %v11040 = vunpack.c.l.b16 %v10777
      %v11041 = vunpack.c.l.b16 %v10778
      %v11042 = vunpack.c.l.b16 %v10779
      %v11043 = vunpack.c.l.b16 %v10780
      %v11044 = vunpack.c.l.b16 %v10781
      %v11045 = vunpack.c.l.b16 %v10782
      %v11046 = vunpack.c.l.b16 %v10783
      %v11047 = vunpack.c.l.b16 %v10784
      %v11048 = vunpack.c.l.b16 %v10785
      %v11049 = vunpack.c.l.b16 %v10786
      %v11050 = vunpack.c.l.b16 %v10787
      %v11051 = vunpack.c.l.b16 %v10788
      %v11052 = vunpack.c.l.b16 %v10789
      %v11053 = vunpack.c.l.b16 %v10790
      %v11054 = vunpack.c.l.b16 %v10791
      %v11055 = vunpack.c.l.b16 %v10792
      %v11056 = vunpack.c.l.b16 %v10793
      %v11057 = vunpack.c.l.b16 %v10794
      %v11058 = vunpack.c.l.b16 %v10795
      %v11059 = vunpack.c.l.b16 %v10796
      %v11060 = vunpack.c.l.b16 %v10797
      %v11061 = vunpack.c.l.b16 %v10798
      %v11062 = vunpack.c.l.b16 %v10799
      %v11063 = vunpack.c.l.b16 %v10800
      %v11064 = vunpack.c.l.b16 %v10801
      %v11065 = vunpack.c.l.b16 %v10802
      %v11066 = vunpack.c.l.b16 %v10803
      %v11067 = vunpack.c.l.b16 %v10804
      %v11068 = vunpack.c.l.b16 %v10805
      %v11069 = vunpack.c.l.b16 %v10806
      %v11070 = vunpack.c.l.b16 %v10807
      %v11071 = vunpack.c.l.b16 %v10808
      %v11072 = vunpack.c.l.b16 %v10809
      %v11073 = vunpack.c.l.b16 %v10810
      %v11074 = vunpack.c.l.b16 %v10811
      %v11075 = vunpack.c.l.b16 %v10812
      %v11076 = vunpack.c.l.b16 %v10813
      %v11077 = vunpack.c.l.b16 %v10814
      %v11078 = vunpack.c.l.b16 %v10815
      %v11079 = vunpack.c.l.b16 %v10816
      %v11080 = vunpack.c.l.b16 %v10817
      %v11081 = vunpack.c.l.b16 %v10818
      %v11082 = vunpack.c.l.b16 %v10819
      %v11083 = vunpack.c.l.b16 %v10820
      %v11084 = vunpack.c.l.b16 %v10821
      %v11085 = vunpack.c.l.b16 %v10822
      %v11086 = vunpack.c.l.b16 %v10823
      %v11087 = vunpack.c.l.b16 %v10824
      %v11088 = vunpack.c.l.b16 %v10825
      %v11089 = vunpack.c.l.b16 %v10826
      %v11090 = vunpack.c.l.b16 %v10827
      %v11091 = vunpack.c.l.b16 %v10828
      %v11092 = vunpack.c.l.b16 %v10829
      %v11093 = vunpack.c.l.b16 %v10830
      %v11094 = vunpack.c.l.b16 %v10831
      %v11095 = vunpack.c.l.b16 %v10832
      %v11096 = vunpack.c.l.b16 %v10833
      %v11097 = vunpack.c.l.b16 %v10834
      %v11098 = vunpack.c.l.b16 %v10835
      %v11099 = vunpack.c.l.b16 %v10836
      %v11100 = vunpack.c.l.b16 %v10837
      %v11101 = vunpack.c.l.b16 %v10838
      %v11102 = vunpack.c.l.b16 %v10839
      %v11103 = vunpack.c.l.b16 %v10840
      %v11104 = vunpack.c.l.b16 %v10841
      %v11105 = vunpack.c.l.b16 %v10842
      %v11106 = vunpack.c.l.b16 %v10843
      %v11107 = vunpack.c.l.b16 %v10844
      %v11108 = vunpack.c.l.b16 %v10845
      %v11109 = vunpack.c.l.b16 %v10846
      %v11110 = vunpack.c.l.b16 %v10847
      %v11111 = vunpack.c.l.b16 %v10848
      %v11112 = vunpack.c.l.b16 %v10849
      %v11113 = vunpack.c.l.b16 %v10850
      %v11114 = vunpack.c.l.b16 %v10851
      %v11115 = vunpack.c.l.b16 %v10852
      %v11116 = vunpack.c.l.b16 %v10853
      %v11117 = vunpack.c.l.b16 %v10854
      %v11118 = vunpack.c.l.b16 %v10855
      %v11119 = vunpack.c.l.b16 %v10856
      %v11120 = vunpack.c.l.b16 %v10857
      %v11121 = vunpack.c.l.b16 %v10858
      %v11122 = vunpack.c.l.b16 %v10859
      %v11123 = vunpack.c.l.b16 %v10860
      %v11124 = vunpack.c.l.b16 %v10861
      %v11125 = vunpack.c.l.b16 %v10862
      %v11126 = vunpack.c.l.b16 %v10863
      %v11127 = vunpack.c.l.b16 %v10864
      %v11128 = vunpack.c.l.b16 %v10865
      %v11129 = vunpack.c.l.b16 %v10866
      %v11130 = vunpack.c.l.b16 %v10867
      %v11131 = vunpack.c.l.b16 %v10868
      %v11132 = vunpack.c.l.b16 %v10869
      %v11133 = vunpack.c.l.b16 %v10870
      %v11134 = vunpack.c.l.b16 %v10871
      %v11135 = vunpack.c.l.b16 %v10872
      %v11136 = vunpack.c.l.b16 %v10873
      %v11137 = vunpack.c.l.b16 %v10874
      %v11138 = vunpack.c.l.b16 %v10875
      %v11139 = vunpack.c.l.b16 %v10876
      %v11140 = vunpack.c.l.b16 %v10877
      %v11141 = vunpack.c.l.b16 %v10878
      %v11142 = vunpack.c.l.b16 %v10879
      %v11143 = vunpack.c.l.b16 %v10880
      %v11144 = vunpack.c.l.b16 %v10881
      %v11145 = vunpack.c.l.b16 %v10882
      %v11146 = vunpack.c.l.b16 %v10883
      %v11147 = vunpack.c.l.b16 %v10884
      %v11148 = vunpack.c.l.b16 %v10885
      %v11149 = vunpack.c.l.b16 %v10886
      %v11150 = vunpack.c.l.b16 %v10887
      %v11151 = vunpack.c.l.b16 %v10888
      %v11152 = vunpack.c.l.b16 %v10889
      %v11153 = vpack.c.b16 %v11026, %v11025
      %v11154 = vpack.c.b16 %v11028, %v11027
      %v11155 = vpack.c.b16 %v11030, %v11029
      %v11156 = vpack.c.b16 %v11032, %v11031
      %v11157 = vpack.c.b16 %v11034, %v11033
      %v11158 = vpack.c.b16 %v11036, %v11035
      %v11159 = vpack.c.b16 %v11038, %v11037
      %v11160 = vpack.c.b16 %v11040, %v11039
      %v11161 = vpack.c.b16 %v11042, %v11041
      %v11162 = vpack.c.b16 %v11044, %v11043
      %v11163 = vpack.c.b16 %v11046, %v11045
      %v11164 = vpack.c.b16 %v11048, %v11047
      %v11165 = vpack.c.b16 %v11050, %v11049
      %v11166 = vpack.c.b16 %v11052, %v11051
      %v11167 = vpack.c.b16 %v11054, %v11053
      %v11168 = vpack.c.b16 %v11056, %v11055
      %v11169 = vpack.c.b16 %v11058, %v11057
      %v11170 = vpack.c.b16 %v11060, %v11059
      %v11171 = vpack.c.b16 %v11062, %v11061
      %v11172 = vpack.c.b16 %v11064, %v11063
      %v11173 = vpack.c.b16 %v11066, %v11065
      %v11174 = vpack.c.b16 %v11068, %v11067
      %v11175 = vpack.c.b16 %v11070, %v11069
      %v11176 = vpack.c.b16 %v11072, %v11071
      %v11177 = vpack.c.b16 %v11074, %v11073
      %v11178 = vpack.c.b16 %v11076, %v11075
      %v11179 = vpack.c.b16 %v11078, %v11077
      %v11180 = vpack.c.b16 %v11080, %v11079
      %v11181 = vpack.c.b16 %v11082, %v11081
      %v11182 = vpack.c.b16 %v11084, %v11083
      %v11183 = vpack.c.b16 %v11086, %v11085
      %v11184 = vpack.c.b16 %v11088, %v11087
      %v11185 = vpack.c.b16 %v11090, %v11089
      %v11186 = vpack.c.b16 %v11092, %v11091
      %v11187 = vpack.c.b16 %v11094, %v11093
      %v11188 = vpack.c.b16 %v11096, %v11095
      %v11189 = vpack.c.b16 %v11098, %v11097
      %v11190 = vpack.c.b16 %v11100, %v11099
      %v11191 = vpack.c.b16 %v11102, %v11101
      %v11192 = vpack.c.b16 %v11104, %v11103
      %v11193 = vpack.c.b16 %v11106, %v11105
      %v11194 = vpack.c.b16 %v11108, %v11107
      %v11195 = vpack.c.b16 %v11110, %v11109
      %v11196 = vpack.c.b16 %v11112, %v11111
      %v11197 = vpack.c.b16 %v11114, %v11113
      %v11198 = vpack.c.b16 %v11116, %v11115
      %v11199 = vpack.c.b16 %v11118, %v11117
      %v11200 = vpack.c.b16 %v11120, %v11119
      %v11201 = vpack.c.b16 %v11122, %v11121
      %v11202 = vpack.c.b16 %v11124, %v11123
      %v11203 = vpack.c.b16 %v11126, %v11125
      %v11204 = vpack.c.b16 %v11128, %v11127
      %v11205 = vpack.c.b16 %v11130, %v11129
      %v11206 = vpack.c.b16 %v11132, %v11131
      %v11207 = vpack.c.b16 %v11134, %v11133
      %v11208 = vpack.c.b16 %v11136, %v11135
      %v11209 = vpack.c.b16 %v11138, %v11137
      %v11210 = vpack.c.b16 %v11140, %v11139
      %v11211 = vpack.c.b16 %v11142, %v11141
      %v11212 = vpack.c.b16 %v11144, %v11143
      %v11213 = vpack.c.b16 %v11146, %v11145
      %v11214 = vpack.c.b16 %v11148, %v11147
      %v11215 = vpack.c.b16 %v11150, %v11149
      %v11216 = vpack.c.b16 %v11152, %v11151
      %11281 = vmatprep.subr.bf16.mxu0 0
      %11282 = vmatpush1.bf16.msra.mxu0 %v11153
      %11283 = vmatprep.subr.bf16.mxu0 0
      %11284 = vmatpush1.bf16.msra.mxu0 %v11154
      %11285 = vmatprep.subr.bf16.mxu0 0
      %11286 = vmatpush1.bf16.msra.mxu0 %v11155
      %11287 = vmatprep.subr.bf16.mxu0 0
      %11288 = vmatpush1.bf16.msra.mxu0 %v11156
      %11289 = vmatprep.subr.bf16.mxu0 0
      %11290 = vmatpush1.bf16.msra.mxu0 %v11157
      %11291 = vmatprep.subr.bf16.mxu0 0
      %11292 = vmatpush1.bf16.msra.mxu0 %v11158
      %11293 = vmatprep.subr.bf16.mxu0 0
      %11294 = vmatpush1.bf16.msra.mxu0 %v11159
      %11295 = vmatprep.subr.bf16.mxu0 0
      %11296 = vmatpush1.bf16.msra.mxu0 %v11160
      %11297 = vmatprep.subr.bf16.mxu0 0
      %11298 = vmatpush1.bf16.msra.mxu0 %v11161
      %11299 = vmatprep.subr.bf16.mxu0 0
      %11300 = vmatpush1.bf16.msra.mxu0 %v11162
      %11301 = vmatprep.subr.bf16.mxu0 0
      %11302 = vmatpush1.bf16.msra.mxu0 %v11163
      %11303 = vmatprep.subr.bf16.mxu0 0
      %11304 = vmatpush1.bf16.msra.mxu0 %v11164
      %11305 = vmatprep.subr.bf16.mxu0 0
      %11306 = vmatpush1.bf16.msra.mxu0 %v11165
      %11307 = vmatprep.subr.bf16.mxu0 0
      %11308 = vmatpush1.bf16.msra.mxu0 %v11166
      %11309 = vmatprep.subr.bf16.mxu0 0
      %11310 = vmatpush1.bf16.msra.mxu0 %v11167
      %11311 = vmatprep.subr.bf16.mxu0 0
      %11312 = vmatpush1.bf16.msra.mxu0 %v11168
      %11313 = vmatprep.mubr.bf16.mxu0 %v10717
      %11314 = vmatmul.mubr.bf16.gmra.mrb[0].mxu0 %v10716
      %v11315 = vpop.f32.mrb[0].mxu0
      %v11316 = vadd.f32 %v10895, %v11315
      %v11317 = vpop.f32.mrb[0].mxu0
      %v11318 = vpop.f32.mrb[0].mxu0
      %v11319 = vpop.f32.mrb[0].mxu0
      %11320 = vdwg.mxu0
      %11321 = vmatprep.subr.bf16.mxu0 0
      %11322 = vmatpush1.bf16.msra.mxu0 %v11169
      %11323 = vmatprep.subr.bf16.mxu0 0
      %11324 = vmatpush1.bf16.msra.mxu0 %v11170
      %11325 = vmatprep.subr.bf16.mxu0 0
      %11326 = vmatpush1.bf16.msra.mxu0 %v11171
      %11327 = vmatprep.subr.bf16.mxu0 0
      %11328 = vmatpush1.bf16.msra.mxu0 %v11172
      %11329 = vmatprep.subr.bf16.mxu0 0
      %11330 = vmatpush1.bf16.msra.mxu0 %v11173
      %11331 = vmatprep.subr.bf16.mxu0 0
      %11332 = vmatpush1.bf16.msra.mxu0 %v11174
      %11333 = vmatprep.subr.bf16.mxu0 0
      %11334 = vmatpush1.bf16.msra.mxu0 %v11175
      %11335 = vmatprep.subr.bf16.mxu0 0
      %11336 = vmatpush1.bf16.msra.mxu0 %v11176
      %11337 = vmatprep.subr.bf16.mxu0 0
      %11338 = vmatpush1.bf16.msra.mxu0 %v11177
      %11339 = vmatprep.subr.bf16.mxu0 0
      %11340 = vmatpush1.bf16.msra.mxu0 %v11178
      %11341 = vmatprep.subr.bf16.mxu0 0
      %11342 = vmatpush1.bf16.msra.mxu0 %v11179
      %11343 = vmatprep.subr.bf16.mxu0 0
      %11344 = vmatpush1.bf16.msra.mxu0 %v11180
      %11345 = vmatprep.subr.bf16.mxu0 0
      %11346 = vmatpush1.bf16.msra.mxu0 %v11181
      %11347 = vmatprep.subr.bf16.mxu0 0
      %11348 = vmatpush1.bf16.msra.mxu0 %v11182
      %11349 = vmatprep.subr.bf16.mxu0 0
      %11350 = vmatpush1.bf16.msra.mxu0 %v11183
      %11351 = vmatprep.subr.bf16.mxu0 0
      %11352 = vmatpush1.bf16.msra.mxu0 %v11184
      %11353 = vmatprep.mubr.bf16.mxu0 %v10731
      %11354 = vmatmul.mubr.bf16.gmra.mrb[0].mxu0 %v10730
      %v11355 = vpop.f32.mrb[0].mxu0
      %v11356 = vadd.f32 %v11316, %v11355
      %v11357 = vpop.f32.mrb[0].mxu0
      %v11358 = vpop.f32.mrb[0].mxu0
      %v11359 = vpop.f32.mrb[0].mxu0
      %11360 = vdwg.mxu0
      %11361 = vmatprep.subr.bf16.mxu0 0
      %11362 = vmatpush1.bf16.msra.mxu0 %v11185
      %11363 = vmatprep.subr.bf16.mxu0 0
      %11364 = vmatpush1.bf16.msra.mxu0 %v11186
      %11365 = vmatprep.subr.bf16.mxu0 0
      %11366 = vmatpush1.bf16.msra.mxu0 %v11187
      %11367 = vmatprep.subr.bf16.mxu0 0
      %11368 = vmatpush1.bf16.msra.mxu0 %v11188
      %11369 = vmatprep.subr.bf16.mxu0 0
      %11370 = vmatpush1.bf16.msra.mxu0 %v11189
      %11371 = vmatprep.subr.bf16.mxu0 0
      %11372 = vmatpush1.bf16.msra.mxu0 %v11190
      %11373 = vmatprep.subr.bf16.mxu0 0
      %11374 = vmatpush1.bf16.msra.mxu0 %v11191
      %11375 = vmatprep.subr.bf16.mxu0 0
      %11376 = vmatpush1.bf16.msra.mxu0 %v11192
      %11377 = vmatprep.subr.bf16.mxu0 0
      %11378 = vmatpush1.bf16.msra.mxu0 %v11193
      %11379 = vmatprep.subr.bf16.mxu0 0
      %11380 = vmatpush1.bf16.msra.mxu0 %v11194
      %11381 = vmatprep.subr.bf16.mxu0 0
      %11382 = vmatpush1.bf16.msra.mxu0 %v11195
      %11383 = vmatprep.subr.bf16.mxu0 0
      %11384 = vmatpush1.bf16.msra.mxu0 %v11196
      %11385 = vmatprep.subr.bf16.mxu0 0
      %11386 = vmatpush1.bf16.msra.mxu0 %v11197
      %11387 = vmatprep.subr.bf16.mxu0 0
      %11388 = vmatpush1.bf16.msra.mxu0 %v11198
      %11389 = vmatprep.subr.bf16.mxu0 0
      %11390 = vmatpush1.bf16.msra.mxu0 %v11199
      %11391 = vmatprep.subr.bf16.mxu0 0
      %11392 = vmatpush1.bf16.msra.mxu0 %v11200
      %11393 = vmatprep.mubr.bf16.mxu0 %v10745
      %11394 = vmatmul.mubr.bf16.gmra.mrb[0].mxu0 %v10744
      %v11395 = vpop.f32.mrb[0].mxu0
      %v11396 = vadd.f32 %v11356, %v11395
      %v11397 = vpop.f32.mrb[0].mxu0
      %v11398 = vpop.f32.mrb[0].mxu0
      %v11399 = vpop.f32.mrb[0].mxu0
      %11400 = vdwg.mxu0
      %11401 = vmatprep.subr.bf16.mxu0 0
      %11402 = vmatpush1.bf16.msra.mxu0 %v11201
      %11403 = vmatprep.subr.bf16.mxu0 0
      %11404 = vmatpush1.bf16.msra.mxu0 %v11202
      %11405 = vmatprep.subr.bf16.mxu0 0
      %11406 = vmatpush1.bf16.msra.mxu0 %v11203
      %11407 = vmatprep.subr.bf16.mxu0 0
      %11408 = vmatpush1.bf16.msra.mxu0 %v11204
      %11409 = vmatprep.subr.bf16.mxu0 0
      %11410 = vmatpush1.bf16.msra.mxu0 %v11205
      %11411 = vmatprep.subr.bf16.mxu0 0
      %11412 = vmatpush1.bf16.msra.mxu0 %v11206
      %11413 = vmatprep.subr.bf16.mxu0 0
      %11414 = vmatpush1.bf16.msra.mxu0 %v11207
      %11415 = vmatprep.subr.bf16.mxu0 0
      %11416 = vmatpush1.bf16.msra.mxu0 %v11208
      %11417 = vmatprep.subr.bf16.mxu0 0
      %11418 = vmatpush1.bf16.msra.mxu0 %v11209
      %11419 = vmatprep.subr.bf16.mxu0 0
      %11420 = vmatpush1.bf16.msra.mxu0 %v11210
      %11421 = vmatprep.subr.bf16.mxu0 0
      %11422 = vmatpush1.bf16.msra.mxu0 %v11211
      %11423 = vmatprep.subr.bf16.mxu0 0
      %11424 = vmatpush1.bf16.msra.mxu0 %v11212
      %11425 = vmatprep.subr.bf16.mxu0 0
      %11426 = vmatpush1.bf16.msra.mxu0 %v11213
      %11427 = vmatprep.subr.bf16.mxu0 0
      %11428 = vmatpush1.bf16.msra.mxu0 %v11214
      %11429 = vmatprep.subr.bf16.mxu0 0
      %11430 = vmatpush1.bf16.msra.mxu0 %v11215
      %11431 = vmatprep.subr.bf16.mxu0 0
      %11432 = vmatpush1.bf16.msra.mxu0 %v11216
      %11433 = vmatprep.mubr.bf16.mxu0 %v10759
      %11434 = vmatmul.mubr.bf16.gmra.mrb[0].mxu0 %v10758
      %v11435 = vpop.f32.mrb[0].mxu0
      %v11436 = vadd.f32 %v11396, %v11435
      %v11437 = vpop.f32.mrb[0].mxu0
      %v11438 = vpop.f32.mrb[0].mxu0
      %v11439 = vpop.f32.mrb[0].mxu0
      %11440 = vdwg.mxu0
      %v11441 = vpack.c.bf16 %v11436, %v11436
      %v11442 = vld [vmem:[%s584] sm:$0xf]
      %v11443 = vld [vmem:[%s584 + $0x4] sm:$0xf]
      %v11444 = vld [vmem:[%s584 + $0x8] sm:$0xf]
      %v11445 = vld [vmem:[%s584 + $0xc] sm:$0xf]
      %v11446 = vld [vmem:[%s587] sm:$0x1]
      %v11448 = vlaneseq
      %v11449 = vshrl.u32 %v11448, 7
      %v11450 = vsub.s32 0, %v11449
      %v11451 = vrot.slane %v11446, %v11450
      %v11457 = vunpack.c.l.b16 %v11442
      %v11458 = vunpack.c.l.b16 %v11443
      %v11459 = vunpack.c.l.b16 %v11444
      %v11460 = vunpack.c.l.b16 %v11445
      %v11461 = vpack.c.b16 %v11458, %v11457
      %v11462 = vpack.c.b16 %v11460, %v11459
      %v11466 = vsel %vm8199, %v11441, 0
      %11468 = vmatprep.subr.bf16.mxu0 0
      %11469 = vmatpush1.bf16.msra.mxu0 %v11461
      %11470 = vmatprep.subr.bf16.mxu0 0
      %11471 = vmatpush1.bf16.msra.mxu0 %v11462
      %11472 = vmatprep.subr.bf16.mxu0 0
      %11473 = vmatpush1.bf16.msra.mxu0 0
      %11474 = vmatprep.subr.bf16.mxu0 0
      %11475 = vmatpush1.bf16.msra.mxu0 0
      %11476 = vmatprep.subr.bf16.mxu0 0
      %11477 = vmatpush1.bf16.msra.mxu0 0
      %11478 = vmatprep.subr.bf16.mxu0 0
      %11479 = vmatpush1.bf16.msra.mxu0 0
      %11480 = vmatprep.subr.bf16.mxu0 0
      %11481 = vmatpush1.bf16.msra.mxu0 0
      %11482 = vmatprep.subr.bf16.mxu0 0
      %11483 = vmatpush1.bf16.msra.mxu0 0
      %11484 = vmatprep.subr.bf16.mxu0 0
      %11485 = vmatpush1.bf16.msra.mxu0 0
      %11486 = vmatprep.subr.bf16.mxu0 0
      %11487 = vmatpush1.bf16.msra.mxu0 0
      %11488 = vmatprep.subr.bf16.mxu0 0
      %11489 = vmatpush1.bf16.msra.mxu0 0
      %11490 = vmatprep.subr.bf16.mxu0 0
      %11491 = vmatpush1.bf16.msra.mxu0 0
      %11492 = vmatprep.subr.bf16.mxu0 0
      %11493 = vmatpush1.bf16.msra.mxu0 0
      %11494 = vmatprep.subr.bf16.mxu0 0
      %11495 = vmatpush1.bf16.msra.mxu0 0
      %11496 = vmatprep.subr.bf16.mxu0 0
      %11497 = vmatpush1.bf16.msra.mxu0 0
      %11498 = vmatprep.subr.bf16.mxu0 0
      %11499 = vmatpush1.bf16.msra.mxu0 0
      %11500 = vmatprep.mubr.bf16.mxu0 0
      %11501 = vmatmul.mubr.bf16.gmra.mrb[0].mxu0 %v11466
      %v11502 = vpop.f32.mrb[0].mxu0
      %v11503 = vadd.f32 %v11451, %v11502
      %v11504 = vpop.f32.mrb[0].mxu0
      %v11505 = vpop.f32.mrb[0].mxu0
      %v11506 = vpop.f32.mrb[0].mxu0
      %11507 = vdwg.mxu0
      %v11508 = vsel %vm941, %v11503, -inf
      %11509 = vmax.xlane.f32.xlu0 %v11508
      %v11510 = vpop.xlane.xlu0 %11509
      %v11511 = vsub.f32 %v11503, %v11510
      %v11512 = vmul.f32 %v11511, 1.442695
      %v11513 = vpow.pop %v11512
      %v11514 = vsel %vm941, %v11513, 0.0
      %11515 = vadd.xlane.f32.xlu0 %v11514
      %v11516 = vpop.xlane.xlu0 %11515
      %v11517 = vrcp.pop %v11516
      %v11518 = vmul.f32 %v11513, %v11517
      %11519 = vst [vmem:[%s591] sm:$0x3] %v11518
      %p11520 = scmp.lt.s32.totalorder %s24, 2
      %s11521 = scalar_select %p11520, %s24, 2
      %s11522 = smul.addr %s11521, 2
      %s11523 = scalar_lea.vmem %s13, %s11522
      // Predicated region
      $region73: #{conv_vcl_forward.3} parent=71 // pred_check
        %p11524 = pneg %p365
      $region74: #{conv_vcl_forward.3} parent=71 // pred_check_branch
        %11526 = sbr.rel (%p11524) target = $region76
      $region75: #{conv_vcl_forward.3} parent=71 // pred_region
        _
      $region76: #{conv_vcl_forward.3} parent=71 // pred_fallthru
        _
    $region72: #{conv_vcl_forward.3} parent=5 // pred_fallthru
      _
    %p11527 = scmp.le.s32.totalorder 2, %s19
    // Predicated region
    $region77: #{conv_vcl_forward.3} parent=5 // pred_check
      %p11528 = pneg %p11527
    $region78: #{conv_vcl_forward.3} parent=5 // pred_check_branch
      %11530 = sbr.rel (%p11528) target = $region80
    $region79: #{conv_vcl_forward.3} parent=5 // pred_region
      %s11531 = ssub.s32 %s19, 2
      // Predicated region
      $region81: #{conv_vcl_forward.3} parent=79 // pred_check
        %p11532 = pneg %p371
      $region82: #{conv_vcl_forward.3} parent=79 // pred_check_branch
        %11534 = sbr.rel (%p11532) target = $region84
      $region83: #{conv_vcl_forward.3} parent=79 // pred_region
        %p11535 = scmp.lt.s32.totalorder %s25, 2
        %s11536 = scalar_select %p11535, %s25, 2
        %s11537 = smul.addr %s11536, 2
        %s11538 = scalar_lea.vmem %s13, %s11537
      $region84: #{conv_vcl_forward.3} parent=79 // pred_fallthru
        _
    $region80: #{conv_vcl_forward.3} parent=5 // pred_fallthru
      _
  $region6: #{conv_vcl_forward.3} parent=0 // loop_footer
    %s23 = sadd.s32 1, %s19
  $region7: #{conv_vcl_forward.3} parent=0 // loop_footer_branch
    %18 = sbr.rel target = $region3
  $region8: #{conv_vcl_forward.3} parent=0 // loop_exit
    _

</llo_original>
